<compile_context>
chip_gen: v7x
topology: tpu7x:2x2x1
jax: 0.10.0
libtpu: 0.0.40
codegen_flags: <defaults>
</compile_context>

<pallas_src>
import functools

import jax
import jax.numpy as jnp
from jax import lax
from jax.experimental import pallas as pl
from jax.experimental.pallas import tpu as pltpu


# ----------------------------------------------------------------------------
# chip-gated VMEM budgets
# ----------------------------------------------------------------------------
@functools.lru_cache(maxsize=None)
def _vmem_budgets():
    """(scoped vmem_limit_bytes, per-invocation tile working-set budget)."""
    try:
        phys = int(pltpu.get_tpu_info().vmem_capacity_bytes)
    except Exception:
        phys = 64 * 1024 * 1024
    if phys >= 128 * 1024 * 1024:          # v5e / v6e: 128 MiB physical VMEM
        return 96 * 1024 * 1024, 24 * 1024 * 1024
    # v7x: only 64 MiB physical per TensorCore -> keep the scoped limit modest.
    return 32 * 1024 * 1024, 14 * 1024 * 1024


def _pick_row_tile(h, n_batch, per_row_bytes, fixed_bytes, budget, forced=None):
    """Largest divisor of `h` whose working set fits the VMEM budget.

    Also guarantees the (N, nH) parallel grid has >= 2 points when possible so
    both v7x TensorCores get work (cheap no-op cost on v5e/v6e).
    """
    if forced is not None:
        assert h % forced == 0, (h, forced)
        return forced
    best = 1
    for cand in range(1, h + 1):
        if h % cand == 0 and fixed_bytes + cand * per_row_bytes <= budget:
            best = cand
    # TODO(synk): add a W-tile grid axis (with halo columns) instead of letting
    #             this collapse to TH=1 when a single row exceeds the budget.
    if n_batch * (h // best) < 2:
        for cand in range(best - 1, 0, -1):
            if h % cand == 0:
                best = cand
                break
    return best


def _block_map_nh(n, h):
    return (n, h, 0, 0)


def _halo_top_map(n, h, *, th):
    # single row just above the tile (clamped; masked out in-kernel at h == 0)
    return (n, jnp.maximum(h * th - 1, 0), 0, 0)


def _halo_bot_map(n, h, *, th, last_row):
    # single row just below the tile (clamped; masked out at the last tile)
    return (n, jnp.minimum((h + 1) * th, last_row), 0, 0)


# ----------------------------------------------------------------------------
# Kernel 1: ConvTranspose2d(k=2, s=2) with depth-to-space fused in.
#   x_ref : (1, TH, W, Cin)        bf16 input rows
#   w_ref : (Cin, 4*Cout)          bf16; columns ordered (kh, kw, c)
#   b_ref : (1, 4*Cout)            f32 bias tiled over (kh, kw)
#   o_ref : (1, TH, 2, W, 2*Cout)  dim 2 = kh, lanes = (kw, c).  Row-major order
#                                  equals (1, 2*TH, 2*W, Cout) -> free reshape.
# ----------------------------------------------------------------------------
def _upconv2x2_kernel(x_ref, w_ref, b_ref, o_ref):
    _, TH, W, Cin = x_ref.shape
    C2 = o_ref.shape[-1]                       # 2 * Cout (lanes = kw, c)
    # (TH, W, Cin) -> (TH*W, Cin): layout-free when W % 8 == 0.
    x2d = x_ref[0].reshape(TH * W, Cin)
    # single MXU push: M = TH*W, K = Cin, N = 4*Cout (fills the 256-wide MXU)
    y = jnp.dot(x2d, w_ref[...], preferred_element_type=jnp.float32) + b_ref[...]
    y = y.reshape(TH, W, 2 * C2).astype(o_ref.dtype)
    # lane halves -> the kh = 0 / 1 depth-to-space planes.
    o_ref[:, :, 0:1, :, :] = y[:, :, 0:C2].reshape(1, TH, 1, W, C2)
    o_ref[:, :, 1:2, :, :] = y[:, :, C2:2 * C2].reshape(1, TH, 1, W, C2)


def _upconv2x2_ds(x_nhwc, w_up, b_up, out_dtype, row_tile=None):
    N, H, W, Cin = x_nhwc.shape
    C4 = w_up.shape[-1]                        # 4 * Cout
    C2 = C4 // 2
    Cout = C2 // 2
    out_isz = jnp.dtype(out_dtype).itemsize

    vmem_limit, budget = _vmem_budgets()
    per_row = (2 * W * Cin * 2                 # dbl-buffered input rows (bf16)
               + 2 * 2 * W * C2 * out_isz      # dbl-buffered output rows
               + W * C4 * 4 + W * C4 * 2)      # f32 dot result + bf16 cast temp
    fixed = 2 * Cin * C4 * 2 + (1 << 16)
    TH = _pick_row_tile(H, N, per_row, fixed, budget, row_tile)
    nH = H // TH

    flops = 2 * N * H * W * Cin * C4
    bytes_accessed = (x_nhwc.size * x_nhwc.dtype.itemsize
                      + N * H * 2 * W * C2 * out_isz
                      + w_up.size * w_up.dtype.itemsize
                      + b_up.size * b_up.dtype.itemsize)

    out6 = pl.pallas_call(
        _upconv2x2_kernel,
        out_shape=jax.ShapeDtypeStruct((N, H, 2, W, C2), out_dtype),
        grid=(N, nH),
        in_specs=[
            pl.BlockSpec((1, TH, W, Cin), _block_map_nh),
            pl.BlockSpec(w_up.shape, lambda n, h: (0, 0)),
            pl.BlockSpec(b_up.shape, lambda n, h: (0, 0)),
        ],
        out_specs=pl.BlockSpec((1, TH, 2, W, C2), lambda n, h: (n, h, 0, 0, 0)),
        compiler_params=pltpu.CompilerParams(
            dimension_semantics=("parallel", "parallel"),
            vmem_limit_bytes=vmem_limit),
        cost_estimate=pl.CostEstimate(flops=int(flops), transcendentals=0,
                                      bytes_accessed=int(bytes_accessed)),
    )(x_nhwc, w_up, b_up)
    # (N, H, 2, W, 2*Cout) -> (N, 2H, 2W, Cout): identical row-major order, so
    # this reshape is data-movement free.
    return out6.reshape(N, 2 * H, 2 * W, Cout)


# ----------------------------------------------------------------------------
# Kernel 2: fused conv3x3 (pad=1) + folded BN + ReLU.
# The logical channel concat of several inputs ("parts") is fused by writing
# each part into a channel slice of ONE zero-padded (TH+2, Wp, Ctot) VMEM
# window (Wp = W+2 rounded up to a multiple of 8).  The 1-row halo above/below
# a tile arrives through extra BlockSpecs; borders are zeroed in-kernel.
# Per kh, one MXU dot of the contiguous row slab against a kw-batched
# (Ctot, 3*Cout) weight; the 3 kw taps are added from slices of the result and
# the accumulator is updated once per kh (first kh assigns).
# TODO(synk): when Cout < 128, fold a factor of W into the lane axis of the
#             output block so the epilogue stores are lane-dense.
# ----------------------------------------------------------------------------
def _make_conv3x3_bn_relu_kernel(part_channels):
    n_parts = len(part_channels)
    c_off = []
    off = 0
    for c in part_channels:
        c_off.append(off)
        off += c

    def kernel(*refs):
        data_refs = refs[:3 * n_parts]            # (mid, top, bot) per part
        w_ref = refs[3 * n_parts]                 # (3, Ctot, 3*Cout) bf16
        s_ref = refs[3 * n_parts + 1]             # (1, Cout) f32
        b_ref = refs[3 * n_parts + 2]             # (1, Cout) f32
        o_ref = refs[3 * n_parts + 3]             # (1, TH, W, Cout)
        win_ref = refs[3 * n_parts + 4]           # (TH+2, Wp, Ctot) scratch

        _, TH, W, _ = data_refs[0].shape
        Cout = o_ref.shape[-1]
        Wp = win_ref.shape[1]
        Ctot = win_ref.shape[-1]
        dt = win_ref.dtype
        h = pl.program_id(1)
        nh = pl.num_programs(1)

        # --- build the zero-padded window; only the border is (re)zeroed ---
        win_ref[:, 0:1, :] = jnp.zeros((TH + 2, 1, Ctot), dt)
        win_ref[:, W + 1:Wp, :] = jnp.zeros((TH + 2, Wp - W - 1, Ctot), dt)

        @pl.when(h == 0)
        def _():
            win_ref[0:1, 1:W + 1, :] = jnp.zeros((1, W, Ctot), dt)

        @pl.when(h == nh - 1)
        def _():
            win_ref[TH + 1:TH + 2, 1:W + 1, :] = jnp.zeros((1, W, Ctot), dt)

        for p in range(n_parts):
            mid_ref, top_ref, bot_ref = data_refs[3 * p:3 * p + 3]
            c0, c1 = c_off[p], c_off[p] + part_channels[p]
            win_ref[1:TH + 1, 1:W + 1, c0:c1] = mid_ref[0]

            @pl.when(h > 0)
            def _():
                win_ref[0:1, 1:W + 1, c0:c1] = top_ref[0]

            @pl.when(h < nh - 1)
            def _():
                win_ref[TH + 1:TH + 2, 1:W + 1, c0:c1] = bot_ref[0]

        # --- 3 kh-dots, kw batched along the MXU N dimension ---
        acc = None
        for kh in range(3):
            # contiguous leading-dim slice; collapse is layout-free (Wp % 8 == 0)
            rows = win_ref[kh:kh + TH, :, :].reshape(TH * Wp, Ctot)
            y = jnp.dot(rows, w_ref[kh],
                        preferred_element_type=jnp.float32)
            y = y.reshape(TH, Wp, 3 * Cout)
            contrib = (y[:, 0:W, 0:Cout]
                       + y[:, 1:W + 1, Cout:2 * Cout]
                       + y[:, 2:W + 2, 2 * Cout:3 * Cout])
            acc = contrib if acc is None else acc + contrib

        # Folded BN + ReLU epilogue in f32, cast only at the store.
        out = jnp.maximum(acc * s_ref[0] + b_ref[0], 0.0)
        o_ref[...] = out.reshape(1, TH, W, Cout).astype(o_ref.dtype)

    return kernel


def _conv3x3_bn_relu(parts, w_cat, scale, bias, out_dtype, row_tile=None):
    N, H, W, _ = parts[0].shape
    Cout = int(scale.shape[-1])
    part_channels = tuple(int(p.shape[-1]) for p in parts)
    c_sum = sum(part_channels)
    out_isz = jnp.dtype(out_dtype).itemsize
    Wp = ((W + 2 + 7) // 8) * 8

    vmem_limit, budget = _vmem_budgets()
    per_row = (2 * W * c_sum * 2                 # dbl-buffered input rows
               + 2 * W * Cout * out_isz          # dbl-buffered output rows
               + Wp * c_sum * 2                  # window scratch
               + Wp * 3 * Cout * 4               # per-kh dot result (f32)
               + 2 * W * Cout * 4)               # accumulator temps (f32)
    fixed = (2 * 9 * c_sum * Cout * 2            # kw-batched weights (dbuf)
             + 8 * W * c_sum * 2                 # halo rows (2 halos, dbuf)
             + 2 * Wp * c_sum * 2                # window pad rows
             + (1 << 16))                        # slack
    TH = _pick_row_tile(H, N, per_row, fixed, budget, row_tile)
    nH = H // TH

    in_specs, operands = [], []
    for x in parts:
        C = int(x.shape[-1])
        in_specs += [
            pl.BlockSpec((1, TH, W, C), _block_map_nh),
            pl.BlockSpec((1, 1, W, C),
                         functools.partial(_halo_top_map, th=TH)),
            pl.BlockSpec((1, 1, W, C),
                         functools.partial(_halo_bot_map, th=TH,
                                           last_row=H - 1)),
        ]
        operands += [x, x, x]
    in_specs.append(pl.BlockSpec(w_cat.shape, lambda n, h: (0, 0, 0)))
    in_specs.append(pl.BlockSpec(scale.shape, lambda n, h: (0, 0)))
    in_specs.append(pl.BlockSpec(bias.shape, lambda n, h: (0, 0)))
    operands += [w_cat, scale, bias]

    scratch_shapes = [pltpu.VMEM((TH + 2, Wp, c_sum), parts[0].dtype)]

    flops = 2 * N * H * Wp * 9 * c_sum * Cout
    bytes_accessed = (sum(int(p.size) * p.dtype.itemsize for p in parts)
                      + N * H * W * Cout * out_isz
                      + int(w_cat.size) * w_cat.dtype.itemsize)

    return pl.pallas_call(
        _make_conv3x3_bn_relu_kernel(part_channels),
        out_shape=jax.ShapeDtypeStruct((N, H, W, Cout), out_dtype),
        grid=(N, nH),
        in_specs=in_specs,
        out_specs=pl.BlockSpec((1, TH, W, Cout), _block_map_nh),
        scratch_shapes=scratch_shapes,
        compiler_params=pltpu.CompilerParams(
            dimension_semantics=("parallel", "parallel"),
            vmem_limit_bytes=vmem_limit),
        cost_estimate=pl.CostEstimate(flops=int(flops), transcendentals=0,
                                      bytes_accessed=int(bytes_accessed)),
    )(*operands)


# ----------------------------------------------------------------------------
# Parameters (mirror nn.Module __init__) + one-time layout/BN-fold prep.
# ----------------------------------------------------------------------------
def init_decoder_block_params(key, in_channels, out_channels):
    ks = jax.random.split(key, 6)
    p = {}
    # ConvTranspose2d(in, out, 2, 2): weight (Cin, Cout, 2, 2)
    p["up_w"] = 0.1 * jax.random.normal(ks[0], (in_channels, out_channels, 2, 2),
                                        jnp.float32)
    p["up_b"] = 0.1 * jax.random.normal(ks[1], (out_channels,), jnp.float32)
    # ConvBlock(out*2, out): conv weights OIHW
    c_in1 = out_channels * 2
    p["conv1_w"] = 0.1 * jax.random.normal(ks[2], (out_channels, c_in1, 3, 3),
                                           jnp.float32)
    p["conv1_b"] = 0.1 * jax.random.normal(ks[3], (out_channels,), jnp.float32)
    p["conv2_w"] = 0.1 * jax.random.normal(ks[4], (out_channels, out_channels, 3, 3),
                                           jnp.float32)
    p["conv2_b"] = 0.1 * jax.random.normal(ks[5], (out_channels,), jnp.float32)
    return p


def _fold_bn(conv_bias, cout, eps=1e-5, gamma=None, beta=None, mean=None, var=None):
    # Defaults match a fresh BatchNorm2d in eval mode; real running stats /
    # affine params can be plumbed through the optional args.
    gamma = jnp.ones((cout,), jnp.float32) if gamma is None else gamma
    beta = jnp.zeros((cout,), jnp.float32) if beta is None else beta
    mean = jnp.zeros((cout,), jnp.float32) if mean is None else mean
    var = jnp.ones((cout,), jnp.float32) if var is None else var
    scale = gamma / jnp.sqrt(var + eps)
    bias = beta + (conv_bias - mean) * scale
    return scale, bias


def prepare_decoder_block_params(params, eps=1e-5):
    """One-time weight relayout + BN fold (hoisted out of the forward path)."""
    bf16 = jnp.bfloat16
    cin, cout = params["up_w"].shape[0], params["up_w"].shape[1]
    # ConvTranspose2d weight (Cin, Cout, kh, kw) -> (Cin, 4*Cout), cols = (kh, kw, c):
    # one MXU dot per tile, depth-to-space handled by lane-half stores.
    up_w = jnp.transpose(params["up_w"], (0, 2, 3, 1)).reshape(cin, 4 * cout)
    up_b = jnp.tile(params["up_b"], 4).reshape(1, 4 * cout).astype(jnp.float32)

    def conv_w_kh_major(w_oihw):
        # (O, I, kh, kw) -> (kh, I, kw, O) -> (3, I, 3*O): per kh one dot with
        # K = I (full concat width) and N = 3*O (kw batched along MXU N).
        o, i = w_oihw.shape[0], w_oihw.shape[1]
        return jnp.transpose(w_oihw, (2, 1, 3, 0)).reshape(3, i, 3 * o)

    # conv1 input channels are ordered [skip, up] == torch.cat([skip, x], dim=1),
    # which matches the window channel layout, so no weight splitting is needed.
    w1 = conv_w_kh_major(params["conv1_w"])
    w2 = conv_w_kh_major(params["conv2_w"])

    s1, b1 = _fold_bn(params["conv1_b"], cout, eps)
    s2, b2 = _fold_bn(params["conv2_b"], cout, eps)
    return dict(
        up_w=up_w.astype(bf16), up_b=up_b,
        w1=w1.astype(bf16), w2=w2.astype(bf16),
        s1=s1.reshape(1, cout), b1=b1.reshape(1, cout),
        s2=s2.reshape(1, cout), b2=b2.reshape(1, cout),
    )


# ----------------------------------------------------------------------------
# DecoderBlock forward (NCHW public API).
# ----------------------------------------------------------------------------
@functools.partial(jax.jit, static_argnames=("conv_row_tile", "up_row_tile"))
def decoder_block_forward(prep, x_nchw, skip_nchw, *, conv_row_tile=None,
                          up_row_tile=None):
    bf16 = jnp.bfloat16
    x = jnp.transpose(x_nchw, (0, 2, 3, 1)).astype(bf16)        # NHWC
    skip = jnp.transpose(skip_nchw, (0, 2, 3, 1)).astype(bf16)  # NHWC

    # ConvTranspose2d(k=2, s=2) with depth-to-space fused in-kernel.
    up = _upconv2x2_ds(x, prep["up_w"], prep["up_b"], bf16, up_row_tile)

    # F.pad to match the skip connection (rare 1-pixel fixup).
    # TODO(synk): negative diffY/diffX (cropping) is not handled.
    if up.shape[1:3] != skip.shape[1:3]:
        dY = skip.shape[1] - up.shape[1]
        dX = skip.shape[2] - up.shape[2]
        up = jnp.pad(up, ((0, 0), (dY // 2, dY - dY // 2),
                          (dX // 2, dX - dX // 2), (0, 0)))

    # conv1: channel-concat of (skip, up) fused into the conv window.
    h1 = _conv3x3_bn_relu([skip, up], prep["w1"], prep["s1"], prep["b1"],
                          bf16, conv_row_tile)
    # conv2: bf16 writeback; the f32 cast happens after the cheap transpose.
    # TODO(synk): fuse conv1+conv2 (2-row halo) to skip one HBM round trip on v5e/v6e.
    h2 = _conv3x3_bn_relu([h1], prep["w2"], prep["s2"], prep["b2"],
                          bf16, conv_row_tile)
    return jnp.transpose(h2, (0, 3, 1, 2)).astype(jnp.float32)  # back to NCHW


# ----------------------------------------------------------------------------
# Pure-JAX reference (same bf16 rounding points) for correctness checking.
# ----------------------------------------------------------------------------
def _reference_forward(params, x_nchw, skip_nchw):
    f32, bf = jnp.float32, jnp.bfloat16
    x = jnp.transpose(x_nchw, (0, 2, 3, 1)).astype(bf).astype(f32)
    skip = jnp.transpose(skip_nchw, (0, 2, 3, 1)).astype(bf).astype(f32)

    w_up = params["up_w"].astype(bf).astype(f32)                 # (Cin,Cout,2,2)
    up6 = jnp.einsum("nhwi,iojk->nhjwko", x, w_up)               # (N,H,2,W,2,Co)
    N, H, _, W, _, Cout = up6.shape
    up = up6.reshape(N, 2 * H, 2 * W, Cout) + params["up_b"]
    up = up.astype(bf).astype(f32)

    if up.shape[1:3] != skip.shape[1:3]:
        dY = skip.shape[1] - up.shape[1]
        dX = skip.shape[2] - up.shape[2]
        up = jnp.pad(up, ((0, 0), (dY // 2, dY - dY // 2),
                          (dX // 2, dX - dX // 2), (0, 0)))
    cat = jnp.concatenate([skip, up], axis=-1)

    def conv_bn_relu(xi, w_oihw, conv_b):
        w = jnp.transpose(w_oihw, (2, 3, 1, 0)).astype(bf).astype(f32)
        y = lax.conv_general_dilated(xi, w, (1, 1), ((1, 1), (1, 1)),
                                     dimension_numbers=("NHWC", "HWIO", "NHWC"))
        s, b = _fold_bn(conv_b, w.shape[-1])
        return jnp.maximum(y * s + b, 0.0)

    h1 = conv_bn_relu(cat, params["conv1_w"], params["conv1_b"]).astype(bf).astype(f32)
    h2 = conv_bn_relu(h1, params["conv2_w"], params["conv2_b"])
    return jnp.transpose(h2, (0, 3, 1, 2))


if __name__ == "__main__":
    key = jax.random.PRNGKey(0)
    k_param, k_x, k_skip = jax.random.split(key, 3)

    in_channels, out_channels = 8, 4
    N, H, W = 2, 8, 8

    params = init_decoder_block_params(k_param, in_channels, out_channels)
    prep = prepare_decoder_block_params(params)

    x = jax.random.normal(k_x, (N, in_channels, H, W), jnp.float32)          # NCHW
    skip = jax.random.normal(k_skip, (N, out_channels, 2 * H, 2 * W), jnp.float32)

    ref = _reference_forward(params, x, skip)

    # 1) default (auto row tiles -> single-tile grids at these toy sizes)
    out = jax.block_until_ready(decoder_block_forward(prep, x, skip))
    assert out.shape == (N, out_channels, 2 * H, 2 * W), out.shape
    assert bool(jnp.all(jnp.isfinite(out)))
    assert jnp.allclose(out, ref, rtol=5e-2, atol=5e-2), \
        float(jnp.max(jnp.abs(out - ref)))

    # 2) force multi-tile grids so the row-tiling + halo path is exercised
    out_tiled = jax.block_until_ready(
        decoder_block_forward(prep, x, skip, conv_row_tile=4, up_row_tile=2))
    assert jnp.allclose(out_tiled, ref, rtol=5e-2, atol=5e-2), \
        float(jnp.max(jnp.abs(out_tiled - ref)))

    print("KERNEL_OK")
</pallas_src>

<mosaic_0001>
module attributes {stable_mosaic.version = 11 : i64} {
  func.func @_upconv2x2_kernel(%arg0: i32, %arg1: i32, %arg2: memref<1x8x8x8xbf16, #tpu.memory_space<vmem>>, %arg3: memref<8x16xbf16, #tpu.memory_space<vmem>>, %arg4: memref<1x16xf32, #tpu.memory_space<vmem>>, %arg5: memref<1x8x2x8x8xbf16, #tpu.memory_space<vmem>>) attributes {dimension_semantics = [#tpu.dimension_semantics<parallel>, #tpu.dimension_semantics<parallel>], iteration_bounds = array<i64: 2, 1>, scalar_prefetch = 0 : i64, scratch_operands = 0 : i64, tpu.core_type = #tpu.core_type<tc>, window_params = [{transform_indices = @transform_0, window_bounds = array<i64: 1, 8, 8, 8>}, {pipeline_mode = #tpu.pipeline_mode<synchronous>, transform_indices = @transform_1, window_bounds = array<i64: 8, 16>}, {pipeline_mode = #tpu.pipeline_mode<synchronous>, transform_indices = @transform_2, window_bounds = array<i64: 1, 16>}, {transform_indices = @transform_3, window_bounds = array<i64: 1, 8, 2, 8, 8>}]} {
    %c0 = arith.constant 0 : index
    %c0_0 = arith.constant 0 : index
    %c0_1 = arith.constant 0 : index
    %c0_2 = arith.constant 0 : index
    %0 = vector.load %arg2[%c0, %c0_0, %c0_1, %c0_2] : memref<1x8x8x8xbf16, #tpu.memory_space<vmem>>, vector<1x8x8x8xbf16>
    %1 = vector.shape_cast %0 : vector<1x8x8x8xbf16> to vector<8x8x8xbf16>
    %2 = vector.shape_cast %1 : vector<8x8x8xbf16> to vector<64x8xbf16>
    %c0_3 = arith.constant 0 : index
    %c0_4 = arith.constant 0 : index
    %3 = vector.load %arg3[%c0_3, %c0_4] : memref<8x16xbf16, #tpu.memory_space<vmem>>, vector<8x16xbf16>
    %cst = arith.constant dense<0.000000e+00> : vector<64x16xf32>
    %4 = tpu.matmul %2, %3, %cst {dimension_numbers = #tpu.dot_dimension_numbers<[1], [0], [0], [1], [0, 0, 1, 1], [], []>} : vector<64x8xbf16>, vector<8x16xbf16>, vector<64x16xf32> -> vector<64x16xf32>
    %c0_5 = arith.constant 0 : index
    %c0_6 = arith.constant 0 : index
    %5 = vector.load %arg4[%c0_5, %c0_6] : memref<1x16xf32, #tpu.memory_space<vmem>>, vector<1x16xf32>
    %6 = vector.broadcast %5 : vector<1x16xf32> to vector<64x16xf32>
    %7 = arith.addf %4, %6 : vector<64x16xf32>
    %8 = vector.shape_cast %7 : vector<64x16xf32> to vector<8x8x16xf32>
    %9 = arith.truncf %8 : vector<8x8x16xf32> to vector<8x8x16xbf16>
    %10 = vector.extract_strided_slice %9 {offsets = [0, 0, 0], sizes = [8, 8, 8], strides = [1, 1, 1]} : vector<8x8x16xbf16> to vector<8x8x8xbf16>
    %11 = vector.shape_cast %10 : vector<8x8x8xbf16> to vector<1x8x1x8x8xbf16>
    %c0_7 = arith.constant 0 : index
    %c0_8 = arith.constant 0 : index
    %c0_9 = arith.constant 0 : index
    %c0_10 = arith.constant 0 : index
    %c0_11 = arith.constant 0 : index
    %12 = vector.load %arg5[%c0_7, %c0_8, %c0_9, %c0_10, %c0_11] : memref<1x8x2x8x8xbf16, #tpu.memory_space<vmem>>, vector<1x8x1x8x8xbf16>
    tpu.vector_store %arg5[%c0_7, %c0_8, %c0_9, %c0_10, %c0_11], %11 {strides = array<i32>} : memref<1x8x2x8x8xbf16, #tpu.memory_space<vmem>>, vector<1x8x1x8x8xbf16>,
    %13 = vector.extract_strided_slice %9 {offsets = [0, 0, 8], sizes = [8, 8, 8], strides = [1, 1, 1]} : vector<8x8x16xbf16> to vector<8x8x8xbf16>
    %14 = vector.shape_cast %13 : vector<8x8x8xbf16> to vector<1x8x1x8x8xbf16>
    %c0_12 = arith.constant 0 : index
    %c0_13 = arith.constant 0 : index
    %c1 = arith.constant 1 : index
    %c0_14 = arith.constant 0 : index
    %c0_15 = arith.constant 0 : index
    %15 = vector.load %arg5[%c0_12, %c0_13, %c1, %c0_14, %c0_15] : memref<1x8x2x8x8xbf16, #tpu.memory_space<vmem>>, vector<1x8x1x8x8xbf16>
    tpu.vector_store %arg5[%c0_12, %c0_13, %c1, %c0_14, %c0_15], %14 {strides = array<i32>} : memref<1x8x2x8x8xbf16, #tpu.memory_space<vmem>>, vector<1x8x1x8x8xbf16>,
    return
  }
  func.func @transform_0(%arg0: i32, %arg1: i32) -> (i32, i32, i32, i32) {
    %c0_i32 = arith.constant 0 : i32
    %c0_i32_0 = arith.constant 0 : i32
    %c0_i32_1 = arith.constant 0 : i32
    return %arg0, %arg1, %c0_i32, %c0_i32_0 : i32, i32, i32, i32
  }
  func.func @transform_1(%arg0: i32, %arg1: i32) -> (i32, i32) {
    %c0_i32 = arith.constant 0 : i32
    %c0_i32_0 = arith.constant 0 : i32
    %c0_i32_1 = arith.constant 0 : i32
    return %c0_i32, %c0_i32_0 : i32, i32
  }
  func.func @transform_2(%arg0: i32, %arg1: i32) -> (i32, i32) {
    %c0_i32 = arith.constant 0 : i32
    %c0_i32_0 = arith.constant 0 : i32
    %c0_i32_1 = arith.constant 0 : i32
    return %c0_i32, %c0_i32_0 : i32, i32
  }
  func.func @transform_3(%arg0: i32, %arg1: i32) -> (i32, i32, i32, i32, i32) {
    %c0_i32 = arith.constant 0 : i32
    %c0_i32_0 = arith.constant 0 : i32
    %c0_i32_1 = arith.constant 0 : i32
    %c0_i32_2 = arith.constant 0 : i32
    return %arg0, %arg1, %c0_i32, %c0_i32_0, %c0_i32_1 : i32, i32, i32, i32, i32
  }
}

module attributes {stable_mosaic.version = 11 : i64} {
  func.func @kernel(%arg0: i32, %arg1: i32, %arg2: memref<1x16x16x4xbf16, #tpu.memory_space<vmem>>, %arg3: memref<1x1x16x4xbf16, #tpu.memory_space<vmem>>, %arg4: memref<1x1x16x4xbf16, #tpu.memory_space<vmem>>, %arg5: memref<1x16x16x4xbf16, #tpu.memory_space<vmem>>, %arg6: memref<1x1x16x4xbf16, #tpu.memory_space<vmem>>, %arg7: memref<1x1x16x4xbf16, #tpu.memory_space<vmem>>, %arg8: memref<3x8x12xbf16, #tpu.memory_space<vmem>>, %arg9: memref<1x4xf32, #tpu.memory_space<vmem>>, %arg10: memref<1x4xf32, #tpu.memory_space<vmem>>, %arg11: memref<1x16x16x4xbf16, #tpu.memory_space<vmem>>, %arg12: memref<18x24x8xbf16, #tpu.memory_space<vmem>>) attributes {dimension_semantics = [#tpu.dimension_semantics<parallel>, #tpu.dimension_semantics<parallel>], iteration_bounds = array<i64: 2, 1>, scalar_prefetch = 0 : i64, scratch_operands = 1 : i64, tpu.core_type = #tpu.core_type<tc>, window_params = [{transform_indices = @transform_0, window_bounds = array<i64: 1, 16, 16, 4>}, {transform_indices = @transform_1, window_bounds = array<i64: 1, 1, 16, 4>}, {transform_indices = @transform_2, window_bounds = array<i64: 1, 1, 16, 4>}, {transform_indices = @transform_3, window_bounds = array<i64: 1, 16, 16, 4>}, {transform_indices = @transform_4, window_bounds = array<i64: 1, 1, 16, 4>}, {transform_indices = @transform_5, window_bounds = array<i64: 1, 1, 16, 4>}, {pipeline_mode = #tpu.pipeline_mode<synchronous>, transform_indices = @transform_6, window_bounds = array<i64: 3, 8, 12>}, {pipeline_mode = #tpu.pipeline_mode<synchronous>, transform_indices = @transform_7, window_bounds = array<i64: 1, 4>}, {pipeline_mode = #tpu.pipeline_mode<synchronous>, transform_indices = @transform_8, window_bounds = array<i64: 1, 4>}, {transform_indices = @transform_9, window_bounds = array<i64: 1, 16, 16, 4>}]} {
    %cst = arith.constant 0.000000e+00 : bf16
    %0 = vector.broadcast %cst : bf16 to vector<18x1x8xbf16>
    %c0 = arith.constant 0 : index
    %c0_0 = arith.constant 0 : index
    %c0_1 = arith.constant 0 : index
    %1 = vector.load %arg12[%c0, %c0_0, %c0_1] : memref<18x24x8xbf16, #tpu.memory_space<vmem>>, vector<18x1x8xbf16>
    tpu.vector_store %arg12[%c0, %c0_0, %c0_1], %0 {strides = array<i32>} : memref<18x24x8xbf16, #tpu.memory_space<vmem>>, vector<18x1x8xbf16>,
    %cst_2 = arith.constant 0.000000e+00 : bf16
    %2 = vector.broadcast %cst_2 : bf16 to vector<18x7x8xbf16>
    %c0_3 = arith.constant 0 : index
    %c17 = arith.constant 17 : index
    %c0_4 = arith.constant 0 : index
    %3 = vector.load %arg12[%c0_3, %c17, %c0_4] : memref<18x24x8xbf16, #tpu.memory_space<vmem>>, vector<18x7x8xbf16>
    tpu.vector_store %arg12[%c0_3, %c17, %c0_4], %2 {strides = array<i32>} : memref<18x24x8xbf16, #tpu.memory_space<vmem>>, vector<18x7x8xbf16>,
    %c0_i32 = arith.constant 0 : i32
    %4 = arith.cmpi eq, %arg1, %c0_i32 : i32
    %5 = arith.extui %4 : i1 to i32
    %c0_i32_5 = arith.constant 0 : i32
    %6 = arith.cmpi ne, %5, %c0_i32_5 : i32
    scf.if %6 {
      %cst_57 = arith.constant 0.000000e+00 : bf16
      %78 = vector.broadcast %cst_57 : bf16 to vector<1x16x8xbf16>
      %c0_58 = arith.constant 0 : index
      %c1_59 = arith.constant 1 : index
      %c0_60 = arith.constant 0 : index
      %79 = vector.load %arg12[%c0_58, %c1_59, %c0_60] : memref<18x24x8xbf16, #tpu.memory_space<vmem>>, vector<1x16x8xbf16>
      tpu.vector_store %arg12[%c0_58, %c1_59, %c0_60], %78 {strides = array<i32>} : memref<18x24x8xbf16, #tpu.memory_space<vmem>>, vector<1x16x8xbf16>,
    } else {
    }
    %c0_i32_6 = arith.constant 0 : i32
    %7 = arith.cmpi eq, %arg1, %c0_i32_6 : i32
    %8 = arith.extui %7 : i1 to i32
    %c0_i32_7 = arith.constant 0 : i32
    %9 = arith.cmpi ne, %8, %c0_i32_7 : i32
    scf.if %9 {
      %cst_57 = arith.constant 0.000000e+00 : bf16
      %78 = vector.broadcast %cst_57 : bf16 to vector<1x16x8xbf16>
      %c17_58 = arith.constant 17 : index
      %c1_59 = arith.constant 1 : index
      %c0_60 = arith.constant 0 : index
      %79 = vector.load %arg12[%c17_58, %c1_59, %c0_60] : memref<18x24x8xbf16, #tpu.memory_space<vmem>>, vector<1x16x8xbf16>
      tpu.vector_store %arg12[%c17_58, %c1_59, %c0_60], %78 {strides = array<i32>} : memref<18x24x8xbf16, #tpu.memory_space<vmem>>, vector<1x16x8xbf16>,
    } else {
    }
    %c0_8 = arith.constant 0 : index
    %c0_9 = arith.constant 0 : index
    %c0_10 = arith.constant 0 : index
    %c0_11 = arith.constant 0 : index
    %10 = vector.load %arg2[%c0_8, %c0_9, %c0_10, %c0_11] : memref<1x16x16x4xbf16, #tpu.memory_space<vmem>>, vector<1x16x16x4xbf16>
    %11 = vector.shape_cast %10 : vector<1x16x16x4xbf16> to vector<16x16x4xbf16>
    %c1 = arith.constant 1 : index
    %c1_12 = arith.constant 1 : index
    %c0_13 = arith.constant 0 : index
    %12 = vector.load %arg12[%c1, %c1_12, %c0_13] : memref<18x24x8xbf16, #tpu.memory_space<vmem>>, vector<16x16x4xbf16>
    tpu.vector_store %arg12[%c1, %c1_12, %c0_13], %11 {strides = array<i32>} : memref<18x24x8xbf16, #tpu.memory_space<vmem>>, vector<16x16x4xbf16>,
    %c0_i32_14 = arith.constant 0 : i32
    %13 = arith.cmpi sgt, %arg1, %c0_i32_14 : i32
    %14 = arith.extui %13 : i1 to i32
    %c0_i32_15 = arith.constant 0 : i32
    %15 = arith.cmpi ne, %14, %c0_i32_15 : i32
    scf.if %15 {
      %c0_57 = arith.constant 0 : index
      %c0_58 = arith.constant 0 : index
      %c0_59 = arith.constant 0 : index
      %c0_60 = arith.constant 0 : index
      %78 = vector.load %arg3[%c0_57, %c0_58, %c0_59, %c0_60] : memref<1x1x16x4xbf16, #tpu.memory_space<vmem>>, vector<1x1x16x4xbf16>
      %79 = vector.shape_cast %78 : vector<1x1x16x4xbf16> to vector<1x16x4xbf16>
      %c0_61 = arith.constant 0 : index
      %c1_62 = arith.constant 1 : index
      %c0_63 = arith.constant 0 : index
      %80 = vector.load %arg12[%c0_61, %c1_62, %c0_63] : memref<18x24x8xbf16, #tpu.memory_space<vmem>>, vector<1x16x4xbf16>
      tpu.vector_store %arg12[%c0_61, %c1_62, %c0_63], %79 {strides = array<i32>} : memref<18x24x8xbf16, #tpu.memory_space<vmem>>, vector<1x16x4xbf16>,
    } else {
    }
    %c0_i32_16 = arith.constant 0 : i32
    %16 = arith.cmpi slt, %arg1, %c0_i32_16 : i32
    %17 = arith.extui %16 : i1 to i32
    %c0_i32_17 = arith.constant 0 : i32
    %18 = arith.cmpi ne, %17, %c0_i32_17 : i32
    scf.if %18 {
      %c0_57 = arith.constant 0 : index
      %c0_58 = arith.constant 0 : index
      %c0_59 = arith.constant 0 : index
      %c0_60 = arith.constant 0 : index
      %78 = vector.load %arg4[%c0_57, %c0_58, %c0_59, %c0_60] : memref<1x1x16x4xbf16, #tpu.memory_space<vmem>>, vector<1x1x16x4xbf16>
      %79 = vector.shape_cast %78 : vector<1x1x16x4xbf16> to vector<1x16x4xbf16>
      %c17_61 = arith.constant 17 : index
      %c1_62 = arith.constant 1 : index
      %c0_63 = arith.constant 0 : index
      %80 = vector.load %arg12[%c17_61, %c1_62, %c0_63] : memref<18x24x8xbf16, #tpu.memory_space<vmem>>, vector<1x16x4xbf16>
      tpu.vector_store %arg12[%c17_61, %c1_62, %c0_63], %79 {strides = array<i32>} : memref<18x24x8xbf16, #tpu.memory_space<vmem>>, vector<1x16x4xbf16>,
    } else {
    }
    %c0_18 = arith.constant 0 : index
    %c0_19 = arith.constant 0 : index
    %c0_20 = arith.constant 0 : index
    %c0_21 = arith.constant 0 : index
    %19 = vector.load %arg5[%c0_18, %c0_19, %c0_20, %c0_21] : memref<1x16x16x4xbf16, #tpu.memory_space<vmem>>, vector<1x16x16x4xbf16>
    %20 = vector.shape_cast %19 : vector<1x16x16x4xbf16> to vector<16x16x4xbf16>
    %c1_22 = arith.constant 1 : index
    %c1_23 = arith.constant 1 : index
    %c4 = arith.constant 4 : index
    %21 = vector.load %arg12[%c1_22, %c1_23, %c4] : memref<18x24x8xbf16, #tpu.memory_space<vmem>>, vector<16x16x4xbf16>
    tpu.vector_store %arg12[%c1_22, %c1_23, %c4], %20 {strides = array<i32>} : memref<18x24x8xbf16, #tpu.memory_space<vmem>>, vector<16x16x4xbf16>,
    %c0_i32_24 = arith.constant 0 : i32
    %22 = arith.cmpi sgt, %arg1, %c0_i32_24 : i32
    %23 = arith.extui %22 : i1 to i32
    %c0_i32_25 = arith.constant 0 : i32
    %24 = arith.cmpi ne, %23, %c0_i32_25 : i32
    scf.if %24 {
      %c0_57 = arith.constant 0 : index
      %c0_58 = arith.constant 0 : index
      %c0_59 = arith.constant 0 : index
      %c0_60 = arith.constant 0 : index
      %78 = vector.load %arg6[%c0_57, %c0_58, %c0_59, %c0_60] : memref<1x1x16x4xbf16, #tpu.memory_space<vmem>>, vector<1x1x16x4xbf16>
      %79 = vector.shape_cast %78 : vector<1x1x16x4xbf16> to vector<1x16x4xbf16>
      %c0_61 = arith.constant 0 : index
      %c1_62 = arith.constant 1 : index
      %c4_63 = arith.constant 4 : index
      %80 = vector.load %arg12[%c0_61, %c1_62, %c4_63] : memref<18x24x8xbf16, #tpu.memory_space<vmem>>, vector<1x16x4xbf16>
      tpu.vector_store %arg12[%c0_61, %c1_62, %c4_63], %79 {strides = array<i32>} : memref<18x24x8xbf16, #tpu.memory_space<vmem>>, vector<1x16x4xbf16>,
    } else {
    }
    %c0_i32_26 = arith.constant 0 : i32
    %25 = arith.cmpi slt, %arg1, %c0_i32_26 : i32
    %26 = arith.extui %25 : i1 to i32
    %c0_i32_27 = arith.constant 0 : i32
    %27 = arith.cmpi ne, %26, %c0_i32_27 : i32
    scf.if %27 {
      %c0_57 = arith.constant 0 : index
      %c0_58 = arith.constant 0 : index
      %c0_59 = arith.constant 0 : index
      %c0_60 = arith.constant 0 : index
      %78 = vector.load %arg7[%c0_57, %c0_58, %c0_59, %c0_60] : memref<1x1x16x4xbf16, #tpu.memory_space<vmem>>, vector<1x1x16x4xbf16>
      %79 = vector.shape_cast %78 : vector<1x1x16x4xbf16> to vector<1x16x4xbf16>
      %c17_61 = arith.constant 17 : index
      %c1_62 = arith.constant 1 : index
      %c4_63 = arith.constant 4 : index
      %80 = vector.load %arg12[%c17_61, %c1_62, %c4_63] : memref<18x24x8xbf16, #tpu.memory_space<vmem>>, vector<1x16x4xbf16>
      tpu.vector_store %arg12[%c17_61, %c1_62, %c4_63], %79 {strides = array<i32>} : memref<18x24x8xbf16, #tpu.memory_space<vmem>>, vector<1x16x4xbf16>,
    } else {
    }
    %c0_28 = arith.constant 0 : index
    %c0_29 = arith.constant 0 : index
    %c0_30 = arith.constant 0 : index
    %28 = vector.load %arg12[%c0_28, %c0_29, %c0_30] : memref<18x24x8xbf16, #tpu.memory_space<vmem>>, vector<16x24x8xbf16>
    %29 = vector.shape_cast %28 : vector<16x24x8xbf16> to vector<384x8xbf16>
    %c0_31 = arith.constant 0 : index
    %c0_32 = arith.constant 0 : index
    %c0_33 = arith.constant 0 : index
    %30 = vector.load %arg8[%c0_31, %c0_32, %c0_33] : memref<3x8x12xbf16, #tpu.memory_space<vmem>>, vector<1x8x12xbf16>
    %31 = vector.shape_cast %30 : vector<1x8x12xbf16> to vector<8x12xbf16>
    %cst_34 = arith.constant dense<0.000000e+00> : vector<384x12xf32>
    %32 = tpu.matmul %29, %31, %cst_34 {dimension_numbers = #tpu.dot_dimension_numbers<[1], [0], [0], [1], [0, 0, 1, 1], [], []>} : vector<384x8xbf16>, vector<8x12xbf16>, vector<384x12xf32> -> vector<384x12xf32>
    %33 = vector.shape_cast %32 : vector<384x12xf32> to vector<16x24x12xf32>
    %34 = vector.extract_strided_slice %33 {offsets = [0, 0, 0], sizes = [16, 16, 4], strides = [1, 1, 1]} : vector<16x24x12xf32> to vector<16x16x4xf32>
    %35 = vector.extract_strided_slice %33 {offsets = [0, 1, 4], sizes = [16, 16, 4], strides = [1, 1, 1]} : vector<16x24x12xf32> to vector<16x16x4xf32>
    %36 = arith.addf %34, %35 : vector<16x16x4xf32>
    %37 = vector.extract_strided_slice %33 {offsets = [0, 2, 8], sizes = [16, 16, 4], strides = [1, 1, 1]} : vector<16x24x12xf32> to vector<16x16x4xf32>
    %38 = arith.addf %36, %37 : vector<16x16x4xf32>
    %c1_35 = arith.constant 1 : index
    %c0_36 = arith.constant 0 : index
    %c0_37 = arith.constant 0 : index
    %39 = vector.load %arg12[%c1_35, %c0_36, %c0_37] : memref<18x24x8xbf16, #tpu.memory_space<vmem>>, vector<16x24x8xbf16>
    %40 = vector.shape_cast %39 : vector<16x24x8xbf16> to vector<384x8xbf16>
    %c1_38 = arith.constant 1 : index
    %c0_39 = arith.constant 0 : index
    %c0_40 = arith.constant 0 : index
    %41 = vector.load %arg8[%c1_38, %c0_39, %c0_40] : memref<3x8x12xbf16, #tpu.memory_space<vmem>>, vector<1x8x12xbf16>
    %42 = vector.shape_cast %41 : vector<1x8x12xbf16> to vector<8x12xbf16>
    %cst_41 = arith.constant dense<0.000000e+00> : vector<384x12xf32>
    %43 = tpu.matmul %40, %42, %cst_41 {dimension_numbers = #tpu.dot_dimension_numbers<[1], [0], [0], [1], [0, 0, 1, 1], [], []>} : vector<384x8xbf16>, vector<8x12xbf16>, vector<384x12xf32> -> vector<384x12xf32>
    %44 = vector.shape_cast %43 : vector<384x12xf32> to vector<16x24x12xf32>
    %45 = vector.extract_strided_slice %44 {offsets = [0, 0, 0], sizes = [16, 16, 4], strides = [1, 1, 1]} : vector<16x24x12xf32> to vector<16x16x4xf32>
    %46 = vector.extract_strided_slice %44 {offsets = [0, 1, 4], sizes = [16, 16, 4], strides = [1, 1, 1]} : vector<16x24x12xf32> to vector<16x16x4xf32>
    %47 = arith.addf %45, %46 : vector<16x16x4xf32>
    %48 = vector.extract_strided_slice %44 {offsets = [0, 2, 8], sizes = [16, 16, 4], strides = [1, 1, 1]} : vector<16x24x12xf32> to vector<16x16x4xf32>
    %49 = arith.addf %47, %48 : vector<16x16x4xf32>
    %50 = arith.addf %38, %49 : vector<16x16x4xf32>
    %c2 = arith.constant 2 : index
    %c0_42 = arith.constant 0 : index
    %c0_43 = arith.constant 0 : index
    %51 = vector.load %arg12[%c2, %c0_42, %c0_43] : memref<18x24x8xbf16, #tpu.memory_space<vmem>>, vector<16x24x8xbf16>
    %52 = vector.shape_cast %51 : vector<16x24x8xbf16> to vector<384x8xbf16>
    %c2_44 = arith.constant 2 : index
    %c0_45 = arith.constant 0 : index
    %c0_46 = arith.constant 0 : index
    %53 = vector.load %arg8[%c2_44, %c0_45, %c0_46] : memref<3x8x12xbf16, #tpu.memory_space<vmem>>, vector<1x8x12xbf16>
    %54 = vector.shape_cast %53 : vector<1x8x12xbf16> to vector<8x12xbf16>
    %cst_47 = arith.constant dense<0.000000e+00> : vector<384x12xf32>
    %55 = tpu.matmul %52, %54, %cst_47 {dimension_numbers = #tpu.dot_dimension_numbers<[1], [0], [0], [1], [0, 0, 1, 1], [], []>} : vector<384x8xbf16>, vector<8x12xbf16>, vector<384x12xf32> -> vector<384x12xf32>
    %56 = vector.shape_cast %55 : vector<384x12xf32> to vector<16x24x12xf32>
    %57 = vector.extract_strided_slice %56 {offsets = [0, 0, 0], sizes = [16, 16, 4], strides = [1, 1, 1]} : vector<16x24x12xf32> to vector<16x16x4xf32>
    %58 = vector.extract_strided_slice %56 {offsets = [0, 1, 4], sizes = [16, 16, 4], strides = [1, 1, 1]} : vector<16x24x12xf32> to vector<16x16x4xf32>
    %59 = arith.addf %57, %58 : vector<16x16x4xf32>
    %60 = vector.extract_strided_slice %56 {offsets = [0, 2, 8], sizes = [16, 16, 4], strides = [1, 1, 1]} : vector<16x24x12xf32> to vector<16x16x4xf32>
    %61 = arith.addf %59, %60 : vector<16x16x4xf32>
    %62 = arith.addf %50, %61 : vector<16x16x4xf32>
    %c0_48 = arith.constant 0 : index
    %c0_49 = arith.constant 0 : index
    %63 = vector.load %arg9[%c0_48, %c0_49] : memref<1x4xf32, #tpu.memory_space<vmem>>, vector<1x4xf32>
    %64 = vector.shape_cast %63 : vector<1x4xf32> to vector<4xf32>
    %65 = vector.shape_cast %64 : vector<4xf32> to vector<1x1x4xf32>
    %66 = vector.broadcast %65 : vector<1x1x4xf32> to vector<16x16x4xf32>
    %67 = arith.mulf %62, %66 : vector<16x16x4xf32>
    %c0_50 = arith.constant 0 : index
    %c0_51 = arith.constant 0 : index
    %68 = vector.load %arg10[%c0_50, %c0_51] : memref<1x4xf32, #tpu.memory_space<vmem>>, vector<1x4xf32>
    %69 = vector.shape_cast %68 : vector<1x4xf32> to vector<4xf32>
    %70 = vector.shape_cast %69 : vector<4xf32> to vector<1x1x4xf32>
    %71 = vector.broadcast %70 : vector<1x1x4xf32> to vector<16x16x4xf32>
    %72 = arith.addf %67, %71 : vector<16x16x4xf32>
    %cst_52 = arith.constant 0.000000e+00 : f32
    %73 = vector.broadcast %cst_52 : f32 to vector<16x16x4xf32>
    %74 = arith.maximumf %72, %73 : vector<16x16x4xf32>
    %75 = vector.shape_cast %74 : vector<16x16x4xf32> to vector<1x16x16x4xf32>
    %76 = arith.truncf %75 : vector<1x16x16x4xf32> to vector<1x16x16x4xbf16>
    %c0_53 = arith.constant 0 : index
    %c0_54 = arith.constant 0 : index
    %c0_55 = arith.constant 0 : index
    %c0_56 = arith.constant 0 : index
    %77 = vector.load %arg11[%c0_53, %c0_54, %c0_55, %c0_56] : memref<1x16x16x4xbf16, #tpu.memory_space<vmem>>, vector<1x16x16x4xbf16>
    tpu.vector_store %arg11[%c0_53, %c0_54, %c0_55, %c0_56], %76 {strides = array<i32>} : memref<1x16x16x4xbf16, #tpu.memory_space<vmem>>, vector<1x16x16x4xbf16>,
    return
  }
  func.func @transform_0(%arg0: i32, %arg1: i32) -> (i32, i32, i32, i32) {
    %c0_i32 = arith.constant 0 : i32
    %c0_i32_0 = arith.constant 0 : i32
    %c0_i32_1 = arith.constant 0 : i32
    return %arg0, %arg1, %c0_i32, %c0_i32_0 : i32, i32, i32, i32
  }
  func.func @transform_1(%arg0: i32, %arg1: i32) -> (i32, i32, i32, i32) {
    %c16_i32 = arith.constant 16 : i32
    %0 = arith.muli %arg1, %c16_i32 : i32
    %c1_i32 = arith.constant 1 : i32
    %1 = arith.subi %0, %c1_i32 : i32
    %c0_i32 = arith.constant 0 : i32
    %2 = arith.maxsi %1, %c0_i32 : i32
    %c0_i32_0 = arith.constant 0 : i32
    %c0_i32_1 = arith.constant 0 : i32
    %c0_i32_2 = arith.constant 0 : i32
    return %arg0, %2, %c0_i32_0, %c0_i32_1 : i32, i32, i32, i32
  }
  func.func @transform_2(%arg0: i32, %arg1: i32) -> (i32, i32, i32, i32) {
    %c1_i32 = arith.constant 1 : i32
    %0 = arith.addi %arg1, %c1_i32 : i32
    %c16_i32 = arith.constant 16 : i32
    %1 = arith.muli %0, %c16_i32 : i32
    %c15_i32 = arith.constant 15 : i32
    %2 = arith.minsi %1, %c15_i32 : i32
    %c0_i32 = arith.constant 0 : i32
    %c0_i32_0 = arith.constant 0 : i32
    %c0_i32_1 = arith.constant 0 : i32
    return %arg0, %2, %c0_i32, %c0_i32_0 : i32, i32, i32, i32
  }
  func.func @transform_3(%arg0: i32, %arg1: i32) -> (i32, i32, i32, i32) {
    %c0_i32 = arith.constant 0 : i32
    %c0_i32_0 = arith.constant 0 : i32
    %c0_i32_1 = arith.constant 0 : i32
    return %arg0, %arg1, %c0_i32, %c0_i32_0 : i32, i32, i32, i32
  }
  func.func @transform_4(%arg0: i32, %arg1: i32) -> (i32, i32, i32, i32) {
    %c16_i32 = arith.constant 16 : i32
    %0 = arith.muli %arg1, %c16_i32 : i32
    %c1_i32 = arith.constant 1 : i32
    %1 = arith.subi %0, %c1_i32 : i32
    %c0_i32 = arith.constant 0 : i32
    %2 = arith.maxsi %1, %c0_i32 : i32
    %c0_i32_0 = arith.constant 0 : i32
    %c0_i32_1 = arith.constant 0 : i32
    %c0_i32_2 = arith.constant 0 : i32
    return %arg0, %2, %c0_i32_0, %c0_i32_1 : i32, i32, i32, i32
  }
  func.func @transform_5(%arg0: i32, %arg1: i32) -> (i32, i32, i32, i32) {
    %c1_i32 = arith.constant 1 : i32
    %0 = arith.addi %arg1, %c1_i32 : i32
    %c16_i32 = arith.constant 16 : i32
    %1 = arith.muli %0, %c16_i32 : i32
    %c15_i32 = arith.constant 15 : i32
    %2 = arith.minsi %1, %c15_i32 : i32
    %c0_i32 = arith.constant 0 : i32
    %c0_i32_0 = arith.constant 0 : i32
    %c0_i32_1 = arith.constant 0 : i32
    return %arg0, %2, %c0_i32, %c0_i32_0 : i32, i32, i32, i32
  }
  func.func @transform_6(%arg0: i32, %arg1: i32) -> (i32, i32, i32) {
    %c0_i32 = arith.constant 0 : i32
    %c0_i32_0 = arith.constant 0 : i32
    %c0_i32_1 = arith.constant 0 : i32
    %c0_i32_2 = arith.constant 0 : i32
    return %c0_i32, %c0_i32_0, %c0_i32_1 : i32, i32, i32
  }
  func.func @transform_7(%arg0: i32, %arg1: i32) -> (i32, i32) {
    %c0_i32 = arith.constant 0 : i32
    %c0_i32_0 = arith.constant 0 : i32
    %c0_i32_1 = arith.constant 0 : i32
    return %c0_i32, %c0_i32_0 : i32, i32
  }
  func.func @transform_8(%arg0: i32, %arg1: i32) -> (i32, i32) {
    %c0_i32 = arith.constant 0 : i32
    %c0_i32_0 = arith.constant 0 : i32
    %c0_i32_1 = arith.constant 0 : i32
    return %c0_i32, %c0_i32_0 : i32, i32
  }
  func.func @transform_9(%arg0: i32, %arg1: i32) -> (i32, i32, i32, i32) {
    %c0_i32 = arith.constant 0 : i32
    %c0_i32_0 = arith.constant 0 : i32
    %c0_i32_1 = arith.constant 0 : i32
    return %arg0, %arg1, %c0_i32, %c0_i32_0 : i32, i32, i32, i32
  }
}

module attributes {stable_mosaic.version = 11 : i64} {
  func.func @kernel(%arg0: i32, %arg1: i32, %arg2: memref<1x16x16x4xbf16, #tpu.memory_space<vmem>>, %arg3: memref<1x1x16x4xbf16, #tpu.memory_space<vmem>>, %arg4: memref<1x1x16x4xbf16, #tpu.memory_space<vmem>>, %arg5: memref<3x4x12xbf16, #tpu.memory_space<vmem>>, %arg6: memref<1x4xf32, #tpu.memory_space<vmem>>, %arg7: memref<1x4xf32, #tpu.memory_space<vmem>>, %arg8: memref<1x16x16x4xbf16, #tpu.memory_space<vmem>>, %arg9: memref<18x24x4xbf16, #tpu.memory_space<vmem>>) attributes {dimension_semantics = [#tpu.dimension_semantics<parallel>, #tpu.dimension_semantics<parallel>], iteration_bounds = array<i64: 2, 1>, scalar_prefetch = 0 : i64, scratch_operands = 1 : i64, tpu.core_type = #tpu.core_type<tc>, window_params = [{transform_indices = @transform_0, window_bounds = array<i64: 1, 16, 16, 4>}, {transform_indices = @transform_1, window_bounds = array<i64: 1, 1, 16, 4>}, {transform_indices = @transform_2, window_bounds = array<i64: 1, 1, 16, 4>}, {pipeline_mode = #tpu.pipeline_mode<synchronous>, transform_indices = @transform_3, window_bounds = array<i64: 3, 4, 12>}, {pipeline_mode = #tpu.pipeline_mode<synchronous>, transform_indices = @transform_4, window_bounds = array<i64: 1, 4>}, {pipeline_mode = #tpu.pipeline_mode<synchronous>, transform_indices = @transform_5, window_bounds = array<i64: 1, 4>}, {transform_indices = @transform_6, window_bounds = array<i64: 1, 16, 16, 4>}]} {
    %cst = arith.constant 0.000000e+00 : bf16
    %0 = vector.broadcast %cst : bf16 to vector<18x1x4xbf16>
    %c0 = arith.constant 0 : index
    %c0_0 = arith.constant 0 : index
    %c0_1 = arith.constant 0 : index
    %1 = vector.load %arg9[%c0, %c0_0, %c0_1] : memref<18x24x4xbf16, #tpu.memory_space<vmem>>, vector<18x1x4xbf16>
    tpu.vector_store %arg9[%c0, %c0_0, %c0_1], %0 {strides = array<i32>} : memref<18x24x4xbf16, #tpu.memory_space<vmem>>, vector<18x1x4xbf16>,
    %cst_2 = arith.constant 0.000000e+00 : bf16
    %2 = vector.broadcast %cst_2 : bf16 to vector<18x7x4xbf16>
    %c0_3 = arith.constant 0 : index
    %c17 = arith.constant 17 : index
    %c0_4 = arith.constant 0 : index
    %3 = vector.load %arg9[%c0_3, %c17, %c0_4] : memref<18x24x4xbf16, #tpu.memory_space<vmem>>, vector<18x7x4xbf16>
    tpu.vector_store %arg9[%c0_3, %c17, %c0_4], %2 {strides = array<i32>} : memref<18x24x4xbf16, #tpu.memory_space<vmem>>, vector<18x7x4xbf16>,
    %c0_i32 = arith.constant 0 : i32
    %4 = arith.cmpi eq, %arg1, %c0_i32 : i32
    %5 = arith.extui %4 : i1 to i32
    %c0_i32_5 = arith.constant 0 : i32
    %6 = arith.cmpi ne, %5, %c0_i32_5 : i32
    scf.if %6 {
      %cst_47 = arith.constant 0.000000e+00 : bf16
      %69 = vector.broadcast %cst_47 : bf16 to vector<1x16x4xbf16>
      %c0_48 = arith.constant 0 : index
      %c1_49 = arith.constant 1 : index
      %c0_50 = arith.constant 0 : index
      %70 = vector.load %arg9[%c0_48, %c1_49, %c0_50] : memref<18x24x4xbf16, #tpu.memory_space<vmem>>, vector<1x16x4xbf16>
      tpu.vector_store %arg9[%c0_48, %c1_49, %c0_50], %69 {strides = array<i32>} : memref<18x24x4xbf16, #tpu.memory_space<vmem>>, vector<1x16x4xbf16>,
    } else {
    }
    %c0_i32_6 = arith.constant 0 : i32
    %7 = arith.cmpi eq, %arg1, %c0_i32_6 : i32
    %8 = arith.extui %7 : i1 to i32
    %c0_i32_7 = arith.constant 0 : i32
    %9 = arith.cmpi ne, %8, %c0_i32_7 : i32
    scf.if %9 {
      %cst_47 = arith.constant 0.000000e+00 : bf16
      %69 = vector.broadcast %cst_47 : bf16 to vector<1x16x4xbf16>
      %c17_48 = arith.constant 17 : index
      %c1_49 = arith.constant 1 : index
      %c0_50 = arith.constant 0 : index
      %70 = vector.load %arg9[%c17_48, %c1_49, %c0_50] : memref<18x24x4xbf16, #tpu.memory_space<vmem>>, vector<1x16x4xbf16>
      tpu.vector_store %arg9[%c17_48, %c1_49, %c0_50], %69 {strides = array<i32>} : memref<18x24x4xbf16, #tpu.memory_space<vmem>>, vector<1x16x4xbf16>,
    } else {
    }
    %c0_8 = arith.constant 0 : index
    %c0_9 = arith.constant 0 : index
    %c0_10 = arith.constant 0 : index
    %c0_11 = arith.constant 0 : index
    %10 = vector.load %arg2[%c0_8, %c0_9, %c0_10, %c0_11] : memref<1x16x16x4xbf16, #tpu.memory_space<vmem>>, vector<1x16x16x4xbf16>
    %11 = vector.shape_cast %10 : vector<1x16x16x4xbf16> to vector<16x16x4xbf16>
    %c1 = arith.constant 1 : index
    %c1_12 = arith.constant 1 : index
    %c0_13 = arith.constant 0 : index
    %12 = vector.load %arg9[%c1, %c1_12, %c0_13] : memref<18x24x4xbf16, #tpu.memory_space<vmem>>, vector<16x16x4xbf16>
    tpu.vector_store %arg9[%c1, %c1_12, %c0_13], %11 {strides = array<i32>} : memref<18x24x4xbf16, #tpu.memory_space<vmem>>, vector<16x16x4xbf16>,
    %c0_i32_14 = arith.constant 0 : i32
    %13 = arith.cmpi sgt, %arg1, %c0_i32_14 : i32
    %14 = arith.extui %13 : i1 to i32
    %c0_i32_15 = arith.constant 0 : i32
    %15 = arith.cmpi ne, %14, %c0_i32_15 : i32
    scf.if %15 {
      %c0_47 = arith.constant 0 : index
      %c0_48 = arith.constant 0 : index
      %c0_49 = arith.constant 0 : index
      %c0_50 = arith.constant 0 : index
      %69 = vector.load %arg3[%c0_47, %c0_48, %c0_49, %c0_50] : memref<1x1x16x4xbf16, #tpu.memory_space<vmem>>, vector<1x1x16x4xbf16>
      %70 = vector.shape_cast %69 : vector<1x1x16x4xbf16> to vector<1x16x4xbf16>
      %c0_51 = arith.constant 0 : index
      %c1_52 = arith.constant 1 : index
      %c0_53 = arith.constant 0 : index
      %71 = vector.load %arg9[%c0_51, %c1_52, %c0_53] : memref<18x24x4xbf16, #tpu.memory_space<vmem>>, vector<1x16x4xbf16>
      tpu.vector_store %arg9[%c0_51, %c1_52, %c0_53], %70 {strides = array<i32>} : memref<18x24x4xbf16, #tpu.memory_space<vmem>>, vector<1x16x4xbf16>,
    } else {
    }
    %c0_i32_16 = arith.constant 0 : i32
    %16 = arith.cmpi slt, %arg1, %c0_i32_16 : i32
    %17 = arith.extui %16 : i1 to i32
    %c0_i32_17 = arith.constant 0 : i32
    %18 = arith.cmpi ne, %17, %c0_i32_17 : i32
    scf.if %18 {
      %c0_47 = arith.constant 0 : index
      %c0_48 = arith.constant 0 : index
      %c0_49 = arith.constant 0 : index
      %c0_50 = arith.constant 0 : index
      %69 = vector.load %arg4[%c0_47, %c0_48, %c0_49, %c0_50] : memref<1x1x16x4xbf16, #tpu.memory_space<vmem>>, vector<1x1x16x4xbf16>
      %70 = vector.shape_cast %69 : vector<1x1x16x4xbf16> to vector<1x16x4xbf16>
      %c17_51 = arith.constant 17 : index
      %c1_52 = arith.constant 1 : index
      %c0_53 = arith.constant 0 : index
      %71 = vector.load %arg9[%c17_51, %c1_52, %c0_53] : memref<18x24x4xbf16, #tpu.memory_space<vmem>>, vector<1x16x4xbf16>
      tpu.vector_store %arg9[%c17_51, %c1_52, %c0_53], %70 {strides = array<i32>} : memref<18x24x4xbf16, #tpu.memory_space<vmem>>, vector<1x16x4xbf16>,
    } else {
    }
    %c0_18 = arith.constant 0 : index
    %c0_19 = arith.constant 0 : index
    %c0_20 = arith.constant 0 : index
    %19 = vector.load %arg9[%c0_18, %c0_19, %c0_20] : memref<18x24x4xbf16, #tpu.memory_space<vmem>>, vector<16x24x4xbf16>
    %20 = vector.shape_cast %19 : vector<16x24x4xbf16> to vector<384x4xbf16>
    %c0_21 = arith.constant 0 : index
    %c0_22 = arith.constant 0 : index
    %c0_23 = arith.constant 0 : index
    %21 = vector.load %arg5[%c0_21, %c0_22, %c0_23] : memref<3x4x12xbf16, #tpu.memory_space<vmem>>, vector<1x4x12xbf16>
    %22 = vector.shape_cast %21 : vector<1x4x12xbf16> to vector<4x12xbf16>
    %cst_24 = arith.constant dense<0.000000e+00> : vector<384x12xf32>
    %23 = tpu.matmul %20, %22, %cst_24 {dimension_numbers = #tpu.dot_dimension_numbers<[1], [0], [0], [1], [0, 0, 1, 1], [], []>} : vector<384x4xbf16>, vector<4x12xbf16>, vector<384x12xf32> -> vector<384x12xf32>
    %24 = vector.shape_cast %23 : vector<384x12xf32> to vector<16x24x12xf32>
    %25 = vector.extract_strided_slice %24 {offsets = [0, 0, 0], sizes = [16, 16, 4], strides = [1, 1, 1]} : vector<16x24x12xf32> to vector<16x16x4xf32>
    %26 = vector.extract_strided_slice %24 {offsets = [0, 1, 4], sizes = [16, 16, 4], strides = [1, 1, 1]} : vector<16x24x12xf32> to vector<16x16x4xf32>
    %27 = arith.addf %25, %26 : vector<16x16x4xf32>
    %28 = vector.extract_strided_slice %24 {offsets = [0, 2, 8], sizes = [16, 16, 4], strides = [1, 1, 1]} : vector<16x24x12xf32> to vector<16x16x4xf32>
    %29 = arith.addf %27, %28 : vector<16x16x4xf32>
    %c1_25 = arith.constant 1 : index
    %c0_26 = arith.constant 0 : index
    %c0_27 = arith.constant 0 : index
    %30 = vector.load %arg9[%c1_25, %c0_26, %c0_27] : memref<18x24x4xbf16, #tpu.memory_space<vmem>>, vector<16x24x4xbf16>
    %31 = vector.shape_cast %30 : vector<16x24x4xbf16> to vector<384x4xbf16>
    %c1_28 = arith.constant 1 : index
    %c0_29 = arith.constant 0 : index
    %c0_30 = arith.constant 0 : index
    %32 = vector.load %arg5[%c1_28, %c0_29, %c0_30] : memref<3x4x12xbf16, #tpu.memory_space<vmem>>, vector<1x4x12xbf16>
    %33 = vector.shape_cast %32 : vector<1x4x12xbf16> to vector<4x12xbf16>
    %cst_31 = arith.constant dense<0.000000e+00> : vector<384x12xf32>
    %34 = tpu.matmul %31, %33, %cst_31 {dimension_numbers = #tpu.dot_dimension_numbers<[1], [0], [0], [1], [0, 0, 1, 1], [], []>} : vector<384x4xbf16>, vector<4x12xbf16>, vector<384x12xf32> -> vector<384x12xf32>
    %35 = vector.shape_cast %34 : vector<384x12xf32> to vector<16x24x12xf32>
    %36 = vector.extract_strided_slice %35 {offsets = [0, 0, 0], sizes = [16, 16, 4], strides = [1, 1, 1]} : vector<16x24x12xf32> to vector<16x16x4xf32>
    %37 = vector.extract_strided_slice %35 {offsets = [0, 1, 4], sizes = [16, 16, 4], strides = [1, 1, 1]} : vector<16x24x12xf32> to vector<16x16x4xf32>
    %38 = arith.addf %36, %37 : vector<16x16x4xf32>
    %39 = vector.extract_strided_slice %35 {offsets = [0, 2, 8], sizes = [16, 16, 4], strides = [1, 1, 1]} : vector<16x24x12xf32> to vector<16x16x4xf32>
    %40 = arith.addf %38, %39 : vector<16x16x4xf32>
    %41 = arith.addf %29, %40 : vector<16x16x4xf32>
    %c2 = arith.constant 2 : index
    %c0_32 = arith.constant 0 : index
    %c0_33 = arith.constant 0 : index
    %42 = vector.load %arg9[%c2, %c0_32, %c0_33] : memref<18x24x4xbf16, #tpu.memory_space<vmem>>, vector<16x24x4xbf16>
    %43 = vector.shape_cast %42 : vector<16x24x4xbf16> to vector<384x4xbf16>
    %c2_34 = arith.constant 2 : index
    %c0_35 = arith.constant 0 : index
    %c0_36 = arith.constant 0 : index
    %44 = vector.load %arg5[%c2_34, %c0_35, %c0_36] : memref<3x4x12xbf16, #tpu.memory_space<vmem>>, vector<1x4x12xbf16>
    %45 = vector.shape_cast %44 : vector<1x4x12xbf16> to vector<4x12xbf16>
    %cst_37 = arith.constant dense<0.000000e+00> : vector<384x12xf32>
    %46 = tpu.matmul %43, %45, %cst_37 {dimension_numbers = #tpu.dot_dimension_numbers<[1], [0], [0], [1], [0, 0, 1, 1], [], []>} : vector<384x4xbf16>, vector<4x12xbf16>, vector<384x12xf32> -> vector<384x12xf32>
    %47 = vector.shape_cast %46 : vector<384x12xf32> to vector<16x24x12xf32>
    %48 = vector.extract_strided_slice %47 {offsets = [0, 0, 0], sizes = [16, 16, 4], strides = [1, 1, 1]} : vector<16x24x12xf32> to vector<16x16x4xf32>
    %49 = vector.extract_strided_slice %47 {offsets = [0, 1, 4], sizes = [16, 16, 4], strides = [1, 1, 1]} : vector<16x24x12xf32> to vector<16x16x4xf32>
    %50 = arith.addf %48, %49 : vector<16x16x4xf32>
    %51 = vector.extract_strided_slice %47 {offsets = [0, 2, 8], sizes = [16, 16, 4], strides = [1, 1, 1]} : vector<16x24x12xf32> to vector<16x16x4xf32>
    %52 = arith.addf %50, %51 : vector<16x16x4xf32>
    %53 = arith.addf %41, %52 : vector<16x16x4xf32>
    %c0_38 = arith.constant 0 : index
    %c0_39 = arith.constant 0 : index
    %54 = vector.load %arg6[%c0_38, %c0_39] : memref<1x4xf32, #tpu.memory_space<vmem>>, vector<1x4xf32>
    %55 = vector.shape_cast %54 : vector<1x4xf32> to vector<4xf32>
    %56 = vector.shape_cast %55 : vector<4xf32> to vector<1x1x4xf32>
    %57 = vector.broadcast %56 : vector<1x1x4xf32> to vector<16x16x4xf32>
    %58 = arith.mulf %53, %57 : vector<16x16x4xf32>
    %c0_40 = arith.constant 0 : index
    %c0_41 = arith.constant 0 : index
    %59 = vector.load %arg7[%c0_40, %c0_41] : memref<1x4xf32, #tpu.memory_space<vmem>>, vector<1x4xf32>
    %60 = vector.shape_cast %59 : vector<1x4xf32> to vector<4xf32>
    %61 = vector.shape_cast %60 : vector<4xf32> to vector<1x1x4xf32>
    %62 = vector.broadcast %61 : vector<1x1x4xf32> to vector<16x16x4xf32>
    %63 = arith.addf %58, %62 : vector<16x16x4xf32>
    %cst_42 = arith.constant 0.000000e+00 : f32
    %64 = vector.broadcast %cst_42 : f32 to vector<16x16x4xf32>
    %65 = arith.maximumf %63, %64 : vector<16x16x4xf32>
    %66 = vector.shape_cast %65 : vector<16x16x4xf32> to vector<1x16x16x4xf32>
    %67 = arith.truncf %66 : vector<1x16x16x4xf32> to vector<1x16x16x4xbf16>
    %c0_43 = arith.constant 0 : index
    %c0_44 = arith.constant 0 : index
    %c0_45 = arith.constant 0 : index
    %c0_46 = arith.constant 0 : index
    %68 = vector.load %arg8[%c0_43, %c0_44, %c0_45, %c0_46] : memref<1x16x16x4xbf16, #tpu.memory_space<vmem>>, vector<1x16x16x4xbf16>
    tpu.vector_store %arg8[%c0_43, %c0_44, %c0_45, %c0_46], %67 {strides = array<i32>} : memref<1x16x16x4xbf16, #tpu.memory_space<vmem>>, vector<1x16x16x4xbf16>,
    return
  }
  func.func @transform_0(%arg0: i32, %arg1: i32) -> (i32, i32, i32, i32) {
    %c0_i32 = arith.constant 0 : i32
    %c0_i32_0 = arith.constant 0 : i32
    %c0_i32_1 = arith.constant 0 : i32
    return %arg0, %arg1, %c0_i32, %c0_i32_0 : i32, i32, i32, i32
  }
  func.func @transform_1(%arg0: i32, %arg1: i32) -> (i32, i32, i32, i32) {
    %c16_i32 = arith.constant 16 : i32
    %0 = arith.muli %arg1, %c16_i32 : i32
    %c1_i32 = arith.constant 1 : i32
    %1 = arith.subi %0, %c1_i32 : i32
    %c0_i32 = arith.constant 0 : i32
    %2 = arith.maxsi %1, %c0_i32 : i32
    %c0_i32_0 = arith.constant 0 : i32
    %c0_i32_1 = arith.constant 0 : i32
    %c0_i32_2 = arith.constant 0 : i32
    return %arg0, %2, %c0_i32_0, %c0_i32_1 : i32, i32, i32, i32
  }
  func.func @transform_2(%arg0: i32, %arg1: i32) -> (i32, i32, i32, i32) {
    %c1_i32 = arith.constant 1 : i32
    %0 = arith.addi %arg1, %c1_i32 : i32
    %c16_i32 = arith.constant 16 : i32
    %1 = arith.muli %0, %c16_i32 : i32
    %c15_i32 = arith.constant 15 : i32
    %2 = arith.minsi %1, %c15_i32 : i32
    %c0_i32 = arith.constant 0 : i32
    %c0_i32_0 = arith.constant 0 : i32
    %c0_i32_1 = arith.constant 0 : i32
    return %arg0, %2, %c0_i32, %c0_i32_0 : i32, i32, i32, i32
  }
  func.func @transform_3(%arg0: i32, %arg1: i32) -> (i32, i32, i32) {
    %c0_i32 = arith.constant 0 : i32
    %c0_i32_0 = arith.constant 0 : i32
    %c0_i32_1 = arith.constant 0 : i32
    %c0_i32_2 = arith.constant 0 : i32
    return %c0_i32, %c0_i32_0, %c0_i32_1 : i32, i32, i32
  }
  func.func @transform_4(%arg0: i32, %arg1: i32) -> (i32, i32) {
    %c0_i32 = arith.constant 0 : i32
    %c0_i32_0 = arith.constant 0 : i32
    %c0_i32_1 = arith.constant 0 : i32
    return %c0_i32, %c0_i32_0 : i32, i32
  }
  func.func @transform_5(%arg0: i32, %arg1: i32) -> (i32, i32) {
    %c0_i32 = arith.constant 0 : i32
    %c0_i32_0 = arith.constant 0 : i32
    %c0_i32_1 = arith.constant 0 : i32
    return %c0_i32, %c0_i32_0 : i32, i32
  }
  func.func @transform_6(%arg0: i32, %arg1: i32) -> (i32, i32, i32, i32) {
    %c0_i32 = arith.constant 0 : i32
    %c0_i32_0 = arith.constant 0 : i32
    %c0_i32_1 = arith.constant 0 : i32
    return %arg0, %arg1, %c0_i32, %c0_i32_0 : i32, i32, i32, i32
  }
}

</mosaic_0001>

<llo_original>
// kernel: decoder_block_forward.3
$region0: #{decoder_block_forward.3}
  #allocation0 [shape = 'u32[]', space=smem, size = 0x4, offset = 0x4, fixed_abs, tag = 'smem constant byte address 0x4 - core index']
  #allocation1 [shape = 'u32[144,128]{1,0:T(1,128)}', space=vmem, size = 0x12000, scoped, tag = 'internal scratch']
  %s0 = inlined_call_operand.vmem [shape: bf16[2,8,8,8], index: 0, kind: input, shape index: {}]
  %s1 = inlined_call_operand.vmem [shape: bf16[8,16], index: 1, kind: input, shape index: {}]
  %s2 = inlined_call_operand.vmem [shape: f32[1,16], index: 2, kind: input, shape index: {}]
  %s3 = inlined_call_operand.vmem [shape: bf16[2,8,2,8,8], index: 3, kind: output, shape index: {}]
  %s4 = sld [smem:[#allocation0]]
  $region45: #{decoder_block_forward.3} parent=0
    _
  %s6 = ssub.s32 1, %s4
  %s7 = scalar_select 0, %s6, %s4
  loop: start=0, step=1, limit=4
  $region2: #{decoder_block_forward.3} parent=0 // loop_pre_header
    _
  $region3: #{decoder_block_forward.3} parent=0 // loop_header
    %s9 = sphi 0, %s13
    %p10 = scmp.ge.s32.totalorder %s9, 4
    %s16 = sphi 0, %s28
    %s17 = sphi 0, %s24
    %s18 = sphi 0, %s16
    %s19 = sphi 0, %s17
    %s20 = sphi 0, %s18
    %s21 = sphi 0, %s19
    %s33 = sphi 0, %s35
    %s36 = sphi 0, %s33
    %s37 = sphi 0, %s36
    %s53 = sphi 0, %s37
    %s57 = sphi 0, %s57
    %s59 = sphi 0, %s57
    %s60 = sphi 0, %s59
    %s74 = sphi 0, %s60
    %s78 = sphi 0, %s78
    %s80 = sphi 0, %s78
    %s81 = sphi 0, %s80
    %s95 = sphi 0, %s81
    %s103 = sphi 0, %s105
    %s106 = sphi 0, %s103
    %s107 = sphi 0, %s106
    %s123 = sphi 0, %s107
  $region4: #{decoder_block_forward.3} parent=0 // loop_header_branch
    %12 = sbr.rel (%p10) target = $region8
  $region5: #{decoder_block_forward.3} parent=0 // loop_body
    %s14 = ssub.s32 %s9, 1
    %s15 = ssub.s32 %s9, 2
    %s22 = sadd.s32 1, %s17
    %p23 = scmp.ge.s32.totalorder %s22, 1
    %s24 = scalar_select %p23, 0, %s22
    %s25 = sadd.s32 1, %s16
    %s26 = scalar_select %p23, %s25, %s16
    %p27 = scmp.ge.s32.totalorder %s26, 2
    %s28 = scalar_select %p27, 0, %s26
    %s29 = ssub.s32 %s16, %s28
    %s30 = ssub.s32 %s17, %s24
    %s31 = sor.u32 %s29, %s30
    %p32 = scmp.eq.s32.totalorder %s31, 0
    %s34 = sadd.s32 %s33, 1
    %s35 = scalar_select %p32, %s33, %s34
    %p38 = pneg %p32
    %p39 = scmp.eq.s32.totalorder %s9, 1
    %p40 = por %p38, %p39
    %p41 = scmp.ne.s32.totalorder %s33, %s36
    %p42 = scmp.eq.s32.totalorder %s9, 0
    %p43 = por %p41, %p42
    %p44 = scmp.ne.s32.totalorder %s33, %s36
    %p45 = scmp.eq.s32.totalorder %s14, 1
    %p46 = por %p44, %p45
    %p47 = scmp.ne.s32.totalorder %s36, %s37
    %p48 = scmp.eq.s32.totalorder %s14, 0
    %p49 = por %p47, %p48
    %p50 = scmp.ne.s32.totalorder %s36, %s37
    %p51 = scmp.eq.s32.totalorder %s15, 1
    %p52 = por %p50, %p51
    %p54 = scmp.ne.s32.totalorder %s37, %s53
    %p55 = scmp.eq.s32.totalorder %s15, 0
    %p56 = por %p54, %p55
    %s58 = sadd.s32 %s57, 1
    %p61 = scmp.eq.s32.totalorder %s9, 1
    %p62 = scmp.ne.s32.totalorder %s57, %s59
    %p63 = scmp.eq.s32.totalorder %s9, 0
    %p64 = por %p62, %p63
    %p65 = scmp.ne.s32.totalorder %s57, %s59
    %p66 = scmp.eq.s32.totalorder %s14, 1
    %p67 = por %p65, %p66
    %p68 = scmp.ne.s32.totalorder %s59, %s60
    %p69 = scmp.eq.s32.totalorder %s14, 0
    %p70 = por %p68, %p69
    %p71 = scmp.ne.s32.totalorder %s59, %s60
    %p72 = scmp.eq.s32.totalorder %s15, 1
    %p73 = por %p71, %p72
    %p75 = scmp.ne.s32.totalorder %s60, %s74
    %p76 = scmp.eq.s32.totalorder %s15, 0
    %p77 = por %p75, %p76
    %s79 = sadd.s32 %s78, 1
    %p82 = scmp.eq.s32.totalorder %s9, 1
    %p83 = scmp.ne.s32.totalorder %s78, %s80
    %p84 = scmp.eq.s32.totalorder %s9, 0
    %p85 = por %p83, %p84
    %p86 = scmp.ne.s32.totalorder %s78, %s80
    %p87 = scmp.eq.s32.totalorder %s14, 1
    %p88 = por %p86, %p87
    %p89 = scmp.ne.s32.totalorder %s80, %s81
    %p90 = scmp.eq.s32.totalorder %s14, 0
    %p91 = por %p89, %p90
    %p92 = scmp.ne.s32.totalorder %s80, %s81
    %p93 = scmp.eq.s32.totalorder %s15, 1
    %p94 = por %p92, %p93
    %p96 = scmp.ne.s32.totalorder %s81, %s95
    %p97 = scmp.eq.s32.totalorder %s15, 0
    %p98 = por %p96, %p97
    %s99 = ssub.s32 %s16, %s28
    %s100 = ssub.s32 %s17, %s24
    %s101 = sor.u32 %s99, %s100
    %p102 = scmp.eq.s32.totalorder %s101, 0
    %s104 = sadd.s32 %s103, 1
    %s105 = scalar_select %p102, %s103, %s104
    %p108 = pneg %p102
    %p109 = scmp.eq.s32.totalorder %s9, 1
    %p110 = por %p108, %p109
    %p111 = scmp.ne.s32.totalorder %s103, %s106
    %p112 = scmp.eq.s32.totalorder %s9, 0
    %p113 = por %p111, %p112
    %p114 = scmp.ne.s32.totalorder %s103, %s106
    %p115 = scmp.eq.s32.totalorder %s14, 1
    %p116 = por %p114, %p115
    %p117 = scmp.ne.s32.totalorder %s106, %s107
    %p118 = scmp.eq.s32.totalorder %s14, 0
    %p119 = por %p117, %p118
    %p120 = scmp.ne.s32.totalorder %s106, %s107
    %p121 = scmp.eq.s32.totalorder %s15, 1
    %p122 = por %p120, %p121
    %p124 = scmp.ne.s32.totalorder %s107, %s123
    %p125 = scmp.eq.s32.totalorder %s15, 0
    %p126 = por %p124, %p125
    %p127 = scmp.le.s32.totalorder 1, %s9
    %p128 = scmp.lt.s32.totalorder %s9, 3
    %p129 = pnand %p127, %p128
    %p130 = pneg %p129
    // Predicated region
    $region9: #{decoder_block_forward.3} parent=5 // pred_check
      _
    $region10: #{decoder_block_forward.3} parent=5 // pred_check_branch
      %132 = sbr.rel (%p129) target = $region12
    $region11: #{decoder_block_forward.3} parent=5 // pred_region
      %s133 = ssub.s32 %s9, 1
      // Predicated region
      $region13: #{decoder_block_forward.3} parent=11 // pred_check
        %p134 = pneg %p70
      $region14: #{decoder_block_forward.3} parent=11 // pred_check_branch
        %136 = sbr.rel (%p134) target = $region16
      $region15: #{decoder_block_forward.3} parent=11 // pred_region
        _
      $region16: #{decoder_block_forward.3} parent=11 // pred_fallthru
        _
      // Predicated region
      $region17: #{decoder_block_forward.3} parent=11 // pred_check
        %p137 = pneg %p91
      $region18: #{decoder_block_forward.3} parent=11 // pred_check_branch
        %139 = sbr.rel (%p137) target = $region20
      $region19: #{decoder_block_forward.3} parent=11 // pred_region
        _
      $region20: #{decoder_block_forward.3} parent=11 // pred_fallthru
        _
    $region12: #{decoder_block_forward.3} parent=5 // pred_fallthru
      _
    %p140 = scmp.lt.s32.totalorder %s9, 2
    // Predicated region
    $region21: #{decoder_block_forward.3} parent=5 // pred_check
      %p141 = pneg %p140
    $region22: #{decoder_block_forward.3} parent=5 // pred_check_branch
      %143 = sbr.rel (%p141) target = $region24
    $region23: #{decoder_block_forward.3} parent=5 // pred_region
      // Predicated region
      $region25: #{decoder_block_forward.3} parent=23 // pred_check
        %p144 = pneg %p43
      $region26: #{decoder_block_forward.3} parent=23 // pred_check_branch
        %146 = sbr.rel (%p144) target = $region28
      $region27: #{decoder_block_forward.3} parent=23 // pred_region
        %s147 = smul.u32 8, %s17
        %p148 = scmp.lt.s32.totalorder %s16, 1
        %s149 = scalar_select %p148, %s16, 1
        %p150 = scmp.lt.s32.totalorder %s147, 7
        %s151 = scalar_select %p150, %s147, 7
        %s152 = smul.addr %s149, 8
        %s153 = sadd.s32 %s151, %s152
        %s154 = smul.addr %s153, 4
        %s155 = scalar_lea.vmem %s0, %s154
        %s156 = smul.u32 8, %s17
      $region28: #{decoder_block_forward.3} parent=23 // pred_fallthru
        _
    $region24: #{decoder_block_forward.3} parent=5 // pred_fallthru
      _
    %p157 = scmp.le.s32.totalorder 1, %s9
    %p158 = scmp.lt.s32.totalorder %s9, 3
    %p159 = pnand %p157, %p158
    %p160 = pneg %p159
    // Predicated region
    $region29: #{decoder_block_forward.3} parent=5 // pred_check
      _
    $region30: #{decoder_block_forward.3} parent=5 // pred_check_branch
      %162 = sbr.rel (%p159) target = $region32
    $region31: #{decoder_block_forward.3} parent=5 // pred_region
      %s163 = ssub.s32 %s9, 1
      %s164 = smul.u32 8, %s19
      %p165 = scmp.lt.s32.totalorder %s18, 1
      %s166 = scalar_select %p165, %s18, 1
      %p167 = scmp.lt.s32.totalorder %s164, 7
      %s168 = scalar_select %p167, %s164, 7
      %s169 = smul.addr %s166, 8
      %s170 = sadd.s32 %s168, %s169
      %s171 = smul.addr %s170, 4
      %s172 = scalar_lea.vmem %s0, %s171
      %p173 = pneg %p49
      %p174 = pneg %p46
      %p175 = pneg %p70
      %p176 = pneg %p67
      %p177 = pneg %p91
      %p178 = pneg %p88
      %p179 = pneg %p119
      %p180 = pneg %p116
      %s181 = smul.u32 8, %s19
      %p182 = scmp.lt.s32.totalorder %s18, 1
      %s183 = scalar_select %p182, %s18, 1
      %p184 = scmp.lt.s32.totalorder %s181, 7
      %s185 = scalar_select %p184, %s181, 7
      %s186 = smul.addr %s185, 2
      %s187 = smul.addr %s183, 16
      %s188 = sadd.s32 %s186, %s187
      %s189 = smul.addr %s188, 4
      %s190 = scalar_lea.vmem %s3, %s189
      %s191 = smul.u32 8, %s19
      %p192 = scmp.lt.s32.totalorder %s18, 1
      %s193 = scalar_select %p192, %s18, 1
      %p194 = scmp.lt.s32.totalorder %s191, 7
      %s195 = scalar_select %p194, %s191, 7
      %s196 = smul.addr %s193, 8
      %s197 = sadd.s32 %s195, %s196
      %s198 = smul.addr %s197, 4
      %s199 = scalar_lea.vmem %s0, %s198
      %s200 = smul.u32 8, %s19
      %s201 = smul.u32 8, %s19
      %p202 = scmp.lt.s32.totalorder %s18, 1
      %s203 = scalar_select %p202, %s18, 1
      %p204 = scmp.lt.s32.totalorder %s201, 7
      %s205 = scalar_select %p204, %s201, 7
      %s206 = smul.addr %s205, 2
      %s207 = smul.addr %s203, 16
      %s208 = sadd.s32 %s206, %s207
      %s209 = smul.addr %s208, 4
      %s210 = scalar_lea.vmem %s3, %s209
      %s211 = smul.u32 8, %s19
      %v213 = vld [vmem:[%s199] sm:$0xf]
      %v214 = vld [vmem:[%s199 + $0x4] sm:$0xf]
      %v215 = vld [vmem:[%s199 + $0x8] sm:$0xf]
      %v216 = vld [vmem:[%s199 + $0xc] sm:$0xf]
      %v217 = vld [vmem:[%s199 + $0x10] sm:$0xf]
      %v218 = vld [vmem:[%s199 + $0x14] sm:$0xf]
      %v219 = vld [vmem:[%s199 + $0x18] sm:$0xf]
      %v220 = vld [vmem:[%s199 + $0x1c] sm:$0xf]
      %v221 = vld [vmem:[%s1] sm:$0xf]
      %v222 = vld [vmem:[%s2] sm:$0x1]
      %v224 = vlaneseq
      %v225 = vshrl.u32 %v224, 7
      %v226 = vsub.s32 0, %v225
      %v227 = vrot.slane %v222, %v226
      %v237 = vunpack.c.l.b16 %v213
      %v238 = vunpack.c.l.b16 %v214
      %v239 = vunpack.c.l.b16 %v215
      %v240 = vunpack.c.l.b16 %v216
      %v241 = vunpack.c.l.b16 %v217
      %v242 = vunpack.c.l.b16 %v218
      %v243 = vunpack.c.l.b16 %v219
      %v244 = vunpack.c.l.b16 %v220
      %v245 = vpack.c.b16 %v238, %v237
      %v246 = vpack.c.b16 %v240, %v239
      %v247 = vpack.c.b16 %v242, %v241
      %v248 = vpack.c.b16 %v244, %v243
      %vm249 = vcmask 64512
      %v251 = vsel %vm249, %v245, 0
      %v254 = vsel %vm249, %v246, 0
      %v257 = vsel %vm249, %v247, 0
      %v260 = vsel %vm249, %v248, 0
      %vm262 = vcmask 1043456
      %v264 = vsel %vm262, %v221, 0
      %266 = vmatprep.subr.bf16.mxu0 0
      %267 = vmatpush1.bf16.msra.mxu0 %v264
      %268 = vmatprep.subr.bf16.mxu0 0
      %269 = vmatpush1.bf16.msra.mxu0 0
      %270 = vmatprep.subr.bf16.mxu0 0
      %271 = vmatpush1.bf16.msra.mxu0 0
      %272 = vmatprep.subr.bf16.mxu0 0
      %273 = vmatpush1.bf16.msra.mxu0 0
      %274 = vmatprep.subr.bf16.mxu0 0
      %275 = vmatpush1.bf16.msra.mxu0 0
      %276 = vmatprep.subr.bf16.mxu0 0
      %277 = vmatpush1.bf16.msra.mxu0 0
      %278 = vmatprep.subr.bf16.mxu0 0
      %279 = vmatpush1.bf16.msra.mxu0 0
      %280 = vmatprep.subr.bf16.mxu0 0
      %281 = vmatpush1.bf16.msra.mxu0 0
      %282 = vmatprep.subr.bf16.mxu0 0
      %283 = vmatpush1.bf16.msra.mxu0 0
      %284 = vmatprep.subr.bf16.mxu0 0
      %285 = vmatpush1.bf16.msra.mxu0 0
      %286 = vmatprep.subr.bf16.mxu0 0
      %287 = vmatpush1.bf16.msra.mxu0 0
      %288 = vmatprep.subr.bf16.mxu0 0
      %289 = vmatpush1.bf16.msra.mxu0 0
      %290 = vmatprep.subr.bf16.mxu0 0
      %291 = vmatpush1.bf16.msra.mxu0 0
      %292 = vmatprep.subr.bf16.mxu0 0
      %293 = vmatpush1.bf16.msra.mxu0 0
      %294 = vmatprep.subr.bf16.mxu0 0
      %295 = vmatpush1.bf16.msra.mxu0 0
      %296 = vmatprep.subr.bf16.mxu0 0
      %297 = vmatpush1.bf16.msra.mxu0 0
      %298 = vmatprep.mubr.bf16.mxu0 0
      %299 = vmatmul.mubr.bf16.gmra.mrb[0].mxu0 %v251
      %v300 = vpop.f32.mrb[0].mxu0
      %v301 = vadd.f32 %v227, %v300
      %v302 = vpop.f32.mrb[0].mxu0
      %v303 = vpop.f32.mrb[0].mxu0
      %v304 = vadd.f32 %v227, %v303
      %v305 = vpop.f32.mrb[0].mxu0
      %306 = vmatprep.mubr.bf16.mxu0 0
      %307 = vmatmul.mubr.bf16.gmra.mrb[0].mxu0 %v254
      %v308 = vpop.f32.mrb[0].mxu0
      %v309 = vadd.f32 %v227, %v308
      %v310 = vpop.f32.mrb[0].mxu0
      %v311 = vpop.f32.mrb[0].mxu0
      %v312 = vadd.f32 %v227, %v311
      %v313 = vpop.f32.mrb[0].mxu0
      %314 = vmatprep.mubr.bf16.mxu0 0
      %315 = vmatmul.mubr.bf16.gmra.mrb[0].mxu0 %v257
      %v316 = vpop.f32.mrb[0].mxu0
      %v317 = vadd.f32 %v227, %v316
      %v318 = vpop.f32.mrb[0].mxu0
      %v319 = vpop.f32.mrb[0].mxu0
      %v320 = vadd.f32 %v227, %v319
      %v321 = vpop.f32.mrb[0].mxu0
      %322 = vmatprep.mubr.bf16.mxu0 0
      %323 = vmatmul.mubr.bf16.gmra.mrb[0].mxu0 %v260
      %v324 = vpop.f32.mrb[0].mxu0
      %v325 = vadd.f32 %v227, %v324
      %v326 = vpop.f32.mrb[0].mxu0
      %v327 = vpop.f32.mrb[0].mxu0
      %v328 = vadd.f32 %v227, %v327
      %v329 = vpop.f32.mrb[0].mxu0
      %330 = vdwg.mxu0
      %v331 = vpack.c.bf16 %v301, %v301
      %v332 = vpack.c.bf16 %v304, %v304
      %v333 = vpack.c.bf16 %v309, %v309
      %v334 = vpack.c.bf16 %v312, %v312
      %v335 = vpack.c.bf16 %v317, %v317
      %v336 = vpack.c.bf16 %v320, %v320
      %v337 = vpack.c.bf16 %v325, %v325
      %v338 = vpack.c.bf16 %v328, %v328
      %vm339 = vcmask 60416
      %340 = vst.msk [vmem:[%s210] sm:$0xf] %vm339, %v331
      %341 = vst.msk [vmem:[%s210 + $0x8] sm:$0xf] %vm339, %v332
      %342 = vst.msk [vmem:[%s210 + $0x10] sm:$0xf] %vm339, %v333
      %343 = vst.msk [vmem:[%s210 + $0x18] sm:$0xf] %vm339, %v334
      %344 = vst.msk [vmem:[%s210 + $0x20] sm:$0xf] %vm339, %v335
      %345 = vst.msk [vmem:[%s210 + $0x28] sm:$0xf] %vm339, %v336
      %346 = vst.msk [vmem:[%s210 + $0x30] sm:$0xf] %vm339, %v337
      %347 = vst.msk [vmem:[%s210 + $0x38] sm:$0xf] %vm339, %v338
      %v356 = vunpack.c.l.b16 %v331
      %v357 = vunpack.c.l.b16 %v332
      %v358 = vunpack.c.l.b16 %v333
      %v359 = vunpack.c.l.b16 %v334
      %v360 = vunpack.c.l.b16 %v335
      %v361 = vunpack.c.l.b16 %v336
      %v362 = vunpack.c.l.b16 %v337
      %v363 = vunpack.c.l.b16 %v338
      %v364 = vpack.c.b16 %v356, %v356
      %v365 = vpack.c.b16 %v357, %v357
      %v366 = vpack.c.b16 %v358, %v358
      %v367 = vpack.c.b16 %v359, %v359
      %v368 = vpack.c.b16 %v360, %v360
      %v369 = vpack.c.b16 %v361, %v361
      %v370 = vpack.c.b16 %v362, %v362
      %v371 = vpack.c.b16 %v363, %v363
      %372 = vrot.lane.b32.xlu0 %v364, 120
      %v373 = vpop.permute.xlu0 %372
      %374 = vrot.lane.b32.xlu0 %v365, 120
      %v375 = vpop.permute.xlu0 %374
      %376 = vrot.lane.b32.xlu0 %v366, 120
      %v377 = vpop.permute.xlu0 %376
      %378 = vrot.lane.b32.xlu0 %v367, 120
      %v379 = vpop.permute.xlu0 %378
      %380 = vrot.lane.b32.xlu0 %v368, 120
      %v381 = vpop.permute.xlu0 %380
      %382 = vrot.lane.b32.xlu0 %v369, 120
      %v383 = vpop.permute.xlu0 %382
      %384 = vrot.lane.b32.xlu0 %v370, 120
      %v385 = vpop.permute.xlu0 %384
      %386 = vrot.lane.b32.xlu0 %v371, 120
      %v387 = vpop.permute.xlu0 %386
      %s396 = scalar_lea.vmem %s210, 4
      %397 = vst.msk [vmem:[%s396] sm:$0xf] %vm339, %v373
      %398 = vst.msk [vmem:[%s396 + $0x8] sm:$0xf] %vm339, %v375
      %399 = vst.msk [vmem:[%s396 + $0x10] sm:$0xf] %vm339, %v377
      %400 = vst.msk [vmem:[%s396 + $0x18] sm:$0xf] %vm339, %v379
      %401 = vst.msk [vmem:[%s396 + $0x20] sm:$0xf] %vm339, %v381
      %402 = vst.msk [vmem:[%s396 + $0x28] sm:$0xf] %vm339, %v383
      %403 = vst.msk [vmem:[%s396 + $0x30] sm:$0xf] %vm339, %v385
      %404 = vst.msk [vmem:[%s396 + $0x38] sm:$0xf] %vm339, %v387
      %s405 = smul.u32 8, %s19
      %p406 = scmp.lt.s32.totalorder %s18, 1
      %s407 = scalar_select %p406, %s18, 1
      %p408 = scmp.lt.s32.totalorder %s405, 7
      %s409 = scalar_select %p408, %s405, 7
      %s410 = smul.addr %s409, 2
      %s411 = smul.addr %s407, 16
      %s412 = sadd.s32 %s410, %s411
      %s413 = smul.addr %s412, 4
      %s414 = scalar_lea.vmem %s3, %s413
      // Predicated region
      $region33: #{decoder_block_forward.3} parent=31 // pred_check
        %p415 = pneg %p116
      $region34: #{decoder_block_forward.3} parent=31 // pred_check_branch
        %417 = sbr.rel (%p415) target = $region36
      $region35: #{decoder_block_forward.3} parent=31 // pred_region
        %s418 = smul.u32 8, %s19
      $region36: #{decoder_block_forward.3} parent=31 // pred_fallthru
        _
    $region32: #{decoder_block_forward.3} parent=5 // pred_fallthru
      _
    %p419 = scmp.le.s32.totalorder 2, %s9
    // Predicated region
    $region37: #{decoder_block_forward.3} parent=5 // pred_check
      %p420 = pneg %p419
    $region38: #{decoder_block_forward.3} parent=5 // pred_check_branch
      %422 = sbr.rel (%p420) target = $region40
    $region39: #{decoder_block_forward.3} parent=5 // pred_region
      %s423 = ssub.s32 %s9, 2
      // Predicated region
      $region41: #{decoder_block_forward.3} parent=39 // pred_check
        %p424 = pneg %p122
      $region42: #{decoder_block_forward.3} parent=39 // pred_check_branch
        %426 = sbr.rel (%p424) target = $region44
      $region43: #{decoder_block_forward.3} parent=39 // pred_region
        %s427 = smul.u32 8, %s21
        %p428 = scmp.lt.s32.totalorder %s20, 1
        %s429 = scalar_select %p428, %s20, 1
        %p430 = scmp.lt.s32.totalorder %s427, 7
        %s431 = scalar_select %p430, %s427, 7
        %s432 = smul.addr %s431, 2
        %s433 = smul.addr %s429, 16
        %s434 = sadd.s32 %s432, %s433
        %s435 = smul.addr %s434, 4
        %s436 = scalar_lea.vmem %s3, %s435
      $region44: #{decoder_block_forward.3} parent=39 // pred_fallthru
        _
    $region40: #{decoder_block_forward.3} parent=5 // pred_fallthru
      _
  $region6: #{decoder_block_forward.3} parent=0 // loop_footer
    %s13 = sadd.s32 1, %s9
  $region7: #{decoder_block_forward.3} parent=0 // loop_footer_branch
    %8 = sbr.rel target = $region3
  $region8: #{decoder_block_forward.3} parent=0 // loop_exit
    _

// kernel: decoder_block_forward.5
$region0: #{decoder_block_forward.5}
  #allocation0 [shape = 'u32[]', space=smem, size = 0x4, offset = 0x4, fixed_abs, tag = 'smem constant byte address 0x4 - core index']
  #allocation1 [shape = 'u32[144,128]{1,0:T(1,128)}', space=vmem, size = 0x12000, scoped, tag = 'internal scratch']
  #allocation2 [shape = 'bf16[18,24,4]{2,1,0:T(8,128)(2,1)}', space=vmem, size = 0x1b000, scoped, tag = 'scratch operand']
  %s0 = inlined_call_operand.vmem [shape: bf16[2,16,16,4], index: 0, kind: input, shape index: {}, may-alias: {0,1,2}]
  %s1 = inlined_call_operand.vmem [shape: bf16[2,16,16,4], index: 1, kind: input, shape index: {}, may-alias: {0,1,2}]
  %s2 = inlined_call_operand.vmem [shape: bf16[2,16,16,4], index: 2, kind: input, shape index: {}, may-alias: {0,1,2}]
  %s3 = inlined_call_operand.vmem [shape: bf16[3,4,12], index: 3, kind: input, shape index: {}]
  %s4 = inlined_call_operand.vmem [shape: f32[1,4], index: 4, kind: input, shape index: {}]
  %s5 = inlined_call_operand.vmem [shape: f32[1,4], index: 5, kind: input, shape index: {}]
  %s6 = inlined_call_operand.vmem [shape: bf16[2,16,16,4], index: 6, kind: output, shape index: {}]
  %s7 = sld [smem:[#allocation0]]
  $region69: #{decoder_block_forward.5} parent=0
    _
  %s9 = ssub.s32 1, %s7
  %s10 = scalar_select 0, %s9, %s7
  loop: start=0, step=1, limit=4
  $region2: #{decoder_block_forward.5} parent=0 // loop_pre_header
    _
  $region3: #{decoder_block_forward.5} parent=0 // loop_header
    %s12 = sphi 0, %s16
    %p13 = scmp.ge.s32.totalorder %s12, 4
    %s19 = sphi 0, %s31
    %s20 = sphi 0, %s27
    %s21 = sphi 0, %s19
    %s22 = sphi 0, %s20
    %s23 = sphi 0, %s21
    %s24 = sphi 0, %s22
    %s36 = sphi 0, %s38
    %s39 = sphi 0, %s36
    %s40 = sphi 0, %s39
    %s56 = sphi 0, %s40
    %s72 = sphi 0, %s74
    %s75 = sphi 0, %s72
    %s76 = sphi 0, %s75
    %s92 = sphi 0, %s76
    %s108 = sphi 0, %s110
    %s111 = sphi 0, %s108
    %s112 = sphi 0, %s111
    %s128 = sphi 0, %s112
    %s132 = sphi 0, %s132
    %s134 = sphi 0, %s132
    %s135 = sphi 0, %s134
    %s149 = sphi 0, %s135
    %s153 = sphi 0, %s153
    %s155 = sphi 0, %s153
    %s156 = sphi 0, %s155
    %s170 = sphi 0, %s156
    %s174 = sphi 0, %s174
    %s176 = sphi 0, %s174
    %s177 = sphi 0, %s176
    %s191 = sphi 0, %s177
    %s199 = sphi 0, %s201
    %s202 = sphi 0, %s199
    %s203 = sphi 0, %s202
    %s219 = sphi 0, %s203
  $region4: #{decoder_block_forward.5} parent=0 // loop_header_branch
    %15 = sbr.rel (%p13) target = $region8
  $region5: #{decoder_block_forward.5} parent=0 // loop_body
    %s17 = ssub.s32 %s12, 1
    %s18 = ssub.s32 %s12, 2
    %s25 = sadd.s32 1, %s20
    %p26 = scmp.ge.s32.totalorder %s25, 1
    %s27 = scalar_select %p26, 0, %s25
    %s28 = sadd.s32 1, %s19
    %s29 = scalar_select %p26, %s28, %s19
    %p30 = scmp.ge.s32.totalorder %s29, 2
    %s31 = scalar_select %p30, 0, %s29
    %s32 = ssub.s32 %s19, %s31
    %s33 = ssub.s32 %s20, %s27
    %s34 = sor.u32 %s32, %s33
    %p35 = scmp.eq.s32.totalorder %s34, 0
    %s37 = sadd.s32 %s36, 1
    %s38 = scalar_select %p35, %s36, %s37
    %p41 = pneg %p35
    %p42 = scmp.eq.s32.totalorder %s12, 1
    %p43 = por %p41, %p42
    %p44 = scmp.ne.s32.totalorder %s36, %s39
    %p45 = scmp.eq.s32.totalorder %s12, 0
    %p46 = por %p44, %p45
    %p47 = scmp.ne.s32.totalorder %s36, %s39
    %p48 = scmp.eq.s32.totalorder %s17, 1
    %p49 = por %p47, %p48
    %p50 = scmp.ne.s32.totalorder %s39, %s40
    %p51 = scmp.eq.s32.totalorder %s17, 0
    %p52 = por %p50, %p51
    %p53 = scmp.ne.s32.totalorder %s39, %s40
    %p54 = scmp.eq.s32.totalorder %s18, 1
    %p55 = por %p53, %p54
    %p57 = scmp.ne.s32.totalorder %s40, %s56
    %p58 = scmp.eq.s32.totalorder %s18, 0
    %p59 = por %p57, %p58
    %s60 = smul.u32 %s20, 16
    %s61 = ssub.s32 %s60, 1
    %p62 = scmp.gt.s32.totalorder %s61, 0
    %s63 = scalar_select %p62, %s61, 0
    %s64 = smul.u32 %s27, 16
    %s65 = ssub.s32 %s64, 1
    %p66 = scmp.gt.s32.totalorder %s65, 0
    %s67 = scalar_select %p66, %s65, 0
    %s68 = ssub.s32 %s19, %s31
    %s69 = ssub.s32 %s63, %s67
    %s70 = sor.u32 %s68, %s69
    %p71 = scmp.eq.s32.totalorder %s70, 0
    %s73 = sadd.s32 %s72, 1
    %s74 = scalar_select %p71, %s72, %s73
    %p77 = pneg %p71
    %p78 = scmp.eq.s32.totalorder %s12, 1
    %p79 = por %p77, %p78
    %p80 = scmp.ne.s32.totalorder %s72, %s75
    %p81 = scmp.eq.s32.totalorder %s12, 0
    %p82 = por %p80, %p81
    %p83 = scmp.ne.s32.totalorder %s72, %s75
    %p84 = scmp.eq.s32.totalorder %s17, 1
    %p85 = por %p83, %p84
    %p86 = scmp.ne.s32.totalorder %s75, %s76
    %p87 = scmp.eq.s32.totalorder %s17, 0
    %p88 = por %p86, %p87
    %p89 = scmp.ne.s32.totalorder %s75, %s76
    %p90 = scmp.eq.s32.totalorder %s18, 1
    %p91 = por %p89, %p90
    %p93 = scmp.ne.s32.totalorder %s76, %s92
    %p94 = scmp.eq.s32.totalorder %s18, 0
    %p95 = por %p93, %p94
    %s96 = sadd.s32 %s20, 1
    %s97 = smul.u32 %s96, 16
    %p98 = scmp.lt.s32.totalorder %s97, 15
    %s99 = scalar_select %p98, %s97, 15
    %s100 = sadd.s32 %s27, 1
    %s101 = smul.u32 %s100, 16
    %p102 = scmp.lt.s32.totalorder %s101, 15
    %s103 = scalar_select %p102, %s101, 15
    %s104 = ssub.s32 %s19, %s31
    %s105 = ssub.s32 %s99, %s103
    %s106 = sor.u32 %s104, %s105
    %p107 = scmp.eq.s32.totalorder %s106, 0
    %s109 = sadd.s32 %s108, 1
    %s110 = scalar_select %p107, %s108, %s109
    %p113 = pneg %p107
    %p114 = scmp.eq.s32.totalorder %s12, 1
    %p115 = por %p113, %p114
    %p116 = scmp.ne.s32.totalorder %s108, %s111
    %p117 = scmp.eq.s32.totalorder %s12, 0
    %p118 = por %p116, %p117
    %p119 = scmp.ne.s32.totalorder %s108, %s111
    %p120 = scmp.eq.s32.totalorder %s17, 1
    %p121 = por %p119, %p120
    %p122 = scmp.ne.s32.totalorder %s111, %s112
    %p123 = scmp.eq.s32.totalorder %s17, 0
    %p124 = por %p122, %p123
    %p125 = scmp.ne.s32.totalorder %s111, %s112
    %p126 = scmp.eq.s32.totalorder %s18, 1
    %p127 = por %p125, %p126
    %p129 = scmp.ne.s32.totalorder %s112, %s128
    %p130 = scmp.eq.s32.totalorder %s18, 0
    %p131 = por %p129, %p130
    %s133 = sadd.s32 %s132, 1
    %p136 = scmp.eq.s32.totalorder %s12, 1
    %p137 = scmp.ne.s32.totalorder %s132, %s134
    %p138 = scmp.eq.s32.totalorder %s12, 0
    %p139 = por %p137, %p138
    %p140 = scmp.ne.s32.totalorder %s132, %s134
    %p141 = scmp.eq.s32.totalorder %s17, 1
    %p142 = por %p140, %p141
    %p143 = scmp.ne.s32.totalorder %s134, %s135
    %p144 = scmp.eq.s32.totalorder %s17, 0
    %p145 = por %p143, %p144
    %p146 = scmp.ne.s32.totalorder %s134, %s135
    %p147 = scmp.eq.s32.totalorder %s18, 1
    %p148 = por %p146, %p147
    %p150 = scmp.ne.s32.totalorder %s135, %s149
    %p151 = scmp.eq.s32.totalorder %s18, 0
    %p152 = por %p150, %p151
    %s154 = sadd.s32 %s153, 1
    %p157 = scmp.eq.s32.totalorder %s12, 1
    %p158 = scmp.ne.s32.totalorder %s153, %s155
    %p159 = scmp.eq.s32.totalorder %s12, 0
    %p160 = por %p158, %p159
    %p161 = scmp.ne.s32.totalorder %s153, %s155
    %p162 = scmp.eq.s32.totalorder %s17, 1
    %p163 = por %p161, %p162
    %p164 = scmp.ne.s32.totalorder %s155, %s156
    %p165 = scmp.eq.s32.totalorder %s17, 0
    %p166 = por %p164, %p165
    %p167 = scmp.ne.s32.totalorder %s155, %s156
    %p168 = scmp.eq.s32.totalorder %s18, 1
    %p169 = por %p167, %p168
    %p171 = scmp.ne.s32.totalorder %s156, %s170
    %p172 = scmp.eq.s32.totalorder %s18, 0
    %p173 = por %p171, %p172
    %s175 = sadd.s32 %s174, 1
    %p178 = scmp.eq.s32.totalorder %s12, 1
    %p179 = scmp.ne.s32.totalorder %s174, %s176
    %p180 = scmp.eq.s32.totalorder %s12, 0
    %p181 = por %p179, %p180
    %p182 = scmp.ne.s32.totalorder %s174, %s176
    %p183 = scmp.eq.s32.totalorder %s17, 1
    %p184 = por %p182, %p183
    %p185 = scmp.ne.s32.totalorder %s176, %s177
    %p186 = scmp.eq.s32.totalorder %s17, 0
    %p187 = por %p185, %p186
    %p188 = scmp.ne.s32.totalorder %s176, %s177
    %p189 = scmp.eq.s32.totalorder %s18, 1
    %p190 = por %p188, %p189
    %p192 = scmp.ne.s32.totalorder %s177, %s191
    %p193 = scmp.eq.s32.totalorder %s18, 0
    %p194 = por %p192, %p193
    %s195 = ssub.s32 %s19, %s31
    %s196 = ssub.s32 %s20, %s27
    %s197 = sor.u32 %s195, %s196
    %p198 = scmp.eq.s32.totalorder %s197, 0
    %s200 = sadd.s32 %s199, 1
    %s201 = scalar_select %p198, %s199, %s200
    %p204 = pneg %p198
    %p205 = scmp.eq.s32.totalorder %s12, 1
    %p206 = por %p204, %p205
    %p207 = scmp.ne.s32.totalorder %s199, %s202
    %p208 = scmp.eq.s32.totalorder %s12, 0
    %p209 = por %p207, %p208
    %p210 = scmp.ne.s32.totalorder %s199, %s202
    %p211 = scmp.eq.s32.totalorder %s17, 1
    %p212 = por %p210, %p211
    %p213 = scmp.ne.s32.totalorder %s202, %s203
    %p214 = scmp.eq.s32.totalorder %s17, 0
    %p215 = por %p213, %p214
    %p216 = scmp.ne.s32.totalorder %s202, %s203
    %p217 = scmp.eq.s32.totalorder %s18, 1
    %p218 = por %p216, %p217
    %p220 = scmp.ne.s32.totalorder %s203, %s219
    %p221 = scmp.eq.s32.totalorder %s18, 0
    %p222 = por %p220, %p221
    %p223 = scmp.le.s32.totalorder 1, %s12
    %p224 = scmp.lt.s32.totalorder %s12, 3
    %p225 = pnand %p223, %p224
    %p226 = pneg %p225
    // Predicated region
    $region9: #{decoder_block_forward.5} parent=5 // pred_check
      _
    $region10: #{decoder_block_forward.5} parent=5 // pred_check_branch
      %228 = sbr.rel (%p225) target = $region12
    $region11: #{decoder_block_forward.5} parent=5 // pred_region
      %s229 = ssub.s32 %s12, 1
      // Predicated region
      $region13: #{decoder_block_forward.5} parent=11 // pred_check
        %p230 = pneg %p145
      $region14: #{decoder_block_forward.5} parent=11 // pred_check_branch
        %232 = sbr.rel (%p230) target = $region16
      $region15: #{decoder_block_forward.5} parent=11 // pred_region
        _
      $region16: #{decoder_block_forward.5} parent=11 // pred_fallthru
        _
      // Predicated region
      $region17: #{decoder_block_forward.5} parent=11 // pred_check
        %p233 = pneg %p166
      $region18: #{decoder_block_forward.5} parent=11 // pred_check_branch
        %235 = sbr.rel (%p233) target = $region20
      $region19: #{decoder_block_forward.5} parent=11 // pred_region
        _
      $region20: #{decoder_block_forward.5} parent=11 // pred_fallthru
        _
      // Predicated region
      $region21: #{decoder_block_forward.5} parent=11 // pred_check
        %p236 = pneg %p187
      $region22: #{decoder_block_forward.5} parent=11 // pred_check_branch
        %238 = sbr.rel (%p236) target = $region24
      $region23: #{decoder_block_forward.5} parent=11 // pred_region
        _
      $region24: #{decoder_block_forward.5} parent=11 // pred_fallthru
        _
    $region12: #{decoder_block_forward.5} parent=5 // pred_fallthru
      _
    %p239 = scmp.lt.s32.totalorder %s12, 2
    // Predicated region
    $region25: #{decoder_block_forward.5} parent=5 // pred_check
      %p240 = pneg %p239
    $region26: #{decoder_block_forward.5} parent=5 // pred_check_branch
      %242 = sbr.rel (%p240) target = $region28
    $region27: #{decoder_block_forward.5} parent=5 // pred_region
      // Predicated region
      $region29: #{decoder_block_forward.5} parent=27 // pred_check
        %p243 = pneg %p46
      $region30: #{decoder_block_forward.5} parent=27 // pred_check_branch
        %245 = sbr.rel (%p243) target = $region32
      $region31: #{decoder_block_forward.5} parent=27 // pred_region
        %s246 = smul.u32 16, %s20
        %p247 = scmp.lt.s32.totalorder %s19, 1
        %s248 = scalar_select %p247, %s19, 1
        %p249 = scmp.lt.s32.totalorder %s246, 15
        %s250 = scalar_select %p249, %s246, 15
        %s251 = smul.addr %s250, 2
        %s252 = smul.addr %s248, 32
        %s253 = sadd.s32 %s251, %s252
        %s254 = smul.addr %s253, 4
        %s255 = scalar_lea.vmem %s0, %s254
        %s256 = smul.u32 16, %s20
      $region32: #{decoder_block_forward.5} parent=27 // pred_fallthru
        _
      // Predicated region
      $region33: #{decoder_block_forward.5} parent=27 // pred_check
        %p257 = pneg %p82
      $region34: #{decoder_block_forward.5} parent=27 // pred_check_branch
        %259 = sbr.rel (%p257) target = $region36
      $region35: #{decoder_block_forward.5} parent=27 // pred_region
        %s260 = smul.u32 %s20, 16
        %s261 = ssub.s32 %s260, 1
        %p262 = scmp.gt.s32.totalorder %s261, 0
        %s263 = scalar_select %p262, %s261, 0
        %p264 = scmp.lt.s32.totalorder %s19, 1
        %s265 = scalar_select %p264, %s19, 1
        %p266 = scmp.lt.s32.totalorder %s263, 15
        %s267 = scalar_select %p266, %s263, 15
        %s268 = smul.addr %s267, 2
        %s269 = smul.addr %s265, 32
        %s270 = sadd.s32 %s268, %s269
        %s271 = smul.addr %s270, 4
        %s272 = scalar_lea.vmem %s1, %s271
        %s273 = smul.u32 %s20, 16
        %s274 = ssub.s32 %s273, 1
        %p275 = scmp.gt.s32.totalorder %s274, 0
        %s276 = scalar_select %p275, %s274, 0
      $region36: #{decoder_block_forward.5} parent=27 // pred_fallthru
        _
      // Predicated region
      $region37: #{decoder_block_forward.5} parent=27 // pred_check
        %p277 = pneg %p118
      $region38: #{decoder_block_forward.5} parent=27 // pred_check_branch
        %279 = sbr.rel (%p277) target = $region40
      $region39: #{decoder_block_forward.5} parent=27 // pred_region
        %s280 = sadd.s32 %s20, 1
        %s281 = smul.u32 %s280, 16
        %p282 = scmp.lt.s32.totalorder %s281, 15
        %s283 = scalar_select %p282, %s281, 15
        %p284 = scmp.lt.s32.totalorder %s19, 1
        %s285 = scalar_select %p284, %s19, 1
        %p286 = scmp.lt.s32.totalorder %s283, 15
        %s287 = scalar_select %p286, %s283, 15
        %s288 = smul.addr %s287, 2
        %s289 = smul.addr %s285, 32
        %s290 = sadd.s32 %s288, %s289
        %s291 = smul.addr %s290, 4
        %s292 = scalar_lea.vmem %s2, %s291
        %s293 = sadd.s32 %s20, 1
        %s294 = smul.u32 %s293, 16
        %p295 = scmp.lt.s32.totalorder %s294, 15
        %s296 = scalar_select %p295, %s294, 15
      $region40: #{decoder_block_forward.5} parent=27 // pred_fallthru
        _
    $region28: #{decoder_block_forward.5} parent=5 // pred_fallthru
      _
    %p297 = scmp.le.s32.totalorder 1, %s12
    %p298 = scmp.lt.s32.totalorder %s12, 3
    %p299 = pnand %p297, %p298
    %p300 = pneg %p299
    // Predicated region
    $region41: #{decoder_block_forward.5} parent=5 // pred_check
      _
    $region42: #{decoder_block_forward.5} parent=5 // pred_check_branch
      %302 = sbr.rel (%p299) target = $region44
    $region43: #{decoder_block_forward.5} parent=5 // pred_region
      %s303 = ssub.s32 %s12, 1
      %s304 = smul.u32 16, %s22
      %p305 = scmp.lt.s32.totalorder %s21, 1
      %s306 = scalar_select %p305, %s21, 1
      %p307 = scmp.lt.s32.totalorder %s304, 15
      %s308 = scalar_select %p307, %s304, 15
      %s309 = smul.addr %s308, 2
      %s310 = smul.addr %s306, 32
      %s311 = sadd.s32 %s309, %s310
      %s312 = smul.addr %s311, 4
      %s313 = scalar_lea.vmem %s0, %s312
      %p314 = pneg %p52
      %p315 = pneg %p49
      %s316 = smul.u32 %s22, 16
      %s317 = ssub.s32 %s316, 1
      %p318 = scmp.gt.s32.totalorder %s317, 0
      %s319 = scalar_select %p318, %s317, 0
      %p320 = scmp.lt.s32.totalorder %s21, 1
      %s321 = scalar_select %p320, %s21, 1
      %p322 = scmp.lt.s32.totalorder %s319, 15
      %s323 = scalar_select %p322, %s319, 15
      %s324 = smul.addr %s323, 2
      %s325 = smul.addr %s321, 32
      %s326 = sadd.s32 %s324, %s325
      %s327 = smul.addr %s326, 4
      %s328 = scalar_lea.vmem %s1, %s327
      %p329 = pneg %p88
      %p330 = pneg %p85
      %s331 = sadd.s32 %s22, 1
      %s332 = smul.u32 %s331, 16
      %p333 = scmp.lt.s32.totalorder %s332, 15
      %s334 = scalar_select %p333, %s332, 15
      %p335 = scmp.lt.s32.totalorder %s21, 1
      %s336 = scalar_select %p335, %s21, 1
      %p337 = scmp.lt.s32.totalorder %s334, 15
      %s338 = scalar_select %p337, %s334, 15
      %s339 = smul.addr %s338, 2
      %s340 = smul.addr %s336, 32
      %s341 = sadd.s32 %s339, %s340
      %s342 = smul.addr %s341, 4
      %s343 = scalar_lea.vmem %s2, %s342
      %p344 = pneg %p124
      %p345 = pneg %p121
      %p346 = pneg %p145
      %p347 = pneg %p142
      %p348 = pneg %p166
      %p349 = pneg %p163
      %p350 = pneg %p187
      %p351 = pneg %p184
      %p352 = pneg %p215
      %p353 = pneg %p212
      %s354 = smul.u32 16, %s22
      %p355 = scmp.lt.s32.totalorder %s21, 1
      %s356 = scalar_select %p355, %s21, 1
      %p357 = scmp.lt.s32.totalorder %s354, 15
      %s358 = scalar_select %p357, %s354, 15
      %s359 = smul.addr %s358, 2
      %s360 = smul.addr %s356, 32
      %s361 = sadd.s32 %s359, %s360
      %s362 = smul.addr %s361, 4
      %s363 = scalar_lea.vmem %s6, %s362
      %s364 = smul.u32 16, %s22
      %p365 = scmp.lt.s32.totalorder %s21, 1
      %s366 = scalar_select %p365, %s21, 1
      %p367 = scmp.lt.s32.totalorder %s364, 15
      %s368 = scalar_select %p367, %s364, 15
      %s369 = smul.addr %s368, 2
      %s370 = smul.addr %s366, 32
      %s371 = sadd.s32 %s369, %s370
      %s372 = smul.addr %s371, 4
      %s373 = scalar_lea.vmem %s0, %s372
      %s374 = smul.u32 16, %s22
      %s375 = smul.u32 %s22, 16
      %s376 = ssub.s32 %s375, 1
      %p377 = scmp.gt.s32.totalorder %s376, 0
      %s378 = scalar_select %p377, %s376, 0
      %p379 = scmp.lt.s32.totalorder %s21, 1
      %s380 = scalar_select %p379, %s21, 1
      %p381 = scmp.lt.s32.totalorder %s378, 15
      %s382 = scalar_select %p381, %s378, 15
      %s383 = smul.addr %s382, 2
      %s384 = smul.addr %s380, 32
      %s385 = sadd.s32 %s383, %s384
      %s386 = smul.addr %s385, 4
      %s387 = scalar_lea.vmem %s1, %s386
      %s388 = smul.u32 %s22, 16
      %s389 = ssub.s32 %s388, 1
      %p390 = scmp.gt.s32.totalorder %s389, 0
      %s391 = scalar_select %p390, %s389, 0
      %s392 = sadd.s32 %s22, 1
      %s393 = smul.u32 %s392, 16
      %p394 = scmp.lt.s32.totalorder %s393, 15
      %s395 = scalar_select %p394, %s393, 15
      %p396 = scmp.lt.s32.totalorder %s21, 1
      %s397 = scalar_select %p396, %s21, 1
      %p398 = scmp.lt.s32.totalorder %s395, 15
      %s399 = scalar_select %p398, %s395, 15
      %s400 = smul.addr %s399, 2
      %s401 = smul.addr %s397, 32
      %s402 = sadd.s32 %s400, %s401
      %s403 = smul.addr %s402, 4
      %s404 = scalar_lea.vmem %s2, %s403
      %s405 = sadd.s32 %s22, 1
      %s406 = smul.u32 %s405, 16
      %p407 = scmp.lt.s32.totalorder %s406, 15
      %s408 = scalar_select %p407, %s406, 15
      %s409 = smul.u32 16, %s22
      %p410 = scmp.lt.s32.totalorder %s21, 1
      %s411 = scalar_select %p410, %s21, 1
      %p412 = scmp.lt.s32.totalorder %s409, 15
      %s413 = scalar_select %p412, %s409, 15
      %s414 = smul.addr %s413, 2
      %s415 = smul.addr %s411, 32
      %s416 = sadd.s32 %s414, %s415
      %s417 = smul.addr %s416, 4
      %s418 = scalar_lea.vmem %s6, %s417
      %s419 = smul.u32 16, %s22
      %vm421 = vcmask 24576
      %vm422 = vsmask.f32 256
      %vm423 = vmand %vm421, %vm422
      %v424 = vld [vmem:[#allocation2] sm:$0x1]
      %v425 = vsel %vm423, 0, %v424
      %426 = vst [vmem:[#allocation2] sm:$0x1] %v425
      %v427 = vld [vmem:[#allocation2 + $0xc] sm:$0x1]
      %v428 = vsel %vm423, 0, %v427
      %429 = vst [vmem:[#allocation2 + $0xc] sm:$0x1] %v428
      %v430 = vld [vmem:[#allocation2 + $0x18] sm:$0x1]
      %v431 = vsel %vm423, 0, %v430
      %432 = vst [vmem:[#allocation2 + $0x18] sm:$0x1] %v431
      %v433 = vld [vmem:[#allocation2 + $0x24] sm:$0x1]
      %v434 = vsel %vm423, 0, %v433
      %435 = vst [vmem:[#allocation2 + $0x24] sm:$0x1] %v434
      %v436 = vld [vmem:[#allocation2 + $0x30] sm:$0x1]
      %v437 = vsel %vm423, 0, %v436
      %438 = vst [vmem:[#allocation2 + $0x30] sm:$0x1] %v437
      %v439 = vld [vmem:[#allocation2 + $0x3c] sm:$0x1]
      %v440 = vsel %vm423, 0, %v439
      %441 = vst [vmem:[#allocation2 + $0x3c] sm:$0x1] %v440
      %v442 = vld [vmem:[#allocation2 + $0x48] sm:$0x1]
      %v443 = vsel %vm423, 0, %v442
      %444 = vst [vmem:[#allocation2 + $0x48] sm:$0x1] %v443
      %v445 = vld [vmem:[#allocation2 + $0x54] sm:$0x1]
      %v446 = vsel %vm423, 0, %v445
      %447 = vst [vmem:[#allocation2 + $0x54] sm:$0x1] %v446
      %v448 = vld [vmem:[#allocation2 + $0x60] sm:$0x1]
      %v449 = vsel %vm423, 0, %v448
      %450 = vst [vmem:[#allocation2 + $0x60] sm:$0x1] %v449
      %v451 = vld [vmem:[#allocation2 + $0x6c] sm:$0x1]
      %v452 = vsel %vm423, 0, %v451
      %453 = vst [vmem:[#allocation2 + $0x6c] sm:$0x1] %v452
      %v454 = vld [vmem:[#allocation2 + $0x78] sm:$0x1]
      %v455 = vsel %vm423, 0, %v454
      %456 = vst [vmem:[#allocation2 + $0x78] sm:$0x1] %v455
      %v457 = vld [vmem:[#allocation2 + $0x84] sm:$0x1]
      %v458 = vsel %vm423, 0, %v457
      %459 = vst [vmem:[#allocation2 + $0x84] sm:$0x1] %v458
      %v460 = vld [vmem:[#allocation2 + $0x90] sm:$0x1]
      %v461 = vsel %vm423, 0, %v460
      %462 = vst [vmem:[#allocation2 + $0x90] sm:$0x1] %v461
      %v463 = vld [vmem:[#allocation2 + $0x9c] sm:$0x1]
      %v464 = vsel %vm423, 0, %v463
      %465 = vst [vmem:[#allocation2 + $0x9c] sm:$0x1] %v464
      %v466 = vld [vmem:[#allocation2 + $0xa8] sm:$0x1]
      %v467 = vsel %vm423, 0, %v466
      %468 = vst [vmem:[#allocation2 + $0xa8] sm:$0x1] %v467
      %v469 = vld [vmem:[#allocation2 + $0xb4] sm:$0x1]
      %v470 = vsel %vm423, 0, %v469
      %471 = vst [vmem:[#allocation2 + $0xb4] sm:$0x1] %v470
      %v472 = vld [vmem:[#allocation2 + $0xc0] sm:$0x1]
      %v473 = vsel %vm423, 0, %v472
      %474 = vst [vmem:[#allocation2 + $0xc0] sm:$0x1] %v473
      %v475 = vld [vmem:[#allocation2 + $0xcc] sm:$0x1]
      %v476 = vsel %vm423, 0, %v475
      %477 = vst [vmem:[#allocation2 + $0xcc] sm:$0x1] %v476
      %vm478 = vcmask 27648
      %vm479 = vsmask.f32 7938
      %vm480 = vmand %vm478, %vm479
      %v481 = vld [vmem:[#allocation2 + $0x8] sm:$0xf]
      %v482 = vsel %vm480, 0, %v481
      %483 = vst [vmem:[#allocation2 + $0x8] sm:$0xf] %v482
      %v484 = vld [vmem:[#allocation2 + $0x14] sm:$0xf]
      %v485 = vsel %vm480, 0, %v484
      %486 = vst [vmem:[#allocation2 + $0x14] sm:$0xf] %v485
      %v487 = vld [vmem:[#allocation2 + $0x20] sm:$0xf]
      %v488 = vsel %vm480, 0, %v487
      %489 = vst [vmem:[#allocation2 + $0x20] sm:$0xf] %v488
      %v490 = vld [vmem:[#allocation2 + $0x2c] sm:$0xf]
      %v491 = vsel %vm480, 0, %v490
      %492 = vst [vmem:[#allocation2 + $0x2c] sm:$0xf] %v491
      %v493 = vld [vmem:[#allocation2 + $0x38] sm:$0xf]
      %v494 = vsel %vm480, 0, %v493
      %495 = vst [vmem:[#allocation2 + $0x38] sm:$0xf] %v494
      %v496 = vld [vmem:[#allocation2 + $0x44] sm:$0xf]
      %v497 = vsel %vm480, 0, %v496
      %498 = vst [vmem:[#allocation2 + $0x44] sm:$0xf] %v497
      %v499 = vld [vmem:[#allocation2 + $0x50] sm:$0xf]
      %v500 = vsel %vm480, 0, %v499
      %501 = vst [vmem:[#allocation2 + $0x50] sm:$0xf] %v500
      %v502 = vld [vmem:[#allocation2 + $0x5c] sm:$0xf]
      %v503 = vsel %vm480, 0, %v502
      %504 = vst [vmem:[#allocation2 + $0x5c] sm:$0xf] %v503
      %v505 = vld [vmem:[#allocation2 + $0x68] sm:$0xf]
      %v506 = vsel %vm480, 0, %v505
      %507 = vst [vmem:[#allocation2 + $0x68] sm:$0xf] %v506
      %v508 = vld [vmem:[#allocation2 + $0x74] sm:$0xf]
      %v509 = vsel %vm480, 0, %v508
      %510 = vst [vmem:[#allocation2 + $0x74] sm:$0xf] %v509
      %v511 = vld [vmem:[#allocation2 + $0x80] sm:$0xf]
      %v512 = vsel %vm480, 0, %v511
      %513 = vst [vmem:[#allocation2 + $0x80] sm:$0xf] %v512
      %v514 = vld [vmem:[#allocation2 + $0x8c] sm:$0xf]
      %v515 = vsel %vm480, 0, %v514
      %516 = vst [vmem:[#allocation2 + $0x8c] sm:$0xf] %v515
      %v517 = vld [vmem:[#allocation2 + $0x98] sm:$0xf]
      %v518 = vsel %vm480, 0, %v517
      %519 = vst [vmem:[#allocation2 + $0x98] sm:$0xf] %v518
      %v520 = vld [vmem:[#allocation2 + $0xa4] sm:$0xf]
      %v521 = vsel %vm480, 0, %v520
      %522 = vst [vmem:[#allocation2 + $0xa4] sm:$0xf] %v521
      %v523 = vld [vmem:[#allocation2 + $0xb0] sm:$0xf]
      %v524 = vsel %vm480, 0, %v523
      %525 = vst [vmem:[#allocation2 + $0xb0] sm:$0xf] %v524
      %v526 = vld [vmem:[#allocation2 + $0xbc] sm:$0xf]
      %v527 = vsel %vm480, 0, %v526
      %528 = vst [vmem:[#allocation2 + $0xbc] sm:$0xf] %v527
      %v529 = vld [vmem:[#allocation2 + $0xc8] sm:$0xf]
      %v530 = vsel %vm480, 0, %v529
      %531 = vst [vmem:[#allocation2 + $0xc8] sm:$0xf] %v530
      %v532 = vld [vmem:[#allocation2 + $0xd4] sm:$0xf]
      %v533 = vsel %vm480, 0, %v532
      %534 = vst [vmem:[#allocation2 + $0xd4] sm:$0xf] %v533
      %p535 = scmp.eq.s32.totalorder %s22, 0
      // Predicated region
      $region45: #{decoder_block_forward.5} parent=43 // pred_check
        %p536 = pneg %p535
      $region46: #{decoder_block_forward.5} parent=43 // pred_check_branch
        %538 = sbr.rel (%p536) target = $region48
      $region47: #{decoder_block_forward.5} parent=43 // pred_region
        %v539 = vld [vmem:[#allocation2] sm:$0xf]
        %v540 = vsel %vm480, 0, %v539
        %541 = vst [vmem:[#allocation2] sm:$0xf] %v540
        %vm542 = vcmask 27648
        %543 = vst.msk [vmem:[#allocation2 + $0x4] sm:$0xf] %vm542, 0
        %v544 = vld [vmem:[#allocation2 + $0x8] sm:$0x1]
        %v545 = vsel %vm423, 0, %v544
        %546 = vst [vmem:[#allocation2 + $0x8] sm:$0x1] %v545
        %s547 = scalar_lea.vmem [#allocation2], 204
        %v548 = vld [vmem:[%s547] sm:$0xf]
        %v549 = vsel %vm480, 0, %v548
        %550 = vst [vmem:[%s547] sm:$0xf] %v549
        %551 = vst.msk [vmem:[%s547 + $0x4] sm:$0xf] %vm542, 0
        %v552 = vld [vmem:[%s547 + $0x8] sm:$0x1]
        %v553 = vsel %vm423, 0, %v552
        %554 = vst [vmem:[%s547 + $0x8] sm:$0x1] %v553
      $region48: #{decoder_block_forward.5} parent=43 // pred_fallthru
        _
      %v555 = vld [vmem:[%s373] sm:$0xf]
      %v556 = vld [vmem:[%s373 + $0x4] sm:$0xf]
      %v557 = vld [vmem:[%s373 + $0x8] sm:$0xf]
      %v558 = vld [vmem:[%s373 + $0xc] sm:$0xf]
      %v559 = vld [vmem:[%s373 + $0x10] sm:$0xf]
      %v560 = vld [vmem:[%s373 + $0x14] sm:$0xf]
      %v561 = vld [vmem:[%s373 + $0x18] sm:$0xf]
      %v562 = vld [vmem:[%s373 + $0x1c] sm:$0xf]
      %v563 = vld [vmem:[%s373 + $0x20] sm:$0xf]
      %v564 = vld [vmem:[%s373 + $0x24] sm:$0xf]
      %v565 = vld [vmem:[%s373 + $0x28] sm:$0xf]
      %v566 = vld [vmem:[%s373 + $0x2c] sm:$0xf]
      %v567 = vld [vmem:[%s373 + $0x30] sm:$0xf]
      %v568 = vld [vmem:[%s373 + $0x34] sm:$0xf]
      %v569 = vld [vmem:[%s373 + $0x38] sm:$0xf]
      %v570 = vld [vmem:[%s373 + $0x3c] sm:$0xf]
      %v571 = vld [vmem:[%s373 + $0x40] sm:$0xf]
      %v572 = vld [vmem:[%s373 + $0x44] sm:$0xf]
      %v573 = vld [vmem:[%s373 + $0x48] sm:$0xf]
      %v574 = vld [vmem:[%s373 + $0x4c] sm:$0xf]
      %v575 = vld [vmem:[%s373 + $0x50] sm:$0xf]
      %v576 = vld [vmem:[%s373 + $0x54] sm:$0xf]
      %v577 = vld [vmem:[%s373 + $0x58] sm:$0xf]
      %v578 = vld [vmem:[%s373 + $0x5c] sm:$0xf]
      %v579 = vld [vmem:[%s373 + $0x60] sm:$0xf]
      %v580 = vld [vmem:[%s373 + $0x64] sm:$0xf]
      %v581 = vld [vmem:[%s373 + $0x68] sm:$0xf]
      %v582 = vld [vmem:[%s373 + $0x6c] sm:$0xf]
      %v583 = vld [vmem:[%s373 + $0x70] sm:$0xf]
      %v584 = vld [vmem:[%s373 + $0x74] sm:$0xf]
      %v585 = vld [vmem:[%s373 + $0x78] sm:$0xf]
      %v586 = vld [vmem:[%s373 + $0x7c] sm:$0xf]
      %vm587 = vsmask.f32 4368
      %vm588 = vmor %vm422, %vm587
      %v590 = vshrl.u32 %v555, 16
      %v592 = vrot.slane %v590, 7
      %v593 = vshll.u32 %v555, 16
      %v595 = vor.u32 %v592, %v593
      %v596 = vrot.slane %v592, 4
      %v598 = vshrl.u32 %v556, 16
      %v600 = vrot.slane %v598, 7
      %v601 = vshll.u32 %v556, 16
      %v603 = vor.u32 %v600, %v601
      %v604 = vsel %vm588, %v596, %v603
      %v605 = vrot.slane %v600, 4
      %v607 = vshrl.u32 %v557, 16
      %v609 = vrot.slane %v607, 7
      %v610 = vshll.u32 %v557, 16
      %v612 = vor.u32 %v609, %v610
      %v613 = vrot.slane %v609, 4
      %v615 = vshrl.u32 %v558, 16
      %v617 = vrot.slane %v615, 7
      %v618 = vshll.u32 %v558, 16
      %v620 = vor.u32 %v617, %v618
      %v621 = vsel %vm588, %v613, %v620
      %v622 = vrot.slane %v617, 4
      %v624 = vshrl.u32 %v559, 16
      %v626 = vrot.slane %v624, 7
      %v627 = vshll.u32 %v559, 16
      %v629 = vor.u32 %v626, %v627
      %v630 = vrot.slane %v626, 4
      %v632 = vshrl.u32 %v560, 16
      %v634 = vrot.slane %v632, 7
      %v635 = vshll.u32 %v560, 16
      %v637 = vor.u32 %v634, %v635
      %v638 = vsel %vm588, %v630, %v637
      %v639 = vrot.slane %v634, 4
      %v641 = vshrl.u32 %v561, 16
      %v643 = vrot.slane %v641, 7
      %v644 = vshll.u32 %v561, 16
      %v646 = vor.u32 %v643, %v644
      %v647 = vrot.slane %v643, 4
      %v649 = vshrl.u32 %v562, 16
      %v651 = vrot.slane %v649, 7
      %v652 = vshll.u32 %v562, 16
      %v654 = vor.u32 %v651, %v652
      %v655 = vsel %vm588, %v647, %v654
      %v656 = vrot.slane %v651, 4
      %v658 = vshrl.u32 %v563, 16
      %v660 = vrot.slane %v658, 7
      %v661 = vshll.u32 %v563, 16
      %v663 = vor.u32 %v660, %v661
      %v664 = vrot.slane %v660, 4
      %v666 = vshrl.u32 %v564, 16
      %v668 = vrot.slane %v666, 7
      %v669 = vshll.u32 %v564, 16
      %v671 = vor.u32 %v668, %v669
      %v672 = vsel %vm588, %v664, %v671
      %v673 = vrot.slane %v668, 4
      %v675 = vshrl.u32 %v565, 16
      %v677 = vrot.slane %v675, 7
      %v678 = vshll.u32 %v565, 16
      %v680 = vor.u32 %v677, %v678
      %v681 = vrot.slane %v677, 4
      %v683 = vshrl.u32 %v566, 16
      %v685 = vrot.slane %v683, 7
      %v686 = vshll.u32 %v566, 16
      %v688 = vor.u32 %v685, %v686
      %v689 = vsel %vm588, %v681, %v688
      %v690 = vrot.slane %v685, 4
      %v692 = vshrl.u32 %v567, 16
      %v694 = vrot.slane %v692, 7
      %v695 = vshll.u32 %v567, 16
      %v697 = vor.u32 %v694, %v695
      %v698 = vrot.slane %v694, 4
      %v700 = vshrl.u32 %v568, 16
      %v702 = vrot.slane %v700, 7
      %v703 = vshll.u32 %v568, 16
      %v705 = vor.u32 %v702, %v703
      %v706 = vsel %vm588, %v698, %v705
      %v707 = vrot.slane %v702, 4
      %v709 = vshrl.u32 %v569, 16
      %v711 = vrot.slane %v709, 7
      %v712 = vshll.u32 %v569, 16
      %v714 = vor.u32 %v711, %v712
      %v715 = vrot.slane %v711, 4
      %v717 = vshrl.u32 %v570, 16
      %v719 = vrot.slane %v717, 7
      %v720 = vshll.u32 %v570, 16
      %v722 = vor.u32 %v719, %v720
      %v723 = vsel %vm588, %v715, %v722
      %v724 = vrot.slane %v719, 4
      %v726 = vshrl.u32 %v571, 16
      %v728 = vrot.slane %v726, 7
      %v729 = vshll.u32 %v571, 16
      %v731 = vor.u32 %v728, %v729
      %v732 = vrot.slane %v728, 4
      %v734 = vshrl.u32 %v572, 16
      %v736 = vrot.slane %v734, 7
      %v737 = vshll.u32 %v572, 16
      %v739 = vor.u32 %v736, %v737
      %v740 = vsel %vm588, %v732, %v739
      %v741 = vrot.slane %v736, 4
      %v743 = vshrl.u32 %v573, 16
      %v745 = vrot.slane %v743, 7
      %v746 = vshll.u32 %v573, 16
      %v748 = vor.u32 %v745, %v746
      %v749 = vrot.slane %v745, 4
      %v751 = vshrl.u32 %v574, 16
      %v753 = vrot.slane %v751, 7
      %v754 = vshll.u32 %v574, 16
      %v756 = vor.u32 %v753, %v754
      %v757 = vsel %vm588, %v749, %v756
      %v758 = vrot.slane %v753, 4
      %v760 = vshrl.u32 %v575, 16
      %v762 = vrot.slane %v760, 7
      %v763 = vshll.u32 %v575, 16
      %v765 = vor.u32 %v762, %v763
      %v766 = vrot.slane %v762, 4
      %v768 = vshrl.u32 %v576, 16
      %v770 = vrot.slane %v768, 7
      %v771 = vshll.u32 %v576, 16
      %v773 = vor.u32 %v770, %v771
      %v774 = vsel %vm588, %v766, %v773
      %v775 = vrot.slane %v770, 4
      %v777 = vshrl.u32 %v577, 16
      %v779 = vrot.slane %v777, 7
      %v780 = vshll.u32 %v577, 16
      %v782 = vor.u32 %v779, %v780
      %v783 = vrot.slane %v779, 4
      %v785 = vshrl.u32 %v578, 16
      %v787 = vrot.slane %v785, 7
      %v788 = vshll.u32 %v578, 16
      %v790 = vor.u32 %v787, %v788
      %v791 = vsel %vm588, %v783, %v790
      %v792 = vrot.slane %v787, 4
      %v794 = vshrl.u32 %v579, 16
      %v796 = vrot.slane %v794, 7
      %v797 = vshll.u32 %v579, 16
      %v799 = vor.u32 %v796, %v797
      %v800 = vrot.slane %v796, 4
      %v802 = vshrl.u32 %v580, 16
      %v804 = vrot.slane %v802, 7
      %v805 = vshll.u32 %v580, 16
      %v807 = vor.u32 %v804, %v805
      %v808 = vsel %vm588, %v800, %v807
      %v809 = vrot.slane %v804, 4
      %v811 = vshrl.u32 %v581, 16
      %v813 = vrot.slane %v811, 7
      %v814 = vshll.u32 %v581, 16
      %v816 = vor.u32 %v813, %v814
      %v817 = vrot.slane %v813, 4
      %v819 = vshrl.u32 %v582, 16
      %v821 = vrot.slane %v819, 7
      %v822 = vshll.u32 %v582, 16
      %v824 = vor.u32 %v821, %v822
      %v825 = vsel %vm588, %v817, %v824
      %v826 = vrot.slane %v821, 4
      %v828 = vshrl.u32 %v583, 16
      %v830 = vrot.slane %v828, 7
      %v831 = vshll.u32 %v583, 16
      %v833 = vor.u32 %v830, %v831
      %v834 = vrot.slane %v830, 4
      %v836 = vshrl.u32 %v584, 16
      %v838 = vrot.slane %v836, 7
      %v839 = vshll.u32 %v584, 16
      %v841 = vor.u32 %v838, %v839
      %v842 = vsel %vm588, %v834, %v841
      %v843 = vrot.slane %v838, 4
      %v845 = vshrl.u32 %v585, 16
      %v847 = vrot.slane %v845, 7
      %v848 = vshll.u32 %v585, 16
      %v850 = vor.u32 %v847, %v848
      %v851 = vrot.slane %v847, 4
      %v853 = vshrl.u32 %v586, 16
      %v855 = vrot.slane %v853, 7
      %v856 = vshll.u32 %v586, 16
      %v858 = vor.u32 %v855, %v856
      %v859 = vsel %vm588, %v851, %v858
      %v860 = vrot.slane %v855, 4
      %s909 = scalar_lea.vmem [#allocation2], 12
      %v910 = vld [vmem:[%s909] sm:$0xf]
      %v911 = vsel %vm480, %v595, %v910
      %912 = vst [vmem:[%s909] sm:$0xf] %v911
      %vm913 = vcmask 27648
      %914 = vst.msk [vmem:[%s909 + $0x4] sm:$0xf] %vm913, %v604
      %v915 = vld [vmem:[%s909 + $0x8] sm:$0x1]
      %v916 = vsel %vm423, %v605, %v915
      %917 = vst [vmem:[%s909 + $0x8] sm:$0x1] %v916
      %v918 = vld [vmem:[%s909 + $0xc] sm:$0xf]
      %v919 = vsel %vm480, %v612, %v918
      %920 = vst [vmem:[%s909 + $0xc] sm:$0xf] %v919
      %921 = vst.msk [vmem:[%s909 + $0x10] sm:$0xf] %vm913, %v621
      %v922 = vld [vmem:[%s909 + $0x14] sm:$0x1]
      %v923 = vsel %vm423, %v622, %v922
      %924 = vst [vmem:[%s909 + $0x14] sm:$0x1] %v923
      %v925 = vld [vmem:[%s909 + $0x18] sm:$0xf]
      %v926 = vsel %vm480, %v629, %v925
      %927 = vst [vmem:[%s909 + $0x18] sm:$0xf] %v926
      %928 = vst.msk [vmem:[%s909 + $0x1c] sm:$0xf] %vm913, %v638
      %v929 = vld [vmem:[%s909 + $0x20] sm:$0x1]
      %v930 = vsel %vm423, %v639, %v929
      %931 = vst [vmem:[%s909 + $0x20] sm:$0x1] %v930
      %v932 = vld [vmem:[%s909 + $0x24] sm:$0xf]
      %v933 = vsel %vm480, %v646, %v932
      %934 = vst [vmem:[%s909 + $0x24] sm:$0xf] %v933
      %935 = vst.msk [vmem:[%s909 + $0x28] sm:$0xf] %vm913, %v655
      %v936 = vld [vmem:[%s909 + $0x2c] sm:$0x1]
      %v937 = vsel %vm423, %v656, %v936
      %938 = vst [vmem:[%s909 + $0x2c] sm:$0x1] %v937
      %v939 = vld [vmem:[%s909 + $0x30] sm:$0xf]
      %v940 = vsel %vm480, %v663, %v939
      %941 = vst [vmem:[%s909 + $0x30] sm:$0xf] %v940
      %942 = vst.msk [vmem:[%s909 + $0x34] sm:$0xf] %vm913, %v672
      %v943 = vld [vmem:[%s909 + $0x38] sm:$0x1]
      %v944 = vsel %vm423, %v673, %v943
      %945 = vst [vmem:[%s909 + $0x38] sm:$0x1] %v944
      %v946 = vld [vmem:[%s909 + $0x3c] sm:$0xf]
      %v947 = vsel %vm480, %v680, %v946
      %948 = vst [vmem:[%s909 + $0x3c] sm:$0xf] %v947
      %949 = vst.msk [vmem:[%s909 + $0x40] sm:$0xf] %vm913, %v689
      %v950 = vld [vmem:[%s909 + $0x44] sm:$0x1]
      %v951 = vsel %vm423, %v690, %v950
      %952 = vst [vmem:[%s909 + $0x44] sm:$0x1] %v951
      %v953 = vld [vmem:[%s909 + $0x48] sm:$0xf]
      %v954 = vsel %vm480, %v697, %v953
      %955 = vst [vmem:[%s909 + $0x48] sm:$0xf] %v954
      %956 = vst.msk [vmem:[%s909 + $0x4c] sm:$0xf] %vm913, %v706
      %v957 = vld [vmem:[%s909 + $0x50] sm:$0x1]
      %v958 = vsel %vm423, %v707, %v957
      %959 = vst [vmem:[%s909 + $0x50] sm:$0x1] %v958
      %v960 = vld [vmem:[%s909 + $0x54] sm:$0xf]
      %v961 = vsel %vm480, %v714, %v960
      %962 = vst [vmem:[%s909 + $0x54] sm:$0xf] %v961
      %963 = vst.msk [vmem:[%s909 + $0x58] sm:$0xf] %vm913, %v723
      %v964 = vld [vmem:[%s909 + $0x5c] sm:$0x1]
      %v965 = vsel %vm423, %v724, %v964
      %966 = vst [vmem:[%s909 + $0x5c] sm:$0x1] %v965
      %v967 = vld [vmem:[%s909 + $0x60] sm:$0xf]
      %v968 = vsel %vm480, %v731, %v967
      %969 = vst [vmem:[%s909 + $0x60] sm:$0xf] %v968
      %970 = vst.msk [vmem:[%s909 + $0x64] sm:$0xf] %vm913, %v740
      %v971 = vld [vmem:[%s909 + $0x68] sm:$0x1]
      %v972 = vsel %vm423, %v741, %v971
      %973 = vst [vmem:[%s909 + $0x68] sm:$0x1] %v972
      %v974 = vld [vmem:[%s909 + $0x6c] sm:$0xf]
      %v975 = vsel %vm480, %v748, %v974
      %976 = vst [vmem:[%s909 + $0x6c] sm:$0xf] %v975
      %977 = vst.msk [vmem:[%s909 + $0x70] sm:$0xf] %vm913, %v757
      %v978 = vld [vmem:[%s909 + $0x74] sm:$0x1]
      %v979 = vsel %vm423, %v758, %v978
      %980 = vst [vmem:[%s909 + $0x74] sm:$0x1] %v979
      %v981 = vld [vmem:[%s909 + $0x78] sm:$0xf]
      %v982 = vsel %vm480, %v765, %v981
      %983 = vst [vmem:[%s909 + $0x78] sm:$0xf] %v982
      %984 = vst.msk [vmem:[%s909 + $0x7c] sm:$0xf] %vm913, %v774
      %v985 = vld [vmem:[%s909 + $0x80] sm:$0x1]
      %v986 = vsel %vm423, %v775, %v985
      %987 = vst [vmem:[%s909 + $0x80] sm:$0x1] %v986
      %v988 = vld [vmem:[%s909 + $0x84] sm:$0xf]
      %v989 = vsel %vm480, %v782, %v988
      %990 = vst [vmem:[%s909 + $0x84] sm:$0xf] %v989
      %991 = vst.msk [vmem:[%s909 + $0x88] sm:$0xf] %vm913, %v791
      %v992 = vld [vmem:[%s909 + $0x8c] sm:$0x1]
      %v993 = vsel %vm423, %v792, %v992
      %994 = vst [vmem:[%s909 + $0x8c] sm:$0x1] %v993
      %v995 = vld [vmem:[%s909 + $0x90] sm:$0xf]
      %v996 = vsel %vm480, %v799, %v995
      %997 = vst [vmem:[%s909 + $0x90] sm:$0xf] %v996
      %998 = vst.msk [vmem:[%s909 + $0x94] sm:$0xf] %vm913, %v808
      %v999 = vld [vmem:[%s909 + $0x98] sm:$0x1]
      %v1000 = vsel %vm423, %v809, %v999
      %1001 = vst [vmem:[%s909 + $0x98] sm:$0x1] %v1000
      %v1002 = vld [vmem:[%s909 + $0x9c] sm:$0xf]
      %v1003 = vsel %vm480, %v816, %v1002
      %1004 = vst [vmem:[%s909 + $0x9c] sm:$0xf] %v1003
      %1005 = vst.msk [vmem:[%s909 + $0xa0] sm:$0xf] %vm913, %v825
      %v1006 = vld [vmem:[%s909 + $0xa4] sm:$0x1]
      %v1007 = vsel %vm423, %v826, %v1006
      %1008 = vst [vmem:[%s909 + $0xa4] sm:$0x1] %v1007
      %v1009 = vld [vmem:[%s909 + $0xa8] sm:$0xf]
      %v1010 = vsel %vm480, %v833, %v1009
      %1011 = vst [vmem:[%s909 + $0xa8] sm:$0xf] %v1010
      %1012 = vst.msk [vmem:[%s909 + $0xac] sm:$0xf] %vm913, %v842
      %v1013 = vld [vmem:[%s909 + $0xb0] sm:$0x1]
      %v1014 = vsel %vm423, %v843, %v1013
      %1015 = vst [vmem:[%s909 + $0xb0] sm:$0x1] %v1014
      %v1016 = vld [vmem:[%s909 + $0xb4] sm:$0xf]
      %v1017 = vsel %vm480, %v850, %v1016
      %1018 = vst [vmem:[%s909 + $0xb4] sm:$0xf] %v1017
      %1019 = vst.msk [vmem:[%s909 + $0xb8] sm:$0xf] %vm913, %v859
      %v1020 = vld [vmem:[%s909 + $0xbc] sm:$0x1]
      %v1021 = vsel %vm423, %v860, %v1020
      %1022 = vst [vmem:[%s909 + $0xbc] sm:$0x1] %v1021
      %p1023 = scmp.gt.s32.totalorder %s22, 0
      // Predicated region
      $region49: #{decoder_block_forward.5} parent=43 // pred_check
        %p1024 = pneg %p1023
      $region50: #{decoder_block_forward.5} parent=43 // pred_check_branch
        %1026 = sbr.rel (%p1024) target = $region52
      $region51: #{decoder_block_forward.5} parent=43 // pred_region
        %v1027 = vld [vmem:[%s387] sm:$0xf]
        %v1028 = vld [vmem:[%s387 + $0x4] sm:$0xf]
        %v1030 = vshrl.u32 %v1027, 16
        %v1032 = vrot.slane %v1030, 7
        %v1033 = vshll.u32 %v1027, 16
        %v1035 = vor.u32 %v1032, %v1033
        %v1036 = vrot.slane %v1032, 4
        %v1038 = vshrl.u32 %v1028, 16
        %v1040 = vrot.slane %v1038, 7
        %v1041 = vshll.u32 %v1028, 16
        %v1043 = vor.u32 %v1040, %v1041
        %v1044 = vsel %vm588, %v1036, %v1043
        %v1045 = vrot.slane %v1040, 4
        %v1049 = vld [vmem:[#allocation2] sm:$0xf]
        %v1050 = vsel %vm480, %v1035, %v1049
        %1051 = vst [vmem:[#allocation2] sm:$0xf] %v1050
        %1052 = vst.msk [vmem:[#allocation2 + $0x4] sm:$0xf] %vm913, %v1044
        %v1053 = vld [vmem:[#allocation2 + $0x8] sm:$0x1]
        %v1054 = vsel %vm423, %v1045, %v1053
        %1055 = vst [vmem:[#allocation2 + $0x8] sm:$0x1] %v1054
      $region52: #{decoder_block_forward.5} parent=43 // pred_fallthru
        _
      %p1056 = scmp.lt.s32.totalorder %s22, 0
      // Predicated region
      $region53: #{decoder_block_forward.5} parent=43 // pred_check
        %p1057 = pneg %p1056
      $region54: #{decoder_block_forward.5} parent=43 // pred_check_branch
        %1059 = sbr.rel (%p1057) target = $region56
      $region55: #{decoder_block_forward.5} parent=43 // pred_region
        %v1060 = vld [vmem:[%s404] sm:$0xf]
        %v1061 = vld [vmem:[%s404 + $0x4] sm:$0xf]
        %v1063 = vshrl.u32 %v1060, 16
        %v1065 = vrot.slane %v1063, 7
        %v1066 = vshll.u32 %v1060, 16
        %v1068 = vor.u32 %v1065, %v1066
        %v1069 = vrot.slane %v1065, 4
        %v1071 = vshrl.u32 %v1061, 16
        %v1073 = vrot.slane %v1071, 7
        %v1074 = vshll.u32 %v1061, 16
        %v1076 = vor.u32 %v1073, %v1074
        %v1077 = vsel %vm588, %v1069, %v1076
        %v1078 = vrot.slane %v1073, 4
        %s1082 = scalar_lea.vmem [#allocation2], 204
        %v1083 = vld [vmem:[%s1082] sm:$0xf]
        %v1084 = vsel %vm480, %v1068, %v1083
        %1085 = vst [vmem:[%s1082] sm:$0xf] %v1084
        %1086 = vst.msk [vmem:[%s1082 + $0x4] sm:$0xf] %vm913, %v1077
        %v1087 = vld [vmem:[%s1082 + $0x8] sm:$0x1]
        %v1088 = vsel %vm423, %v1078, %v1087
        %1089 = vst [vmem:[%s1082 + $0x8] sm:$0x1] %v1088
      $region56: #{decoder_block_forward.5} parent=43 // pred_fallthru
        _
      %v1090 = vld [vmem:[#allocation2] sm:$0xf]
      %v1091 = vld [vmem:[#allocation2 + $0x4] sm:$0xf]
      %v1092 = vld [vmem:[#allocation2 + $0x8] sm:$0xf]
      %v1093 = vld [vmem:[#allocation2 + $0xc] sm:$0xf]
      %v1094 = vld [vmem:[#allocation2 + $0x10] sm:$0xf]
      %v1095 = vld [vmem:[#allocation2 + $0x14] sm:$0xf]
      %v1096 = vld [vmem:[#allocation2 + $0x18] sm:$0xf]
      %v1097 = vld [vmem:[#allocation2 + $0x1c] sm:$0xf]
      %v1098 = vld [vmem:[#allocation2 + $0x20] sm:$0xf]
      %v1099 = vld [vmem:[#allocation2 + $0x24] sm:$0xf]
      %v1100 = vld [vmem:[#allocation2 + $0x28] sm:$0xf]
      %v1101 = vld [vmem:[#allocation2 + $0x2c] sm:$0xf]
      %v1102 = vld [vmem:[#allocation2 + $0x30] sm:$0xf]
      %v1103 = vld [vmem:[#allocation2 + $0x34] sm:$0xf]
      %v1104 = vld [vmem:[#allocation2 + $0x38] sm:$0xf]
      %v1105 = vld [vmem:[#allocation2 + $0x3c] sm:$0xf]
      %v1106 = vld [vmem:[#allocation2 + $0x40] sm:$0xf]
      %v1107 = vld [vmem:[#allocation2 + $0x44] sm:$0xf]
      %v1108 = vld [vmem:[#allocation2 + $0x48] sm:$0xf]
      %v1109 = vld [vmem:[#allocation2 + $0x4c] sm:$0xf]
      %v1110 = vld [vmem:[#allocation2 + $0x50] sm:$0xf]
      %v1111 = vld [vmem:[#allocation2 + $0x54] sm:$0xf]
      %v1112 = vld [vmem:[#allocation2 + $0x58] sm:$0xf]
      %v1113 = vld [vmem:[#allocation2 + $0x5c] sm:$0xf]
      %v1114 = vld [vmem:[#allocation2 + $0x60] sm:$0xf]
      %v1115 = vld [vmem:[#allocation2 + $0x64] sm:$0xf]
      %v1116 = vld [vmem:[#allocation2 + $0x68] sm:$0xf]
      %v1117 = vld [vmem:[#allocation2 + $0x6c] sm:$0xf]
      %v1118 = vld [vmem:[#allocation2 + $0x70] sm:$0xf]
      %v1119 = vld [vmem:[#allocation2 + $0x74] sm:$0xf]
      %v1120 = vld [vmem:[#allocation2 + $0x78] sm:$0xf]
      %v1121 = vld [vmem:[#allocation2 + $0x7c] sm:$0xf]
      %v1122 = vld [vmem:[#allocation2 + $0x80] sm:$0xf]
      %v1123 = vld [vmem:[#allocation2 + $0x84] sm:$0xf]
      %v1124 = vld [vmem:[#allocation2 + $0x88] sm:$0xf]
      %v1125 = vld [vmem:[#allocation2 + $0x8c] sm:$0xf]
      %v1126 = vld [vmem:[#allocation2 + $0x90] sm:$0xf]
      %v1127 = vld [vmem:[#allocation2 + $0x94] sm:$0xf]
      %v1128 = vld [vmem:[#allocation2 + $0x98] sm:$0xf]
      %v1129 = vld [vmem:[#allocation2 + $0x9c] sm:$0xf]
      %v1130 = vld [vmem:[#allocation2 + $0xa0] sm:$0xf]
      %v1131 = vld [vmem:[#allocation2 + $0xa4] sm:$0xf]
      %v1132 = vld [vmem:[#allocation2 + $0xa8] sm:$0xf]
      %v1133 = vld [vmem:[#allocation2 + $0xac] sm:$0xf]
      %v1134 = vld [vmem:[#allocation2 + $0xb0] sm:$0xf]
      %v1135 = vld [vmem:[#allocation2 + $0xb4] sm:$0xf]
      %v1136 = vld [vmem:[#allocation2 + $0xb8] sm:$0xf]
      %v1137 = vld [vmem:[#allocation2 + $0xbc] sm:$0xf]
      %v1138 = vld [vmem:[%s3] sm:$0x3]
      %v1187 = vunpack.c.l.b16 %v1090
      %v1188 = vunpack.c.l.b16 %v1091
      %v1189 = vunpack.c.l.b16 %v1092
      %v1190 = vunpack.c.l.b16 %v1093
      %v1191 = vunpack.c.l.b16 %v1094
      %v1192 = vunpack.c.l.b16 %v1095
      %v1193 = vunpack.c.l.b16 %v1096
      %v1194 = vunpack.c.l.b16 %v1097
      %v1195 = vunpack.c.l.b16 %v1098
      %v1196 = vunpack.c.l.b16 %v1099
      %v1197 = vunpack.c.l.b16 %v1100
      %v1198 = vunpack.c.l.b16 %v1101
      %v1199 = vunpack.c.l.b16 %v1102
      %v1200 = vunpack.c.l.b16 %v1103
      %v1201 = vunpack.c.l.b16 %v1104
      %v1202 = vunpack.c.l.b16 %v1105
      %v1203 = vunpack.c.l.b16 %v1106
      %v1204 = vunpack.c.l.b16 %v1107
      %v1205 = vunpack.c.l.b16 %v1108
      %v1206 = vunpack.c.l.b16 %v1109
      %v1207 = vunpack.c.l.b16 %v1110
      %v1208 = vunpack.c.l.b16 %v1111
      %v1209 = vunpack.c.l.b16 %v1112
      %v1210 = vunpack.c.l.b16 %v1113
      %v1211 = vunpack.c.l.b16 %v1114
      %v1212 = vunpack.c.l.b16 %v1115
      %v1213 = vunpack.c.l.b16 %v1116
      %v1214 = vunpack.c.l.b16 %v1117
      %v1215 = vunpack.c.l.b16 %v1118
      %v1216 = vunpack.c.l.b16 %v1119
      %v1217 = vunpack.c.l.b16 %v1120
      %v1218 = vunpack.c.l.b16 %v1121
      %v1219 = vunpack.c.l.b16 %v1122
      %v1220 = vunpack.c.l.b16 %v1123
      %v1221 = vunpack.c.l.b16 %v1124
      %v1222 = vunpack.c.l.b16 %v1125
      %v1223 = vunpack.c.l.b16 %v1126
      %v1224 = vunpack.c.l.b16 %v1127
      %v1225 = vunpack.c.l.b16 %v1128
      %v1226 = vunpack.c.l.b16 %v1129
      %v1227 = vunpack.c.l.b16 %v1130
      %v1228 = vunpack.c.l.b16 %v1131
      %v1229 = vunpack.c.l.b16 %v1132
      %v1230 = vunpack.c.l.b16 %v1133
      %v1231 = vunpack.c.l.b16 %v1134
      %v1232 = vunpack.c.l.b16 %v1135
      %v1233 = vunpack.c.l.b16 %v1136
      %v1234 = vunpack.c.l.b16 %v1137
      %v1235 = vpack.c.b16 %v1188, %v1187
      %v1236 = vpack.c.b16 %v1190, %v1189
      %v1237 = vpack.c.b16 %v1192, %v1191
      %v1238 = vpack.c.b16 %v1194, %v1193
      %v1239 = vpack.c.b16 %v1196, %v1195
      %v1240 = vpack.c.b16 %v1198, %v1197
      %v1241 = vpack.c.b16 %v1200, %v1199
      %v1242 = vpack.c.b16 %v1202, %v1201
      %v1243 = vpack.c.b16 %v1204, %v1203
      %v1244 = vpack.c.b16 %v1206, %v1205
      %v1245 = vpack.c.b16 %v1208, %v1207
      %v1246 = vpack.c.b16 %v1210, %v1209
      %v1247 = vpack.c.b16 %v1212, %v1211
      %v1248 = vpack.c.b16 %v1214, %v1213
      %v1249 = vpack.c.b16 %v1216, %v1215
      %v1250 = vpack.c.b16 %v1218, %v1217
      %v1251 = vpack.c.b16 %v1220, %v1219
      %v1252 = vpack.c.b16 %v1222, %v1221
      %v1253 = vpack.c.b16 %v1224, %v1223
      %v1254 = vpack.c.b16 %v1226, %v1225
      %v1255 = vpack.c.b16 %v1228, %v1227
      %v1256 = vpack.c.b16 %v1230, %v1229
      %v1257 = vpack.c.b16 %v1232, %v1231
      %v1258 = vpack.c.b16 %v1234, %v1233
      %vm1259 = vcmask 31744
      %v1261 = vsel %vm1259, %v1235, 0
      %v1264 = vsel %vm1259, %v1236, 0
      %v1267 = vsel %vm1259, %v1237, 0
      %v1270 = vsel %vm1259, %v1238, 0
      %v1273 = vsel %vm1259, %v1239, 0
      %v1276 = vsel %vm1259, %v1240, 0
      %v1279 = vsel %vm1259, %v1241, 0
      %v1282 = vsel %vm1259, %v1242, 0
      %v1285 = vsel %vm1259, %v1243, 0
      %v1288 = vsel %vm1259, %v1244, 0
      %v1291 = vsel %vm1259, %v1245, 0
      %v1294 = vsel %vm1259, %v1246, 0
      %v1297 = vsel %vm1259, %v1247, 0
      %v1300 = vsel %vm1259, %v1248, 0
      %v1303 = vsel %vm1259, %v1249, 0
      %v1306 = vsel %vm1259, %v1250, 0
      %v1309 = vsel %vm1259, %v1251, 0
      %v1312 = vsel %vm1259, %v1252, 0
      %v1315 = vsel %vm1259, %v1253, 0
      %v1318 = vsel %vm1259, %v1254, 0
      %v1321 = vsel %vm1259, %v1255, 0
      %v1324 = vsel %vm1259, %v1256, 0
      %v1327 = vsel %vm1259, %v1257, 0
      %v1330 = vsel %vm1259, %v1258, 0
      %vm1332 = vcmask 1041408
      %v1334 = vsel %vm1332, %v1138, 0
      %1336 = vmatprep.subr.bf16.mxu0 0
      %1337 = vmatpush1.bf16.msra.mxu0 %v1334
      %1338 = vmatprep.subr.bf16.mxu0 0
      %1339 = vmatpush1.bf16.msra.mxu0 0
      %1340 = vmatprep.subr.bf16.mxu0 0
      %1341 = vmatpush1.bf16.msra.mxu0 0
      %1342 = vmatprep.subr.bf16.mxu0 0
      %1343 = vmatpush1.bf16.msra.mxu0 0
      %1344 = vmatprep.subr.bf16.mxu0 0
      %1345 = vmatpush1.bf16.msra.mxu0 0
      %1346 = vmatprep.subr.bf16.mxu0 0
      %1347 = vmatpush1.bf16.msra.mxu0 0
      %1348 = vmatprep.subr.bf16.mxu0 0
      %1349 = vmatpush1.bf16.msra.mxu0 0
      %1350 = vmatprep.subr.bf16.mxu0 0
      %1351 = vmatpush1.bf16.msra.mxu0 0
      %1352 = vmatprep.subr.bf16.mxu0 0
      %1353 = vmatpush1.bf16.msra.mxu0 0
      %1354 = vmatprep.subr.bf16.mxu0 0
      %1355 = vmatpush1.bf16.msra.mxu0 0
      %1356 = vmatprep.subr.bf16.mxu0 0
      %1357 = vmatpush1.bf16.msra.mxu0 0
      %1358 = vmatprep.subr.bf16.mxu0 0
      %1359 = vmatpush1.bf16.msra.mxu0 0
      %1360 = vmatprep.subr.bf16.mxu0 0
      %1361 = vmatpush1.bf16.msra.mxu0 0
      %1362 = vmatprep.subr.bf16.mxu0 0
      %1363 = vmatpush1.bf16.msra.mxu0 0
      %1364 = vmatprep.subr.bf16.mxu0 0
      %1365 = vmatpush1.bf16.msra.mxu0 0
      %1366 = vmatprep.subr.bf16.mxu0 0
      %1367 = vmatpush1.bf16.msra.mxu0 0
      %1368 = vmatprep.mubr.bf16.mxu0 0
      %1369 = vmatmul.mubr.bf16.gmra.mrb[0].mxu0 %v1261
      %v1370 = vpop.f32.mrb[0].mxu0
      %v1371 = vadd.f32 0.0, %v1370
      %v1372 = vpop.f32.mrb[0].mxu0
      %v1373 = vpop.f32.mrb[0].mxu0
      %v1374 = vadd.f32 0.0, %v1373
      %v1375 = vpop.f32.mrb[0].mxu0
      %1376 = vmatprep.mubr.bf16.mxu0 0
      %1377 = vmatmul.mubr.bf16.gmra.mrb[0].mxu0 %v1264
      %v1378 = vpop.f32.mrb[0].mxu0
      %v1379 = vadd.f32 0.0, %v1378
      %v1380 = vpop.f32.mrb[0].mxu0
      %v1381 = vpop.f32.mrb[0].mxu0
      %v1382 = vadd.f32 0.0, %v1381
      %v1383 = vpop.f32.mrb[0].mxu0
      %1384 = vmatprep.mubr.bf16.mxu0 0
      %1385 = vmatmul.mubr.bf16.gmra.mrb[0].mxu0 %v1267
      %v1386 = vpop.f32.mrb[0].mxu0
      %v1387 = vadd.f32 0.0, %v1386
      %v1388 = vpop.f32.mrb[0].mxu0
      %v1389 = vpop.f32.mrb[0].mxu0
      %v1390 = vadd.f32 0.0, %v1389
      %v1391 = vpop.f32.mrb[0].mxu0
      %1392 = vmatprep.mubr.bf16.mxu0 0
      %1393 = vmatmul.mubr.bf16.gmra.mrb[0].mxu0 %v1270
      %v1394 = vpop.f32.mrb[0].mxu0
      %v1395 = vadd.f32 0.0, %v1394
      %v1396 = vpop.f32.mrb[0].mxu0
      %v1397 = vpop.f32.mrb[0].mxu0
      %v1398 = vadd.f32 0.0, %v1397
      %v1399 = vpop.f32.mrb[0].mxu0
      %1400 = vmatprep.mubr.bf16.mxu0 0
      %1401 = vmatmul.mubr.bf16.gmra.mrb[0].mxu0 %v1273
      %v1402 = vpop.f32.mrb[0].mxu0
      %v1403 = vadd.f32 0.0, %v1402
      %v1404 = vpop.f32.mrb[0].mxu0
      %v1405 = vpop.f32.mrb[0].mxu0
      %v1406 = vadd.f32 0.0, %v1405
      %v1407 = vpop.f32.mrb[0].mxu0
      %1408 = vmatprep.mubr.bf16.mxu0 0
      %1409 = vmatmul.mubr.bf16.gmra.mrb[0].mxu0 %v1276
      %v1410 = vpop.f32.mrb[0].mxu0
      %v1411 = vadd.f32 0.0, %v1410
      %v1412 = vpop.f32.mrb[0].mxu0
      %v1413 = vpop.f32.mrb[0].mxu0
      %v1414 = vadd.f32 0.0, %v1413
      %v1415 = vpop.f32.mrb[0].mxu0
      %1416 = vmatprep.mubr.bf16.mxu0 0
      %1417 = vmatmul.mubr.bf16.gmra.mrb[0].mxu0 %v1279
      %v1418 = vpop.f32.mrb[0].mxu0
      %v1419 = vadd.f32 0.0, %v1418
      %v1420 = vpop.f32.mrb[0].mxu0
      %v1421 = vpop.f32.mrb[0].mxu0
      %v1422 = vadd.f32 0.0, %v1421
      %v1423 = vpop.f32.mrb[0].mxu0
      %1424 = vmatprep.mubr.bf16.mxu0 0
      %1425 = vmatmul.mubr.bf16.gmra.mrb[0].mxu0 %v1282
      %v1426 = vpop.f32.mrb[0].mxu0
      %v1427 = vadd.f32 0.0, %v1426
      %v1428 = vpop.f32.mrb[0].mxu0
      %v1429 = vpop.f32.mrb[0].mxu0
      %v1430 = vadd.f32 0.0, %v1429
      %v1431 = vpop.f32.mrb[0].mxu0
      %1432 = vmatprep.mubr.bf16.mxu0 0
      %1433 = vmatmul.mubr.bf16.gmra.mrb[0].mxu0 %v1285
      %v1434 = vpop.f32.mrb[0].mxu0
      %v1435 = vadd.f32 0.0, %v1434
      %v1436 = vpop.f32.mrb[0].mxu0
      %v1437 = vpop.f32.mrb[0].mxu0
      %v1438 = vadd.f32 0.0, %v1437
      %v1439 = vpop.f32.mrb[0].mxu0
      %1440 = vmatprep.mubr.bf16.mxu0 0
      %1441 = vmatmul.mubr.bf16.gmra.mrb[0].mxu0 %v1288
      %v1442 = vpop.f32.mrb[0].mxu0
      %v1443 = vadd.f32 0.0, %v1442
      %v1444 = vpop.f32.mrb[0].mxu0
      %v1445 = vpop.f32.mrb[0].mxu0
      %v1446 = vadd.f32 0.0, %v1445
      %v1447 = vpop.f32.mrb[0].mxu0
      %1448 = vmatprep.mubr.bf16.mxu0 0
      %1449 = vmatmul.mubr.bf16.gmra.mrb[0].mxu0 %v1291
      %v1450 = vpop.f32.mrb[0].mxu0
      %v1451 = vadd.f32 0.0, %v1450
      %v1452 = vpop.f32.mrb[0].mxu0
      %v1453 = vpop.f32.mrb[0].mxu0
      %v1454 = vadd.f32 0.0, %v1453
      %v1455 = vpop.f32.mrb[0].mxu0
      %1456 = vmatprep.mubr.bf16.mxu0 0
      %1457 = vmatmul.mubr.bf16.gmra.mrb[0].mxu0 %v1294
      %v1458 = vpop.f32.mrb[0].mxu0
      %v1459 = vadd.f32 0.0, %v1458
      %v1460 = vpop.f32.mrb[0].mxu0
      %v1461 = vpop.f32.mrb[0].mxu0
      %v1462 = vadd.f32 0.0, %v1461
      %v1463 = vpop.f32.mrb[0].mxu0
      %1464 = vmatprep.mubr.bf16.mxu0 0
      %1465 = vmatmul.mubr.bf16.gmra.mrb[0].mxu0 %v1297
      %v1466 = vpop.f32.mrb[0].mxu0
      %v1467 = vadd.f32 0.0, %v1466
      %v1468 = vpop.f32.mrb[0].mxu0
      %v1469 = vpop.f32.mrb[0].mxu0
      %v1470 = vadd.f32 0.0, %v1469
      %v1471 = vpop.f32.mrb[0].mxu0
      %1472 = vmatprep.mubr.bf16.mxu0 0
      %1473 = vmatmul.mubr.bf16.gmra.mrb[0].mxu0 %v1300
      %v1474 = vpop.f32.mrb[0].mxu0
      %v1475 = vadd.f32 0.0, %v1474
      %v1476 = vpop.f32.mrb[0].mxu0
      %v1477 = vpop.f32.mrb[0].mxu0
      %v1478 = vadd.f32 0.0, %v1477
      %v1479 = vpop.f32.mrb[0].mxu0
      %1480 = vmatprep.mubr.bf16.mxu0 0
      %1481 = vmatmul.mubr.bf16.gmra.mrb[0].mxu0 %v1303
      %v1482 = vpop.f32.mrb[0].mxu0
      %v1483 = vadd.f32 0.0, %v1482
      %v1484 = vpop.f32.mrb[0].mxu0
      %v1485 = vpop.f32.mrb[0].mxu0
      %v1486 = vadd.f32 0.0, %v1485
      %v1487 = vpop.f32.mrb[0].mxu0
      %1488 = vmatprep.mubr.bf16.mxu0 0
      %1489 = vmatmul.mubr.bf16.gmra.mrb[0].mxu0 %v1306
      %v1490 = vpop.f32.mrb[0].mxu0
      %v1491 = vadd.f32 0.0, %v1490
      %v1492 = vpop.f32.mrb[0].mxu0
      %v1493 = vpop.f32.mrb[0].mxu0
      %v1494 = vadd.f32 0.0, %v1493
      %v1495 = vpop.f32.mrb[0].mxu0
      %1496 = vmatprep.mubr.bf16.mxu0 0
      %1497 = vmatmul.mubr.bf16.gmra.mrb[0].mxu0 %v1309
      %v1498 = vpop.f32.mrb[0].mxu0
      %v1499 = vadd.f32 0.0, %v1498
      %v1500 = vpop.f32.mrb[0].mxu0
      %v1501 = vpop.f32.mrb[0].mxu0
      %v1502 = vadd.f32 0.0, %v1501
      %v1503 = vpop.f32.mrb[0].mxu0
      %1504 = vmatprep.mubr.bf16.mxu0 0
      %1505 = vmatmul.mubr.bf16.gmra.mrb[0].mxu0 %v1312
      %v1506 = vpop.f32.mrb[0].mxu0
      %v1507 = vadd.f32 0.0, %v1506
      %v1508 = vpop.f32.mrb[0].mxu0
      %v1509 = vpop.f32.mrb[0].mxu0
      %v1510 = vadd.f32 0.0, %v1509
      %v1511 = vpop.f32.mrb[0].mxu0
      %1512 = vmatprep.mubr.bf16.mxu0 0
      %1513 = vmatmul.mubr.bf16.gmra.mrb[0].mxu0 %v1315
      %v1514 = vpop.f32.mrb[0].mxu0
      %v1515 = vadd.f32 0.0, %v1514
      %v1516 = vpop.f32.mrb[0].mxu0
      %v1517 = vpop.f32.mrb[0].mxu0
      %v1518 = vadd.f32 0.0, %v1517
      %v1519 = vpop.f32.mrb[0].mxu0
      %1520 = vmatprep.mubr.bf16.mxu0 0
      %1521 = vmatmul.mubr.bf16.gmra.mrb[0].mxu0 %v1318
      %v1522 = vpop.f32.mrb[0].mxu0
      %v1523 = vadd.f32 0.0, %v1522
      %v1524 = vpop.f32.mrb[0].mxu0
      %v1525 = vpop.f32.mrb[0].mxu0
      %v1526 = vadd.f32 0.0, %v1525
      %v1527 = vpop.f32.mrb[0].mxu0
      %1528 = vmatprep.mubr.bf16.mxu0 0
      %1529 = vmatmul.mubr.bf16.gmra.mrb[0].mxu0 %v1321
      %v1530 = vpop.f32.mrb[0].mxu0
      %v1531 = vadd.f32 0.0, %v1530
      %v1532 = vpop.f32.mrb[0].mxu0
      %v1533 = vpop.f32.mrb[0].mxu0
      %v1534 = vadd.f32 0.0, %v1533
      %v1535 = vpop.f32.mrb[0].mxu0
      %1536 = vmatprep.mubr.bf16.mxu0 0
      %1537 = vmatmul.mubr.bf16.gmra.mrb[0].mxu0 %v1324
      %v1538 = vpop.f32.mrb[0].mxu0
      %v1539 = vadd.f32 0.0, %v1538
      %v1540 = vpop.f32.mrb[0].mxu0
      %v1541 = vpop.f32.mrb[0].mxu0
      %v1542 = vadd.f32 0.0, %v1541
      %v1543 = vpop.f32.mrb[0].mxu0
      %1544 = vmatprep.mubr.bf16.mxu0 0
      %1545 = vmatmul.mubr.bf16.gmra.mrb[0].mxu0 %v1327
      %v1546 = vpop.f32.mrb[0].mxu0
      %v1547 = vadd.f32 0.0, %v1546
      %v1548 = vpop.f32.mrb[0].mxu0
      %v1549 = vpop.f32.mrb[0].mxu0
      %v1550 = vadd.f32 0.0, %v1549
      %v1551 = vpop.f32.mrb[0].mxu0
      %1552 = vmatprep.mubr.bf16.mxu0 0
      %1553 = vmatmul.mubr.bf16.gmra.mrb[0].mxu0 %v1330
      %v1554 = vpop.f32.mrb[0].mxu0
      %v1555 = vadd.f32 0.0, %v1554
      %v1556 = vpop.f32.mrb[0].mxu0
      %v1557 = vpop.f32.mrb[0].mxu0
      %v1558 = vadd.f32 0.0, %v1557
      %v1559 = vpop.f32.mrb[0].mxu0
      %1560 = vdwg.mxu0
      %vm1609 = vcmask 1046528
      %v1610 = vrot.slane %v1371, 1
      %v1611 = vrot.slane %v1374, 1
      %v1612 = vsel %vm1609, %v1610, %v1611
      %v1613 = vrot.slane %v1379, 1
      %v1614 = vsel %vm1609, %v1611, %v1613
      %v1615 = vrot.slane %v1382, 1
      %v1616 = vrot.slane %v1387, 1
      %v1617 = vsel %vm1609, %v1615, %v1616
      %v1618 = vrot.slane %v1390, 1
      %v1619 = vsel %vm1609, %v1616, %v1618
      %v1620 = vrot.slane %v1395, 1
      %v1621 = vrot.slane %v1398, 1
      %v1622 = vsel %vm1609, %v1620, %v1621
      %v1623 = vrot.slane %v1403, 1
      %v1624 = vsel %vm1609, %v1621, %v1623
      %v1625 = vrot.slane %v1406, 1
      %v1626 = vrot.slane %v1411, 1
      %v1627 = vsel %vm1609, %v1625, %v1626
      %v1628 = vrot.slane %v1414, 1
      %v1629 = vsel %vm1609, %v1626, %v1628
      %v1630 = vrot.slane %v1419, 1
      %v1631 = vrot.slane %v1422, 1
      %v1632 = vsel %vm1609, %v1630, %v1631
      %v1633 = vrot.slane %v1427, 1
      %v1634 = vsel %vm1609, %v1631, %v1633
      %v1635 = vrot.slane %v1430, 1
      %v1636 = vrot.slane %v1435, 1
      %v1637 = vsel %vm1609, %v1635, %v1636
      %v1638 = vrot.slane %v1438, 1
      %v1639 = vsel %vm1609, %v1636, %v1638
      %v1640 = vrot.slane %v1443, 1
      %v1641 = vrot.slane %v1446, 1
      %v1642 = vsel %vm1609, %v1640, %v1641
      %v1643 = vrot.slane %v1451, 1
      %v1644 = vsel %vm1609, %v1641, %v1643
      %v1645 = vrot.slane %v1454, 1
      %v1646 = vrot.slane %v1459, 1
      %v1647 = vsel %vm1609, %v1645, %v1646
      %v1648 = vrot.slane %v1462, 1
      %v1649 = vsel %vm1609, %v1646, %v1648
      %v1650 = vrot.slane %v1467, 1
      %v1651 = vrot.slane %v1470, 1
      %v1652 = vsel %vm1609, %v1650, %v1651
      %v1653 = vrot.slane %v1475, 1
      %v1654 = vsel %vm1609, %v1651, %v1653
      %v1655 = vrot.slane %v1478, 1
      %v1656 = vrot.slane %v1483, 1
      %v1657 = vsel %vm1609, %v1655, %v1656
      %v1658 = vrot.slane %v1486, 1
      %v1659 = vsel %vm1609, %v1656, %v1658
      %v1660 = vrot.slane %v1491, 1
      %v1661 = vrot.slane %v1494, 1
      %v1662 = vsel %vm1609, %v1660, %v1661
      %v1663 = vrot.slane %v1499, 1
      %v1664 = vsel %vm1609, %v1661, %v1663
      %v1665 = vrot.slane %v1502, 1
      %v1666 = vrot.slane %v1507, 1
      %v1667 = vsel %vm1609, %v1665, %v1666
      %v1668 = vrot.slane %v1510, 1
      %v1669 = vsel %vm1609, %v1666, %v1668
      %v1670 = vrot.slane %v1515, 1
      %v1671 = vrot.slane %v1518, 1
      %v1672 = vsel %vm1609, %v1670, %v1671
      %v1673 = vrot.slane %v1523, 1
      %v1674 = vsel %vm1609, %v1671, %v1673
      %v1675 = vrot.slane %v1526, 1
      %v1676 = vrot.slane %v1531, 1
      %v1677 = vsel %vm1609, %v1675, %v1676
      %v1678 = vrot.slane %v1534, 1
      %v1679 = vsel %vm1609, %v1676, %v1678
      %v1680 = vrot.slane %v1539, 1
      %v1681 = vrot.slane %v1542, 1
      %v1682 = vsel %vm1609, %v1680, %v1681
      %v1683 = vrot.slane %v1547, 1
      %v1684 = vsel %vm1609, %v1681, %v1683
      %v1685 = vrot.slane %v1550, 1
      %v1686 = vrot.slane %v1555, 1
      %v1687 = vsel %vm1609, %v1685, %v1686
      %v1688 = vrot.slane %v1558, 1
      %v1689 = vsel %vm1609, %v1686, %v1688
      %1690 = vrot.lane.b32.xlu0 %v1612, 124
      %v1691 = vpop.permute.xlu0 %1690
      %1692 = vrot.lane.b32.xlu0 %v1614, 124
      %v1693 = vpop.permute.xlu0 %1692
      %1694 = vrot.lane.b32.xlu0 %v1617, 124
      %v1695 = vpop.permute.xlu0 %1694
      %1696 = vrot.lane.b32.xlu0 %v1619, 124
      %v1697 = vpop.permute.xlu0 %1696
      %1698 = vrot.lane.b32.xlu0 %v1622, 124
      %v1699 = vpop.permute.xlu0 %1698
      %1700 = vrot.lane.b32.xlu0 %v1624, 124
      %v1701 = vpop.permute.xlu0 %1700
      %1702 = vrot.lane.b32.xlu0 %v1627, 124
      %v1703 = vpop.permute.xlu0 %1702
      %1704 = vrot.lane.b32.xlu0 %v1629, 124
      %v1705 = vpop.permute.xlu0 %1704
      %1706 = vrot.lane.b32.xlu0 %v1632, 124
      %v1707 = vpop.permute.xlu0 %1706
      %1708 = vrot.lane.b32.xlu0 %v1634, 124
      %v1709 = vpop.permute.xlu0 %1708
      %1710 = vrot.lane.b32.xlu0 %v1637, 124
      %v1711 = vpop.permute.xlu0 %1710
      %1712 = vrot.lane.b32.xlu0 %v1639, 124
      %v1713 = vpop.permute.xlu0 %1712
      %1714 = vrot.lane.b32.xlu0 %v1642, 124
      %v1715 = vpop.permute.xlu0 %1714
      %1716 = vrot.lane.b32.xlu0 %v1644, 124
      %v1717 = vpop.permute.xlu0 %1716
      %1718 = vrot.lane.b32.xlu0 %v1647, 124
      %v1719 = vpop.permute.xlu0 %1718
      %1720 = vrot.lane.b32.xlu0 %v1649, 124
      %v1721 = vpop.permute.xlu0 %1720
      %1722 = vrot.lane.b32.xlu0 %v1652, 124
      %v1723 = vpop.permute.xlu0 %1722
      %1724 = vrot.lane.b32.xlu0 %v1654, 124
      %v1725 = vpop.permute.xlu0 %1724
      %1726 = vrot.lane.b32.xlu0 %v1657, 124
      %v1727 = vpop.permute.xlu0 %1726
      %1728 = vrot.lane.b32.xlu0 %v1659, 124
      %v1729 = vpop.permute.xlu0 %1728
      %1730 = vrot.lane.b32.xlu0 %v1662, 124
      %v1731 = vpop.permute.xlu0 %1730
      %1732 = vrot.lane.b32.xlu0 %v1664, 124
      %v1733 = vpop.permute.xlu0 %1732
      %1734 = vrot.lane.b32.xlu0 %v1667, 124
      %v1735 = vpop.permute.xlu0 %1734
      %1736 = vrot.lane.b32.xlu0 %v1669, 124
      %v1737 = vpop.permute.xlu0 %1736
      %1738 = vrot.lane.b32.xlu0 %v1672, 124
      %v1739 = vpop.permute.xlu0 %1738
      %1740 = vrot.lane.b32.xlu0 %v1674, 124
      %v1741 = vpop.permute.xlu0 %1740
      %1742 = vrot.lane.b32.xlu0 %v1677, 124
      %v1743 = vpop.permute.xlu0 %1742
      %1744 = vrot.lane.b32.xlu0 %v1679, 124
      %v1745 = vpop.permute.xlu0 %1744
      %1746 = vrot.lane.b32.xlu0 %v1682, 124
      %v1747 = vpop.permute.xlu0 %1746
      %1748 = vrot.lane.b32.xlu0 %v1684, 124
      %v1749 = vpop.permute.xlu0 %1748
      %1750 = vrot.lane.b32.xlu0 %v1687, 124
      %v1751 = vpop.permute.xlu0 %1750
      %1752 = vrot.lane.b32.xlu0 %v1689, 124
      %v1753 = vpop.permute.xlu0 %1752
      %v1786 = vadd.f32 %v1371, %v1691
      %v1787 = vadd.f32 %v1374, %v1693
      %v1788 = vadd.f32 %v1382, %v1695
      %v1789 = vadd.f32 %v1387, %v1697
      %v1790 = vadd.f32 %v1395, %v1699
      %v1791 = vadd.f32 %v1398, %v1701
      %v1792 = vadd.f32 %v1406, %v1703
      %v1793 = vadd.f32 %v1411, %v1705
      %v1794 = vadd.f32 %v1419, %v1707
      %v1795 = vadd.f32 %v1422, %v1709
      %v1796 = vadd.f32 %v1430, %v1711
      %v1797 = vadd.f32 %v1435, %v1713
      %v1798 = vadd.f32 %v1443, %v1715
      %v1799 = vadd.f32 %v1446, %v1717
      %v1800 = vadd.f32 %v1454, %v1719
      %v1801 = vadd.f32 %v1459, %v1721
      %v1802 = vadd.f32 %v1467, %v1723
      %v1803 = vadd.f32 %v1470, %v1725
      %v1804 = vadd.f32 %v1478, %v1727
      %v1805 = vadd.f32 %v1483, %v1729
      %v1806 = vadd.f32 %v1491, %v1731
      %v1807 = vadd.f32 %v1494, %v1733
      %v1808 = vadd.f32 %v1502, %v1735
      %v1809 = vadd.f32 %v1507, %v1737
      %v1810 = vadd.f32 %v1515, %v1739
      %v1811 = vadd.f32 %v1518, %v1741
      %v1812 = vadd.f32 %v1526, %v1743
      %v1813 = vadd.f32 %v1531, %v1745
      %v1814 = vadd.f32 %v1539, %v1747
      %v1815 = vadd.f32 %v1542, %v1749
      %v1816 = vadd.f32 %v1550, %v1751
      %v1817 = vadd.f32 %v1555, %v1753
      %vm1818 = vcmask 1045504
      %v1819 = vrot.slane %v1371, 2
      %v1820 = vrot.slane %v1374, 2
      %v1821 = vsel %vm1818, %v1819, %v1820
      %v1822 = vrot.slane %v1379, 2
      %v1823 = vsel %vm1818, %v1820, %v1822
      %v1824 = vrot.slane %v1382, 2
      %v1825 = vrot.slane %v1387, 2
      %v1826 = vsel %vm1818, %v1824, %v1825
      %v1827 = vrot.slane %v1390, 2
      %v1828 = vsel %vm1818, %v1825, %v1827
      %v1829 = vrot.slane %v1395, 2
      %v1830 = vrot.slane %v1398, 2
      %v1831 = vsel %vm1818, %v1829, %v1830
      %v1832 = vrot.slane %v1403, 2
      %v1833 = vsel %vm1818, %v1830, %v1832
      %v1834 = vrot.slane %v1406, 2
      %v1835 = vrot.slane %v1411, 2
      %v1836 = vsel %vm1818, %v1834, %v1835
      %v1837 = vrot.slane %v1414, 2
      %v1838 = vsel %vm1818, %v1835, %v1837
      %v1839 = vrot.slane %v1419, 2
      %v1840 = vrot.slane %v1422, 2
      %v1841 = vsel %vm1818, %v1839, %v1840
      %v1842 = vrot.slane %v1427, 2
      %v1843 = vsel %vm1818, %v1840, %v1842
      %v1844 = vrot.slane %v1430, 2
      %v1845 = vrot.slane %v1435, 2
      %v1846 = vsel %vm1818, %v1844, %v1845
      %v1847 = vrot.slane %v1438, 2
      %v1848 = vsel %vm1818, %v1845, %v1847
      %v1849 = vrot.slane %v1443, 2
      %v1850 = vrot.slane %v1446, 2
      %v1851 = vsel %vm1818, %v1849, %v1850
      %v1852 = vrot.slane %v1451, 2
      %v1853 = vsel %vm1818, %v1850, %v1852
      %v1854 = vrot.slane %v1454, 2
      %v1855 = vrot.slane %v1459, 2
      %v1856 = vsel %vm1818, %v1854, %v1855
      %v1857 = vrot.slane %v1462, 2
      %v1858 = vsel %vm1818, %v1855, %v1857
      %v1859 = vrot.slane %v1467, 2
      %v1860 = vrot.slane %v1470, 2
      %v1861 = vsel %vm1818, %v1859, %v1860
      %v1862 = vrot.slane %v1475, 2
      %v1863 = vsel %vm1818, %v1860, %v1862
      %v1864 = vrot.slane %v1478, 2
      %v1865 = vrot.slane %v1483, 2
      %v1866 = vsel %vm1818, %v1864, %v1865
      %v1867 = vrot.slane %v1486, 2
      %v1868 = vsel %vm1818, %v1865, %v1867
      %v1869 = vrot.slane %v1491, 2
      %v1870 = vrot.slane %v1494, 2
      %v1871 = vsel %vm1818, %v1869, %v1870
      %v1872 = vrot.slane %v1499, 2
      %v1873 = vsel %vm1818, %v1870, %v1872
      %v1874 = vrot.slane %v1502, 2
      %v1875 = vrot.slane %v1507, 2
      %v1876 = vsel %vm1818, %v1874, %v1875
      %v1877 = vrot.slane %v1510, 2
      %v1878 = vsel %vm1818, %v1875, %v1877
      %v1879 = vrot.slane %v1515, 2
      %v1880 = vrot.slane %v1518, 2
      %v1881 = vsel %vm1818, %v1879, %v1880
      %v1882 = vrot.slane %v1523, 2
      %v1883 = vsel %vm1818, %v1880, %v1882
      %v1884 = vrot.slane %v1526, 2
      %v1885 = vrot.slane %v1531, 2
      %v1886 = vsel %vm1818, %v1884, %v1885
      %v1887 = vrot.slane %v1534, 2
      %v1888 = vsel %vm1818, %v1885, %v1887
      %v1889 = vrot.slane %v1539, 2
      %v1890 = vrot.slane %v1542, 2
      %v1891 = vsel %vm1818, %v1889, %v1890
      %v1892 = vrot.slane %v1547, 2
      %v1893 = vsel %vm1818, %v1890, %v1892
      %v1894 = vrot.slane %v1550, 2
      %v1895 = vrot.slane %v1555, 2
      %v1896 = vsel %vm1818, %v1894, %v1895
      %v1897 = vrot.slane %v1558, 2
      %v1898 = vsel %vm1818, %v1895, %v1897
      %1899 = vrot.lane.b32.xlu0 %v1821, 120
      %v1900 = vpop.permute.xlu0 %1899
      %1901 = vrot.lane.b32.xlu0 %v1823, 120
      %v1902 = vpop.permute.xlu0 %1901
      %1903 = vrot.lane.b32.xlu0 %v1826, 120
      %v1904 = vpop.permute.xlu0 %1903
      %1905 = vrot.lane.b32.xlu0 %v1828, 120
      %v1906 = vpop.permute.xlu0 %1905
      %1907 = vrot.lane.b32.xlu0 %v1831, 120
      %v1908 = vpop.permute.xlu0 %1907
      %1909 = vrot.lane.b32.xlu0 %v1833, 120
      %v1910 = vpop.permute.xlu0 %1909
      %1911 = vrot.lane.b32.xlu0 %v1836, 120
      %v1912 = vpop.permute.xlu0 %1911
      %1913 = vrot.lane.b32.xlu0 %v1838, 120
      %v1914 = vpop.permute.xlu0 %1913
      %1915 = vrot.lane.b32.xlu0 %v1841, 120
      %v1916 = vpop.permute.xlu0 %1915
      %1917 = vrot.lane.b32.xlu0 %v1843, 120
      %v1918 = vpop.permute.xlu0 %1917
      %1919 = vrot.lane.b32.xlu0 %v1846, 120
      %v1920 = vpop.permute.xlu0 %1919
      %1921 = vrot.lane.b32.xlu0 %v1848, 120
      %v1922 = vpop.permute.xlu0 %1921
      %1923 = vrot.lane.b32.xlu0 %v1851, 120
      %v1924 = vpop.permute.xlu0 %1923
      %1925 = vrot.lane.b32.xlu0 %v1853, 120
      %v1926 = vpop.permute.xlu0 %1925
      %1927 = vrot.lane.b32.xlu0 %v1856, 120
      %v1928 = vpop.permute.xlu0 %1927
      %1929 = vrot.lane.b32.xlu0 %v1858, 120
      %v1930 = vpop.permute.xlu0 %1929
      %1931 = vrot.lane.b32.xlu0 %v1861, 120
      %v1932 = vpop.permute.xlu0 %1931
      %1933 = vrot.lane.b32.xlu0 %v1863, 120
      %v1934 = vpop.permute.xlu0 %1933
      %1935 = vrot.lane.b32.xlu0 %v1866, 120
      %v1936 = vpop.permute.xlu0 %1935
      %1937 = vrot.lane.b32.xlu0 %v1868, 120
      %v1938 = vpop.permute.xlu0 %1937
      %1939 = vrot.lane.b32.xlu0 %v1871, 120
      %v1940 = vpop.permute.xlu0 %1939
      %1941 = vrot.lane.b32.xlu0 %v1873, 120
      %v1942 = vpop.permute.xlu0 %1941
      %1943 = vrot.lane.b32.xlu0 %v1876, 120
      %v1944 = vpop.permute.xlu0 %1943
      %1945 = vrot.lane.b32.xlu0 %v1878, 120
      %v1946 = vpop.permute.xlu0 %1945
      %1947 = vrot.lane.b32.xlu0 %v1881, 120
      %v1948 = vpop.permute.xlu0 %1947
      %1949 = vrot.lane.b32.xlu0 %v1883, 120
      %v1950 = vpop.permute.xlu0 %1949
      %1951 = vrot.lane.b32.xlu0 %v1886, 120
      %v1952 = vpop.permute.xlu0 %1951
      %1953 = vrot.lane.b32.xlu0 %v1888, 120
      %v1954 = vpop.permute.xlu0 %1953
      %1955 = vrot.lane.b32.xlu0 %v1891, 120
      %v1956 = vpop.permute.xlu0 %1955
      %1957 = vrot.lane.b32.xlu0 %v1893, 120
      %v1958 = vpop.permute.xlu0 %1957
      %1959 = vrot.lane.b32.xlu0 %v1896, 120
      %v1960 = vpop.permute.xlu0 %1959
      %1961 = vrot.lane.b32.xlu0 %v1898, 120
      %v1962 = vpop.permute.xlu0 %1961
      %v1995 = vadd.f32 %v1786, %v1900
      %v1996 = vadd.f32 %v1787, %v1902
      %v1997 = vadd.f32 %v1788, %v1904
      %v1998 = vadd.f32 %v1789, %v1906
      %v1999 = vadd.f32 %v1790, %v1908
      %v2000 = vadd.f32 %v1791, %v1910
      %v2001 = vadd.f32 %v1792, %v1912
      %v2002 = vadd.f32 %v1793, %v1914
      %v2003 = vadd.f32 %v1794, %v1916
      %v2004 = vadd.f32 %v1795, %v1918
      %v2005 = vadd.f32 %v1796, %v1920
      %v2006 = vadd.f32 %v1797, %v1922
      %v2007 = vadd.f32 %v1798, %v1924
      %v2008 = vadd.f32 %v1799, %v1926
      %v2009 = vadd.f32 %v1800, %v1928
      %v2010 = vadd.f32 %v1801, %v1930
      %v2011 = vadd.f32 %v1802, %v1932
      %v2012 = vadd.f32 %v1803, %v1934
      %v2013 = vadd.f32 %v1804, %v1936
      %v2014 = vadd.f32 %v1805, %v1938
      %v2015 = vadd.f32 %v1806, %v1940
      %v2016 = vadd.f32 %v1807, %v1942
      %v2017 = vadd.f32 %v1808, %v1944
      %v2018 = vadd.f32 %v1809, %v1946
      %v2019 = vadd.f32 %v1810, %v1948
      %v2020 = vadd.f32 %v1811, %v1950
      %v2021 = vadd.f32 %v1812, %v1952
      %v2022 = vadd.f32 %v1813, %v1954
      %v2023 = vadd.f32 %v1814, %v1956
      %v2024 = vadd.f32 %v1815, %v1958
      %v2025 = vadd.f32 %v1816, %v1960
      %v2026 = vadd.f32 %v1817, %v1962
      %v2027 = vld [vmem:[%s909] sm:$0xf]
      %v2028 = vld [vmem:[%s909 + $0x4] sm:$0xf]
      %v2029 = vld [vmem:[%s909 + $0x8] sm:$0xf]
      %v2030 = vld [vmem:[%s909 + $0xc] sm:$0xf]
      %v2031 = vld [vmem:[%s909 + $0x10] sm:$0xf]
      %v2032 = vld [vmem:[%s909 + $0x14] sm:$0xf]
      %v2033 = vld [vmem:[%s909 + $0x18] sm:$0xf]
      %v2034 = vld [vmem:[%s909 + $0x1c] sm:$0xf]
      %v2035 = vld [vmem:[%s909 + $0x20] sm:$0xf]
      %v2036 = vld [vmem:[%s909 + $0x24] sm:$0xf]
      %v2037 = vld [vmem:[%s909 + $0x28] sm:$0xf]
      %v2038 = vld [vmem:[%s909 + $0x2c] sm:$0xf]
      %v2039 = vld [vmem:[%s909 + $0x30] sm:$0xf]
      %v2040 = vld [vmem:[%s909 + $0x34] sm:$0xf]
      %v2041 = vld [vmem:[%s909 + $0x38] sm:$0xf]
      %v2042 = vld [vmem:[%s909 + $0x3c] sm:$0xf]
      %v2043 = vld [vmem:[%s909 + $0x40] sm:$0xf]
      %v2044 = vld [vmem:[%s909 + $0x44] sm:$0xf]
      %v2045 = vld [vmem:[%s909 + $0x48] sm:$0xf]
      %v2046 = vld [vmem:[%s909 + $0x4c] sm:$0xf]
      %v2047 = vld [vmem:[%s909 + $0x50] sm:$0xf]
      %v2048 = vld [vmem:[%s909 + $0x54] sm:$0xf]
      %v2049 = vld [vmem:[%s909 + $0x58] sm:$0xf]
      %v2050 = vld [vmem:[%s909 + $0x5c] sm:$0xf]
      %v2051 = vld [vmem:[%s909 + $0x60] sm:$0xf]
      %v2052 = vld [vmem:[%s909 + $0x64] sm:$0xf]
      %v2053 = vld [vmem:[%s909 + $0x68] sm:$0xf]
      %v2054 = vld [vmem:[%s909 + $0x6c] sm:$0xf]
      %v2055 = vld [vmem:[%s909 + $0x70] sm:$0xf]
      %v2056 = vld [vmem:[%s909 + $0x74] sm:$0xf]
      %v2057 = vld [vmem:[%s909 + $0x78] sm:$0xf]
      %v2058 = vld [vmem:[%s909 + $0x7c] sm:$0xf]
      %v2059 = vld [vmem:[%s909 + $0x80] sm:$0xf]
      %v2060 = vld [vmem:[%s909 + $0x84] sm:$0xf]
      %v2061 = vld [vmem:[%s909 + $0x88] sm:$0xf]
      %v2062 = vld [vmem:[%s909 + $0x8c] sm:$0xf]
      %v2063 = vld [vmem:[%s909 + $0x90] sm:$0xf]
      %v2064 = vld [vmem:[%s909 + $0x94] sm:$0xf]
      %v2065 = vld [vmem:[%s909 + $0x98] sm:$0xf]
      %v2066 = vld [vmem:[%s909 + $0x9c] sm:$0xf]
      %v2067 = vld [vmem:[%s909 + $0xa0] sm:$0xf]
      %v2068 = vld [vmem:[%s909 + $0xa4] sm:$0xf]
      %v2069 = vld [vmem:[%s909 + $0xa8] sm:$0xf]
      %v2070 = vld [vmem:[%s909 + $0xac] sm:$0xf]
      %v2071 = vld [vmem:[%s909 + $0xb0] sm:$0xf]
      %v2072 = vld [vmem:[%s909 + $0xb4] sm:$0xf]
      %v2073 = vld [vmem:[%s909 + $0xb8] sm:$0xf]
      %v2074 = vld [vmem:[%s909 + $0xbc] sm:$0xf]
      %s2075 = scalar_lea.vmem %s3, 2
      %v2076 = vld [vmem:[%s2075] sm:$0x3]
      %v2125 = vunpack.c.l.b16 %v2027
      %v2126 = vunpack.c.l.b16 %v2028
      %v2127 = vunpack.c.l.b16 %v2029
      %v2128 = vunpack.c.l.b16 %v2030
      %v2129 = vunpack.c.l.b16 %v2031
      %v2130 = vunpack.c.l.b16 %v2032
      %v2131 = vunpack.c.l.b16 %v2033
      %v2132 = vunpack.c.l.b16 %v2034
      %v2133 = vunpack.c.l.b16 %v2035
      %v2134 = vunpack.c.l.b16 %v2036
      %v2135 = vunpack.c.l.b16 %v2037
      %v2136 = vunpack.c.l.b16 %v2038
      %v2137 = vunpack.c.l.b16 %v2039
      %v2138 = vunpack.c.l.b16 %v2040
      %v2139 = vunpack.c.l.b16 %v2041
      %v2140 = vunpack.c.l.b16 %v2042
      %v2141 = vunpack.c.l.b16 %v2043
      %v2142 = vunpack.c.l.b16 %v2044
      %v2143 = vunpack.c.l.b16 %v2045
      %v2144 = vunpack.c.l.b16 %v2046
      %v2145 = vunpack.c.l.b16 %v2047
      %v2146 = vunpack.c.l.b16 %v2048
      %v2147 = vunpack.c.l.b16 %v2049
      %v2148 = vunpack.c.l.b16 %v2050
      %v2149 = vunpack.c.l.b16 %v2051
      %v2150 = vunpack.c.l.b16 %v2052
      %v2151 = vunpack.c.l.b16 %v2053
      %v2152 = vunpack.c.l.b16 %v2054
      %v2153 = vunpack.c.l.b16 %v2055
      %v2154 = vunpack.c.l.b16 %v2056
      %v2155 = vunpack.c.l.b16 %v2057
      %v2156 = vunpack.c.l.b16 %v2058
      %v2157 = vunpack.c.l.b16 %v2059
      %v2158 = vunpack.c.l.b16 %v2060
      %v2159 = vunpack.c.l.b16 %v2061
      %v2160 = vunpack.c.l.b16 %v2062
      %v2161 = vunpack.c.l.b16 %v2063
      %v2162 = vunpack.c.l.b16 %v2064
      %v2163 = vunpack.c.l.b16 %v2065
      %v2164 = vunpack.c.l.b16 %v2066
      %v2165 = vunpack.c.l.b16 %v2067
      %v2166 = vunpack.c.l.b16 %v2068
      %v2167 = vunpack.c.l.b16 %v2069
      %v2168 = vunpack.c.l.b16 %v2070
      %v2169 = vunpack.c.l.b16 %v2071
      %v2170 = vunpack.c.l.b16 %v2072
      %v2171 = vunpack.c.l.b16 %v2073
      %v2172 = vunpack.c.l.b16 %v2074
      %v2173 = vpack.c.b16 %v2126, %v2125
      %v2174 = vpack.c.b16 %v2128, %v2127
      %v2175 = vpack.c.b16 %v2130, %v2129
      %v2176 = vpack.c.b16 %v2132, %v2131
      %v2177 = vpack.c.b16 %v2134, %v2133
      %v2178 = vpack.c.b16 %v2136, %v2135
      %v2179 = vpack.c.b16 %v2138, %v2137
      %v2180 = vpack.c.b16 %v2140, %v2139
      %v2181 = vpack.c.b16 %v2142, %v2141
      %v2182 = vpack.c.b16 %v2144, %v2143
      %v2183 = vpack.c.b16 %v2146, %v2145
      %v2184 = vpack.c.b16 %v2148, %v2147
      %v2185 = vpack.c.b16 %v2150, %v2149
      %v2186 = vpack.c.b16 %v2152, %v2151
      %v2187 = vpack.c.b16 %v2154, %v2153
      %v2188 = vpack.c.b16 %v2156, %v2155
      %v2189 = vpack.c.b16 %v2158, %v2157
      %v2190 = vpack.c.b16 %v2160, %v2159
      %v2191 = vpack.c.b16 %v2162, %v2161
      %v2192 = vpack.c.b16 %v2164, %v2163
      %v2193 = vpack.c.b16 %v2166, %v2165
      %v2194 = vpack.c.b16 %v2168, %v2167
      %v2195 = vpack.c.b16 %v2170, %v2169
      %v2196 = vpack.c.b16 %v2172, %v2171
      %v2198 = vsel %vm1259, %v2173, 0
      %v2201 = vsel %vm1259, %v2174, 0
      %v2204 = vsel %vm1259, %v2175, 0
      %v2207 = vsel %vm1259, %v2176, 0
      %v2210 = vsel %vm1259, %v2177, 0
      %v2213 = vsel %vm1259, %v2178, 0
      %v2216 = vsel %vm1259, %v2179, 0
      %v2219 = vsel %vm1259, %v2180, 0
      %v2222 = vsel %vm1259, %v2181, 0
      %v2225 = vsel %vm1259, %v2182, 0
      %v2228 = vsel %vm1259, %v2183, 0
      %v2231 = vsel %vm1259, %v2184, 0
      %v2234 = vsel %vm1259, %v2185, 0
      %v2237 = vsel %vm1259, %v2186, 0
      %v2240 = vsel %vm1259, %v2187, 0
      %v2243 = vsel %vm1259, %v2188, 0
      %v2246 = vsel %vm1259, %v2189, 0
      %v2249 = vsel %vm1259, %v2190, 0
      %v2252 = vsel %vm1259, %v2191, 0
      %v2255 = vsel %vm1259, %v2192, 0
      %v2258 = vsel %vm1259, %v2193, 0
      %v2261 = vsel %vm1259, %v2194, 0
      %v2264 = vsel %vm1259, %v2195, 0
      %v2267 = vsel %vm1259, %v2196, 0
      %v2270 = vsel %vm1332, %v2076, 0
      %2272 = vmatprep.subr.bf16.mxu0 0
      %2273 = vmatpush1.bf16.msra.mxu0 %v2270
      %2274 = vmatprep.subr.bf16.mxu0 0
      %2275 = vmatpush1.bf16.msra.mxu0 0
      %2276 = vmatprep.subr.bf16.mxu0 0
      %2277 = vmatpush1.bf16.msra.mxu0 0
      %2278 = vmatprep.subr.bf16.mxu0 0
      %2279 = vmatpush1.bf16.msra.mxu0 0
      %2280 = vmatprep.subr.bf16.mxu0 0
      %2281 = vmatpush1.bf16.msra.mxu0 0
      %2282 = vmatprep.subr.bf16.mxu0 0
      %2283 = vmatpush1.bf16.msra.mxu0 0
      %2284 = vmatprep.subr.bf16.mxu0 0
      %2285 = vmatpush1.bf16.msra.mxu0 0
      %2286 = vmatprep.subr.bf16.mxu0 0
      %2287 = vmatpush1.bf16.msra.mxu0 0
      %2288 = vmatprep.subr.bf16.mxu0 0
      %2289 = vmatpush1.bf16.msra.mxu0 0
      %2290 = vmatprep.subr.bf16.mxu0 0
      %2291 = vmatpush1.bf16.msra.mxu0 0
      %2292 = vmatprep.subr.bf16.mxu0 0
      %2293 = vmatpush1.bf16.msra.mxu0 0
      %2294 = vmatprep.subr.bf16.mxu0 0
      %2295 = vmatpush1.bf16.msra.mxu0 0
      %2296 = vmatprep.subr.bf16.mxu0 0
      %2297 = vmatpush1.bf16.msra.mxu0 0
      %2298 = vmatprep.subr.bf16.mxu0 0
      %2299 = vmatpush1.bf16.msra.mxu0 0
      %2300 = vmatprep.subr.bf16.mxu0 0
      %2301 = vmatpush1.bf16.msra.mxu0 0
      %2302 = vmatprep.subr.bf16.mxu0 0
      %2303 = vmatpush1.bf16.msra.mxu0 0
      %2304 = vmatprep.mubr.bf16.mxu0 0
      %2305 = vmatmul.mubr.bf16.gmra.mrb[0].mxu0 %v2198
      %v2306 = vpop.f32.mrb[0].mxu0
      %v2307 = vadd.f32 0.0, %v2306
      %v2308 = vpop.f32.mrb[0].mxu0
      %v2309 = vpop.f32.mrb[0].mxu0
      %v2310 = vadd.f32 0.0, %v2309
      %v2311 = vpop.f32.mrb[0].mxu0
      %2312 = vmatprep.mubr.bf16.mxu0 0
      %2313 = vmatmul.mubr.bf16.gmra.mrb[0].mxu0 %v2201
      %v2314 = vpop.f32.mrb[0].mxu0
      %v2315 = vadd.f32 0.0, %v2314
      %v2316 = vpop.f32.mrb[0].mxu0
      %v2317 = vpop.f32.mrb[0].mxu0
      %v2318 = vadd.f32 0.0, %v2317
      %v2319 = vpop.f32.mrb[0].mxu0
      %2320 = vmatprep.mubr.bf16.mxu0 0
      %2321 = vmatmul.mubr.bf16.gmra.mrb[0].mxu0 %v2204
      %v2322 = vpop.f32.mrb[0].mxu0
      %v2323 = vadd.f32 0.0, %v2322
      %v2324 = vpop.f32.mrb[0].mxu0
      %v2325 = vpop.f32.mrb[0].mxu0
      %v2326 = vadd.f32 0.0, %v2325
      %v2327 = vpop.f32.mrb[0].mxu0
      %2328 = vmatprep.mubr.bf16.mxu0 0
      %2329 = vmatmul.mubr.bf16.gmra.mrb[0].mxu0 %v2207
      %v2330 = vpop.f32.mrb[0].mxu0
      %v2331 = vadd.f32 0.0, %v2330
      %v2332 = vpop.f32.mrb[0].mxu0
      %v2333 = vpop.f32.mrb[0].mxu0
      %v2334 = vadd.f32 0.0, %v2333
      %v2335 = vpop.f32.mrb[0].mxu0
      %2336 = vmatprep.mubr.bf16.mxu0 0
      %2337 = vmatmul.mubr.bf16.gmra.mrb[0].mxu0 %v2210
      %v2338 = vpop.f32.mrb[0].mxu0
      %v2339 = vadd.f32 0.0, %v2338
      %v2340 = vpop.f32.mrb[0].mxu0
      %v2341 = vpop.f32.mrb[0].mxu0
      %v2342 = vadd.f32 0.0, %v2341
      %v2343 = vpop.f32.mrb[0].mxu0
      %2344 = vmatprep.mubr.bf16.mxu0 0
      %2345 = vmatmul.mubr.bf16.gmra.mrb[0].mxu0 %v2213
      %v2346 = vpop.f32.mrb[0].mxu0
      %v2347 = vadd.f32 0.0, %v2346
      %v2348 = vpop.f32.mrb[0].mxu0
      %v2349 = vpop.f32.mrb[0].mxu0
      %v2350 = vadd.f32 0.0, %v2349
      %v2351 = vpop.f32.mrb[0].mxu0
      %2352 = vmatprep.mubr.bf16.mxu0 0
      %2353 = vmatmul.mubr.bf16.gmra.mrb[0].mxu0 %v2216
      %v2354 = vpop.f32.mrb[0].mxu0
      %v2355 = vadd.f32 0.0, %v2354
      %v2356 = vpop.f32.mrb[0].mxu0
      %v2357 = vpop.f32.mrb[0].mxu0
      %v2358 = vadd.f32 0.0, %v2357
      %v2359 = vpop.f32.mrb[0].mxu0
      %2360 = vmatprep.mubr.bf16.mxu0 0
      %2361 = vmatmul.mubr.bf16.gmra.mrb[0].mxu0 %v2219
      %v2362 = vpop.f32.mrb[0].mxu0
      %v2363 = vadd.f32 0.0, %v2362
      %v2364 = vpop.f32.mrb[0].mxu0
      %v2365 = vpop.f32.mrb[0].mxu0
      %v2366 = vadd.f32 0.0, %v2365
      %v2367 = vpop.f32.mrb[0].mxu0
      %2368 = vmatprep.mubr.bf16.mxu0 0
      %2369 = vmatmul.mubr.bf16.gmra.mrb[0].mxu0 %v2222
      %v2370 = vpop.f32.mrb[0].mxu0
      %v2371 = vadd.f32 0.0, %v2370
      %v2372 = vpop.f32.mrb[0].mxu0
      %v2373 = vpop.f32.mrb[0].mxu0
      %v2374 = vadd.f32 0.0, %v2373
      %v2375 = vpop.f32.mrb[0].mxu0
      %2376 = vmatprep.mubr.bf16.mxu0 0
      %2377 = vmatmul.mubr.bf16.gmra.mrb[0].mxu0 %v2225
      %v2378 = vpop.f32.mrb[0].mxu0
      %v2379 = vadd.f32 0.0, %v2378
      %v2380 = vpop.f32.mrb[0].mxu0
      %v2381 = vpop.f32.mrb[0].mxu0
      %v2382 = vadd.f32 0.0, %v2381
      %v2383 = vpop.f32.mrb[0].mxu0
      %2384 = vmatprep.mubr.bf16.mxu0 0
      %2385 = vmatmul.mubr.bf16.gmra.mrb[0].mxu0 %v2228
      %v2386 = vpop.f32.mrb[0].mxu0
      %v2387 = vadd.f32 0.0, %v2386
      %v2388 = vpop.f32.mrb[0].mxu0
      %v2389 = vpop.f32.mrb[0].mxu0
      %v2390 = vadd.f32 0.0, %v2389
      %v2391 = vpop.f32.mrb[0].mxu0
      %2392 = vmatprep.mubr.bf16.mxu0 0
      %2393 = vmatmul.mubr.bf16.gmra.mrb[0].mxu0 %v2231
      %v2394 = vpop.f32.mrb[0].mxu0
      %v2395 = vadd.f32 0.0, %v2394
      %v2396 = vpop.f32.mrb[0].mxu0
      %v2397 = vpop.f32.mrb[0].mxu0
      %v2398 = vadd.f32 0.0, %v2397
      %v2399 = vpop.f32.mrb[0].mxu0
      %2400 = vmatprep.mubr.bf16.mxu0 0
      %2401 = vmatmul.mubr.bf16.gmra.mrb[0].mxu0 %v2234
      %v2402 = vpop.f32.mrb[0].mxu0
      %v2403 = vadd.f32 0.0, %v2402
      %v2404 = vpop.f32.mrb[0].mxu0
      %v2405 = vpop.f32.mrb[0].mxu0
      %v2406 = vadd.f32 0.0, %v2405
      %v2407 = vpop.f32.mrb[0].mxu0
      %2408 = vmatprep.mubr.bf16.mxu0 0
      %2409 = vmatmul.mubr.bf16.gmra.mrb[0].mxu0 %v2237
      %v2410 = vpop.f32.mrb[0].mxu0
      %v2411 = vadd.f32 0.0, %v2410
      %v2412 = vpop.f32.mrb[0].mxu0
      %v2413 = vpop.f32.mrb[0].mxu0
      %v2414 = vadd.f32 0.0, %v2413
      %v2415 = vpop.f32.mrb[0].mxu0
      %2416 = vmatprep.mubr.bf16.mxu0 0
      %2417 = vmatmul.mubr.bf16.gmra.mrb[0].mxu0 %v2240
      %v2418 = vpop.f32.mrb[0].mxu0
      %v2419 = vadd.f32 0.0, %v2418
      %v2420 = vpop.f32.mrb[0].mxu0
      %v2421 = vpop.f32.mrb[0].mxu0
      %v2422 = vadd.f32 0.0, %v2421
      %v2423 = vpop.f32.mrb[0].mxu0
      %2424 = vmatprep.mubr.bf16.mxu0 0
      %2425 = vmatmul.mubr.bf16.gmra.mrb[0].mxu0 %v2243
      %v2426 = vpop.f32.mrb[0].mxu0
      %v2427 = vadd.f32 0.0, %v2426
      %v2428 = vpop.f32.mrb[0].mxu0
      %v2429 = vpop.f32.mrb[0].mxu0
      %v2430 = vadd.f32 0.0, %v2429
      %v2431 = vpop.f32.mrb[0].mxu0
      %2432 = vmatprep.mubr.bf16.mxu0 0
      %2433 = vmatmul.mubr.bf16.gmra.mrb[0].mxu0 %v2246
      %v2434 = vpop.f32.mrb[0].mxu0
      %v2435 = vadd.f32 0.0, %v2434
      %v2436 = vpop.f32.mrb[0].mxu0
      %v2437 = vpop.f32.mrb[0].mxu0
      %v2438 = vadd.f32 0.0, %v2437
      %v2439 = vpop.f32.mrb[0].mxu0
      %2440 = vmatprep.mubr.bf16.mxu0 0
      %2441 = vmatmul.mubr.bf16.gmra.mrb[0].mxu0 %v2249
      %v2442 = vpop.f32.mrb[0].mxu0
      %v2443 = vadd.f32 0.0, %v2442
      %v2444 = vpop.f32.mrb[0].mxu0
      %v2445 = vpop.f32.mrb[0].mxu0
      %v2446 = vadd.f32 0.0, %v2445
      %v2447 = vpop.f32.mrb[0].mxu0
      %2448 = vmatprep.mubr.bf16.mxu0 0
      %2449 = vmatmul.mubr.bf16.gmra.mrb[0].mxu0 %v2252
      %v2450 = vpop.f32.mrb[0].mxu0
      %v2451 = vadd.f32 0.0, %v2450
      %v2452 = vpop.f32.mrb[0].mxu0
      %v2453 = vpop.f32.mrb[0].mxu0
      %v2454 = vadd.f32 0.0, %v2453
      %v2455 = vpop.f32.mrb[0].mxu0
      %2456 = vmatprep.mubr.bf16.mxu0 0
      %2457 = vmatmul.mubr.bf16.gmra.mrb[0].mxu0 %v2255
      %v2458 = vpop.f32.mrb[0].mxu0
      %v2459 = vadd.f32 0.0, %v2458
      %v2460 = vpop.f32.mrb[0].mxu0
      %v2461 = vpop.f32.mrb[0].mxu0
      %v2462 = vadd.f32 0.0, %v2461
      %v2463 = vpop.f32.mrb[0].mxu0
      %2464 = vmatprep.mubr.bf16.mxu0 0
      %2465 = vmatmul.mubr.bf16.gmra.mrb[0].mxu0 %v2258
      %v2466 = vpop.f32.mrb[0].mxu0
      %v2467 = vadd.f32 0.0, %v2466
      %v2468 = vpop.f32.mrb[0].mxu0
      %v2469 = vpop.f32.mrb[0].mxu0
      %v2470 = vadd.f32 0.0, %v2469
      %v2471 = vpop.f32.mrb[0].mxu0
      %2472 = vmatprep.mubr.bf16.mxu0 0
      %2473 = vmatmul.mubr.bf16.gmra.mrb[0].mxu0 %v2261
      %v2474 = vpop.f32.mrb[0].mxu0
      %v2475 = vadd.f32 0.0, %v2474
      %v2476 = vpop.f32.mrb[0].mxu0
      %v2477 = vpop.f32.mrb[0].mxu0
      %v2478 = vadd.f32 0.0, %v2477
      %v2479 = vpop.f32.mrb[0].mxu0
      %2480 = vmatprep.mubr.bf16.mxu0 0
      %2481 = vmatmul.mubr.bf16.gmra.mrb[0].mxu0 %v2264
      %v2482 = vpop.f32.mrb[0].mxu0
      %v2483 = vadd.f32 0.0, %v2482
      %v2484 = vpop.f32.mrb[0].mxu0
      %v2485 = vpop.f32.mrb[0].mxu0
      %v2486 = vadd.f32 0.0, %v2485
      %v2487 = vpop.f32.mrb[0].mxu0
      %2488 = vmatprep.mubr.bf16.mxu0 0
      %2489 = vmatmul.mubr.bf16.gmra.mrb[0].mxu0 %v2267
      %v2490 = vpop.f32.mrb[0].mxu0
      %v2491 = vadd.f32 0.0, %v2490
      %v2492 = vpop.f32.mrb[0].mxu0
      %v2493 = vpop.f32.mrb[0].mxu0
      %v2494 = vadd.f32 0.0, %v2493
      %v2495 = vpop.f32.mrb[0].mxu0
      %2496 = vdwg.mxu0
      %v2545 = vrot.slane %v2307, 1
      %v2546 = vrot.slane %v2310, 1
      %v2547 = vsel %vm1609, %v2545, %v2546
      %v2548 = vrot.slane %v2315, 1
      %v2549 = vsel %vm1609, %v2546, %v2548
      %v2550 = vrot.slane %v2318, 1
      %v2551 = vrot.slane %v2323, 1
      %v2552 = vsel %vm1609, %v2550, %v2551
      %v2553 = vrot.slane %v2326, 1
      %v2554 = vsel %vm1609, %v2551, %v2553
      %v2555 = vrot.slane %v2331, 1
      %v2556 = vrot.slane %v2334, 1
      %v2557 = vsel %vm1609, %v2555, %v2556
      %v2558 = vrot.slane %v2339, 1
      %v2559 = vsel %vm1609, %v2556, %v2558
      %v2560 = vrot.slane %v2342, 1
      %v2561 = vrot.slane %v2347, 1
      %v2562 = vsel %vm1609, %v2560, %v2561
      %v2563 = vrot.slane %v2350, 1
      %v2564 = vsel %vm1609, %v2561, %v2563
      %v2565 = vrot.slane %v2355, 1
      %v2566 = vrot.slane %v2358, 1
      %v2567 = vsel %vm1609, %v2565, %v2566
      %v2568 = vrot.slane %v2363, 1
      %v2569 = vsel %vm1609, %v2566, %v2568
      %v2570 = vrot.slane %v2366, 1
      %v2571 = vrot.slane %v2371, 1
      %v2572 = vsel %vm1609, %v2570, %v2571
      %v2573 = vrot.slane %v2374, 1
      %v2574 = vsel %vm1609, %v2571, %v2573
      %v2575 = vrot.slane %v2379, 1
      %v2576 = vrot.slane %v2382, 1
      %v2577 = vsel %vm1609, %v2575, %v2576
      %v2578 = vrot.slane %v2387, 1
      %v2579 = vsel %vm1609, %v2576, %v2578
      %v2580 = vrot.slane %v2390, 1
      %v2581 = vrot.slane %v2395, 1
      %v2582 = vsel %vm1609, %v2580, %v2581
      %v2583 = vrot.slane %v2398, 1
      %v2584 = vsel %vm1609, %v2581, %v2583
      %v2585 = vrot.slane %v2403, 1
      %v2586 = vrot.slane %v2406, 1
      %v2587 = vsel %vm1609, %v2585, %v2586
      %v2588 = vrot.slane %v2411, 1
      %v2589 = vsel %vm1609, %v2586, %v2588
      %v2590 = vrot.slane %v2414, 1
      %v2591 = vrot.slane %v2419, 1
      %v2592 = vsel %vm1609, %v2590, %v2591
      %v2593 = vrot.slane %v2422, 1
      %v2594 = vsel %vm1609, %v2591, %v2593
      %v2595 = vrot.slane %v2427, 1
      %v2596 = vrot.slane %v2430, 1
      %v2597 = vsel %vm1609, %v2595, %v2596
      %v2598 = vrot.slane %v2435, 1
      %v2599 = vsel %vm1609, %v2596, %v2598
      %v2600 = vrot.slane %v2438, 1
      %v2601 = vrot.slane %v2443, 1
      %v2602 = vsel %vm1609, %v2600, %v2601
      %v2603 = vrot.slane %v2446, 1
      %v2604 = vsel %vm1609, %v2601, %v2603
      %v2605 = vrot.slane %v2451, 1
      %v2606 = vrot.slane %v2454, 1
      %v2607 = vsel %vm1609, %v2605, %v2606
      %v2608 = vrot.slane %v2459, 1
      %v2609 = vsel %vm1609, %v2606, %v2608
      %v2610 = vrot.slane %v2462, 1
      %v2611 = vrot.slane %v2467, 1
      %v2612 = vsel %vm1609, %v2610, %v2611
      %v2613 = vrot.slane %v2470, 1
      %v2614 = vsel %vm1609, %v2611, %v2613
      %v2615 = vrot.slane %v2475, 1
      %v2616 = vrot.slane %v2478, 1
      %v2617 = vsel %vm1609, %v2615, %v2616
      %v2618 = vrot.slane %v2483, 1
      %v2619 = vsel %vm1609, %v2616, %v2618
      %v2620 = vrot.slane %v2486, 1
      %v2621 = vrot.slane %v2491, 1
      %v2622 = vsel %vm1609, %v2620, %v2621
      %v2623 = vrot.slane %v2494, 1
      %v2624 = vsel %vm1609, %v2621, %v2623
      %2625 = vrot.lane.b32.xlu0 %v2547, 124
      %v2626 = vpop.permute.xlu0 %2625
      %2627 = vrot.lane.b32.xlu0 %v2549, 124
      %v2628 = vpop.permute.xlu0 %2627
      %2629 = vrot.lane.b32.xlu0 %v2552, 124
      %v2630 = vpop.permute.xlu0 %2629
      %2631 = vrot.lane.b32.xlu0 %v2554, 124
      %v2632 = vpop.permute.xlu0 %2631
      %2633 = vrot.lane.b32.xlu0 %v2557, 124
      %v2634 = vpop.permute.xlu0 %2633
      %2635 = vrot.lane.b32.xlu0 %v2559, 124
      %v2636 = vpop.permute.xlu0 %2635
      %2637 = vrot.lane.b32.xlu0 %v2562, 124
      %v2638 = vpop.permute.xlu0 %2637
      %2639 = vrot.lane.b32.xlu0 %v2564, 124
      %v2640 = vpop.permute.xlu0 %2639
      %2641 = vrot.lane.b32.xlu0 %v2567, 124
      %v2642 = vpop.permute.xlu0 %2641
      %2643 = vrot.lane.b32.xlu0 %v2569, 124
      %v2644 = vpop.permute.xlu0 %2643
      %2645 = vrot.lane.b32.xlu0 %v2572, 124
      %v2646 = vpop.permute.xlu0 %2645
      %2647 = vrot.lane.b32.xlu0 %v2574, 124
      %v2648 = vpop.permute.xlu0 %2647
      %2649 = vrot.lane.b32.xlu0 %v2577, 124
      %v2650 = vpop.permute.xlu0 %2649
      %2651 = vrot.lane.b32.xlu0 %v2579, 124
      %v2652 = vpop.permute.xlu0 %2651
      %2653 = vrot.lane.b32.xlu0 %v2582, 124
      %v2654 = vpop.permute.xlu0 %2653
      %2655 = vrot.lane.b32.xlu0 %v2584, 124
      %v2656 = vpop.permute.xlu0 %2655
      %2657 = vrot.lane.b32.xlu0 %v2587, 124
      %v2658 = vpop.permute.xlu0 %2657
      %2659 = vrot.lane.b32.xlu0 %v2589, 124
      %v2660 = vpop.permute.xlu0 %2659
      %2661 = vrot.lane.b32.xlu0 %v2592, 124
      %v2662 = vpop.permute.xlu0 %2661
      %2663 = vrot.lane.b32.xlu0 %v2594, 124
      %v2664 = vpop.permute.xlu0 %2663
      %2665 = vrot.lane.b32.xlu0 %v2597, 124
      %v2666 = vpop.permute.xlu0 %2665
      %2667 = vrot.lane.b32.xlu0 %v2599, 124
      %v2668 = vpop.permute.xlu0 %2667
      %2669 = vrot.lane.b32.xlu0 %v2602, 124
      %v2670 = vpop.permute.xlu0 %2669
      %2671 = vrot.lane.b32.xlu0 %v2604, 124
      %v2672 = vpop.permute.xlu0 %2671
      %2673 = vrot.lane.b32.xlu0 %v2607, 124
      %v2674 = vpop.permute.xlu0 %2673
      %2675 = vrot.lane.b32.xlu0 %v2609, 124
      %v2676 = vpop.permute.xlu0 %2675
      %2677 = vrot.lane.b32.xlu0 %v2612, 124
      %v2678 = vpop.permute.xlu0 %2677
      %2679 = vrot.lane.b32.xlu0 %v2614, 124
      %v2680 = vpop.permute.xlu0 %2679
      %2681 = vrot.lane.b32.xlu0 %v2617, 124
      %v2682 = vpop.permute.xlu0 %2681
      %2683 = vrot.lane.b32.xlu0 %v2619, 124
      %v2684 = vpop.permute.xlu0 %2683
      %2685 = vrot.lane.b32.xlu0 %v2622, 124
      %v2686 = vpop.permute.xlu0 %2685
      %2687 = vrot.lane.b32.xlu0 %v2624, 124
      %v2688 = vpop.permute.xlu0 %2687
      %v2721 = vadd.f32 %v2307, %v2626
      %v2722 = vadd.f32 %v2310, %v2628
      %v2723 = vadd.f32 %v2318, %v2630
      %v2724 = vadd.f32 %v2323, %v2632
      %v2725 = vadd.f32 %v2331, %v2634
      %v2726 = vadd.f32 %v2334, %v2636
      %v2727 = vadd.f32 %v2342, %v2638
      %v2728 = vadd.f32 %v2347, %v2640
      %v2729 = vadd.f32 %v2355, %v2642
      %v2730 = vadd.f32 %v2358, %v2644
      %v2731 = vadd.f32 %v2366, %v2646
      %v2732 = vadd.f32 %v2371, %v2648
      %v2733 = vadd.f32 %v2379, %v2650
      %v2734 = vadd.f32 %v2382, %v2652
      %v2735 = vadd.f32 %v2390, %v2654
      %v2736 = vadd.f32 %v2395, %v2656
      %v2737 = vadd.f32 %v2403, %v2658
      %v2738 = vadd.f32 %v2406, %v2660
      %v2739 = vadd.f32 %v2414, %v2662
      %v2740 = vadd.f32 %v2419, %v2664
      %v2741 = vadd.f32 %v2427, %v2666
      %v2742 = vadd.f32 %v2430, %v2668
      %v2743 = vadd.f32 %v2438, %v2670
      %v2744 = vadd.f32 %v2443, %v2672
      %v2745 = vadd.f32 %v2451, %v2674
      %v2746 = vadd.f32 %v2454, %v2676
      %v2747 = vadd.f32 %v2462, %v2678
      %v2748 = vadd.f32 %v2467, %v2680
      %v2749 = vadd.f32 %v2475, %v2682
      %v2750 = vadd.f32 %v2478, %v2684
      %v2751 = vadd.f32 %v2486, %v2686
      %v2752 = vadd.f32 %v2491, %v2688
      %v2753 = vrot.slane %v2307, 2
      %v2754 = vrot.slane %v2310, 2
      %v2755 = vsel %vm1818, %v2753, %v2754
      %v2756 = vrot.slane %v2315, 2
      %v2757 = vsel %vm1818, %v2754, %v2756
      %v2758 = vrot.slane %v2318, 2
      %v2759 = vrot.slane %v2323, 2
      %v2760 = vsel %vm1818, %v2758, %v2759
      %v2761 = vrot.slane %v2326, 2
      %v2762 = vsel %vm1818, %v2759, %v2761
      %v2763 = vrot.slane %v2331, 2
      %v2764 = vrot.slane %v2334, 2
      %v2765 = vsel %vm1818, %v2763, %v2764
      %v2766 = vrot.slane %v2339, 2
      %v2767 = vsel %vm1818, %v2764, %v2766
      %v2768 = vrot.slane %v2342, 2
      %v2769 = vrot.slane %v2347, 2
      %v2770 = vsel %vm1818, %v2768, %v2769
      %v2771 = vrot.slane %v2350, 2
      %v2772 = vsel %vm1818, %v2769, %v2771
      %v2773 = vrot.slane %v2355, 2
      %v2774 = vrot.slane %v2358, 2
      %v2775 = vsel %vm1818, %v2773, %v2774
      %v2776 = vrot.slane %v2363, 2
      %v2777 = vsel %vm1818, %v2774, %v2776
      %v2778 = vrot.slane %v2366, 2
      %v2779 = vrot.slane %v2371, 2
      %v2780 = vsel %vm1818, %v2778, %v2779
      %v2781 = vrot.slane %v2374, 2
      %v2782 = vsel %vm1818, %v2779, %v2781
      %v2783 = vrot.slane %v2379, 2
      %v2784 = vrot.slane %v2382, 2
      %v2785 = vsel %vm1818, %v2783, %v2784
      %v2786 = vrot.slane %v2387, 2
      %v2787 = vsel %vm1818, %v2784, %v2786
      %v2788 = vrot.slane %v2390, 2
      %v2789 = vrot.slane %v2395, 2
      %v2790 = vsel %vm1818, %v2788, %v2789
      %v2791 = vrot.slane %v2398, 2
      %v2792 = vsel %vm1818, %v2789, %v2791
      %v2793 = vrot.slane %v2403, 2
      %v2794 = vrot.slane %v2406, 2
      %v2795 = vsel %vm1818, %v2793, %v2794
      %v2796 = vrot.slane %v2411, 2
      %v2797 = vsel %vm1818, %v2794, %v2796
      %v2798 = vrot.slane %v2414, 2
      %v2799 = vrot.slane %v2419, 2
      %v2800 = vsel %vm1818, %v2798, %v2799
      %v2801 = vrot.slane %v2422, 2
      %v2802 = vsel %vm1818, %v2799, %v2801
      %v2803 = vrot.slane %v2427, 2
      %v2804 = vrot.slane %v2430, 2
      %v2805 = vsel %vm1818, %v2803, %v2804
      %v2806 = vrot.slane %v2435, 2
      %v2807 = vsel %vm1818, %v2804, %v2806
      %v2808 = vrot.slane %v2438, 2
      %v2809 = vrot.slane %v2443, 2
      %v2810 = vsel %vm1818, %v2808, %v2809
      %v2811 = vrot.slane %v2446, 2
      %v2812 = vsel %vm1818, %v2809, %v2811
      %v2813 = vrot.slane %v2451, 2
      %v2814 = vrot.slane %v2454, 2
      %v2815 = vsel %vm1818, %v2813, %v2814
      %v2816 = vrot.slane %v2459, 2
      %v2817 = vsel %vm1818, %v2814, %v2816
      %v2818 = vrot.slane %v2462, 2
      %v2819 = vrot.slane %v2467, 2
      %v2820 = vsel %vm1818, %v2818, %v2819
      %v2821 = vrot.slane %v2470, 2
      %v2822 = vsel %vm1818, %v2819, %v2821
      %v2823 = vrot.slane %v2475, 2
      %v2824 = vrot.slane %v2478, 2
      %v2825 = vsel %vm1818, %v2823, %v2824
      %v2826 = vrot.slane %v2483, 2
      %v2827 = vsel %vm1818, %v2824, %v2826
      %v2828 = vrot.slane %v2486, 2
      %v2829 = vrot.slane %v2491, 2
      %v2830 = vsel %vm1818, %v2828, %v2829
      %v2831 = vrot.slane %v2494, 2
      %v2832 = vsel %vm1818, %v2829, %v2831
      %2833 = vrot.lane.b32.xlu0 %v2755, 120
      %v2834 = vpop.permute.xlu0 %2833
      %2835 = vrot.lane.b32.xlu0 %v2757, 120
      %v2836 = vpop.permute.xlu0 %2835
      %2837 = vrot.lane.b32.xlu0 %v2760, 120
      %v2838 = vpop.permute.xlu0 %2837
      %2839 = vrot.lane.b32.xlu0 %v2762, 120
      %v2840 = vpop.permute.xlu0 %2839
      %2841 = vrot.lane.b32.xlu0 %v2765, 120
      %v2842 = vpop.permute.xlu0 %2841
      %2843 = vrot.lane.b32.xlu0 %v2767, 120
      %v2844 = vpop.permute.xlu0 %2843
      %2845 = vrot.lane.b32.xlu0 %v2770, 120
      %v2846 = vpop.permute.xlu0 %2845
      %2847 = vrot.lane.b32.xlu0 %v2772, 120
      %v2848 = vpop.permute.xlu0 %2847
      %2849 = vrot.lane.b32.xlu0 %v2775, 120
      %v2850 = vpop.permute.xlu0 %2849
      %2851 = vrot.lane.b32.xlu0 %v2777, 120
      %v2852 = vpop.permute.xlu0 %2851
      %2853 = vrot.lane.b32.xlu0 %v2780, 120
      %v2854 = vpop.permute.xlu0 %2853
      %2855 = vrot.lane.b32.xlu0 %v2782, 120
      %v2856 = vpop.permute.xlu0 %2855
      %2857 = vrot.lane.b32.xlu0 %v2785, 120
      %v2858 = vpop.permute.xlu0 %2857
      %2859 = vrot.lane.b32.xlu0 %v2787, 120
      %v2860 = vpop.permute.xlu0 %2859
      %2861 = vrot.lane.b32.xlu0 %v2790, 120
      %v2862 = vpop.permute.xlu0 %2861
      %2863 = vrot.lane.b32.xlu0 %v2792, 120
      %v2864 = vpop.permute.xlu0 %2863
      %2865 = vrot.lane.b32.xlu0 %v2795, 120
      %v2866 = vpop.permute.xlu0 %2865
      %2867 = vrot.lane.b32.xlu0 %v2797, 120
      %v2868 = vpop.permute.xlu0 %2867
      %2869 = vrot.lane.b32.xlu0 %v2800, 120
      %v2870 = vpop.permute.xlu0 %2869
      %2871 = vrot.lane.b32.xlu0 %v2802, 120
      %v2872 = vpop.permute.xlu0 %2871
      %2873 = vrot.lane.b32.xlu0 %v2805, 120
      %v2874 = vpop.permute.xlu0 %2873
      %2875 = vrot.lane.b32.xlu0 %v2807, 120
      %v2876 = vpop.permute.xlu0 %2875
      %2877 = vrot.lane.b32.xlu0 %v2810, 120
      %v2878 = vpop.permute.xlu0 %2877
      %2879 = vrot.lane.b32.xlu0 %v2812, 120
      %v2880 = vpop.permute.xlu0 %2879
      %2881 = vrot.lane.b32.xlu0 %v2815, 120
      %v2882 = vpop.permute.xlu0 %2881
      %2883 = vrot.lane.b32.xlu0 %v2817, 120
      %v2884 = vpop.permute.xlu0 %2883
      %2885 = vrot.lane.b32.xlu0 %v2820, 120
      %v2886 = vpop.permute.xlu0 %2885
      %2887 = vrot.lane.b32.xlu0 %v2822, 120
      %v2888 = vpop.permute.xlu0 %2887
      %2889 = vrot.lane.b32.xlu0 %v2825, 120
      %v2890 = vpop.permute.xlu0 %2889
      %2891 = vrot.lane.b32.xlu0 %v2827, 120
      %v2892 = vpop.permute.xlu0 %2891
      %2893 = vrot.lane.b32.xlu0 %v2830, 120
      %v2894 = vpop.permute.xlu0 %2893
      %2895 = vrot.lane.b32.xlu0 %v2832, 120
      %v2896 = vpop.permute.xlu0 %2895
      %v2929 = vadd.f32 %v2721, %v2834
      %v2930 = vadd.f32 %v2722, %v2836
      %v2931 = vadd.f32 %v2723, %v2838
      %v2932 = vadd.f32 %v2724, %v2840
      %v2933 = vadd.f32 %v2725, %v2842
      %v2934 = vadd.f32 %v2726, %v2844
      %v2935 = vadd.f32 %v2727, %v2846
      %v2936 = vadd.f32 %v2728, %v2848
      %v2937 = vadd.f32 %v2729, %v2850
      %v2938 = vadd.f32 %v2730, %v2852
      %v2939 = vadd.f32 %v2731, %v2854
      %v2940 = vadd.f32 %v2732, %v2856
      %v2941 = vadd.f32 %v2733, %v2858
      %v2942 = vadd.f32 %v2734, %v2860
      %v2943 = vadd.f32 %v2735, %v2862
      %v2944 = vadd.f32 %v2736, %v2864
      %v2945 = vadd.f32 %v2737, %v2866
      %v2946 = vadd.f32 %v2738, %v2868
      %v2947 = vadd.f32 %v2739, %v2870
      %v2948 = vadd.f32 %v2740, %v2872
      %v2949 = vadd.f32 %v2741, %v2874
      %v2950 = vadd.f32 %v2742, %v2876
      %v2951 = vadd.f32 %v2743, %v2878
      %v2952 = vadd.f32 %v2744, %v2880
      %v2953 = vadd.f32 %v2745, %v2882
      %v2954 = vadd.f32 %v2746, %v2884
      %v2955 = vadd.f32 %v2747, %v2886
      %v2956 = vadd.f32 %v2748, %v2888
      %v2957 = vadd.f32 %v2749, %v2890
      %v2958 = vadd.f32 %v2750, %v2892
      %v2959 = vadd.f32 %v2751, %v2894
      %v2960 = vadd.f32 %v2752, %v2896
      %v2961 = vadd.f32 %v1995, %v2929
      %v2962 = vadd.f32 %v1996, %v2930
      %v2963 = vadd.f32 %v1997, %v2931
      %v2964 = vadd.f32 %v1998, %v2932
      %v2965 = vadd.f32 %v1999, %v2933
      %v2966 = vadd.f32 %v2000, %v2934
      %v2967 = vadd.f32 %v2001, %v2935
      %v2968 = vadd.f32 %v2002, %v2936
      %v2969 = vadd.f32 %v2003, %v2937
      %v2970 = vadd.f32 %v2004, %v2938
      %v2971 = vadd.f32 %v2005, %v2939
      %v2972 = vadd.f32 %v2006, %v2940
      %v2973 = vadd.f32 %v2007, %v2941
      %v2974 = vadd.f32 %v2008, %v2942
      %v2975 = vadd.f32 %v2009, %v2943
      %v2976 = vadd.f32 %v2010, %v2944
      %v2977 = vadd.f32 %v2011, %v2945
      %v2978 = vadd.f32 %v2012, %v2946
      %v2979 = vadd.f32 %v2013, %v2947
      %v2980 = vadd.f32 %v2014, %v2948
      %v2981 = vadd.f32 %v2015, %v2949
      %v2982 = vadd.f32 %v2016, %v2950
      %v2983 = vadd.f32 %v2017, %v2951
      %v2984 = vadd.f32 %v2018, %v2952
      %v2985 = vadd.f32 %v2019, %v2953
      %v2986 = vadd.f32 %v2020, %v2954
      %v2987 = vadd.f32 %v2021, %v2955
      %v2988 = vadd.f32 %v2022, %v2956
      %v2989 = vadd.f32 %v2023, %v2957
      %v2990 = vadd.f32 %v2024, %v2958
      %v2991 = vadd.f32 %v2025, %v2959
      %v2992 = vadd.f32 %v2026, %v2960
      %s2993 = scalar_lea.vmem [#allocation2], 24
      %v2994 = vld [vmem:[%s2993] sm:$0xf]
      %v2995 = vld [vmem:[%s2993 + $0x4] sm:$0xf]
      %v2996 = vld [vmem:[%s2993 + $0x8] sm:$0xf]
      %v2997 = vld [vmem:[%s2993 + $0xc] sm:$0xf]
      %v2998 = vld [vmem:[%s2993 + $0x10] sm:$0xf]
      %v2999 = vld [vmem:[%s2993 + $0x14] sm:$0xf]
      %v3000 = vld [vmem:[%s2993 + $0x18] sm:$0xf]
      %v3001 = vld [vmem:[%s2993 + $0x1c] sm:$0xf]
      %v3002 = vld [vmem:[%s2993 + $0x20] sm:$0xf]
      %v3003 = vld [vmem:[%s2993 + $0x24] sm:$0xf]
      %v3004 = vld [vmem:[%s2993 + $0x28] sm:$0xf]
      %v3005 = vld [vmem:[%s2993 + $0x2c] sm:$0xf]
      %v3006 = vld [vmem:[%s2993 + $0x30] sm:$0xf]
      %v3007 = vld [vmem:[%s2993 + $0x34] sm:$0xf]
      %v3008 = vld [vmem:[%s2993 + $0x38] sm:$0xf]
      %v3009 = vld [vmem:[%s2993 + $0x3c] sm:$0xf]
      %v3010 = vld [vmem:[%s2993 + $0x40] sm:$0xf]
      %v3011 = vld [vmem:[%s2993 + $0x44] sm:$0xf]
      %v3012 = vld [vmem:[%s2993 + $0x48] sm:$0xf]
      %v3013 = vld [vmem:[%s2993 + $0x4c] sm:$0xf]
      %v3014 = vld [vmem:[%s2993 + $0x50] sm:$0xf]
      %v3015 = vld [vmem:[%s2993 + $0x54] sm:$0xf]
      %v3016 = vld [vmem:[%s2993 + $0x58] sm:$0xf]
      %v3017 = vld [vmem:[%s2993 + $0x5c] sm:$0xf]
      %v3018 = vld [vmem:[%s2993 + $0x60] sm:$0xf]
      %v3019 = vld [vmem:[%s2993 + $0x64] sm:$0xf]
      %v3020 = vld [vmem:[%s2993 + $0x68] sm:$0xf]
      %v3021 = vld [vmem:[%s2993 + $0x6c] sm:$0xf]
      %v3022 = vld [vmem:[%s2993 + $0x70] sm:$0xf]
      %v3023 = vld [vmem:[%s2993 + $0x74] sm:$0xf]
      %v3024 = vld [vmem:[%s2993 + $0x78] sm:$0xf]
      %v3025 = vld [vmem:[%s2993 + $0x7c] sm:$0xf]
      %v3026 = vld [vmem:[%s2993 + $0x80] sm:$0xf]
      %v3027 = vld [vmem:[%s2993 + $0x84] sm:$0xf]
      %v3028 = vld [vmem:[%s2993 + $0x88] sm:$0xf]
      %v3029 = vld [vmem:[%s2993 + $0x8c] sm:$0xf]
      %v3030 = vld [vmem:[%s2993 + $0x90] sm:$0xf]
      %v3031 = vld [vmem:[%s2993 + $0x94] sm:$0xf]
      %v3032 = vld [vmem:[%s2993 + $0x98] sm:$0xf]
      %v3033 = vld [vmem:[%s2993 + $0x9c] sm:$0xf]
      %v3034 = vld [vmem:[%s2993 + $0xa0] sm:$0xf]
      %v3035 = vld [vmem:[%s2993 + $0xa4] sm:$0xf]
      %v3036 = vld [vmem:[%s2993 + $0xa8] sm:$0xf]
      %v3037 = vld [vmem:[%s2993 + $0xac] sm:$0xf]
      %v3038 = vld [vmem:[%s2993 + $0xb0] sm:$0xf]
      %v3039 = vld [vmem:[%s2993 + $0xb4] sm:$0xf]
      %v3040 = vld [vmem:[%s2993 + $0xb8] sm:$0xf]
      %v3041 = vld [vmem:[%s2993 + $0xbc] sm:$0xf]
      %s3042 = scalar_lea.vmem %s3, 4
      %v3043 = vld [vmem:[%s3042] sm:$0x3]
      %v3092 = vunpack.c.l.b16 %v2994
      %v3093 = vunpack.c.l.b16 %v2995
      %v3094 = vunpack.c.l.b16 %v2996
      %v3095 = vunpack.c.l.b16 %v2997
      %v3096 = vunpack.c.l.b16 %v2998
      %v3097 = vunpack.c.l.b16 %v2999
      %v3098 = vunpack.c.l.b16 %v3000
      %v3099 = vunpack.c.l.b16 %v3001
      %v3100 = vunpack.c.l.b16 %v3002
      %v3101 = vunpack.c.l.b16 %v3003
      %v3102 = vunpack.c.l.b16 %v3004
      %v3103 = vunpack.c.l.b16 %v3005
      %v3104 = vunpack.c.l.b16 %v3006
      %v3105 = vunpack.c.l.b16 %v3007
      %v3106 = vunpack.c.l.b16 %v3008
      %v3107 = vunpack.c.l.b16 %v3009
      %v3108 = vunpack.c.l.b16 %v3010
      %v3109 = vunpack.c.l.b16 %v3011
      %v3110 = vunpack.c.l.b16 %v3012
      %v3111 = vunpack.c.l.b16 %v3013
      %v3112 = vunpack.c.l.b16 %v3014
      %v3113 = vunpack.c.l.b16 %v3015
      %v3114 = vunpack.c.l.b16 %v3016
      %v3115 = vunpack.c.l.b16 %v3017
      %v3116 = vunpack.c.l.b16 %v3018
      %v3117 = vunpack.c.l.b16 %v3019
      %v3118 = vunpack.c.l.b16 %v3020
      %v3119 = vunpack.c.l.b16 %v3021
      %v3120 = vunpack.c.l.b16 %v3022
      %v3121 = vunpack.c.l.b16 %v3023
      %v3122 = vunpack.c.l.b16 %v3024
      %v3123 = vunpack.c.l.b16 %v3025
      %v3124 = vunpack.c.l.b16 %v3026
      %v3125 = vunpack.c.l.b16 %v3027
      %v3126 = vunpack.c.l.b16 %v3028
      %v3127 = vunpack.c.l.b16 %v3029
      %v3128 = vunpack.c.l.b16 %v3030
      %v3129 = vunpack.c.l.b16 %v3031
      %v3130 = vunpack.c.l.b16 %v3032
      %v3131 = vunpack.c.l.b16 %v3033
      %v3132 = vunpack.c.l.b16 %v3034
      %v3133 = vunpack.c.l.b16 %v3035
      %v3134 = vunpack.c.l.b16 %v3036
      %v3135 = vunpack.c.l.b16 %v3037
      %v3136 = vunpack.c.l.b16 %v3038
      %v3137 = vunpack.c.l.b16 %v3039
      %v3138 = vunpack.c.l.b16 %v3040
      %v3139 = vunpack.c.l.b16 %v3041
      %v3140 = vpack.c.b16 %v3093, %v3092
      %v3141 = vpack.c.b16 %v3095, %v3094
      %v3142 = vpack.c.b16 %v3097, %v3096
      %v3143 = vpack.c.b16 %v3099, %v3098
      %v3144 = vpack.c.b16 %v3101, %v3100
      %v3145 = vpack.c.b16 %v3103, %v3102
      %v3146 = vpack.c.b16 %v3105, %v3104
      %v3147 = vpack.c.b16 %v3107, %v3106
      %v3148 = vpack.c.b16 %v3109, %v3108
      %v3149 = vpack.c.b16 %v3111, %v3110
      %v3150 = vpack.c.b16 %v3113, %v3112
      %v3151 = vpack.c.b16 %v3115, %v3114
      %v3152 = vpack.c.b16 %v3117, %v3116
      %v3153 = vpack.c.b16 %v3119, %v3118
      %v3154 = vpack.c.b16 %v3121, %v3120
      %v3155 = vpack.c.b16 %v3123, %v3122
      %v3156 = vpack.c.b16 %v3125, %v3124
      %v3157 = vpack.c.b16 %v3127, %v3126
      %v3158 = vpack.c.b16 %v3129, %v3128
      %v3159 = vpack.c.b16 %v3131, %v3130
      %v3160 = vpack.c.b16 %v3133, %v3132
      %v3161 = vpack.c.b16 %v3135, %v3134
      %v3162 = vpack.c.b16 %v3137, %v3136
      %v3163 = vpack.c.b16 %v3139, %v3138
      %v3165 = vsel %vm1259, %v3140, 0
      %v3168 = vsel %vm1259, %v3141, 0
      %v3171 = vsel %vm1259, %v3142, 0
      %v3174 = vsel %vm1259, %v3143, 0
      %v3177 = vsel %vm1259, %v3144, 0
      %v3180 = vsel %vm1259, %v3145, 0
      %v3183 = vsel %vm1259, %v3146, 0
      %v3186 = vsel %vm1259, %v3147, 0
      %v3189 = vsel %vm1259, %v3148, 0
      %v3192 = vsel %vm1259, %v3149, 0
      %v3195 = vsel %vm1259, %v3150, 0
      %v3198 = vsel %vm1259, %v3151, 0
      %v3201 = vsel %vm1259, %v3152, 0
      %v3204 = vsel %vm1259, %v3153, 0
      %v3207 = vsel %vm1259, %v3154, 0
      %v3210 = vsel %vm1259, %v3155, 0
      %v3213 = vsel %vm1259, %v3156, 0
      %v3216 = vsel %vm1259, %v3157, 0
      %v3219 = vsel %vm1259, %v3158, 0
      %v3222 = vsel %vm1259, %v3159, 0
      %v3225 = vsel %vm1259, %v3160, 0
      %v3228 = vsel %vm1259, %v3161, 0
      %v3231 = vsel %vm1259, %v3162, 0
      %v3234 = vsel %vm1259, %v3163, 0
      %v3237 = vsel %vm1332, %v3043, 0
      %3239 = vmatprep.subr.bf16.mxu0 0
      %3240 = vmatpush1.bf16.msra.mxu0 %v3237
      %3241 = vmatprep.subr.bf16.mxu0 0
      %3242 = vmatpush1.bf16.msra.mxu0 0
      %3243 = vmatprep.subr.bf16.mxu0 0
      %3244 = vmatpush1.bf16.msra.mxu0 0
      %3245 = vmatprep.subr.bf16.mxu0 0
      %3246 = vmatpush1.bf16.msra.mxu0 0
      %3247 = vmatprep.subr.bf16.mxu0 0
      %3248 = vmatpush1.bf16.msra.mxu0 0
      %3249 = vmatprep.subr.bf16.mxu0 0
      %3250 = vmatpush1.bf16.msra.mxu0 0
      %3251 = vmatprep.subr.bf16.mxu0 0
      %3252 = vmatpush1.bf16.msra.mxu0 0
      %3253 = vmatprep.subr.bf16.mxu0 0
      %3254 = vmatpush1.bf16.msra.mxu0 0
      %3255 = vmatprep.subr.bf16.mxu0 0
      %3256 = vmatpush1.bf16.msra.mxu0 0
      %3257 = vmatprep.subr.bf16.mxu0 0
      %3258 = vmatpush1.bf16.msra.mxu0 0
      %3259 = vmatprep.subr.bf16.mxu0 0
      %3260 = vmatpush1.bf16.msra.mxu0 0
      %3261 = vmatprep.subr.bf16.mxu0 0
      %3262 = vmatpush1.bf16.msra.mxu0 0
      %3263 = vmatprep.subr.bf16.mxu0 0
      %3264 = vmatpush1.bf16.msra.mxu0 0
      %3265 = vmatprep.subr.bf16.mxu0 0
      %3266 = vmatpush1.bf16.msra.mxu0 0
      %3267 = vmatprep.subr.bf16.mxu0 0
      %3268 = vmatpush1.bf16.msra.mxu0 0
      %3269 = vmatprep.subr.bf16.mxu0 0
      %3270 = vmatpush1.bf16.msra.mxu0 0
      %3271 = vmatprep.mubr.bf16.mxu0 0
      %3272 = vmatmul.mubr.bf16.gmra.mrb[0].mxu0 %v3165
      %v3273 = vpop.f32.mrb[0].mxu0
      %v3274 = vadd.f32 0.0, %v3273
      %v3275 = vpop.f32.mrb[0].mxu0
      %v3276 = vpop.f32.mrb[0].mxu0
      %v3277 = vadd.f32 0.0, %v3276
      %v3278 = vpop.f32.mrb[0].mxu0
      %3279 = vmatprep.mubr.bf16.mxu0 0
      %3280 = vmatmul.mubr.bf16.gmra.mrb[0].mxu0 %v3168
      %v3281 = vpop.f32.mrb[0].mxu0
      %v3282 = vadd.f32 0.0, %v3281
      %v3283 = vpop.f32.mrb[0].mxu0
      %v3284 = vpop.f32.mrb[0].mxu0
      %v3285 = vadd.f32 0.0, %v3284
      %v3286 = vpop.f32.mrb[0].mxu0
      %3287 = vmatprep.mubr.bf16.mxu0 0
      %3288 = vmatmul.mubr.bf16.gmra.mrb[0].mxu0 %v3171
      %v3289 = vpop.f32.mrb[0].mxu0
      %v3290 = vadd.f32 0.0, %v3289
      %v3291 = vpop.f32.mrb[0].mxu0
      %v3292 = vpop.f32.mrb[0].mxu0
      %v3293 = vadd.f32 0.0, %v3292
      %v3294 = vpop.f32.mrb[0].mxu0
      %3295 = vmatprep.mubr.bf16.mxu0 0
      %3296 = vmatmul.mubr.bf16.gmra.mrb[0].mxu0 %v3174
      %v3297 = vpop.f32.mrb[0].mxu0
      %v3298 = vadd.f32 0.0, %v3297
      %v3299 = vpop.f32.mrb[0].mxu0
      %v3300 = vpop.f32.mrb[0].mxu0
      %v3301 = vadd.f32 0.0, %v3300
      %v3302 = vpop.f32.mrb[0].mxu0
      %3303 = vmatprep.mubr.bf16.mxu0 0
      %3304 = vmatmul.mubr.bf16.gmra.mrb[0].mxu0 %v3177
      %v3305 = vpop.f32.mrb[0].mxu0
      %v3306 = vadd.f32 0.0, %v3305
      %v3307 = vpop.f32.mrb[0].mxu0
      %v3308 = vpop.f32.mrb[0].mxu0
      %v3309 = vadd.f32 0.0, %v3308
      %v3310 = vpop.f32.mrb[0].mxu0
      %3311 = vmatprep.mubr.bf16.mxu0 0
      %3312 = vmatmul.mubr.bf16.gmra.mrb[0].mxu0 %v3180
      %v3313 = vpop.f32.mrb[0].mxu0
      %v3314 = vadd.f32 0.0, %v3313
      %v3315 = vpop.f32.mrb[0].mxu0
      %v3316 = vpop.f32.mrb[0].mxu0
      %v3317 = vadd.f32 0.0, %v3316
      %v3318 = vpop.f32.mrb[0].mxu0
      %3319 = vmatprep.mubr.bf16.mxu0 0
      %3320 = vmatmul.mubr.bf16.gmra.mrb[0].mxu0 %v3183
      %v3321 = vpop.f32.mrb[0].mxu0
      %v3322 = vadd.f32 0.0, %v3321
      %v3323 = vpop.f32.mrb[0].mxu0
      %v3324 = vpop.f32.mrb[0].mxu0
      %v3325 = vadd.f32 0.0, %v3324
      %v3326 = vpop.f32.mrb[0].mxu0
      %3327 = vmatprep.mubr.bf16.mxu0 0
      %3328 = vmatmul.mubr.bf16.gmra.mrb[0].mxu0 %v3186
      %v3329 = vpop.f32.mrb[0].mxu0
      %v3330 = vadd.f32 0.0, %v3329
      %v3331 = vpop.f32.mrb[0].mxu0
      %v3332 = vpop.f32.mrb[0].mxu0
      %v3333 = vadd.f32 0.0, %v3332
      %v3334 = vpop.f32.mrb[0].mxu0
      %3335 = vmatprep.mubr.bf16.mxu0 0
      %3336 = vmatmul.mubr.bf16.gmra.mrb[0].mxu0 %v3189
      %v3337 = vpop.f32.mrb[0].mxu0
      %v3338 = vadd.f32 0.0, %v3337
      %v3339 = vpop.f32.mrb[0].mxu0
      %v3340 = vpop.f32.mrb[0].mxu0
      %v3341 = vadd.f32 0.0, %v3340
      %v3342 = vpop.f32.mrb[0].mxu0
      %3343 = vmatprep.mubr.bf16.mxu0 0
      %3344 = vmatmul.mubr.bf16.gmra.mrb[0].mxu0 %v3192
      %v3345 = vpop.f32.mrb[0].mxu0
      %v3346 = vadd.f32 0.0, %v3345
      %v3347 = vpop.f32.mrb[0].mxu0
      %v3348 = vpop.f32.mrb[0].mxu0
      %v3349 = vadd.f32 0.0, %v3348
      %v3350 = vpop.f32.mrb[0].mxu0
      %3351 = vmatprep.mubr.bf16.mxu0 0
      %3352 = vmatmul.mubr.bf16.gmra.mrb[0].mxu0 %v3195
      %v3353 = vpop.f32.mrb[0].mxu0
      %v3354 = vadd.f32 0.0, %v3353
      %v3355 = vpop.f32.mrb[0].mxu0
      %v3356 = vpop.f32.mrb[0].mxu0
      %v3357 = vadd.f32 0.0, %v3356
      %v3358 = vpop.f32.mrb[0].mxu0
      %3359 = vmatprep.mubr.bf16.mxu0 0
      %3360 = vmatmul.mubr.bf16.gmra.mrb[0].mxu0 %v3198
      %v3361 = vpop.f32.mrb[0].mxu0
      %v3362 = vadd.f32 0.0, %v3361
      %v3363 = vpop.f32.mrb[0].mxu0
      %v3364 = vpop.f32.mrb[0].mxu0
      %v3365 = vadd.f32 0.0, %v3364
      %v3366 = vpop.f32.mrb[0].mxu0
      %3367 = vmatprep.mubr.bf16.mxu0 0
      %3368 = vmatmul.mubr.bf16.gmra.mrb[0].mxu0 %v3201
      %v3369 = vpop.f32.mrb[0].mxu0
      %v3370 = vadd.f32 0.0, %v3369
      %v3371 = vpop.f32.mrb[0].mxu0
      %v3372 = vpop.f32.mrb[0].mxu0
      %v3373 = vadd.f32 0.0, %v3372
      %v3374 = vpop.f32.mrb[0].mxu0
      %3375 = vmatprep.mubr.bf16.mxu0 0
      %3376 = vmatmul.mubr.bf16.gmra.mrb[0].mxu0 %v3204
      %v3377 = vpop.f32.mrb[0].mxu0
      %v3378 = vadd.f32 0.0, %v3377
      %v3379 = vpop.f32.mrb[0].mxu0
      %v3380 = vpop.f32.mrb[0].mxu0
      %v3381 = vadd.f32 0.0, %v3380
      %v3382 = vpop.f32.mrb[0].mxu0
      %3383 = vmatprep.mubr.bf16.mxu0 0
      %3384 = vmatmul.mubr.bf16.gmra.mrb[0].mxu0 %v3207
      %v3385 = vpop.f32.mrb[0].mxu0
      %v3386 = vadd.f32 0.0, %v3385
      %v3387 = vpop.f32.mrb[0].mxu0
      %v3388 = vpop.f32.mrb[0].mxu0
      %v3389 = vadd.f32 0.0, %v3388
      %v3390 = vpop.f32.mrb[0].mxu0
      %3391 = vmatprep.mubr.bf16.mxu0 0
      %3392 = vmatmul.mubr.bf16.gmra.mrb[0].mxu0 %v3210
      %v3393 = vpop.f32.mrb[0].mxu0
      %v3394 = vadd.f32 0.0, %v3393
      %v3395 = vpop.f32.mrb[0].mxu0
      %v3396 = vpop.f32.mrb[0].mxu0
      %v3397 = vadd.f32 0.0, %v3396
      %v3398 = vpop.f32.mrb[0].mxu0
      %3399 = vmatprep.mubr.bf16.mxu0 0
      %3400 = vmatmul.mubr.bf16.gmra.mrb[0].mxu0 %v3213
      %v3401 = vpop.f32.mrb[0].mxu0
      %v3402 = vadd.f32 0.0, %v3401
      %v3403 = vpop.f32.mrb[0].mxu0
      %v3404 = vpop.f32.mrb[0].mxu0
      %v3405 = vadd.f32 0.0, %v3404
      %v3406 = vpop.f32.mrb[0].mxu0
      %3407 = vmatprep.mubr.bf16.mxu0 0
      %3408 = vmatmul.mubr.bf16.gmra.mrb[0].mxu0 %v3216
      %v3409 = vpop.f32.mrb[0].mxu0
      %v3410 = vadd.f32 0.0, %v3409
      %v3411 = vpop.f32.mrb[0].mxu0
      %v3412 = vpop.f32.mrb[0].mxu0
      %v3413 = vadd.f32 0.0, %v3412
      %v3414 = vpop.f32.mrb[0].mxu0
      %3415 = vmatprep.mubr.bf16.mxu0 0
      %3416 = vmatmul.mubr.bf16.gmra.mrb[0].mxu0 %v3219
      %v3417 = vpop.f32.mrb[0].mxu0
      %v3418 = vadd.f32 0.0, %v3417
      %v3419 = vpop.f32.mrb[0].mxu0
      %v3420 = vpop.f32.mrb[0].mxu0
      %v3421 = vadd.f32 0.0, %v3420
      %v3422 = vpop.f32.mrb[0].mxu0
      %3423 = vmatprep.mubr.bf16.mxu0 0
      %3424 = vmatmul.mubr.bf16.gmra.mrb[0].mxu0 %v3222
      %v3425 = vpop.f32.mrb[0].mxu0
      %v3426 = vadd.f32 0.0, %v3425
      %v3427 = vpop.f32.mrb[0].mxu0
      %v3428 = vpop.f32.mrb[0].mxu0
      %v3429 = vadd.f32 0.0, %v3428
      %v3430 = vpop.f32.mrb[0].mxu0
      %3431 = vmatprep.mubr.bf16.mxu0 0
      %3432 = vmatmul.mubr.bf16.gmra.mrb[0].mxu0 %v3225
      %v3433 = vpop.f32.mrb[0].mxu0
      %v3434 = vadd.f32 0.0, %v3433
      %v3435 = vpop.f32.mrb[0].mxu0
      %v3436 = vpop.f32.mrb[0].mxu0
      %v3437 = vadd.f32 0.0, %v3436
      %v3438 = vpop.f32.mrb[0].mxu0
      %3439 = vmatprep.mubr.bf16.mxu0 0
      %3440 = vmatmul.mubr.bf16.gmra.mrb[0].mxu0 %v3228
      %v3441 = vpop.f32.mrb[0].mxu0
      %v3442 = vadd.f32 0.0, %v3441
      %v3443 = vpop.f32.mrb[0].mxu0
      %v3444 = vpop.f32.mrb[0].mxu0
      %v3445 = vadd.f32 0.0, %v3444
      %v3446 = vpop.f32.mrb[0].mxu0
      %3447 = vmatprep.mubr.bf16.mxu0 0
      %3448 = vmatmul.mubr.bf16.gmra.mrb[0].mxu0 %v3231
      %v3449 = vpop.f32.mrb[0].mxu0
      %v3450 = vadd.f32 0.0, %v3449
      %v3451 = vpop.f32.mrb[0].mxu0
      %v3452 = vpop.f32.mrb[0].mxu0
      %v3453 = vadd.f32 0.0, %v3452
      %v3454 = vpop.f32.mrb[0].mxu0
      %3455 = vmatprep.mubr.bf16.mxu0 0
      %3456 = vmatmul.mubr.bf16.gmra.mrb[0].mxu0 %v3234
      %v3457 = vpop.f32.mrb[0].mxu0
      %v3458 = vadd.f32 0.0, %v3457
      %v3459 = vpop.f32.mrb[0].mxu0
      %v3460 = vpop.f32.mrb[0].mxu0
      %v3461 = vadd.f32 0.0, %v3460
      %v3462 = vpop.f32.mrb[0].mxu0
      %3463 = vdwg.mxu0
      %v3512 = vrot.slane %v3274, 1
      %v3513 = vrot.slane %v3277, 1
      %v3514 = vsel %vm1609, %v3512, %v3513
      %v3515 = vrot.slane %v3282, 1
      %v3516 = vsel %vm1609, %v3513, %v3515
      %v3517 = vrot.slane %v3285, 1
      %v3518 = vrot.slane %v3290, 1
      %v3519 = vsel %vm1609, %v3517, %v3518
      %v3520 = vrot.slane %v3293, 1
      %v3521 = vsel %vm1609, %v3518, %v3520
      %v3522 = vrot.slane %v3298, 1
      %v3523 = vrot.slane %v3301, 1
      %v3524 = vsel %vm1609, %v3522, %v3523
      %v3525 = vrot.slane %v3306, 1
      %v3526 = vsel %vm1609, %v3523, %v3525
      %v3527 = vrot.slane %v3309, 1
      %v3528 = vrot.slane %v3314, 1
      %v3529 = vsel %vm1609, %v3527, %v3528
      %v3530 = vrot.slane %v3317, 1
      %v3531 = vsel %vm1609, %v3528, %v3530
      %v3532 = vrot.slane %v3322, 1
      %v3533 = vrot.slane %v3325, 1
      %v3534 = vsel %vm1609, %v3532, %v3533
      %v3535 = vrot.slane %v3330, 1
      %v3536 = vsel %vm1609, %v3533, %v3535
      %v3537 = vrot.slane %v3333, 1
      %v3538 = vrot.slane %v3338, 1
      %v3539 = vsel %vm1609, %v3537, %v3538
      %v3540 = vrot.slane %v3341, 1
      %v3541 = vsel %vm1609, %v3538, %v3540
      %v3542 = vrot.slane %v3346, 1
      %v3543 = vrot.slane %v3349, 1
      %v3544 = vsel %vm1609, %v3542, %v3543
      %v3545 = vrot.slane %v3354, 1
      %v3546 = vsel %vm1609, %v3543, %v3545
      %v3547 = vrot.slane %v3357, 1
      %v3548 = vrot.slane %v3362, 1
      %v3549 = vsel %vm1609, %v3547, %v3548
      %v3550 = vrot.slane %v3365, 1
      %v3551 = vsel %vm1609, %v3548, %v3550
      %v3552 = vrot.slane %v3370, 1
      %v3553 = vrot.slane %v3373, 1
      %v3554 = vsel %vm1609, %v3552, %v3553
      %v3555 = vrot.slane %v3378, 1
      %v3556 = vsel %vm1609, %v3553, %v3555
      %v3557 = vrot.slane %v3381, 1
      %v3558 = vrot.slane %v3386, 1
      %v3559 = vsel %vm1609, %v3557, %v3558
      %v3560 = vrot.slane %v3389, 1
      %v3561 = vsel %vm1609, %v3558, %v3560
      %v3562 = vrot.slane %v3394, 1
      %v3563 = vrot.slane %v3397, 1
      %v3564 = vsel %vm1609, %v3562, %v3563
      %v3565 = vrot.slane %v3402, 1
      %v3566 = vsel %vm1609, %v3563, %v3565
      %v3567 = vrot.slane %v3405, 1
      %v3568 = vrot.slane %v3410, 1
      %v3569 = vsel %vm1609, %v3567, %v3568
      %v3570 = vrot.slane %v3413, 1
      %v3571 = vsel %vm1609, %v3568, %v3570
      %v3572 = vrot.slane %v3418, 1
      %v3573 = vrot.slane %v3421, 1
      %v3574 = vsel %vm1609, %v3572, %v3573
      %v3575 = vrot.slane %v3426, 1
      %v3576 = vsel %vm1609, %v3573, %v3575
      %v3577 = vrot.slane %v3429, 1
      %v3578 = vrot.slane %v3434, 1
      %v3579 = vsel %vm1609, %v3577, %v3578
      %v3580 = vrot.slane %v3437, 1
      %v3581 = vsel %vm1609, %v3578, %v3580
      %v3582 = vrot.slane %v3442, 1
      %v3583 = vrot.slane %v3445, 1
      %v3584 = vsel %vm1609, %v3582, %v3583
      %v3585 = vrot.slane %v3450, 1
      %v3586 = vsel %vm1609, %v3583, %v3585
      %v3587 = vrot.slane %v3453, 1
      %v3588 = vrot.slane %v3458, 1
      %v3589 = vsel %vm1609, %v3587, %v3588
      %v3590 = vrot.slane %v3461, 1
      %v3591 = vsel %vm1609, %v3588, %v3590
      %3592 = vrot.lane.b32.xlu0 %v3514, 124
      %v3593 = vpop.permute.xlu0 %3592
      %3594 = vrot.lane.b32.xlu0 %v3516, 124
      %v3595 = vpop.permute.xlu0 %3594
      %3596 = vrot.lane.b32.xlu0 %v3519, 124
      %v3597 = vpop.permute.xlu0 %3596
      %3598 = vrot.lane.b32.xlu0 %v3521, 124
      %v3599 = vpop.permute.xlu0 %3598
      %3600 = vrot.lane.b32.xlu0 %v3524, 124
      %v3601 = vpop.permute.xlu0 %3600
      %3602 = vrot.lane.b32.xlu0 %v3526, 124
      %v3603 = vpop.permute.xlu0 %3602
      %3604 = vrot.lane.b32.xlu0 %v3529, 124
      %v3605 = vpop.permute.xlu0 %3604
      %3606 = vrot.lane.b32.xlu0 %v3531, 124
      %v3607 = vpop.permute.xlu0 %3606
      %3608 = vrot.lane.b32.xlu0 %v3534, 124
      %v3609 = vpop.permute.xlu0 %3608
      %3610 = vrot.lane.b32.xlu0 %v3536, 124
      %v3611 = vpop.permute.xlu0 %3610
      %3612 = vrot.lane.b32.xlu0 %v3539, 124
      %v3613 = vpop.permute.xlu0 %3612
      %3614 = vrot.lane.b32.xlu0 %v3541, 124
      %v3615 = vpop.permute.xlu0 %3614
      %3616 = vrot.lane.b32.xlu0 %v3544, 124
      %v3617 = vpop.permute.xlu0 %3616
      %3618 = vrot.lane.b32.xlu0 %v3546, 124
      %v3619 = vpop.permute.xlu0 %3618
      %3620 = vrot.lane.b32.xlu0 %v3549, 124
      %v3621 = vpop.permute.xlu0 %3620
      %3622 = vrot.lane.b32.xlu0 %v3551, 124
      %v3623 = vpop.permute.xlu0 %3622
      %3624 = vrot.lane.b32.xlu0 %v3554, 124
      %v3625 = vpop.permute.xlu0 %3624
      %3626 = vrot.lane.b32.xlu0 %v3556, 124
      %v3627 = vpop.permute.xlu0 %3626
      %3628 = vrot.lane.b32.xlu0 %v3559, 124
      %v3629 = vpop.permute.xlu0 %3628
      %3630 = vrot.lane.b32.xlu0 %v3561, 124
      %v3631 = vpop.permute.xlu0 %3630
      %3632 = vrot.lane.b32.xlu0 %v3564, 124
      %v3633 = vpop.permute.xlu0 %3632
      %3634 = vrot.lane.b32.xlu0 %v3566, 124
      %v3635 = vpop.permute.xlu0 %3634
      %3636 = vrot.lane.b32.xlu0 %v3569, 124
      %v3637 = vpop.permute.xlu0 %3636
      %3638 = vrot.lane.b32.xlu0 %v3571, 124
      %v3639 = vpop.permute.xlu0 %3638
      %3640 = vrot.lane.b32.xlu0 %v3574, 124
      %v3641 = vpop.permute.xlu0 %3640
      %3642 = vrot.lane.b32.xlu0 %v3576, 124
      %v3643 = vpop.permute.xlu0 %3642
      %3644 = vrot.lane.b32.xlu0 %v3579, 124
      %v3645 = vpop.permute.xlu0 %3644
      %3646 = vrot.lane.b32.xlu0 %v3581, 124
      %v3647 = vpop.permute.xlu0 %3646
      %3648 = vrot.lane.b32.xlu0 %v3584, 124
      %v3649 = vpop.permute.xlu0 %3648
      %3650 = vrot.lane.b32.xlu0 %v3586, 124
      %v3651 = vpop.permute.xlu0 %3650
      %3652 = vrot.lane.b32.xlu0 %v3589, 124
      %v3653 = vpop.permute.xlu0 %3652
      %3654 = vrot.lane.b32.xlu0 %v3591, 124
      %v3655 = vpop.permute.xlu0 %3654
      %v3688 = vadd.f32 %v3274, %v3593
      %v3689 = vadd.f32 %v3277, %v3595
      %v3690 = vadd.f32 %v3285, %v3597
      %v3691 = vadd.f32 %v3290, %v3599
      %v3692 = vadd.f32 %v3298, %v3601
      %v3693 = vadd.f32 %v3301, %v3603
      %v3694 = vadd.f32 %v3309, %v3605
      %v3695 = vadd.f32 %v3314, %v3607
      %v3696 = vadd.f32 %v3322, %v3609
      %v3697 = vadd.f32 %v3325, %v3611
      %v3698 = vadd.f32 %v3333, %v3613
      %v3699 = vadd.f32 %v3338, %v3615
      %v3700 = vadd.f32 %v3346, %v3617
      %v3701 = vadd.f32 %v3349, %v3619
      %v3702 = vadd.f32 %v3357, %v3621
      %v3703 = vadd.f32 %v3362, %v3623
      %v3704 = vadd.f32 %v3370, %v3625
      %v3705 = vadd.f32 %v3373, %v3627
      %v3706 = vadd.f32 %v3381, %v3629
      %v3707 = vadd.f32 %v3386, %v3631
      %v3708 = vadd.f32 %v3394, %v3633
      %v3709 = vadd.f32 %v3397, %v3635
      %v3710 = vadd.f32 %v3405, %v3637
      %v3711 = vadd.f32 %v3410, %v3639
      %v3712 = vadd.f32 %v3418, %v3641
      %v3713 = vadd.f32 %v3421, %v3643
      %v3714 = vadd.f32 %v3429, %v3645
      %v3715 = vadd.f32 %v3434, %v3647
      %v3716 = vadd.f32 %v3442, %v3649
      %v3717 = vadd.f32 %v3445, %v3651
      %v3718 = vadd.f32 %v3453, %v3653
      %v3719 = vadd.f32 %v3458, %v3655
      %v3720 = vrot.slane %v3274, 2
      %v3721 = vrot.slane %v3277, 2
      %v3722 = vsel %vm1818, %v3720, %v3721
      %v3723 = vrot.slane %v3282, 2
      %v3724 = vsel %vm1818, %v3721, %v3723
      %v3725 = vrot.slane %v3285, 2
      %v3726 = vrot.slane %v3290, 2
      %v3727 = vsel %vm1818, %v3725, %v3726
      %v3728 = vrot.slane %v3293, 2
      %v3729 = vsel %vm1818, %v3726, %v3728
      %v3730 = vrot.slane %v3298, 2
      %v3731 = vrot.slane %v3301, 2
      %v3732 = vsel %vm1818, %v3730, %v3731
      %v3733 = vrot.slane %v3306, 2
      %v3734 = vsel %vm1818, %v3731, %v3733
      %v3735 = vrot.slane %v3309, 2
      %v3736 = vrot.slane %v3314, 2
      %v3737 = vsel %vm1818, %v3735, %v3736
      %v3738 = vrot.slane %v3317, 2
      %v3739 = vsel %vm1818, %v3736, %v3738
      %v3740 = vrot.slane %v3322, 2
      %v3741 = vrot.slane %v3325, 2
      %v3742 = vsel %vm1818, %v3740, %v3741
      %v3743 = vrot.slane %v3330, 2
      %v3744 = vsel %vm1818, %v3741, %v3743
      %v3745 = vrot.slane %v3333, 2
      %v3746 = vrot.slane %v3338, 2
      %v3747 = vsel %vm1818, %v3745, %v3746
      %v3748 = vrot.slane %v3341, 2
      %v3749 = vsel %vm1818, %v3746, %v3748
      %v3750 = vrot.slane %v3346, 2
      %v3751 = vrot.slane %v3349, 2
      %v3752 = vsel %vm1818, %v3750, %v3751
      %v3753 = vrot.slane %v3354, 2
      %v3754 = vsel %vm1818, %v3751, %v3753
      %v3755 = vrot.slane %v3357, 2
      %v3756 = vrot.slane %v3362, 2
      %v3757 = vsel %vm1818, %v3755, %v3756
      %v3758 = vrot.slane %v3365, 2
      %v3759 = vsel %vm1818, %v3756, %v3758
      %v3760 = vrot.slane %v3370, 2
      %v3761 = vrot.slane %v3373, 2
      %v3762 = vsel %vm1818, %v3760, %v3761
      %v3763 = vrot.slane %v3378, 2
      %v3764 = vsel %vm1818, %v3761, %v3763
      %v3765 = vrot.slane %v3381, 2
      %v3766 = vrot.slane %v3386, 2
      %v3767 = vsel %vm1818, %v3765, %v3766
      %v3768 = vrot.slane %v3389, 2
      %v3769 = vsel %vm1818, %v3766, %v3768
      %v3770 = vrot.slane %v3394, 2
      %v3771 = vrot.slane %v3397, 2
      %v3772 = vsel %vm1818, %v3770, %v3771
      %v3773 = vrot.slane %v3402, 2
      %v3774 = vsel %vm1818, %v3771, %v3773
      %v3775 = vrot.slane %v3405, 2
      %v3776 = vrot.slane %v3410, 2
      %v3777 = vsel %vm1818, %v3775, %v3776
      %v3778 = vrot.slane %v3413, 2
      %v3779 = vsel %vm1818, %v3776, %v3778
      %v3780 = vrot.slane %v3418, 2
      %v3781 = vrot.slane %v3421, 2
      %v3782 = vsel %vm1818, %v3780, %v3781
      %v3783 = vrot.slane %v3426, 2
      %v3784 = vsel %vm1818, %v3781, %v3783
      %v3785 = vrot.slane %v3429, 2
      %v3786 = vrot.slane %v3434, 2
      %v3787 = vsel %vm1818, %v3785, %v3786
      %v3788 = vrot.slane %v3437, 2
      %v3789 = vsel %vm1818, %v3786, %v3788
      %v3790 = vrot.slane %v3442, 2
      %v3791 = vrot.slane %v3445, 2
      %v3792 = vsel %vm1818, %v3790, %v3791
      %v3793 = vrot.slane %v3450, 2
      %v3794 = vsel %vm1818, %v3791, %v3793
      %v3795 = vrot.slane %v3453, 2
      %v3796 = vrot.slane %v3458, 2
      %v3797 = vsel %vm1818, %v3795, %v3796
      %v3798 = vrot.slane %v3461, 2
      %v3799 = vsel %vm1818, %v3796, %v3798
      %3800 = vrot.lane.b32.xlu0 %v3722, 120
      %v3801 = vpop.permute.xlu0 %3800
      %3802 = vrot.lane.b32.xlu0 %v3724, 120
      %v3803 = vpop.permute.xlu0 %3802
      %3804 = vrot.lane.b32.xlu0 %v3727, 120
      %v3805 = vpop.permute.xlu0 %3804
      %3806 = vrot.lane.b32.xlu0 %v3729, 120
      %v3807 = vpop.permute.xlu0 %3806
      %3808 = vrot.lane.b32.xlu0 %v3732, 120
      %v3809 = vpop.permute.xlu0 %3808
      %3810 = vrot.lane.b32.xlu0 %v3734, 120
      %v3811 = vpop.permute.xlu0 %3810
      %3812 = vrot.lane.b32.xlu0 %v3737, 120
      %v3813 = vpop.permute.xlu0 %3812
      %3814 = vrot.lane.b32.xlu0 %v3739, 120
      %v3815 = vpop.permute.xlu0 %3814
      %3816 = vrot.lane.b32.xlu0 %v3742, 120
      %v3817 = vpop.permute.xlu0 %3816
      %3818 = vrot.lane.b32.xlu0 %v3744, 120
      %v3819 = vpop.permute.xlu0 %3818
      %3820 = vrot.lane.b32.xlu0 %v3747, 120
      %v3821 = vpop.permute.xlu0 %3820
      %3822 = vrot.lane.b32.xlu0 %v3749, 120
      %v3823 = vpop.permute.xlu0 %3822
      %3824 = vrot.lane.b32.xlu0 %v3752, 120
      %v3825 = vpop.permute.xlu0 %3824
      %3826 = vrot.lane.b32.xlu0 %v3754, 120
      %v3827 = vpop.permute.xlu0 %3826
      %3828 = vrot.lane.b32.xlu0 %v3757, 120
      %v3829 = vpop.permute.xlu0 %3828
      %3830 = vrot.lane.b32.xlu0 %v3759, 120
      %v3831 = vpop.permute.xlu0 %3830
      %3832 = vrot.lane.b32.xlu0 %v3762, 120
      %v3833 = vpop.permute.xlu0 %3832
      %3834 = vrot.lane.b32.xlu0 %v3764, 120
      %v3835 = vpop.permute.xlu0 %3834
      %3836 = vrot.lane.b32.xlu0 %v3767, 120
      %v3837 = vpop.permute.xlu0 %3836
      %3838 = vrot.lane.b32.xlu0 %v3769, 120
      %v3839 = vpop.permute.xlu0 %3838
      %3840 = vrot.lane.b32.xlu0 %v3772, 120
      %v3841 = vpop.permute.xlu0 %3840
      %3842 = vrot.lane.b32.xlu0 %v3774, 120
      %v3843 = vpop.permute.xlu0 %3842
      %3844 = vrot.lane.b32.xlu0 %v3777, 120
      %v3845 = vpop.permute.xlu0 %3844
      %3846 = vrot.lane.b32.xlu0 %v3779, 120
      %v3847 = vpop.permute.xlu0 %3846
      %3848 = vrot.lane.b32.xlu0 %v3782, 120
      %v3849 = vpop.permute.xlu0 %3848
      %3850 = vrot.lane.b32.xlu0 %v3784, 120
      %v3851 = vpop.permute.xlu0 %3850
      %3852 = vrot.lane.b32.xlu0 %v3787, 120
      %v3853 = vpop.permute.xlu0 %3852
      %3854 = vrot.lane.b32.xlu0 %v3789, 120
      %v3855 = vpop.permute.xlu0 %3854
      %3856 = vrot.lane.b32.xlu0 %v3792, 120
      %v3857 = vpop.permute.xlu0 %3856
      %3858 = vrot.lane.b32.xlu0 %v3794, 120
      %v3859 = vpop.permute.xlu0 %3858
      %3860 = vrot.lane.b32.xlu0 %v3797, 120
      %v3861 = vpop.permute.xlu0 %3860
      %3862 = vrot.lane.b32.xlu0 %v3799, 120
      %v3863 = vpop.permute.xlu0 %3862
      %v3896 = vadd.f32 %v3688, %v3801
      %v3897 = vadd.f32 %v3689, %v3803
      %v3898 = vadd.f32 %v3690, %v3805
      %v3899 = vadd.f32 %v3691, %v3807
      %v3900 = vadd.f32 %v3692, %v3809
      %v3901 = vadd.f32 %v3693, %v3811
      %v3902 = vadd.f32 %v3694, %v3813
      %v3903 = vadd.f32 %v3695, %v3815
      %v3904 = vadd.f32 %v3696, %v3817
      %v3905 = vadd.f32 %v3697, %v3819
      %v3906 = vadd.f32 %v3698, %v3821
      %v3907 = vadd.f32 %v3699, %v3823
      %v3908 = vadd.f32 %v3700, %v3825
      %v3909 = vadd.f32 %v3701, %v3827
      %v3910 = vadd.f32 %v3702, %v3829
      %v3911 = vadd.f32 %v3703, %v3831
      %v3912 = vadd.f32 %v3704, %v3833
      %v3913 = vadd.f32 %v3705, %v3835
      %v3914 = vadd.f32 %v3706, %v3837
      %v3915 = vadd.f32 %v3707, %v3839
      %v3916 = vadd.f32 %v3708, %v3841
      %v3917 = vadd.f32 %v3709, %v3843
      %v3918 = vadd.f32 %v3710, %v3845
      %v3919 = vadd.f32 %v3711, %v3847
      %v3920 = vadd.f32 %v3712, %v3849
      %v3921 = vadd.f32 %v3713, %v3851
      %v3922 = vadd.f32 %v3714, %v3853
      %v3923 = vadd.f32 %v3715, %v3855
      %v3924 = vadd.f32 %v3716, %v3857
      %v3925 = vadd.f32 %v3717, %v3859
      %v3926 = vadd.f32 %v3718, %v3861
      %v3927 = vadd.f32 %v3719, %v3863
      %v3928 = vadd.f32 %v2961, %v3896
      %v3929 = vadd.f32 %v2962, %v3897
      %v3930 = vadd.f32 %v2963, %v3898
      %v3931 = vadd.f32 %v2964, %v3899
      %v3932 = vadd.f32 %v2965, %v3900
      %v3933 = vadd.f32 %v2966, %v3901
      %v3934 = vadd.f32 %v2967, %v3902
      %v3935 = vadd.f32 %v2968, %v3903
      %v3936 = vadd.f32 %v2969, %v3904
      %v3937 = vadd.f32 %v2970, %v3905
      %v3938 = vadd.f32 %v2971, %v3906
      %v3939 = vadd.f32 %v2972, %v3907
      %v3940 = vadd.f32 %v2973, %v3908
      %v3941 = vadd.f32 %v2974, %v3909
      %v3942 = vadd.f32 %v2975, %v3910
      %v3943 = vadd.f32 %v2976, %v3911
      %v3944 = vadd.f32 %v2977, %v3912
      %v3945 = vadd.f32 %v2978, %v3913
      %v3946 = vadd.f32 %v2979, %v3914
      %v3947 = vadd.f32 %v2980, %v3915
      %v3948 = vadd.f32 %v2981, %v3916
      %v3949 = vadd.f32 %v2982, %v3917
      %v3950 = vadd.f32 %v2983, %v3918
      %v3951 = vadd.f32 %v2984, %v3919
      %v3952 = vadd.f32 %v2985, %v3920
      %v3953 = vadd.f32 %v2986, %v3921
      %v3954 = vadd.f32 %v2987, %v3922
      %v3955 = vadd.f32 %v2988, %v3923
      %v3956 = vadd.f32 %v2989, %v3924
      %v3957 = vadd.f32 %v2990, %v3925
      %v3958 = vadd.f32 %v2991, %v3926
      %v3959 = vadd.f32 %v2992, %v3927
      %v3960 = vld [vmem:[%s4] sm:$0x1]
      %v3962 = vlaneseq
      %v3963 = vshrl.u32 %v3962, 7
      %v3964 = vsub.s32 0, %v3963
      %v3965 = vrot.slane %v3960, %v3964
      %v3967 = vmul.f32 %v3928, %v3965
      %v3968 = vmul.f32 %v3929, %v3965
      %v3969 = vmul.f32 %v3930, %v3965
      %v3970 = vmul.f32 %v3931, %v3965
      %v3971 = vmul.f32 %v3932, %v3965
      %v3972 = vmul.f32 %v3933, %v3965
      %v3973 = vmul.f32 %v3934, %v3965
      %v3974 = vmul.f32 %v3935, %v3965
      %v3975 = vmul.f32 %v3936, %v3965
      %v3976 = vmul.f32 %v3937, %v3965
      %v3977 = vmul.f32 %v3938, %v3965
      %v3978 = vmul.f32 %v3939, %v3965
      %v3979 = vmul.f32 %v3940, %v3965
      %v3980 = vmul.f32 %v3941, %v3965
      %v3981 = vmul.f32 %v3942, %v3965
      %v3982 = vmul.f32 %v3943, %v3965
      %v3983 = vmul.f32 %v3944, %v3965
      %v3984 = vmul.f32 %v3945, %v3965
      %v3985 = vmul.f32 %v3946, %v3965
      %v3986 = vmul.f32 %v3947, %v3965
      %v3987 = vmul.f32 %v3948, %v3965
      %v3988 = vmul.f32 %v3949, %v3965
      %v3989 = vmul.f32 %v3950, %v3965
      %v3990 = vmul.f32 %v3951, %v3965
      %v3991 = vmul.f32 %v3952, %v3965
      %v3992 = vmul.f32 %v3953, %v3965
      %v3993 = vmul.f32 %v3954, %v3965
      %v3994 = vmul.f32 %v3955, %v3965
      %v3995 = vmul.f32 %v3956, %v3965
      %v3996 = vmul.f32 %v3957, %v3965
      %v3997 = vmul.f32 %v3958, %v3965
      %v3998 = vmul.f32 %v3959, %v3965
      %v3999 = vld [vmem:[%s5] sm:$0x1]
      %v4001 = vlaneseq
      %v4002 = vshrl.u32 %v4001, 7
      %v4003 = vsub.s32 0, %v4002
      %v4004 = vrot.slane %v3999, %v4003
      %v4006 = vadd.f32 %v3967, %v4004
      %v4007 = vadd.f32 %v3968, %v4004
      %v4008 = vadd.f32 %v3969, %v4004
      %v4009 = vadd.f32 %v3970, %v4004
      %v4010 = vadd.f32 %v3971, %v4004
      %v4011 = vadd.f32 %v3972, %v4004
      %v4012 = vadd.f32 %v3973, %v4004
      %v4013 = vadd.f32 %v3974, %v4004
      %v4014 = vadd.f32 %v3975, %v4004
      %v4015 = vadd.f32 %v3976, %v4004
      %v4016 = vadd.f32 %v3977, %v4004
      %v4017 = vadd.f32 %v3978, %v4004
      %v4018 = vadd.f32 %v3979, %v4004
      %v4019 = vadd.f32 %v3980, %v4004
      %v4020 = vadd.f32 %v3981, %v4004
      %v4021 = vadd.f32 %v3982, %v4004
      %v4022 = vadd.f32 %v3983, %v4004
      %v4023 = vadd.f32 %v3984, %v4004
      %v4024 = vadd.f32 %v3985, %v4004
      %v4025 = vadd.f32 %v3986, %v4004
      %v4026 = vadd.f32 %v3987, %v4004
      %v4027 = vadd.f32 %v3988, %v4004
      %v4028 = vadd.f32 %v3989, %v4004
      %v4029 = vadd.f32 %v3990, %v4004
      %v4030 = vadd.f32 %v3991, %v4004
      %v4031 = vadd.f32 %v3992, %v4004
      %v4032 = vadd.f32 %v3993, %v4004
      %v4033 = vadd.f32 %v3994, %v4004
      %v4034 = vadd.f32 %v3995, %v4004
      %v4035 = vadd.f32 %v3996, %v4004
      %v4036 = vadd.f32 %v3997, %v4004
      %v4037 = vadd.f32 %v3998, %v4004
      %v4038 = vmax.f32 %v4006, 0.0
      %v4039 = vmax.f32 %v4007, 0.0
      %v4040 = vmax.f32 %v4008, 0.0
      %v4041 = vmax.f32 %v4009, 0.0
      %v4042 = vmax.f32 %v4010, 0.0
      %v4043 = vmax.f32 %v4011, 0.0
      %v4044 = vmax.f32 %v4012, 0.0
      %v4045 = vmax.f32 %v4013, 0.0
      %v4046 = vmax.f32 %v4014, 0.0
      %v4047 = vmax.f32 %v4015, 0.0
      %v4048 = vmax.f32 %v4016, 0.0
      %v4049 = vmax.f32 %v4017, 0.0
      %v4050 = vmax.f32 %v4018, 0.0
      %v4051 = vmax.f32 %v4019, 0.0
      %v4052 = vmax.f32 %v4020, 0.0
      %v4053 = vmax.f32 %v4021, 0.0
      %v4054 = vmax.f32 %v4022, 0.0
      %v4055 = vmax.f32 %v4023, 0.0
      %v4056 = vmax.f32 %v4024, 0.0
      %v4057 = vmax.f32 %v4025, 0.0
      %v4058 = vmax.f32 %v4026, 0.0
      %v4059 = vmax.f32 %v4027, 0.0
      %v4060 = vmax.f32 %v4028, 0.0
      %v4061 = vmax.f32 %v4029, 0.0
      %v4062 = vmax.f32 %v4030, 0.0
      %v4063 = vmax.f32 %v4031, 0.0
      %v4064 = vmax.f32 %v4032, 0.0
      %v4065 = vmax.f32 %v4033, 0.0
      %v4066 = vmax.f32 %v4034, 0.0
      %v4067 = vmax.f32 %v4035, 0.0
      %v4068 = vmax.f32 %v4036, 0.0
      %v4069 = vmax.f32 %v4037, 0.0
      %v4070 = vpack.c.bf16 %v4039, %v4038
      %v4071 = vpack.c.bf16 %v4041, %v4040
      %v4072 = vpack.c.bf16 %v4043, %v4042
      %v4073 = vpack.c.bf16 %v4045, %v4044
      %v4074 = vpack.c.bf16 %v4047, %v4046
      %v4075 = vpack.c.bf16 %v4049, %v4048
      %v4076 = vpack.c.bf16 %v4051, %v4050
      %v4077 = vpack.c.bf16 %v4053, %v4052
      %v4078 = vpack.c.bf16 %v4055, %v4054
      %v4079 = vpack.c.bf16 %v4057, %v4056
      %v4080 = vpack.c.bf16 %v4059, %v4058
      %v4081 = vpack.c.bf16 %v4061, %v4060
      %v4082 = vpack.c.bf16 %v4063, %v4062
      %v4083 = vpack.c.bf16 %v4065, %v4064
      %v4084 = vpack.c.bf16 %v4067, %v4066
      %v4085 = vpack.c.bf16 %v4069, %v4068
      %v4102 = vunpack.c.l.b16 %v4070
      %v4103 = vunpack.c.h.b16 %v4070
      %v4104 = vunpack.c.l.b16 %v4071
      %v4105 = vunpack.c.h.b16 %v4071
      %v4106 = vunpack.c.l.b16 %v4072
      %v4107 = vunpack.c.h.b16 %v4072
      %v4108 = vunpack.c.l.b16 %v4073
      %v4109 = vunpack.c.h.b16 %v4073
      %v4110 = vunpack.c.l.b16 %v4074
      %v4111 = vunpack.c.h.b16 %v4074
      %v4112 = vunpack.c.l.b16 %v4075
      %v4113 = vunpack.c.h.b16 %v4075
      %v4114 = vunpack.c.l.b16 %v4076
      %v4115 = vunpack.c.h.b16 %v4076
      %v4116 = vunpack.c.l.b16 %v4077
      %v4117 = vunpack.c.h.b16 %v4077
      %v4118 = vunpack.c.l.b16 %v4078
      %v4119 = vunpack.c.h.b16 %v4078
      %v4120 = vunpack.c.l.b16 %v4079
      %v4121 = vunpack.c.h.b16 %v4079
      %v4122 = vunpack.c.l.b16 %v4080
      %v4123 = vunpack.c.h.b16 %v4080
      %v4124 = vunpack.c.l.b16 %v4081
      %v4125 = vunpack.c.h.b16 %v4081
      %v4126 = vunpack.c.l.b16 %v4082
      %v4127 = vunpack.c.h.b16 %v4082
      %v4128 = vunpack.c.l.b16 %v4083
      %v4129 = vunpack.c.h.b16 %v4083
      %v4130 = vunpack.c.l.b16 %v4084
      %v4131 = vunpack.c.h.b16 %v4084
      %v4132 = vunpack.c.l.b16 %v4085
      %v4133 = vunpack.c.h.b16 %v4085
      %v4134 = vpack.c.b16 %v4102, %v4102
      %v4135 = vpack.c.b16 %v4103, %v4103
      %v4136 = vpack.c.b16 %v4104, %v4104
      %v4137 = vpack.c.b16 %v4105, %v4105
      %v4138 = vpack.c.b16 %v4106, %v4106
      %v4139 = vpack.c.b16 %v4107, %v4107
      %v4140 = vpack.c.b16 %v4108, %v4108
      %v4141 = vpack.c.b16 %v4109, %v4109
      %v4142 = vpack.c.b16 %v4110, %v4110
      %v4143 = vpack.c.b16 %v4111, %v4111
      %v4144 = vpack.c.b16 %v4112, %v4112
      %v4145 = vpack.c.b16 %v4113, %v4113
      %v4146 = vpack.c.b16 %v4114, %v4114
      %v4147 = vpack.c.b16 %v4115, %v4115
      %v4148 = vpack.c.b16 %v4116, %v4116
      %v4149 = vpack.c.b16 %v4117, %v4117
      %v4150 = vpack.c.b16 %v4118, %v4118
      %v4151 = vpack.c.b16 %v4119, %v4119
      %v4152 = vpack.c.b16 %v4120, %v4120
      %v4153 = vpack.c.b16 %v4121, %v4121
      %v4154 = vpack.c.b16 %v4122, %v4122
      %v4155 = vpack.c.b16 %v4123, %v4123
      %v4156 = vpack.c.b16 %v4124, %v4124
      %v4157 = vpack.c.b16 %v4125, %v4125
      %v4158 = vpack.c.b16 %v4126, %v4126
      %v4159 = vpack.c.b16 %v4127, %v4127
      %v4160 = vpack.c.b16 %v4128, %v4128
      %v4161 = vpack.c.b16 %v4129, %v4129
      %v4162 = vpack.c.b16 %v4130, %v4130
      %v4163 = vpack.c.b16 %v4131, %v4131
      %v4164 = vpack.c.b16 %v4132, %v4132
      %v4165 = vpack.c.b16 %v4133, %v4133
      %4198 = vst.msk [vmem:[%s418] sm:$0xf] %vm913, %v4134
      %4199 = vst.msk [vmem:[%s418 + $0x4] sm:$0xf] %vm913, %v4135
      %4200 = vst.msk [vmem:[%s418 + $0x8] sm:$0xf] %vm913, %v4136
      %4201 = vst.msk [vmem:[%s418 + $0xc] sm:$0xf] %vm913, %v4137
      %4202 = vst.msk [vmem:[%s418 + $0x10] sm:$0xf] %vm913, %v4138
      %4203 = vst.msk [vmem:[%s418 + $0x14] sm:$0xf] %vm913, %v4139
      %4204 = vst.msk [vmem:[%s418 + $0x18] sm:$0xf] %vm913, %v4140
      %4205 = vst.msk [vmem:[%s418 + $0x1c] sm:$0xf] %vm913, %v4141
      %4206 = vst.msk [vmem:[%s418 + $0x20] sm:$0xf] %vm913, %v4142
      %4207 = vst.msk [vmem:[%s418 + $0x24] sm:$0xf] %vm913, %v4143
      %4208 = vst.msk [vmem:[%s418 + $0x28] sm:$0xf] %vm913, %v4144
      %4209 = vst.msk [vmem:[%s418 + $0x2c] sm:$0xf] %vm913, %v4145
      %4210 = vst.msk [vmem:[%s418 + $0x30] sm:$0xf] %vm913, %v4146
      %4211 = vst.msk [vmem:[%s418 + $0x34] sm:$0xf] %vm913, %v4147
      %4212 = vst.msk [vmem:[%s418 + $0x38] sm:$0xf] %vm913, %v4148
      %4213 = vst.msk [vmem:[%s418 + $0x3c] sm:$0xf] %vm913, %v4149
      %4214 = vst.msk [vmem:[%s418 + $0x40] sm:$0xf] %vm913, %v4150
      %4215 = vst.msk [vmem:[%s418 + $0x44] sm:$0xf] %vm913, %v4151
      %4216 = vst.msk [vmem:[%s418 + $0x48] sm:$0xf] %vm913, %v4152
      %4217 = vst.msk [vmem:[%s418 + $0x4c] sm:$0xf] %vm913, %v4153
      %4218 = vst.msk [vmem:[%s418 + $0x50] sm:$0xf] %vm913, %v4154
      %4219 = vst.msk [vmem:[%s418 + $0x54] sm:$0xf] %vm913, %v4155
      %4220 = vst.msk [vmem:[%s418 + $0x58] sm:$0xf] %vm913, %v4156
      %4221 = vst.msk [vmem:[%s418 + $0x5c] sm:$0xf] %vm913, %v4157
      %4222 = vst.msk [vmem:[%s418 + $0x60] sm:$0xf] %vm913, %v4158
      %4223 = vst.msk [vmem:[%s418 + $0x64] sm:$0xf] %vm913, %v4159
      %4224 = vst.msk [vmem:[%s418 + $0x68] sm:$0xf] %vm913, %v4160
      %4225 = vst.msk [vmem:[%s418 + $0x6c] sm:$0xf] %vm913, %v4161
      %4226 = vst.msk [vmem:[%s418 + $0x70] sm:$0xf] %vm913, %v4162
      %4227 = vst.msk [vmem:[%s418 + $0x74] sm:$0xf] %vm913, %v4163
      %4228 = vst.msk [vmem:[%s418 + $0x78] sm:$0xf] %vm913, %v4164
      %4229 = vst.msk [vmem:[%s418 + $0x7c] sm:$0xf] %vm913, %v4165
      %s4230 = smul.u32 16, %s22
      %p4231 = scmp.lt.s32.totalorder %s21, 1
      %s4232 = scalar_select %p4231, %s21, 1
      %p4233 = scmp.lt.s32.totalorder %s4230, 15
      %s4234 = scalar_select %p4233, %s4230, 15
      %s4235 = smul.addr %s4234, 2
      %s4236 = smul.addr %s4232, 32
      %s4237 = sadd.s32 %s4235, %s4236
      %s4238 = smul.addr %s4237, 4
      %s4239 = scalar_lea.vmem %s6, %s4238
      // Predicated region
      $region57: #{decoder_block_forward.5} parent=43 // pred_check
        %p4240 = pneg %p212
      $region58: #{decoder_block_forward.5} parent=43 // pred_check_branch
        %4242 = sbr.rel (%p4240) target = $region60
      $region59: #{decoder_block_forward.5} parent=43 // pred_region
        %s4243 = smul.u32 16, %s22
      $region60: #{decoder_block_forward.5} parent=43 // pred_fallthru
        _
    $region44: #{decoder_block_forward.5} parent=5 // pred_fallthru
      _
    %p4244 = scmp.le.s32.totalorder 2, %s12
    // Predicated region
    $region61: #{decoder_block_forward.5} parent=5 // pred_check
      %p4245 = pneg %p4244
    $region62: #{decoder_block_forward.5} parent=5 // pred_check_branch
      %4247 = sbr.rel (%p4245) target = $region64
    $region63: #{decoder_block_forward.5} parent=5 // pred_region
      %s4248 = ssub.s32 %s12, 2
      // Predicated region
      $region65: #{decoder_block_forward.5} parent=63 // pred_check
        %p4249 = pneg %p218
      $region66: #{decoder_block_forward.5} parent=63 // pred_check_branch
        %4251 = sbr.rel (%p4249) target = $region68
      $region67: #{decoder_block_forward.5} parent=63 // pred_region
        %s4252 = smul.u32 16, %s24
        %p4253 = scmp.lt.s32.totalorder %s23, 1
        %s4254 = scalar_select %p4253, %s23, 1
        %p4255 = scmp.lt.s32.totalorder %s4252, 15
        %s4256 = scalar_select %p4255, %s4252, 15
        %s4257 = smul.addr %s4256, 2
        %s4258 = smul.addr %s4254, 32
        %s4259 = sadd.s32 %s4257, %s4258
        %s4260 = smul.addr %s4259, 4
        %s4261 = scalar_lea.vmem %s6, %s4260
      $region68: #{decoder_block_forward.5} parent=63 // pred_fallthru
        _
    $region64: #{decoder_block_forward.5} parent=5 // pred_fallthru
      _
  $region6: #{decoder_block_forward.5} parent=0 // loop_footer
    %s16 = sadd.s32 1, %s12
  $region7: #{decoder_block_forward.5} parent=0 // loop_footer_branch
    %11 = sbr.rel target = $region3
  $region8: #{decoder_block_forward.5} parent=0 // loop_exit
    _

// kernel: decoder_block_forward.4
$region0: #{decoder_block_forward.4}
  #allocation0 [shape = 'u32[]', space=smem, size = 0x4, offset = 0x4, fixed_abs, tag = 'smem constant byte address 0x4 - core index']
  #allocation1 [shape = 'u32[144,128]{1,0:T(1,128)}', space=vmem, size = 0x12000, scoped, tag = 'internal scratch']
  #allocation2 [shape = 'bf16[18,24,8]{2,1,0:T(8,128)(2,1)}', space=vmem, size = 0x1b000, scoped, tag = 'scratch operand']
  %s0 = inlined_call_operand.vmem [shape: bf16[2,16,16,4], index: 0, kind: input, shape index: {}, may-alias: {0,1,2}]
  %s1 = inlined_call_operand.vmem [shape: bf16[2,16,16,4], index: 1, kind: input, shape index: {}, may-alias: {0,1,2}]
  %s2 = inlined_call_operand.vmem [shape: bf16[2,16,16,4], index: 2, kind: input, shape index: {}, may-alias: {0,1,2}]
  %s3 = inlined_call_operand.vmem [shape: bf16[2,16,16,4], index: 3, kind: input, shape index: {}, may-alias: {3,4,5}]
  %s4 = inlined_call_operand.vmem [shape: bf16[2,16,16,4], index: 4, kind: input, shape index: {}, may-alias: {3,4,5}]
  %s5 = inlined_call_operand.vmem [shape: bf16[2,16,16,4], index: 5, kind: input, shape index: {}, may-alias: {3,4,5}]
  %s6 = inlined_call_operand.vmem [shape: bf16[3,8,12], index: 6, kind: input, shape index: {}]
  %s7 = inlined_call_operand.vmem [shape: f32[1,4], index: 7, kind: input, shape index: {}]
  %s8 = inlined_call_operand.vmem [shape: f32[1,4], index: 8, kind: input, shape index: {}]
  %s9 = inlined_call_operand.vmem [shape: bf16[2,16,16,4], index: 9, kind: output, shape index: {}]
  %s10 = sld [smem:[#allocation0]]
  $region89: #{decoder_block_forward.4} parent=0
    _
  %s12 = ssub.s32 1, %s10
  %s13 = scalar_select 0, %s12, %s10
  loop: start=0, step=1, limit=4
  $region2: #{decoder_block_forward.4} parent=0 // loop_pre_header
    _
  $region3: #{decoder_block_forward.4} parent=0 // loop_header
    %s15 = sphi 0, %s19
    %p16 = scmp.ge.s32.totalorder %s15, 4
    %s22 = sphi 0, %s34
    %s23 = sphi 0, %s30
    %s24 = sphi 0, %s22
    %s25 = sphi 0, %s23
    %s26 = sphi 0, %s24
    %s27 = sphi 0, %s25
    %s39 = sphi 0, %s41
    %s42 = sphi 0, %s39
    %s43 = sphi 0, %s42
    %s59 = sphi 0, %s43
    %s75 = sphi 0, %s77
    %s78 = sphi 0, %s75
    %s79 = sphi 0, %s78
    %s95 = sphi 0, %s79
    %s111 = sphi 0, %s113
    %s114 = sphi 0, %s111
    %s115 = sphi 0, %s114
    %s131 = sphi 0, %s115
    %s139 = sphi 0, %s141
    %s142 = sphi 0, %s139
    %s143 = sphi 0, %s142
    %s159 = sphi 0, %s143
    %s175 = sphi 0, %s177
    %s178 = sphi 0, %s175
    %s179 = sphi 0, %s178
    %s195 = sphi 0, %s179
    %s211 = sphi 0, %s213
    %s214 = sphi 0, %s211
    %s215 = sphi 0, %s214
    %s231 = sphi 0, %s215
    %s235 = sphi 0, %s235
    %s237 = sphi 0, %s235
    %s238 = sphi 0, %s237
    %s252 = sphi 0, %s238
    %s256 = sphi 0, %s256
    %s258 = sphi 0, %s256
    %s259 = sphi 0, %s258
    %s273 = sphi 0, %s259
    %s277 = sphi 0, %s277
    %s279 = sphi 0, %s277
    %s280 = sphi 0, %s279
    %s294 = sphi 0, %s280
    %s302 = sphi 0, %s304
    %s305 = sphi 0, %s302
    %s306 = sphi 0, %s305
    %s322 = sphi 0, %s306
  $region4: #{decoder_block_forward.4} parent=0 // loop_header_branch
    %18 = sbr.rel (%p16) target = $region8
  $region5: #{decoder_block_forward.4} parent=0 // loop_body
    %s20 = ssub.s32 %s15, 1
    %s21 = ssub.s32 %s15, 2
    %s28 = sadd.s32 1, %s23
    %p29 = scmp.ge.s32.totalorder %s28, 1
    %s30 = scalar_select %p29, 0, %s28
    %s31 = sadd.s32 1, %s22
    %s32 = scalar_select %p29, %s31, %s22
    %p33 = scmp.ge.s32.totalorder %s32, 2
    %s34 = scalar_select %p33, 0, %s32
    %s35 = ssub.s32 %s22, %s34
    %s36 = ssub.s32 %s23, %s30
    %s37 = sor.u32 %s35, %s36
    %p38 = scmp.eq.s32.totalorder %s37, 0
    %s40 = sadd.s32 %s39, 1
    %s41 = scalar_select %p38, %s39, %s40
    %p44 = pneg %p38
    %p45 = scmp.eq.s32.totalorder %s15, 1
    %p46 = por %p44, %p45
    %p47 = scmp.ne.s32.totalorder %s39, %s42
    %p48 = scmp.eq.s32.totalorder %s15, 0
    %p49 = por %p47, %p48
    %p50 = scmp.ne.s32.totalorder %s39, %s42
    %p51 = scmp.eq.s32.totalorder %s20, 1
    %p52 = por %p50, %p51
    %p53 = scmp.ne.s32.totalorder %s42, %s43
    %p54 = scmp.eq.s32.totalorder %s20, 0
    %p55 = por %p53, %p54
    %p56 = scmp.ne.s32.totalorder %s42, %s43
    %p57 = scmp.eq.s32.totalorder %s21, 1
    %p58 = por %p56, %p57
    %p60 = scmp.ne.s32.totalorder %s43, %s59
    %p61 = scmp.eq.s32.totalorder %s21, 0
    %p62 = por %p60, %p61
    %s63 = smul.u32 %s23, 16
    %s64 = ssub.s32 %s63, 1
    %p65 = scmp.gt.s32.totalorder %s64, 0
    %s66 = scalar_select %p65, %s64, 0
    %s67 = smul.u32 %s30, 16
    %s68 = ssub.s32 %s67, 1
    %p69 = scmp.gt.s32.totalorder %s68, 0
    %s70 = scalar_select %p69, %s68, 0
    %s71 = ssub.s32 %s22, %s34
    %s72 = ssub.s32 %s66, %s70
    %s73 = sor.u32 %s71, %s72
    %p74 = scmp.eq.s32.totalorder %s73, 0
    %s76 = sadd.s32 %s75, 1
    %s77 = scalar_select %p74, %s75, %s76
    %p80 = pneg %p74
    %p81 = scmp.eq.s32.totalorder %s15, 1
    %p82 = por %p80, %p81
    %p83 = scmp.ne.s32.totalorder %s75, %s78
    %p84 = scmp.eq.s32.totalorder %s15, 0
    %p85 = por %p83, %p84
    %p86 = scmp.ne.s32.totalorder %s75, %s78
    %p87 = scmp.eq.s32.totalorder %s20, 1
    %p88 = por %p86, %p87
    %p89 = scmp.ne.s32.totalorder %s78, %s79
    %p90 = scmp.eq.s32.totalorder %s20, 0
    %p91 = por %p89, %p90
    %p92 = scmp.ne.s32.totalorder %s78, %s79
    %p93 = scmp.eq.s32.totalorder %s21, 1
    %p94 = por %p92, %p93
    %p96 = scmp.ne.s32.totalorder %s79, %s95
    %p97 = scmp.eq.s32.totalorder %s21, 0
    %p98 = por %p96, %p97
    %s99 = sadd.s32 %s23, 1
    %s100 = smul.u32 %s99, 16
    %p101 = scmp.lt.s32.totalorder %s100, 15
    %s102 = scalar_select %p101, %s100, 15
    %s103 = sadd.s32 %s30, 1
    %s104 = smul.u32 %s103, 16
    %p105 = scmp.lt.s32.totalorder %s104, 15
    %s106 = scalar_select %p105, %s104, 15
    %s107 = ssub.s32 %s22, %s34
    %s108 = ssub.s32 %s102, %s106
    %s109 = sor.u32 %s107, %s108
    %p110 = scmp.eq.s32.totalorder %s109, 0
    %s112 = sadd.s32 %s111, 1
    %s113 = scalar_select %p110, %s111, %s112
    %p116 = pneg %p110
    %p117 = scmp.eq.s32.totalorder %s15, 1
    %p118 = por %p116, %p117
    %p119 = scmp.ne.s32.totalorder %s111, %s114
    %p120 = scmp.eq.s32.totalorder %s15, 0
    %p121 = por %p119, %p120
    %p122 = scmp.ne.s32.totalorder %s111, %s114
    %p123 = scmp.eq.s32.totalorder %s20, 1
    %p124 = por %p122, %p123
    %p125 = scmp.ne.s32.totalorder %s114, %s115
    %p126 = scmp.eq.s32.totalorder %s20, 0
    %p127 = por %p125, %p126
    %p128 = scmp.ne.s32.totalorder %s114, %s115
    %p129 = scmp.eq.s32.totalorder %s21, 1
    %p130 = por %p128, %p129
    %p132 = scmp.ne.s32.totalorder %s115, %s131
    %p133 = scmp.eq.s32.totalorder %s21, 0
    %p134 = por %p132, %p133
    %s135 = ssub.s32 %s22, %s34
    %s136 = ssub.s32 %s23, %s30
    %s137 = sor.u32 %s135, %s136
    %p138 = scmp.eq.s32.totalorder %s137, 0
    %s140 = sadd.s32 %s139, 1
    %s141 = scalar_select %p138, %s139, %s140
    %p144 = pneg %p138
    %p145 = scmp.eq.s32.totalorder %s15, 1
    %p146 = por %p144, %p145
    %p147 = scmp.ne.s32.totalorder %s139, %s142
    %p148 = scmp.eq.s32.totalorder %s15, 0
    %p149 = por %p147, %p148
    %p150 = scmp.ne.s32.totalorder %s139, %s142
    %p151 = scmp.eq.s32.totalorder %s20, 1
    %p152 = por %p150, %p151
    %p153 = scmp.ne.s32.totalorder %s142, %s143
    %p154 = scmp.eq.s32.totalorder %s20, 0
    %p155 = por %p153, %p154
    %p156 = scmp.ne.s32.totalorder %s142, %s143
    %p157 = scmp.eq.s32.totalorder %s21, 1
    %p158 = por %p156, %p157
    %p160 = scmp.ne.s32.totalorder %s143, %s159
    %p161 = scmp.eq.s32.totalorder %s21, 0
    %p162 = por %p160, %p161
    %s163 = smul.u32 %s23, 16
    %s164 = ssub.s32 %s163, 1
    %p165 = scmp.gt.s32.totalorder %s164, 0
    %s166 = scalar_select %p165, %s164, 0
    %s167 = smul.u32 %s30, 16
    %s168 = ssub.s32 %s167, 1
    %p169 = scmp.gt.s32.totalorder %s168, 0
    %s170 = scalar_select %p169, %s168, 0
    %s171 = ssub.s32 %s22, %s34
    %s172 = ssub.s32 %s166, %s170
    %s173 = sor.u32 %s171, %s172
    %p174 = scmp.eq.s32.totalorder %s173, 0
    %s176 = sadd.s32 %s175, 1
    %s177 = scalar_select %p174, %s175, %s176
    %p180 = pneg %p174
    %p181 = scmp.eq.s32.totalorder %s15, 1
    %p182 = por %p180, %p181
    %p183 = scmp.ne.s32.totalorder %s175, %s178
    %p184 = scmp.eq.s32.totalorder %s15, 0
    %p185 = por %p183, %p184
    %p186 = scmp.ne.s32.totalorder %s175, %s178
    %p187 = scmp.eq.s32.totalorder %s20, 1
    %p188 = por %p186, %p187
    %p189 = scmp.ne.s32.totalorder %s178, %s179
    %p190 = scmp.eq.s32.totalorder %s20, 0
    %p191 = por %p189, %p190
    %p192 = scmp.ne.s32.totalorder %s178, %s179
    %p193 = scmp.eq.s32.totalorder %s21, 1
    %p194 = por %p192, %p193
    %p196 = scmp.ne.s32.totalorder %s179, %s195
    %p197 = scmp.eq.s32.totalorder %s21, 0
    %p198 = por %p196, %p197
    %s199 = sadd.s32 %s23, 1
    %s200 = smul.u32 %s199, 16
    %p201 = scmp.lt.s32.totalorder %s200, 15
    %s202 = scalar_select %p201, %s200, 15
    %s203 = sadd.s32 %s30, 1
    %s204 = smul.u32 %s203, 16
    %p205 = scmp.lt.s32.totalorder %s204, 15
    %s206 = scalar_select %p205, %s204, 15
    %s207 = ssub.s32 %s22, %s34
    %s208 = ssub.s32 %s202, %s206
    %s209 = sor.u32 %s207, %s208
    %p210 = scmp.eq.s32.totalorder %s209, 0
    %s212 = sadd.s32 %s211, 1
    %s213 = scalar_select %p210, %s211, %s212
    %p216 = pneg %p210
    %p217 = scmp.eq.s32.totalorder %s15, 1
    %p218 = por %p216, %p217
    %p219 = scmp.ne.s32.totalorder %s211, %s214
    %p220 = scmp.eq.s32.totalorder %s15, 0
    %p221 = por %p219, %p220
    %p222 = scmp.ne.s32.totalorder %s211, %s214
    %p223 = scmp.eq.s32.totalorder %s20, 1
    %p224 = por %p222, %p223
    %p225 = scmp.ne.s32.totalorder %s214, %s215
    %p226 = scmp.eq.s32.totalorder %s20, 0
    %p227 = por %p225, %p226
    %p228 = scmp.ne.s32.totalorder %s214, %s215
    %p229 = scmp.eq.s32.totalorder %s21, 1
    %p230 = por %p228, %p229
    %p232 = scmp.ne.s32.totalorder %s215, %s231
    %p233 = scmp.eq.s32.totalorder %s21, 0
    %p234 = por %p232, %p233
    %s236 = sadd.s32 %s235, 1
    %p239 = scmp.eq.s32.totalorder %s15, 1
    %p240 = scmp.ne.s32.totalorder %s235, %s237
    %p241 = scmp.eq.s32.totalorder %s15, 0
    %p242 = por %p240, %p241
    %p243 = scmp.ne.s32.totalorder %s235, %s237
    %p244 = scmp.eq.s32.totalorder %s20, 1
    %p245 = por %p243, %p244
    %p246 = scmp.ne.s32.totalorder %s237, %s238
    %p247 = scmp.eq.s32.totalorder %s20, 0
    %p248 = por %p246, %p247
    %p249 = scmp.ne.s32.totalorder %s237, %s238
    %p250 = scmp.eq.s32.totalorder %s21, 1
    %p251 = por %p249, %p250
    %p253 = scmp.ne.s32.totalorder %s238, %s252
    %p254 = scmp.eq.s32.totalorder %s21, 0
    %p255 = por %p253, %p254
    %s257 = sadd.s32 %s256, 1
    %p260 = scmp.eq.s32.totalorder %s15, 1
    %p261 = scmp.ne.s32.totalorder %s256, %s258
    %p262 = scmp.eq.s32.totalorder %s15, 0
    %p263 = por %p261, %p262
    %p264 = scmp.ne.s32.totalorder %s256, %s258
    %p265 = scmp.eq.s32.totalorder %s20, 1
    %p266 = por %p264, %p265
    %p267 = scmp.ne.s32.totalorder %s258, %s259
    %p268 = scmp.eq.s32.totalorder %s20, 0
    %p269 = por %p267, %p268
    %p270 = scmp.ne.s32.totalorder %s258, %s259
    %p271 = scmp.eq.s32.totalorder %s21, 1
    %p272 = por %p270, %p271
    %p274 = scmp.ne.s32.totalorder %s259, %s273
    %p275 = scmp.eq.s32.totalorder %s21, 0
    %p276 = por %p274, %p275
    %s278 = sadd.s32 %s277, 1
    %p281 = scmp.eq.s32.totalorder %s15, 1
    %p282 = scmp.ne.s32.totalorder %s277, %s279
    %p283 = scmp.eq.s32.totalorder %s15, 0
    %p284 = por %p282, %p283
    %p285 = scmp.ne.s32.totalorder %s277, %s279
    %p286 = scmp.eq.s32.totalorder %s20, 1
    %p287 = por %p285, %p286
    %p288 = scmp.ne.s32.totalorder %s279, %s280
    %p289 = scmp.eq.s32.totalorder %s20, 0
    %p290 = por %p288, %p289
    %p291 = scmp.ne.s32.totalorder %s279, %s280
    %p292 = scmp.eq.s32.totalorder %s21, 1
    %p293 = por %p291, %p292
    %p295 = scmp.ne.s32.totalorder %s280, %s294
    %p296 = scmp.eq.s32.totalorder %s21, 0
    %p297 = por %p295, %p296
    %s298 = ssub.s32 %s22, %s34
    %s299 = ssub.s32 %s23, %s30
    %s300 = sor.u32 %s298, %s299
    %p301 = scmp.eq.s32.totalorder %s300, 0
    %s303 = sadd.s32 %s302, 1
    %s304 = scalar_select %p301, %s302, %s303
    %p307 = pneg %p301
    %p308 = scmp.eq.s32.totalorder %s15, 1
    %p309 = por %p307, %p308
    %p310 = scmp.ne.s32.totalorder %s302, %s305
    %p311 = scmp.eq.s32.totalorder %s15, 0
    %p312 = por %p310, %p311
    %p313 = scmp.ne.s32.totalorder %s302, %s305
    %p314 = scmp.eq.s32.totalorder %s20, 1
    %p315 = por %p313, %p314
    %p316 = scmp.ne.s32.totalorder %s305, %s306
    %p317 = scmp.eq.s32.totalorder %s20, 0
    %p318 = por %p316, %p317
    %p319 = scmp.ne.s32.totalorder %s305, %s306
    %p320 = scmp.eq.s32.totalorder %s21, 1
    %p321 = por %p319, %p320
    %p323 = scmp.ne.s32.totalorder %s306, %s322
    %p324 = scmp.eq.s32.totalorder %s21, 0
    %p325 = por %p323, %p324
    %p326 = scmp.le.s32.totalorder 1, %s15
    %p327 = scmp.lt.s32.totalorder %s15, 3
    %p328 = pnand %p326, %p327
    %p329 = pneg %p328
    // Predicated region
    $region9: #{decoder_block_forward.4} parent=5 // pred_check
      _
    $region10: #{decoder_block_forward.4} parent=5 // pred_check_branch
      %331 = sbr.rel (%p328) target = $region12
    $region11: #{decoder_block_forward.4} parent=5 // pred_region
      %s332 = ssub.s32 %s15, 1
      // Predicated region
      $region13: #{decoder_block_forward.4} parent=11 // pred_check
        %p333 = pneg %p248
      $region14: #{decoder_block_forward.4} parent=11 // pred_check_branch
        %335 = sbr.rel (%p333) target = $region16
      $region15: #{decoder_block_forward.4} parent=11 // pred_region
        _
      $region16: #{decoder_block_forward.4} parent=11 // pred_fallthru
        _
      // Predicated region
      $region17: #{decoder_block_forward.4} parent=11 // pred_check
        %p336 = pneg %p269
      $region18: #{decoder_block_forward.4} parent=11 // pred_check_branch
        %338 = sbr.rel (%p336) target = $region20
      $region19: #{decoder_block_forward.4} parent=11 // pred_region
        _
      $region20: #{decoder_block_forward.4} parent=11 // pred_fallthru
        _
      // Predicated region
      $region21: #{decoder_block_forward.4} parent=11 // pred_check
        %p339 = pneg %p290
      $region22: #{decoder_block_forward.4} parent=11 // pred_check_branch
        %341 = sbr.rel (%p339) target = $region24
      $region23: #{decoder_block_forward.4} parent=11 // pred_region
        _
      $region24: #{decoder_block_forward.4} parent=11 // pred_fallthru
        _
    $region12: #{decoder_block_forward.4} parent=5 // pred_fallthru
      _
    %p342 = scmp.lt.s32.totalorder %s15, 2
    // Predicated region
    $region25: #{decoder_block_forward.4} parent=5 // pred_check
      %p343 = pneg %p342
    $region26: #{decoder_block_forward.4} parent=5 // pred_check_branch
      %345 = sbr.rel (%p343) target = $region28
    $region27: #{decoder_block_forward.4} parent=5 // pred_region
      // Predicated region
      $region29: #{decoder_block_forward.4} parent=27 // pred_check
        %p346 = pneg %p49
      $region30: #{decoder_block_forward.4} parent=27 // pred_check_branch
        %348 = sbr.rel (%p346) target = $region32
      $region31: #{decoder_block_forward.4} parent=27 // pred_region
        %s349 = smul.u32 16, %s23
        %p350 = scmp.lt.s32.totalorder %s22, 1
        %s351 = scalar_select %p350, %s22, 1
        %p352 = scmp.lt.s32.totalorder %s349, 15
        %s353 = scalar_select %p352, %s349, 15
        %s354 = smul.addr %s353, 2
        %s355 = smul.addr %s351, 32
        %s356 = sadd.s32 %s354, %s355
        %s357 = smul.addr %s356, 4
        %s358 = scalar_lea.vmem %s0, %s357
        %s359 = smul.u32 16, %s23
      $region32: #{decoder_block_forward.4} parent=27 // pred_fallthru
        _
      // Predicated region
      $region33: #{decoder_block_forward.4} parent=27 // pred_check
        %p360 = pneg %p85
      $region34: #{decoder_block_forward.4} parent=27 // pred_check_branch
        %362 = sbr.rel (%p360) target = $region36
      $region35: #{decoder_block_forward.4} parent=27 // pred_region
        %s363 = smul.u32 %s23, 16
        %s364 = ssub.s32 %s363, 1
        %p365 = scmp.gt.s32.totalorder %s364, 0
        %s366 = scalar_select %p365, %s364, 0
        %p367 = scmp.lt.s32.totalorder %s22, 1
        %s368 = scalar_select %p367, %s22, 1
        %p369 = scmp.lt.s32.totalorder %s366, 15
        %s370 = scalar_select %p369, %s366, 15
        %s371 = smul.addr %s370, 2
        %s372 = smul.addr %s368, 32
        %s373 = sadd.s32 %s371, %s372
        %s374 = smul.addr %s373, 4
        %s375 = scalar_lea.vmem %s1, %s374
        %s376 = smul.u32 %s23, 16
        %s377 = ssub.s32 %s376, 1
        %p378 = scmp.gt.s32.totalorder %s377, 0
        %s379 = scalar_select %p378, %s377, 0
      $region36: #{decoder_block_forward.4} parent=27 // pred_fallthru
        _
      // Predicated region
      $region37: #{decoder_block_forward.4} parent=27 // pred_check
        %p380 = pneg %p121
      $region38: #{decoder_block_forward.4} parent=27 // pred_check_branch
        %382 = sbr.rel (%p380) target = $region40
      $region39: #{decoder_block_forward.4} parent=27 // pred_region
        %s383 = sadd.s32 %s23, 1
        %s384 = smul.u32 %s383, 16
        %p385 = scmp.lt.s32.totalorder %s384, 15
        %s386 = scalar_select %p385, %s384, 15
        %p387 = scmp.lt.s32.totalorder %s22, 1
        %s388 = scalar_select %p387, %s22, 1
        %p389 = scmp.lt.s32.totalorder %s386, 15
        %s390 = scalar_select %p389, %s386, 15
        %s391 = smul.addr %s390, 2
        %s392 = smul.addr %s388, 32
        %s393 = sadd.s32 %s391, %s392
        %s394 = smul.addr %s393, 4
        %s395 = scalar_lea.vmem %s2, %s394
        %s396 = sadd.s32 %s23, 1
        %s397 = smul.u32 %s396, 16
        %p398 = scmp.lt.s32.totalorder %s397, 15
        %s399 = scalar_select %p398, %s397, 15
      $region40: #{decoder_block_forward.4} parent=27 // pred_fallthru
        _
      // Predicated region
      $region41: #{decoder_block_forward.4} parent=27 // pred_check
        %p400 = pneg %p149
      $region42: #{decoder_block_forward.4} parent=27 // pred_check_branch
        %402 = sbr.rel (%p400) target = $region44
      $region43: #{decoder_block_forward.4} parent=27 // pred_region
        %s403 = smul.u32 16, %s23
        %p404 = scmp.lt.s32.totalorder %s22, 1
        %s405 = scalar_select %p404, %s22, 1
        %p406 = scmp.lt.s32.totalorder %s403, 15
        %s407 = scalar_select %p406, %s403, 15
        %s408 = smul.addr %s407, 2
        %s409 = smul.addr %s405, 32
        %s410 = sadd.s32 %s408, %s409
        %s411 = smul.addr %s410, 4
        %s412 = scalar_lea.vmem %s3, %s411
        %s413 = smul.u32 16, %s23
      $region44: #{decoder_block_forward.4} parent=27 // pred_fallthru
        _
      // Predicated region
      $region45: #{decoder_block_forward.4} parent=27 // pred_check
        %p414 = pneg %p185
      $region46: #{decoder_block_forward.4} parent=27 // pred_check_branch
        %416 = sbr.rel (%p414) target = $region48
      $region47: #{decoder_block_forward.4} parent=27 // pred_region
        %s417 = smul.u32 %s23, 16
        %s418 = ssub.s32 %s417, 1
        %p419 = scmp.gt.s32.totalorder %s418, 0
        %s420 = scalar_select %p419, %s418, 0
        %p421 = scmp.lt.s32.totalorder %s22, 1
        %s422 = scalar_select %p421, %s22, 1
        %p423 = scmp.lt.s32.totalorder %s420, 15
        %s424 = scalar_select %p423, %s420, 15
        %s425 = smul.addr %s424, 2
        %s426 = smul.addr %s422, 32
        %s427 = sadd.s32 %s425, %s426
        %s428 = smul.addr %s427, 4
        %s429 = scalar_lea.vmem %s4, %s428
        %s430 = smul.u32 %s23, 16
        %s431 = ssub.s32 %s430, 1
        %p432 = scmp.gt.s32.totalorder %s431, 0
        %s433 = scalar_select %p432, %s431, 0
      $region48: #{decoder_block_forward.4} parent=27 // pred_fallthru
        _
      // Predicated region
      $region49: #{decoder_block_forward.4} parent=27 // pred_check
        %p434 = pneg %p221
      $region50: #{decoder_block_forward.4} parent=27 // pred_check_branch
        %436 = sbr.rel (%p434) target = $region52
      $region51: #{decoder_block_forward.4} parent=27 // pred_region
        %s437 = sadd.s32 %s23, 1
        %s438 = smul.u32 %s437, 16
        %p439 = scmp.lt.s32.totalorder %s438, 15
        %s440 = scalar_select %p439, %s438, 15
        %p441 = scmp.lt.s32.totalorder %s22, 1
        %s442 = scalar_select %p441, %s22, 1
        %p443 = scmp.lt.s32.totalorder %s440, 15
        %s444 = scalar_select %p443, %s440, 15
        %s445 = smul.addr %s444, 2
        %s446 = smul.addr %s442, 32
        %s447 = sadd.s32 %s445, %s446
        %s448 = smul.addr %s447, 4
        %s449 = scalar_lea.vmem %s5, %s448
        %s450 = sadd.s32 %s23, 1
        %s451 = smul.u32 %s450, 16
        %p452 = scmp.lt.s32.totalorder %s451, 15
        %s453 = scalar_select %p452, %s451, 15
      $region52: #{decoder_block_forward.4} parent=27 // pred_fallthru
        _
    $region28: #{decoder_block_forward.4} parent=5 // pred_fallthru
      _
    %p454 = scmp.le.s32.totalorder 1, %s15
    %p455 = scmp.lt.s32.totalorder %s15, 3
    %p456 = pnand %p454, %p455
    %p457 = pneg %p456
    // Predicated region
    $region53: #{decoder_block_forward.4} parent=5 // pred_check
      _
    $region54: #{decoder_block_forward.4} parent=5 // pred_check_branch
      %459 = sbr.rel (%p456) target = $region56
    $region55: #{decoder_block_forward.4} parent=5 // pred_region
      %s460 = ssub.s32 %s15, 1
      %s461 = smul.u32 16, %s25
      %p462 = scmp.lt.s32.totalorder %s24, 1
      %s463 = scalar_select %p462, %s24, 1
      %p464 = scmp.lt.s32.totalorder %s461, 15
      %s465 = scalar_select %p464, %s461, 15
      %s466 = smul.addr %s465, 2
      %s467 = smul.addr %s463, 32
      %s468 = sadd.s32 %s466, %s467
      %s469 = smul.addr %s468, 4
      %s470 = scalar_lea.vmem %s0, %s469
      %p471 = pneg %p55
      %p472 = pneg %p52
      %s473 = smul.u32 %s25, 16
      %s474 = ssub.s32 %s473, 1
      %p475 = scmp.gt.s32.totalorder %s474, 0
      %s476 = scalar_select %p475, %s474, 0
      %p477 = scmp.lt.s32.totalorder %s24, 1
      %s478 = scalar_select %p477, %s24, 1
      %p479 = scmp.lt.s32.totalorder %s476, 15
      %s480 = scalar_select %p479, %s476, 15
      %s481 = smul.addr %s480, 2
      %s482 = smul.addr %s478, 32
      %s483 = sadd.s32 %s481, %s482
      %s484 = smul.addr %s483, 4
      %s485 = scalar_lea.vmem %s1, %s484
      %p486 = pneg %p91
      %p487 = pneg %p88
      %s488 = sadd.s32 %s25, 1
      %s489 = smul.u32 %s488, 16
      %p490 = scmp.lt.s32.totalorder %s489, 15
      %s491 = scalar_select %p490, %s489, 15
      %p492 = scmp.lt.s32.totalorder %s24, 1
      %s493 = scalar_select %p492, %s24, 1
      %p494 = scmp.lt.s32.totalorder %s491, 15
      %s495 = scalar_select %p494, %s491, 15
      %s496 = smul.addr %s495, 2
      %s497 = smul.addr %s493, 32
      %s498 = sadd.s32 %s496, %s497
      %s499 = smul.addr %s498, 4
      %s500 = scalar_lea.vmem %s2, %s499
      %p501 = pneg %p127
      %p502 = pneg %p124
      %s503 = smul.u32 16, %s25
      %p504 = scmp.lt.s32.totalorder %s24, 1
      %s505 = scalar_select %p504, %s24, 1
      %p506 = scmp.lt.s32.totalorder %s503, 15
      %s507 = scalar_select %p506, %s503, 15
      %s508 = smul.addr %s507, 2
      %s509 = smul.addr %s505, 32
      %s510 = sadd.s32 %s508, %s509
      %s511 = smul.addr %s510, 4
      %s512 = scalar_lea.vmem %s3, %s511
      %p513 = pneg %p155
      %p514 = pneg %p152
      %s515 = smul.u32 %s25, 16
      %s516 = ssub.s32 %s515, 1
      %p517 = scmp.gt.s32.totalorder %s516, 0
      %s518 = scalar_select %p517, %s516, 0
      %p519 = scmp.lt.s32.totalorder %s24, 1
      %s520 = scalar_select %p519, %s24, 1
      %p521 = scmp.lt.s32.totalorder %s518, 15
      %s522 = scalar_select %p521, %s518, 15
      %s523 = smul.addr %s522, 2
      %s524 = smul.addr %s520, 32
      %s525 = sadd.s32 %s523, %s524
      %s526 = smul.addr %s525, 4
      %s527 = scalar_lea.vmem %s4, %s526
      %p528 = pneg %p191
      %p529 = pneg %p188
      %s530 = sadd.s32 %s25, 1
      %s531 = smul.u32 %s530, 16
      %p532 = scmp.lt.s32.totalorder %s531, 15
      %s533 = scalar_select %p532, %s531, 15
      %p534 = scmp.lt.s32.totalorder %s24, 1
      %s535 = scalar_select %p534, %s24, 1
      %p536 = scmp.lt.s32.totalorder %s533, 15
      %s537 = scalar_select %p536, %s533, 15
      %s538 = smul.addr %s537, 2
      %s539 = smul.addr %s535, 32
      %s540 = sadd.s32 %s538, %s539
      %s541 = smul.addr %s540, 4
      %s542 = scalar_lea.vmem %s5, %s541
      %p543 = pneg %p227
      %p544 = pneg %p224
      %p545 = pneg %p248
      %p546 = pneg %p245
      %p547 = pneg %p269
      %p548 = pneg %p266
      %p549 = pneg %p290
      %p550 = pneg %p287
      %p551 = pneg %p318
      %p552 = pneg %p315
      %s553 = smul.u32 16, %s25
      %p554 = scmp.lt.s32.totalorder %s24, 1
      %s555 = scalar_select %p554, %s24, 1
      %p556 = scmp.lt.s32.totalorder %s553, 15
      %s557 = scalar_select %p556, %s553, 15
      %s558 = smul.addr %s557, 2
      %s559 = smul.addr %s555, 32
      %s560 = sadd.s32 %s558, %s559
      %s561 = smul.addr %s560, 4
      %s562 = scalar_lea.vmem %s9, %s561
      %s563 = smul.u32 16, %s25
      %p564 = scmp.lt.s32.totalorder %s24, 1
      %s565 = scalar_select %p564, %s24, 1
      %p566 = scmp.lt.s32.totalorder %s563, 15
      %s567 = scalar_select %p566, %s563, 15
      %s568 = smul.addr %s567, 2
      %s569 = smul.addr %s565, 32
      %s570 = sadd.s32 %s568, %s569
      %s571 = smul.addr %s570, 4
      %s572 = scalar_lea.vmem %s0, %s571
      %s573 = smul.u32 16, %s25
      %s574 = smul.u32 %s25, 16
      %s575 = ssub.s32 %s574, 1
      %p576 = scmp.gt.s32.totalorder %s575, 0
      %s577 = scalar_select %p576, %s575, 0
      %p578 = scmp.lt.s32.totalorder %s24, 1
      %s579 = scalar_select %p578, %s24, 1
      %p580 = scmp.lt.s32.totalorder %s577, 15
      %s581 = scalar_select %p580, %s577, 15
      %s582 = smul.addr %s581, 2
      %s583 = smul.addr %s579, 32
      %s584 = sadd.s32 %s582, %s583
      %s585 = smul.addr %s584, 4
      %s586 = scalar_lea.vmem %s1, %s585
      %s587 = smul.u32 %s25, 16
      %s588 = ssub.s32 %s587, 1
      %p589 = scmp.gt.s32.totalorder %s588, 0
      %s590 = scalar_select %p589, %s588, 0
      %s591 = sadd.s32 %s25, 1
      %s592 = smul.u32 %s591, 16
      %p593 = scmp.lt.s32.totalorder %s592, 15
      %s594 = scalar_select %p593, %s592, 15
      %p595 = scmp.lt.s32.totalorder %s24, 1
      %s596 = scalar_select %p595, %s24, 1
      %p597 = scmp.lt.s32.totalorder %s594, 15
      %s598 = scalar_select %p597, %s594, 15
      %s599 = smul.addr %s598, 2
      %s600 = smul.addr %s596, 32
      %s601 = sadd.s32 %s599, %s600
      %s602 = smul.addr %s601, 4
      %s603 = scalar_lea.vmem %s2, %s602
      %s604 = sadd.s32 %s25, 1
      %s605 = smul.u32 %s604, 16
      %p606 = scmp.lt.s32.totalorder %s605, 15
      %s607 = scalar_select %p606, %s605, 15
      %s608 = smul.u32 16, %s25
      %p609 = scmp.lt.s32.totalorder %s24, 1
      %s610 = scalar_select %p609, %s24, 1
      %p611 = scmp.lt.s32.totalorder %s608, 15
      %s612 = scalar_select %p611, %s608, 15
      %s613 = smul.addr %s612, 2
      %s614 = smul.addr %s610, 32
      %s615 = sadd.s32 %s613, %s614
      %s616 = smul.addr %s615, 4
      %s617 = scalar_lea.vmem %s3, %s616
      %s618 = smul.u32 16, %s25
      %s619 = smul.u32 %s25, 16
      %s620 = ssub.s32 %s619, 1
      %p621 = scmp.gt.s32.totalorder %s620, 0
      %s622 = scalar_select %p621, %s620, 0
      %p623 = scmp.lt.s32.totalorder %s24, 1
      %s624 = scalar_select %p623, %s24, 1
      %p625 = scmp.lt.s32.totalorder %s622, 15
      %s626 = scalar_select %p625, %s622, 15
      %s627 = smul.addr %s626, 2
      %s628 = smul.addr %s624, 32
      %s629 = sadd.s32 %s627, %s628
      %s630 = smul.addr %s629, 4
      %s631 = scalar_lea.vmem %s4, %s630
      %s632 = smul.u32 %s25, 16
      %s633 = ssub.s32 %s632, 1
      %p634 = scmp.gt.s32.totalorder %s633, 0
      %s635 = scalar_select %p634, %s633, 0
      %s636 = sadd.s32 %s25, 1
      %s637 = smul.u32 %s636, 16
      %p638 = scmp.lt.s32.totalorder %s637, 15
      %s639 = scalar_select %p638, %s637, 15
      %p640 = scmp.lt.s32.totalorder %s24, 1
      %s641 = scalar_select %p640, %s24, 1
      %p642 = scmp.lt.s32.totalorder %s639, 15
      %s643 = scalar_select %p642, %s639, 15
      %s644 = smul.addr %s643, 2
      %s645 = smul.addr %s641, 32
      %s646 = sadd.s32 %s644, %s645
      %s647 = smul.addr %s646, 4
      %s648 = scalar_lea.vmem %s5, %s647
      %s649 = sadd.s32 %s25, 1
      %s650 = smul.u32 %s649, 16
      %p651 = scmp.lt.s32.totalorder %s650, 15
      %s652 = scalar_select %p651, %s650, 15
      %s653 = smul.u32 16, %s25
      %p654 = scmp.lt.s32.totalorder %s24, 1
      %s655 = scalar_select %p654, %s24, 1
      %p656 = scmp.lt.s32.totalorder %s653, 15
      %s657 = scalar_select %p656, %s653, 15
      %s658 = smul.addr %s657, 2
      %s659 = smul.addr %s655, 32
      %s660 = sadd.s32 %s658, %s659
      %s661 = smul.addr %s660, 4
      %s662 = scalar_lea.vmem %s9, %s661
      %s663 = smul.u32 16, %s25
      %vm665 = vcmask 57344
      %vm666 = vsmask.f32 256
      %vm667 = vmand %vm665, %vm666
      %v668 = vld [vmem:[#allocation2] sm:$0x1]
      %v669 = vsel %vm667, 0, %v668
      %670 = vst [vmem:[#allocation2] sm:$0x1] %v669
      %v671 = vld [vmem:[#allocation2 + $0xc] sm:$0x1]
      %v672 = vsel %vm667, 0, %v671
      %673 = vst [vmem:[#allocation2 + $0xc] sm:$0x1] %v672
      %v674 = vld [vmem:[#allocation2 + $0x18] sm:$0x1]
      %v675 = vsel %vm667, 0, %v674
      %676 = vst [vmem:[#allocation2 + $0x18] sm:$0x1] %v675
      %v677 = vld [vmem:[#allocation2 + $0x24] sm:$0x1]
      %v678 = vsel %vm667, 0, %v677
      %679 = vst [vmem:[#allocation2 + $0x24] sm:$0x1] %v678
      %v680 = vld [vmem:[#allocation2 + $0x30] sm:$0x1]
      %v681 = vsel %vm667, 0, %v680
      %682 = vst [vmem:[#allocation2 + $0x30] sm:$0x1] %v681
      %v683 = vld [vmem:[#allocation2 + $0x3c] sm:$0x1]
      %v684 = vsel %vm667, 0, %v683
      %685 = vst [vmem:[#allocation2 + $0x3c] sm:$0x1] %v684
      %v686 = vld [vmem:[#allocation2 + $0x48] sm:$0x1]
      %v687 = vsel %vm667, 0, %v686
      %688 = vst [vmem:[#allocation2 + $0x48] sm:$0x1] %v687
      %v689 = vld [vmem:[#allocation2 + $0x54] sm:$0x1]
      %v690 = vsel %vm667, 0, %v689
      %691 = vst [vmem:[#allocation2 + $0x54] sm:$0x1] %v690
      %v692 = vld [vmem:[#allocation2 + $0x60] sm:$0x1]
      %v693 = vsel %vm667, 0, %v692
      %694 = vst [vmem:[#allocation2 + $0x60] sm:$0x1] %v693
      %v695 = vld [vmem:[#allocation2 + $0x6c] sm:$0x1]
      %v696 = vsel %vm667, 0, %v695
      %697 = vst [vmem:[#allocation2 + $0x6c] sm:$0x1] %v696
      %v698 = vld [vmem:[#allocation2 + $0x78] sm:$0x1]
      %v699 = vsel %vm667, 0, %v698
      %700 = vst [vmem:[#allocation2 + $0x78] sm:$0x1] %v699
      %v701 = vld [vmem:[#allocation2 + $0x84] sm:$0x1]
      %v702 = vsel %vm667, 0, %v701
      %703 = vst [vmem:[#allocation2 + $0x84] sm:$0x1] %v702
      %v704 = vld [vmem:[#allocation2 + $0x90] sm:$0x1]
      %v705 = vsel %vm667, 0, %v704
      %706 = vst [vmem:[#allocation2 + $0x90] sm:$0x1] %v705
      %v707 = vld [vmem:[#allocation2 + $0x9c] sm:$0x1]
      %v708 = vsel %vm667, 0, %v707
      %709 = vst [vmem:[#allocation2 + $0x9c] sm:$0x1] %v708
      %v710 = vld [vmem:[#allocation2 + $0xa8] sm:$0x1]
      %v711 = vsel %vm667, 0, %v710
      %712 = vst [vmem:[#allocation2 + $0xa8] sm:$0x1] %v711
      %v713 = vld [vmem:[#allocation2 + $0xb4] sm:$0x1]
      %v714 = vsel %vm667, 0, %v713
      %715 = vst [vmem:[#allocation2 + $0xb4] sm:$0x1] %v714
      %v716 = vld [vmem:[#allocation2 + $0xc0] sm:$0x1]
      %v717 = vsel %vm667, 0, %v716
      %718 = vst [vmem:[#allocation2 + $0xc0] sm:$0x1] %v717
      %v719 = vld [vmem:[#allocation2 + $0xcc] sm:$0x1]
      %v720 = vsel %vm667, 0, %v719
      %721 = vst [vmem:[#allocation2 + $0xcc] sm:$0x1] %v720
      %vm722 = vcmask 60416
      %vm723 = vsmask.f32 7938
      %vm724 = vmand %vm722, %vm723
      %v725 = vld [vmem:[#allocation2 + $0x8] sm:$0xf]
      %v726 = vsel %vm724, 0, %v725
      %727 = vst [vmem:[#allocation2 + $0x8] sm:$0xf] %v726
      %v728 = vld [vmem:[#allocation2 + $0x14] sm:$0xf]
      %v729 = vsel %vm724, 0, %v728
      %730 = vst [vmem:[#allocation2 + $0x14] sm:$0xf] %v729
      %v731 = vld [vmem:[#allocation2 + $0x20] sm:$0xf]
      %v732 = vsel %vm724, 0, %v731
      %733 = vst [vmem:[#allocation2 + $0x20] sm:$0xf] %v732
      %v734 = vld [vmem:[#allocation2 + $0x2c] sm:$0xf]
      %v735 = vsel %vm724, 0, %v734
      %736 = vst [vmem:[#allocation2 + $0x2c] sm:$0xf] %v735
      %v737 = vld [vmem:[#allocation2 + $0x38] sm:$0xf]
      %v738 = vsel %vm724, 0, %v737
      %739 = vst [vmem:[#allocation2 + $0x38] sm:$0xf] %v738
      %v740 = vld [vmem:[#allocation2 + $0x44] sm:$0xf]
      %v741 = vsel %vm724, 0, %v740
      %742 = vst [vmem:[#allocation2 + $0x44] sm:$0xf] %v741
      %v743 = vld [vmem:[#allocation2 + $0x50] sm:$0xf]
      %v744 = vsel %vm724, 0, %v743
      %745 = vst [vmem:[#allocation2 + $0x50] sm:$0xf] %v744
      %v746 = vld [vmem:[#allocation2 + $0x5c] sm:$0xf]
      %v747 = vsel %vm724, 0, %v746
      %748 = vst [vmem:[#allocation2 + $0x5c] sm:$0xf] %v747
      %v749 = vld [vmem:[#allocation2 + $0x68] sm:$0xf]
      %v750 = vsel %vm724, 0, %v749
      %751 = vst [vmem:[#allocation2 + $0x68] sm:$0xf] %v750
      %v752 = vld [vmem:[#allocation2 + $0x74] sm:$0xf]
      %v753 = vsel %vm724, 0, %v752
      %754 = vst [vmem:[#allocation2 + $0x74] sm:$0xf] %v753
      %v755 = vld [vmem:[#allocation2 + $0x80] sm:$0xf]
      %v756 = vsel %vm724, 0, %v755
      %757 = vst [vmem:[#allocation2 + $0x80] sm:$0xf] %v756
      %v758 = vld [vmem:[#allocation2 + $0x8c] sm:$0xf]
      %v759 = vsel %vm724, 0, %v758
      %760 = vst [vmem:[#allocation2 + $0x8c] sm:$0xf] %v759
      %v761 = vld [vmem:[#allocation2 + $0x98] sm:$0xf]
      %v762 = vsel %vm724, 0, %v761
      %763 = vst [vmem:[#allocation2 + $0x98] sm:$0xf] %v762
      %v764 = vld [vmem:[#allocation2 + $0xa4] sm:$0xf]
      %v765 = vsel %vm724, 0, %v764
      %766 = vst [vmem:[#allocation2 + $0xa4] sm:$0xf] %v765
      %v767 = vld [vmem:[#allocation2 + $0xb0] sm:$0xf]
      %v768 = vsel %vm724, 0, %v767
      %769 = vst [vmem:[#allocation2 + $0xb0] sm:$0xf] %v768
      %v770 = vld [vmem:[#allocation2 + $0xbc] sm:$0xf]
      %v771 = vsel %vm724, 0, %v770
      %772 = vst [vmem:[#allocation2 + $0xbc] sm:$0xf] %v771
      %v773 = vld [vmem:[#allocation2 + $0xc8] sm:$0xf]
      %v774 = vsel %vm724, 0, %v773
      %775 = vst [vmem:[#allocation2 + $0xc8] sm:$0xf] %v774
      %v776 = vld [vmem:[#allocation2 + $0xd4] sm:$0xf]
      %v777 = vsel %vm724, 0, %v776
      %778 = vst [vmem:[#allocation2 + $0xd4] sm:$0xf] %v777
      %p779 = scmp.eq.s32.totalorder %s25, 0
      // Predicated region
      $region57: #{decoder_block_forward.4} parent=55 // pred_check
        %p780 = pneg %p779
      $region58: #{decoder_block_forward.4} parent=55 // pred_check_branch
        %782 = sbr.rel (%p780) target = $region60
      $region59: #{decoder_block_forward.4} parent=55 // pred_region
        %v783 = vld [vmem:[#allocation2] sm:$0xf]
        %v784 = vsel %vm724, 0, %v783
        %785 = vst [vmem:[#allocation2] sm:$0xf] %v784
        %vm786 = vcmask 60416
        %787 = vst.msk [vmem:[#allocation2 + $0x4] sm:$0xf] %vm786, 0
        %v788 = vld [vmem:[#allocation2 + $0x8] sm:$0x1]
        %v789 = vsel %vm667, 0, %v788
        %790 = vst [vmem:[#allocation2 + $0x8] sm:$0x1] %v789
        %s791 = scalar_lea.vmem [#allocation2], 204
        %v792 = vld [vmem:[%s791] sm:$0xf]
        %v793 = vsel %vm724, 0, %v792
        %794 = vst [vmem:[%s791] sm:$0xf] %v793
        %795 = vst.msk [vmem:[%s791 + $0x4] sm:$0xf] %vm786, 0
        %v796 = vld [vmem:[%s791 + $0x8] sm:$0x1]
        %v797 = vsel %vm667, 0, %v796
        %798 = vst [vmem:[%s791 + $0x8] sm:$0x1] %v797
      $region60: #{decoder_block_forward.4} parent=55 // pred_fallthru
        _
      %v799 = vld [vmem:[%s572] sm:$0xf]
      %v800 = vld [vmem:[%s572 + $0x4] sm:$0xf]
      %v801 = vld [vmem:[%s572 + $0x8] sm:$0xf]
      %v802 = vld [vmem:[%s572 + $0xc] sm:$0xf]
      %v803 = vld [vmem:[%s572 + $0x10] sm:$0xf]
      %v804 = vld [vmem:[%s572 + $0x14] sm:$0xf]
      %v805 = vld [vmem:[%s572 + $0x18] sm:$0xf]
      %v806 = vld [vmem:[%s572 + $0x1c] sm:$0xf]
      %v807 = vld [vmem:[%s572 + $0x20] sm:$0xf]
      %v808 = vld [vmem:[%s572 + $0x24] sm:$0xf]
      %v809 = vld [vmem:[%s572 + $0x28] sm:$0xf]
      %v810 = vld [vmem:[%s572 + $0x2c] sm:$0xf]
      %v811 = vld [vmem:[%s572 + $0x30] sm:$0xf]
      %v812 = vld [vmem:[%s572 + $0x34] sm:$0xf]
      %v813 = vld [vmem:[%s572 + $0x38] sm:$0xf]
      %v814 = vld [vmem:[%s572 + $0x3c] sm:$0xf]
      %v815 = vld [vmem:[%s572 + $0x40] sm:$0xf]
      %v816 = vld [vmem:[%s572 + $0x44] sm:$0xf]
      %v817 = vld [vmem:[%s572 + $0x48] sm:$0xf]
      %v818 = vld [vmem:[%s572 + $0x4c] sm:$0xf]
      %v819 = vld [vmem:[%s572 + $0x50] sm:$0xf]
      %v820 = vld [vmem:[%s572 + $0x54] sm:$0xf]
      %v821 = vld [vmem:[%s572 + $0x58] sm:$0xf]
      %v822 = vld [vmem:[%s572 + $0x5c] sm:$0xf]
      %v823 = vld [vmem:[%s572 + $0x60] sm:$0xf]
      %v824 = vld [vmem:[%s572 + $0x64] sm:$0xf]
      %v825 = vld [vmem:[%s572 + $0x68] sm:$0xf]
      %v826 = vld [vmem:[%s572 + $0x6c] sm:$0xf]
      %v827 = vld [vmem:[%s572 + $0x70] sm:$0xf]
      %v828 = vld [vmem:[%s572 + $0x74] sm:$0xf]
      %v829 = vld [vmem:[%s572 + $0x78] sm:$0xf]
      %v830 = vld [vmem:[%s572 + $0x7c] sm:$0xf]
      %vm831 = vsmask.f32 4368
      %vm832 = vmor %vm666, %vm831
      %v834 = vshrl.u32 %v799, 16
      %v836 = vrot.slane %v834, 7
      %v837 = vshll.u32 %v799, 16
      %v839 = vor.u32 %v836, %v837
      %v840 = vrot.slane %v836, 4
      %v842 = vshrl.u32 %v800, 16
      %v844 = vrot.slane %v842, 7
      %v845 = vshll.u32 %v800, 16
      %v847 = vor.u32 %v844, %v845
      %v848 = vsel %vm832, %v840, %v847
      %v849 = vrot.slane %v844, 4
      %v851 = vshrl.u32 %v801, 16
      %v853 = vrot.slane %v851, 7
      %v854 = vshll.u32 %v801, 16
      %v856 = vor.u32 %v853, %v854
      %v857 = vrot.slane %v853, 4
      %v859 = vshrl.u32 %v802, 16
      %v861 = vrot.slane %v859, 7
      %v862 = vshll.u32 %v802, 16
      %v864 = vor.u32 %v861, %v862
      %v865 = vsel %vm832, %v857, %v864
      %v866 = vrot.slane %v861, 4
      %v868 = vshrl.u32 %v803, 16
      %v870 = vrot.slane %v868, 7
      %v871 = vshll.u32 %v803, 16
      %v873 = vor.u32 %v870, %v871
      %v874 = vrot.slane %v870, 4
      %v876 = vshrl.u32 %v804, 16
      %v878 = vrot.slane %v876, 7
      %v879 = vshll.u32 %v804, 16
      %v881 = vor.u32 %v878, %v879
      %v882 = vsel %vm832, %v874, %v881
      %v883 = vrot.slane %v878, 4
      %v885 = vshrl.u32 %v805, 16
      %v887 = vrot.slane %v885, 7
      %v888 = vshll.u32 %v805, 16
      %v890 = vor.u32 %v887, %v888
      %v891 = vrot.slane %v887, 4
      %v893 = vshrl.u32 %v806, 16
      %v895 = vrot.slane %v893, 7
      %v896 = vshll.u32 %v806, 16
      %v898 = vor.u32 %v895, %v896
      %v899 = vsel %vm832, %v891, %v898
      %v900 = vrot.slane %v895, 4
      %v902 = vshrl.u32 %v807, 16
      %v904 = vrot.slane %v902, 7
      %v905 = vshll.u32 %v807, 16
      %v907 = vor.u32 %v904, %v905
      %v908 = vrot.slane %v904, 4
      %v910 = vshrl.u32 %v808, 16
      %v912 = vrot.slane %v910, 7
      %v913 = vshll.u32 %v808, 16
      %v915 = vor.u32 %v912, %v913
      %v916 = vsel %vm832, %v908, %v915
      %v917 = vrot.slane %v912, 4
      %v919 = vshrl.u32 %v809, 16
      %v921 = vrot.slane %v919, 7
      %v922 = vshll.u32 %v809, 16
      %v924 = vor.u32 %v921, %v922
      %v925 = vrot.slane %v921, 4
      %v927 = vshrl.u32 %v810, 16
      %v929 = vrot.slane %v927, 7
      %v930 = vshll.u32 %v810, 16
      %v932 = vor.u32 %v929, %v930
      %v933 = vsel %vm832, %v925, %v932
      %v934 = vrot.slane %v929, 4
      %v936 = vshrl.u32 %v811, 16
      %v938 = vrot.slane %v936, 7
      %v939 = vshll.u32 %v811, 16
      %v941 = vor.u32 %v938, %v939
      %v942 = vrot.slane %v938, 4
      %v944 = vshrl.u32 %v812, 16
      %v946 = vrot.slane %v944, 7
      %v947 = vshll.u32 %v812, 16
      %v949 = vor.u32 %v946, %v947
      %v950 = vsel %vm832, %v942, %v949
      %v951 = vrot.slane %v946, 4
      %v953 = vshrl.u32 %v813, 16
      %v955 = vrot.slane %v953, 7
      %v956 = vshll.u32 %v813, 16
      %v958 = vor.u32 %v955, %v956
      %v959 = vrot.slane %v955, 4
      %v961 = vshrl.u32 %v814, 16
      %v963 = vrot.slane %v961, 7
      %v964 = vshll.u32 %v814, 16
      %v966 = vor.u32 %v963, %v964
      %v967 = vsel %vm832, %v959, %v966
      %v968 = vrot.slane %v963, 4
      %v970 = vshrl.u32 %v815, 16
      %v972 = vrot.slane %v970, 7
      %v973 = vshll.u32 %v815, 16
      %v975 = vor.u32 %v972, %v973
      %v976 = vrot.slane %v972, 4
      %v978 = vshrl.u32 %v816, 16
      %v980 = vrot.slane %v978, 7
      %v981 = vshll.u32 %v816, 16
      %v983 = vor.u32 %v980, %v981
      %v984 = vsel %vm832, %v976, %v983
      %v985 = vrot.slane %v980, 4
      %v987 = vshrl.u32 %v817, 16
      %v989 = vrot.slane %v987, 7
      %v990 = vshll.u32 %v817, 16
      %v992 = vor.u32 %v989, %v990
      %v993 = vrot.slane %v989, 4
      %v995 = vshrl.u32 %v818, 16
      %v997 = vrot.slane %v995, 7
      %v998 = vshll.u32 %v818, 16
      %v1000 = vor.u32 %v997, %v998
      %v1001 = vsel %vm832, %v993, %v1000
      %v1002 = vrot.slane %v997, 4
      %v1004 = vshrl.u32 %v819, 16
      %v1006 = vrot.slane %v1004, 7
      %v1007 = vshll.u32 %v819, 16
      %v1009 = vor.u32 %v1006, %v1007
      %v1010 = vrot.slane %v1006, 4
      %v1012 = vshrl.u32 %v820, 16
      %v1014 = vrot.slane %v1012, 7
      %v1015 = vshll.u32 %v820, 16
      %v1017 = vor.u32 %v1014, %v1015
      %v1018 = vsel %vm832, %v1010, %v1017
      %v1019 = vrot.slane %v1014, 4
      %v1021 = vshrl.u32 %v821, 16
      %v1023 = vrot.slane %v1021, 7
      %v1024 = vshll.u32 %v821, 16
      %v1026 = vor.u32 %v1023, %v1024
      %v1027 = vrot.slane %v1023, 4
      %v1029 = vshrl.u32 %v822, 16
      %v1031 = vrot.slane %v1029, 7
      %v1032 = vshll.u32 %v822, 16
      %v1034 = vor.u32 %v1031, %v1032
      %v1035 = vsel %vm832, %v1027, %v1034
      %v1036 = vrot.slane %v1031, 4
      %v1038 = vshrl.u32 %v823, 16
      %v1040 = vrot.slane %v1038, 7
      %v1041 = vshll.u32 %v823, 16
      %v1043 = vor.u32 %v1040, %v1041
      %v1044 = vrot.slane %v1040, 4
      %v1046 = vshrl.u32 %v824, 16
      %v1048 = vrot.slane %v1046, 7
      %v1049 = vshll.u32 %v824, 16
      %v1051 = vor.u32 %v1048, %v1049
      %v1052 = vsel %vm832, %v1044, %v1051
      %v1053 = vrot.slane %v1048, 4
      %v1055 = vshrl.u32 %v825, 16
      %v1057 = vrot.slane %v1055, 7
      %v1058 = vshll.u32 %v825, 16
      %v1060 = vor.u32 %v1057, %v1058
      %v1061 = vrot.slane %v1057, 4
      %v1063 = vshrl.u32 %v826, 16
      %v1065 = vrot.slane %v1063, 7
      %v1066 = vshll.u32 %v826, 16
      %v1068 = vor.u32 %v1065, %v1066
      %v1069 = vsel %vm832, %v1061, %v1068
      %v1070 = vrot.slane %v1065, 4
      %v1072 = vshrl.u32 %v827, 16
      %v1074 = vrot.slane %v1072, 7
      %v1075 = vshll.u32 %v827, 16
      %v1077 = vor.u32 %v1074, %v1075
      %v1078 = vrot.slane %v1074, 4
      %v1080 = vshrl.u32 %v828, 16
      %v1082 = vrot.slane %v1080, 7
      %v1083 = vshll.u32 %v828, 16
      %v1085 = vor.u32 %v1082, %v1083
      %v1086 = vsel %vm832, %v1078, %v1085
      %v1087 = vrot.slane %v1082, 4
      %v1089 = vshrl.u32 %v829, 16
      %v1091 = vrot.slane %v1089, 7
      %v1092 = vshll.u32 %v829, 16
      %v1094 = vor.u32 %v1091, %v1092
      %v1095 = vrot.slane %v1091, 4
      %v1097 = vshrl.u32 %v830, 16
      %v1099 = vrot.slane %v1097, 7
      %v1100 = vshll.u32 %v830, 16
      %v1102 = vor.u32 %v1099, %v1100
      %v1103 = vsel %vm832, %v1095, %v1102
      %v1104 = vrot.slane %v1099, 4
      %s1153 = scalar_lea.vmem [#allocation2], 12
      %vm1154 = vcmask 27648
      %vm1155 = vmand %vm1154, %vm723
      %v1156 = vld [vmem:[%s1153] sm:$0xf]
      %v1157 = vsel %vm1155, %v839, %v1156
      %1158 = vst [vmem:[%s1153] sm:$0xf] %v1157
      %vm1159 = vcmask 27648
      %1160 = vst.msk [vmem:[%s1153 + $0x4] sm:$0xf] %vm1159, %v848
      %vm1161 = vcmask 24576
      %vm1162 = vmand %vm1161, %vm666
      %v1163 = vld [vmem:[%s1153 + $0x8] sm:$0x1]
      %v1164 = vsel %vm1162, %v849, %v1163
      %1165 = vst [vmem:[%s1153 + $0x8] sm:$0x1] %v1164
      %v1166 = vld [vmem:[%s1153 + $0xc] sm:$0xf]
      %v1167 = vsel %vm1155, %v856, %v1166
      %1168 = vst [vmem:[%s1153 + $0xc] sm:$0xf] %v1167
      %1169 = vst.msk [vmem:[%s1153 + $0x10] sm:$0xf] %vm1159, %v865
      %v1170 = vld [vmem:[%s1153 + $0x14] sm:$0x1]
      %v1171 = vsel %vm1162, %v866, %v1170
      %1172 = vst [vmem:[%s1153 + $0x14] sm:$0x1] %v1171
      %v1173 = vld [vmem:[%s1153 + $0x18] sm:$0xf]
      %v1174 = vsel %vm1155, %v873, %v1173
      %1175 = vst [vmem:[%s1153 + $0x18] sm:$0xf] %v1174
      %1176 = vst.msk [vmem:[%s1153 + $0x1c] sm:$0xf] %vm1159, %v882
      %v1177 = vld [vmem:[%s1153 + $0x20] sm:$0x1]
      %v1178 = vsel %vm1162, %v883, %v1177
      %1179 = vst [vmem:[%s1153 + $0x20] sm:$0x1] %v1178
      %v1180 = vld [vmem:[%s1153 + $0x24] sm:$0xf]
      %v1181 = vsel %vm1155, %v890, %v1180
      %1182 = vst [vmem:[%s1153 + $0x24] sm:$0xf] %v1181
      %1183 = vst.msk [vmem:[%s1153 + $0x28] sm:$0xf] %vm1159, %v899
      %v1184 = vld [vmem:[%s1153 + $0x2c] sm:$0x1]
      %v1185 = vsel %vm1162, %v900, %v1184
      %1186 = vst [vmem:[%s1153 + $0x2c] sm:$0x1] %v1185
      %v1187 = vld [vmem:[%s1153 + $0x30] sm:$0xf]
      %v1188 = vsel %vm1155, %v907, %v1187
      %1189 = vst [vmem:[%s1153 + $0x30] sm:$0xf] %v1188
      %1190 = vst.msk [vmem:[%s1153 + $0x34] sm:$0xf] %vm1159, %v916
      %v1191 = vld [vmem:[%s1153 + $0x38] sm:$0x1]
      %v1192 = vsel %vm1162, %v917, %v1191
      %1193 = vst [vmem:[%s1153 + $0x38] sm:$0x1] %v1192
      %v1194 = vld [vmem:[%s1153 + $0x3c] sm:$0xf]
      %v1195 = vsel %vm1155, %v924, %v1194
      %1196 = vst [vmem:[%s1153 + $0x3c] sm:$0xf] %v1195
      %1197 = vst.msk [vmem:[%s1153 + $0x40] sm:$0xf] %vm1159, %v933
      %v1198 = vld [vmem:[%s1153 + $0x44] sm:$0x1]
      %v1199 = vsel %vm1162, %v934, %v1198
      %1200 = vst [vmem:[%s1153 + $0x44] sm:$0x1] %v1199
      %v1201 = vld [vmem:[%s1153 + $0x48] sm:$0xf]
      %v1202 = vsel %vm1155, %v941, %v1201
      %1203 = vst [vmem:[%s1153 + $0x48] sm:$0xf] %v1202
      %1204 = vst.msk [vmem:[%s1153 + $0x4c] sm:$0xf] %vm1159, %v950
      %v1205 = vld [vmem:[%s1153 + $0x50] sm:$0x1]
      %v1206 = vsel %vm1162, %v951, %v1205
      %1207 = vst [vmem:[%s1153 + $0x50] sm:$0x1] %v1206
      %v1208 = vld [vmem:[%s1153 + $0x54] sm:$0xf]
      %v1209 = vsel %vm1155, %v958, %v1208
      %1210 = vst [vmem:[%s1153 + $0x54] sm:$0xf] %v1209
      %1211 = vst.msk [vmem:[%s1153 + $0x58] sm:$0xf] %vm1159, %v967
      %v1212 = vld [vmem:[%s1153 + $0x5c] sm:$0x1]
      %v1213 = vsel %vm1162, %v968, %v1212
      %1214 = vst [vmem:[%s1153 + $0x5c] sm:$0x1] %v1213
      %v1215 = vld [vmem:[%s1153 + $0x60] sm:$0xf]
      %v1216 = vsel %vm1155, %v975, %v1215
      %1217 = vst [vmem:[%s1153 + $0x60] sm:$0xf] %v1216
      %1218 = vst.msk [vmem:[%s1153 + $0x64] sm:$0xf] %vm1159, %v984
      %v1219 = vld [vmem:[%s1153 + $0x68] sm:$0x1]
      %v1220 = vsel %vm1162, %v985, %v1219
      %1221 = vst [vmem:[%s1153 + $0x68] sm:$0x1] %v1220
      %v1222 = vld [vmem:[%s1153 + $0x6c] sm:$0xf]
      %v1223 = vsel %vm1155, %v992, %v1222
      %1224 = vst [vmem:[%s1153 + $0x6c] sm:$0xf] %v1223
      %1225 = vst.msk [vmem:[%s1153 + $0x70] sm:$0xf] %vm1159, %v1001
      %v1226 = vld [vmem:[%s1153 + $0x74] sm:$0x1]
      %v1227 = vsel %vm1162, %v1002, %v1226
      %1228 = vst [vmem:[%s1153 + $0x74] sm:$0x1] %v1227
      %v1229 = vld [vmem:[%s1153 + $0x78] sm:$0xf]
      %v1230 = vsel %vm1155, %v1009, %v1229
      %1231 = vst [vmem:[%s1153 + $0x78] sm:$0xf] %v1230
      %1232 = vst.msk [vmem:[%s1153 + $0x7c] sm:$0xf] %vm1159, %v1018
      %v1233 = vld [vmem:[%s1153 + $0x80] sm:$0x1]
      %v1234 = vsel %vm1162, %v1019, %v1233
      %1235 = vst [vmem:[%s1153 + $0x80] sm:$0x1] %v1234
      %v1236 = vld [vmem:[%s1153 + $0x84] sm:$0xf]
      %v1237 = vsel %vm1155, %v1026, %v1236
      %1238 = vst [vmem:[%s1153 + $0x84] sm:$0xf] %v1237
      %1239 = vst.msk [vmem:[%s1153 + $0x88] sm:$0xf] %vm1159, %v1035
      %v1240 = vld [vmem:[%s1153 + $0x8c] sm:$0x1]
      %v1241 = vsel %vm1162, %v1036, %v1240
      %1242 = vst [vmem:[%s1153 + $0x8c] sm:$0x1] %v1241
      %v1243 = vld [vmem:[%s1153 + $0x90] sm:$0xf]
      %v1244 = vsel %vm1155, %v1043, %v1243
      %1245 = vst [vmem:[%s1153 + $0x90] sm:$0xf] %v1244
      %1246 = vst.msk [vmem:[%s1153 + $0x94] sm:$0xf] %vm1159, %v1052
      %v1247 = vld [vmem:[%s1153 + $0x98] sm:$0x1]
      %v1248 = vsel %vm1162, %v1053, %v1247
      %1249 = vst [vmem:[%s1153 + $0x98] sm:$0x1] %v1248
      %v1250 = vld [vmem:[%s1153 + $0x9c] sm:$0xf]
      %v1251 = vsel %vm1155, %v1060, %v1250
      %1252 = vst [vmem:[%s1153 + $0x9c] sm:$0xf] %v1251
      %1253 = vst.msk [vmem:[%s1153 + $0xa0] sm:$0xf] %vm1159, %v1069
      %v1254 = vld [vmem:[%s1153 + $0xa4] sm:$0x1]
      %v1255 = vsel %vm1162, %v1070, %v1254
      %1256 = vst [vmem:[%s1153 + $0xa4] sm:$0x1] %v1255
      %v1257 = vld [vmem:[%s1153 + $0xa8] sm:$0xf]
      %v1258 = vsel %vm1155, %v1077, %v1257
      %1259 = vst [vmem:[%s1153 + $0xa8] sm:$0xf] %v1258
      %1260 = vst.msk [vmem:[%s1153 + $0xac] sm:$0xf] %vm1159, %v1086
      %v1261 = vld [vmem:[%s1153 + $0xb0] sm:$0x1]
      %v1262 = vsel %vm1162, %v1087, %v1261
      %1263 = vst [vmem:[%s1153 + $0xb0] sm:$0x1] %v1262
      %v1264 = vld [vmem:[%s1153 + $0xb4] sm:$0xf]
      %v1265 = vsel %vm1155, %v1094, %v1264
      %1266 = vst [vmem:[%s1153 + $0xb4] sm:$0xf] %v1265
      %1267 = vst.msk [vmem:[%s1153 + $0xb8] sm:$0xf] %vm1159, %v1103
      %v1268 = vld [vmem:[%s1153 + $0xbc] sm:$0x1]
      %v1269 = vsel %vm1162, %v1104, %v1268
      %1270 = vst [vmem:[%s1153 + $0xbc] sm:$0x1] %v1269
      %p1271 = scmp.gt.s32.totalorder %s25, 0
      // Predicated region
      $region61: #{decoder_block_forward.4} parent=55 // pred_check
        %p1272 = pneg %p1271
      $region62: #{decoder_block_forward.4} parent=55 // pred_check_branch
        %1274 = sbr.rel (%p1272) target = $region64
      $region63: #{decoder_block_forward.4} parent=55 // pred_region
        %v1275 = vld [vmem:[%s586] sm:$0xf]
        %v1276 = vld [vmem:[%s586 + $0x4] sm:$0xf]
        %v1278 = vshrl.u32 %v1275, 16
        %v1280 = vrot.slane %v1278, 7
        %v1281 = vshll.u32 %v1275, 16
        %v1283 = vor.u32 %v1280, %v1281
        %v1284 = vrot.slane %v1280, 4
        %v1286 = vshrl.u32 %v1276, 16
        %v1288 = vrot.slane %v1286, 7
        %v1289 = vshll.u32 %v1276, 16
        %v1291 = vor.u32 %v1288, %v1289
        %v1292 = vsel %vm832, %v1284, %v1291
        %v1293 = vrot.slane %v1288, 4
        %v1297 = vld [vmem:[#allocation2] sm:$0xf]
        %v1298 = vsel %vm1155, %v1283, %v1297
        %1299 = vst [vmem:[#allocation2] sm:$0xf] %v1298
        %1300 = vst.msk [vmem:[#allocation2 + $0x4] sm:$0xf] %vm1159, %v1292
        %v1301 = vld [vmem:[#allocation2 + $0x8] sm:$0x1]
        %v1302 = vsel %vm1162, %v1293, %v1301
        %1303 = vst [vmem:[#allocation2 + $0x8] sm:$0x1] %v1302
      $region64: #{decoder_block_forward.4} parent=55 // pred_fallthru
        _
      %p1304 = scmp.lt.s32.totalorder %s25, 0
      // Predicated region
      $region65: #{decoder_block_forward.4} parent=55 // pred_check
        %p1305 = pneg %p1304
      $region66: #{decoder_block_forward.4} parent=55 // pred_check_branch
        %1307 = sbr.rel (%p1305) target = $region68
      $region67: #{decoder_block_forward.4} parent=55 // pred_region
        %v1308 = vld [vmem:[%s603] sm:$0xf]
        %v1309 = vld [vmem:[%s603 + $0x4] sm:$0xf]
        %v1311 = vshrl.u32 %v1308, 16
        %v1313 = vrot.slane %v1311, 7
        %v1314 = vshll.u32 %v1308, 16
        %v1316 = vor.u32 %v1313, %v1314
        %v1317 = vrot.slane %v1313, 4
        %v1319 = vshrl.u32 %v1309, 16
        %v1321 = vrot.slane %v1319, 7
        %v1322 = vshll.u32 %v1309, 16
        %v1324 = vor.u32 %v1321, %v1322
        %v1325 = vsel %vm832, %v1317, %v1324
        %v1326 = vrot.slane %v1321, 4
        %s1330 = scalar_lea.vmem [#allocation2], 204
        %v1331 = vld [vmem:[%s1330] sm:$0xf]
        %v1332 = vsel %vm1155, %v1316, %v1331
        %1333 = vst [vmem:[%s1330] sm:$0xf] %v1332
        %1334 = vst.msk [vmem:[%s1330 + $0x4] sm:$0xf] %vm1159, %v1325
        %v1335 = vld [vmem:[%s1330 + $0x8] sm:$0x1]
        %v1336 = vsel %vm1162, %v1326, %v1335
        %1337 = vst [vmem:[%s1330 + $0x8] sm:$0x1] %v1336
      $region68: #{decoder_block_forward.4} parent=55 // pred_fallthru
        _
      %v1338 = vld [vmem:[%s617] sm:$0xf]
      %v1339 = vld [vmem:[%s617 + $0x4] sm:$0xf]
      %v1340 = vld [vmem:[%s617 + $0x8] sm:$0xf]
      %v1341 = vld [vmem:[%s617 + $0xc] sm:$0xf]
      %v1342 = vld [vmem:[%s617 + $0x10] sm:$0xf]
      %v1343 = vld [vmem:[%s617 + $0x14] sm:$0xf]
      %v1344 = vld [vmem:[%s617 + $0x18] sm:$0xf]
      %v1345 = vld [vmem:[%s617 + $0x1c] sm:$0xf]
      %v1346 = vld [vmem:[%s617 + $0x20] sm:$0xf]
      %v1347 = vld [vmem:[%s617 + $0x24] sm:$0xf]
      %v1348 = vld [vmem:[%s617 + $0x28] sm:$0xf]
      %v1349 = vld [vmem:[%s617 + $0x2c] sm:$0xf]
      %v1350 = vld [vmem:[%s617 + $0x30] sm:$0xf]
      %v1351 = vld [vmem:[%s617 + $0x34] sm:$0xf]
      %v1352 = vld [vmem:[%s617 + $0x38] sm:$0xf]
      %v1353 = vld [vmem:[%s617 + $0x3c] sm:$0xf]
      %v1354 = vld [vmem:[%s617 + $0x40] sm:$0xf]
      %v1355 = vld [vmem:[%s617 + $0x44] sm:$0xf]
      %v1356 = vld [vmem:[%s617 + $0x48] sm:$0xf]
      %v1357 = vld [vmem:[%s617 + $0x4c] sm:$0xf]
      %v1358 = vld [vmem:[%s617 + $0x50] sm:$0xf]
      %v1359 = vld [vmem:[%s617 + $0x54] sm:$0xf]
      %v1360 = vld [vmem:[%s617 + $0x58] sm:$0xf]
      %v1361 = vld [vmem:[%s617 + $0x5c] sm:$0xf]
      %v1362 = vld [vmem:[%s617 + $0x60] sm:$0xf]
      %v1363 = vld [vmem:[%s617 + $0x64] sm:$0xf]
      %v1364 = vld [vmem:[%s617 + $0x68] sm:$0xf]
      %v1365 = vld [vmem:[%s617 + $0x6c] sm:$0xf]
      %v1366 = vld [vmem:[%s617 + $0x70] sm:$0xf]
      %v1367 = vld [vmem:[%s617 + $0x74] sm:$0xf]
      %v1368 = vld [vmem:[%s617 + $0x78] sm:$0xf]
      %v1369 = vld [vmem:[%s617 + $0x7c] sm:$0xf]
      %v1371 = vshrl.u32 %v1338, 16
      %v1373 = vrot.slane %v1371, 7
      %v1374 = vshll.u32 %v1338, 16
      %v1376 = vor.u32 %v1373, %v1374
      %v1377 = vrot.slane %v1373, 4
      %v1379 = vshrl.u32 %v1339, 16
      %v1381 = vrot.slane %v1379, 7
      %v1382 = vshll.u32 %v1339, 16
      %v1384 = vor.u32 %v1381, %v1382
      %v1385 = vsel %vm832, %v1377, %v1384
      %v1386 = vrot.slane %v1381, 4
      %v1388 = vshrl.u32 %v1340, 16
      %v1390 = vrot.slane %v1388, 7
      %v1391 = vshll.u32 %v1340, 16
      %v1393 = vor.u32 %v1390, %v1391
      %v1394 = vrot.slane %v1390, 4
      %v1396 = vshrl.u32 %v1341, 16
      %v1398 = vrot.slane %v1396, 7
      %v1399 = vshll.u32 %v1341, 16
      %v1401 = vor.u32 %v1398, %v1399
      %v1402 = vsel %vm832, %v1394, %v1401
      %v1403 = vrot.slane %v1398, 4
      %v1405 = vshrl.u32 %v1342, 16
      %v1407 = vrot.slane %v1405, 7
      %v1408 = vshll.u32 %v1342, 16
      %v1410 = vor.u32 %v1407, %v1408
      %v1411 = vrot.slane %v1407, 4
      %v1413 = vshrl.u32 %v1343, 16
      %v1415 = vrot.slane %v1413, 7
      %v1416 = vshll.u32 %v1343, 16
      %v1418 = vor.u32 %v1415, %v1416
      %v1419 = vsel %vm832, %v1411, %v1418
      %v1420 = vrot.slane %v1415, 4
      %v1422 = vshrl.u32 %v1344, 16
      %v1424 = vrot.slane %v1422, 7
      %v1425 = vshll.u32 %v1344, 16
      %v1427 = vor.u32 %v1424, %v1425
      %v1428 = vrot.slane %v1424, 4
      %v1430 = vshrl.u32 %v1345, 16
      %v1432 = vrot.slane %v1430, 7
      %v1433 = vshll.u32 %v1345, 16
      %v1435 = vor.u32 %v1432, %v1433
      %v1436 = vsel %vm832, %v1428, %v1435
      %v1437 = vrot.slane %v1432, 4
      %v1439 = vshrl.u32 %v1346, 16
      %v1441 = vrot.slane %v1439, 7
      %v1442 = vshll.u32 %v1346, 16
      %v1444 = vor.u32 %v1441, %v1442
      %v1445 = vrot.slane %v1441, 4
      %v1447 = vshrl.u32 %v1347, 16
      %v1449 = vrot.slane %v1447, 7
      %v1450 = vshll.u32 %v1347, 16
      %v1452 = vor.u32 %v1449, %v1450
      %v1453 = vsel %vm832, %v1445, %v1452
      %v1454 = vrot.slane %v1449, 4
      %v1456 = vshrl.u32 %v1348, 16
      %v1458 = vrot.slane %v1456, 7
      %v1459 = vshll.u32 %v1348, 16
      %v1461 = vor.u32 %v1458, %v1459
      %v1462 = vrot.slane %v1458, 4
      %v1464 = vshrl.u32 %v1349, 16
      %v1466 = vrot.slane %v1464, 7
      %v1467 = vshll.u32 %v1349, 16
      %v1469 = vor.u32 %v1466, %v1467
      %v1470 = vsel %vm832, %v1462, %v1469
      %v1471 = vrot.slane %v1466, 4
      %v1473 = vshrl.u32 %v1350, 16
      %v1475 = vrot.slane %v1473, 7
      %v1476 = vshll.u32 %v1350, 16
      %v1478 = vor.u32 %v1475, %v1476
      %v1479 = vrot.slane %v1475, 4
      %v1481 = vshrl.u32 %v1351, 16
      %v1483 = vrot.slane %v1481, 7
      %v1484 = vshll.u32 %v1351, 16
      %v1486 = vor.u32 %v1483, %v1484
      %v1487 = vsel %vm832, %v1479, %v1486
      %v1488 = vrot.slane %v1483, 4
      %v1490 = vshrl.u32 %v1352, 16
      %v1492 = vrot.slane %v1490, 7
      %v1493 = vshll.u32 %v1352, 16
      %v1495 = vor.u32 %v1492, %v1493
      %v1496 = vrot.slane %v1492, 4
      %v1498 = vshrl.u32 %v1353, 16
      %v1500 = vrot.slane %v1498, 7
      %v1501 = vshll.u32 %v1353, 16
      %v1503 = vor.u32 %v1500, %v1501
      %v1504 = vsel %vm832, %v1496, %v1503
      %v1505 = vrot.slane %v1500, 4
      %v1507 = vshrl.u32 %v1354, 16
      %v1509 = vrot.slane %v1507, 7
      %v1510 = vshll.u32 %v1354, 16
      %v1512 = vor.u32 %v1509, %v1510
      %v1513 = vrot.slane %v1509, 4
      %v1515 = vshrl.u32 %v1355, 16
      %v1517 = vrot.slane %v1515, 7
      %v1518 = vshll.u32 %v1355, 16
      %v1520 = vor.u32 %v1517, %v1518
      %v1521 = vsel %vm832, %v1513, %v1520
      %v1522 = vrot.slane %v1517, 4
      %v1524 = vshrl.u32 %v1356, 16
      %v1526 = vrot.slane %v1524, 7
      %v1527 = vshll.u32 %v1356, 16
      %v1529 = vor.u32 %v1526, %v1527
      %v1530 = vrot.slane %v1526, 4
      %v1532 = vshrl.u32 %v1357, 16
      %v1534 = vrot.slane %v1532, 7
      %v1535 = vshll.u32 %v1357, 16
      %v1537 = vor.u32 %v1534, %v1535
      %v1538 = vsel %vm832, %v1530, %v1537
      %v1539 = vrot.slane %v1534, 4
      %v1541 = vshrl.u32 %v1358, 16
      %v1543 = vrot.slane %v1541, 7
      %v1544 = vshll.u32 %v1358, 16
      %v1546 = vor.u32 %v1543, %v1544
      %v1547 = vrot.slane %v1543, 4
      %v1549 = vshrl.u32 %v1359, 16
      %v1551 = vrot.slane %v1549, 7
      %v1552 = vshll.u32 %v1359, 16
      %v1554 = vor.u32 %v1551, %v1552
      %v1555 = vsel %vm832, %v1547, %v1554
      %v1556 = vrot.slane %v1551, 4
      %v1558 = vshrl.u32 %v1360, 16
      %v1560 = vrot.slane %v1558, 7
      %v1561 = vshll.u32 %v1360, 16
      %v1563 = vor.u32 %v1560, %v1561
      %v1564 = vrot.slane %v1560, 4
      %v1566 = vshrl.u32 %v1361, 16
      %v1568 = vrot.slane %v1566, 7
      %v1569 = vshll.u32 %v1361, 16
      %v1571 = vor.u32 %v1568, %v1569
      %v1572 = vsel %vm832, %v1564, %v1571
      %v1573 = vrot.slane %v1568, 4
      %v1575 = vshrl.u32 %v1362, 16
      %v1577 = vrot.slane %v1575, 7
      %v1578 = vshll.u32 %v1362, 16
      %v1580 = vor.u32 %v1577, %v1578
      %v1581 = vrot.slane %v1577, 4
      %v1583 = vshrl.u32 %v1363, 16
      %v1585 = vrot.slane %v1583, 7
      %v1586 = vshll.u32 %v1363, 16
      %v1588 = vor.u32 %v1585, %v1586
      %v1589 = vsel %vm832, %v1581, %v1588
      %v1590 = vrot.slane %v1585, 4
      %v1592 = vshrl.u32 %v1364, 16
      %v1594 = vrot.slane %v1592, 7
      %v1595 = vshll.u32 %v1364, 16
      %v1597 = vor.u32 %v1594, %v1595
      %v1598 = vrot.slane %v1594, 4
      %v1600 = vshrl.u32 %v1365, 16
      %v1602 = vrot.slane %v1600, 7
      %v1603 = vshll.u32 %v1365, 16
      %v1605 = vor.u32 %v1602, %v1603
      %v1606 = vsel %vm832, %v1598, %v1605
      %v1607 = vrot.slane %v1602, 4
      %v1609 = vshrl.u32 %v1366, 16
      %v1611 = vrot.slane %v1609, 7
      %v1612 = vshll.u32 %v1366, 16
      %v1614 = vor.u32 %v1611, %v1612
      %v1615 = vrot.slane %v1611, 4
      %v1617 = vshrl.u32 %v1367, 16
      %v1619 = vrot.slane %v1617, 7
      %v1620 = vshll.u32 %v1367, 16
      %v1622 = vor.u32 %v1619, %v1620
      %v1623 = vsel %vm832, %v1615, %v1622
      %v1624 = vrot.slane %v1619, 4
      %v1626 = vshrl.u32 %v1368, 16
      %v1628 = vrot.slane %v1626, 7
      %v1629 = vshll.u32 %v1368, 16
      %v1631 = vor.u32 %v1628, %v1629
      %v1632 = vrot.slane %v1628, 4
      %v1634 = vshrl.u32 %v1369, 16
      %v1636 = vrot.slane %v1634, 7
      %v1637 = vshll.u32 %v1369, 16
      %v1639 = vor.u32 %v1636, %v1637
      %v1640 = vsel %vm832, %v1632, %v1639
      %v1641 = vrot.slane %v1636, 4
      %1642 = vrot.lane.b32.xlu0 %v1376, 4
      %v1643 = vpop.permute.xlu0 %1642
      %1644 = vrot.lane.b32.xlu0 %v1385, 4
      %v1645 = vpop.permute.xlu0 %1644
      %1646 = vrot.lane.b32.xlu0 %v1386, 4
      %v1647 = vpop.permute.xlu0 %1646
      %1648 = vrot.lane.b32.xlu0 %v1393, 4
      %v1649 = vpop.permute.xlu0 %1648
      %1650 = vrot.lane.b32.xlu0 %v1402, 4
      %v1651 = vpop.permute.xlu0 %1650
      %1652 = vrot.lane.b32.xlu0 %v1403, 4
      %v1653 = vpop.permute.xlu0 %1652
      %1654 = vrot.lane.b32.xlu0 %v1410, 4
      %v1655 = vpop.permute.xlu0 %1654
      %1656 = vrot.lane.b32.xlu0 %v1419, 4
      %v1657 = vpop.permute.xlu0 %1656
      %1658 = vrot.lane.b32.xlu0 %v1420, 4
      %v1659 = vpop.permute.xlu0 %1658
      %1660 = vrot.lane.b32.xlu0 %v1427, 4
      %v1661 = vpop.permute.xlu0 %1660
      %1662 = vrot.lane.b32.xlu0 %v1436, 4
      %v1663 = vpop.permute.xlu0 %1662
      %1664 = vrot.lane.b32.xlu0 %v1437, 4
      %v1665 = vpop.permute.xlu0 %1664
      %1666 = vrot.lane.b32.xlu0 %v1444, 4
      %v1667 = vpop.permute.xlu0 %1666
      %1668 = vrot.lane.b32.xlu0 %v1453, 4
      %v1669 = vpop.permute.xlu0 %1668
      %1670 = vrot.lane.b32.xlu0 %v1454, 4
      %v1671 = vpop.permute.xlu0 %1670
      %1672 = vrot.lane.b32.xlu0 %v1461, 4
      %v1673 = vpop.permute.xlu0 %1672
      %1674 = vrot.lane.b32.xlu0 %v1470, 4
      %v1675 = vpop.permute.xlu0 %1674
      %1676 = vrot.lane.b32.xlu0 %v1471, 4
      %v1677 = vpop.permute.xlu0 %1676
      %1678 = vrot.lane.b32.xlu0 %v1478, 4
      %v1679 = vpop.permute.xlu0 %1678
      %1680 = vrot.lane.b32.xlu0 %v1487, 4
      %v1681 = vpop.permute.xlu0 %1680
      %1682 = vrot.lane.b32.xlu0 %v1488, 4
      %v1683 = vpop.permute.xlu0 %1682
      %1684 = vrot.lane.b32.xlu0 %v1495, 4
      %v1685 = vpop.permute.xlu0 %1684
      %1686 = vrot.lane.b32.xlu0 %v1504, 4
      %v1687 = vpop.permute.xlu0 %1686
      %1688 = vrot.lane.b32.xlu0 %v1505, 4
      %v1689 = vpop.permute.xlu0 %1688
      %1690 = vrot.lane.b32.xlu0 %v1512, 4
      %v1691 = vpop.permute.xlu0 %1690
      %1692 = vrot.lane.b32.xlu0 %v1521, 4
      %v1693 = vpop.permute.xlu0 %1692
      %1694 = vrot.lane.b32.xlu0 %v1522, 4
      %v1695 = vpop.permute.xlu0 %1694
      %1696 = vrot.lane.b32.xlu0 %v1529, 4
      %v1697 = vpop.permute.xlu0 %1696
      %1698 = vrot.lane.b32.xlu0 %v1538, 4
      %v1699 = vpop.permute.xlu0 %1698
      %1700 = vrot.lane.b32.xlu0 %v1539, 4
      %v1701 = vpop.permute.xlu0 %1700
      %1702 = vrot.lane.b32.xlu0 %v1546, 4
      %v1703 = vpop.permute.xlu0 %1702
      %1704 = vrot.lane.b32.xlu0 %v1555, 4
      %v1705 = vpop.permute.xlu0 %1704
      %1706 = vrot.lane.b32.xlu0 %v1556, 4
      %v1707 = vpop.permute.xlu0 %1706
      %1708 = vrot.lane.b32.xlu0 %v1563, 4
      %v1709 = vpop.permute.xlu0 %1708
      %1710 = vrot.lane.b32.xlu0 %v1572, 4
      %v1711 = vpop.permute.xlu0 %1710
      %1712 = vrot.lane.b32.xlu0 %v1573, 4
      %v1713 = vpop.permute.xlu0 %1712
      %1714 = vrot.lane.b32.xlu0 %v1580, 4
      %v1715 = vpop.permute.xlu0 %1714
      %1716 = vrot.lane.b32.xlu0 %v1589, 4
      %v1717 = vpop.permute.xlu0 %1716
      %1718 = vrot.lane.b32.xlu0 %v1590, 4
      %v1719 = vpop.permute.xlu0 %1718
      %1720 = vrot.lane.b32.xlu0 %v1597, 4
      %v1721 = vpop.permute.xlu0 %1720
      %1722 = vrot.lane.b32.xlu0 %v1606, 4
      %v1723 = vpop.permute.xlu0 %1722
      %1724 = vrot.lane.b32.xlu0 %v1607, 4
      %v1725 = vpop.permute.xlu0 %1724
      %1726 = vrot.lane.b32.xlu0 %v1614, 4
      %v1727 = vpop.permute.xlu0 %1726
      %1728 = vrot.lane.b32.xlu0 %v1623, 4
      %v1729 = vpop.permute.xlu0 %1728
      %1730 = vrot.lane.b32.xlu0 %v1624, 4
      %v1731 = vpop.permute.xlu0 %1730
      %1732 = vrot.lane.b32.xlu0 %v1631, 4
      %v1733 = vpop.permute.xlu0 %1732
      %1734 = vrot.lane.b32.xlu0 %v1640, 4
      %v1735 = vpop.permute.xlu0 %1734
      %1736 = vrot.lane.b32.xlu0 %v1641, 4
      %v1737 = vpop.permute.xlu0 %1736
      %vm1786 = vcmask 60448
      %vm1787 = vmand %vm1786, %vm723
      %v1788 = vld [vmem:[%s1153] sm:$0xf]
      %v1789 = vsel %vm1787, %v1643, %v1788
      %1790 = vst [vmem:[%s1153] sm:$0xf] %v1789
      %vm1791 = vcmask 60448
      %1792 = vst.msk [vmem:[%s1153 + $0x4] sm:$0xf] %vm1791, %v1645
      %vm1793 = vcmask 57376
      %vm1794 = vmand %vm1793, %vm666
      %v1795 = vld [vmem:[%s1153 + $0x8] sm:$0x1]
      %v1796 = vsel %vm1794, %v1647, %v1795
      %1797 = vst [vmem:[%s1153 + $0x8] sm:$0x1] %v1796
      %v1798 = vld [vmem:[%s1153 + $0xc] sm:$0xf]
      %v1799 = vsel %vm1787, %v1649, %v1798
      %1800 = vst [vmem:[%s1153 + $0xc] sm:$0xf] %v1799
      %1801 = vst.msk [vmem:[%s1153 + $0x10] sm:$0xf] %vm1791, %v1651
      %v1802 = vld [vmem:[%s1153 + $0x14] sm:$0x1]
      %v1803 = vsel %vm1794, %v1653, %v1802
      %1804 = vst [vmem:[%s1153 + $0x14] sm:$0x1] %v1803
      %v1805 = vld [vmem:[%s1153 + $0x18] sm:$0xf]
      %v1806 = vsel %vm1787, %v1655, %v1805
      %1807 = vst [vmem:[%s1153 + $0x18] sm:$0xf] %v1806
      %1808 = vst.msk [vmem:[%s1153 + $0x1c] sm:$0xf] %vm1791, %v1657
      %v1809 = vld [vmem:[%s1153 + $0x20] sm:$0x1]
      %v1810 = vsel %vm1794, %v1659, %v1809
      %1811 = vst [vmem:[%s1153 + $0x20] sm:$0x1] %v1810
      %v1812 = vld [vmem:[%s1153 + $0x24] sm:$0xf]
      %v1813 = vsel %vm1787, %v1661, %v1812
      %1814 = vst [vmem:[%s1153 + $0x24] sm:$0xf] %v1813
      %1815 = vst.msk [vmem:[%s1153 + $0x28] sm:$0xf] %vm1791, %v1663
      %v1816 = vld [vmem:[%s1153 + $0x2c] sm:$0x1]
      %v1817 = vsel %vm1794, %v1665, %v1816
      %1818 = vst [vmem:[%s1153 + $0x2c] sm:$0x1] %v1817
      %v1819 = vld [vmem:[%s1153 + $0x30] sm:$0xf]
      %v1820 = vsel %vm1787, %v1667, %v1819
      %1821 = vst [vmem:[%s1153 + $0x30] sm:$0xf] %v1820
      %1822 = vst.msk [vmem:[%s1153 + $0x34] sm:$0xf] %vm1791, %v1669
      %v1823 = vld [vmem:[%s1153 + $0x38] sm:$0x1]
      %v1824 = vsel %vm1794, %v1671, %v1823
      %1825 = vst [vmem:[%s1153 + $0x38] sm:$0x1] %v1824
      %v1826 = vld [vmem:[%s1153 + $0x3c] sm:$0xf]
      %v1827 = vsel %vm1787, %v1673, %v1826
      %1828 = vst [vmem:[%s1153 + $0x3c] sm:$0xf] %v1827
      %1829 = vst.msk [vmem:[%s1153 + $0x40] sm:$0xf] %vm1791, %v1675
      %v1830 = vld [vmem:[%s1153 + $0x44] sm:$0x1]
      %v1831 = vsel %vm1794, %v1677, %v1830
      %1832 = vst [vmem:[%s1153 + $0x44] sm:$0x1] %v1831
      %v1833 = vld [vmem:[%s1153 + $0x48] sm:$0xf]
      %v1834 = vsel %vm1787, %v1679, %v1833
      %1835 = vst [vmem:[%s1153 + $0x48] sm:$0xf] %v1834
      %1836 = vst.msk [vmem:[%s1153 + $0x4c] sm:$0xf] %vm1791, %v1681
      %v1837 = vld [vmem:[%s1153 + $0x50] sm:$0x1]
      %v1838 = vsel %vm1794, %v1683, %v1837
      %1839 = vst [vmem:[%s1153 + $0x50] sm:$0x1] %v1838
      %v1840 = vld [vmem:[%s1153 + $0x54] sm:$0xf]
      %v1841 = vsel %vm1787, %v1685, %v1840
      %1842 = vst [vmem:[%s1153 + $0x54] sm:$0xf] %v1841
      %1843 = vst.msk [vmem:[%s1153 + $0x58] sm:$0xf] %vm1791, %v1687
      %v1844 = vld [vmem:[%s1153 + $0x5c] sm:$0x1]
      %v1845 = vsel %vm1794, %v1689, %v1844
      %1846 = vst [vmem:[%s1153 + $0x5c] sm:$0x1] %v1845
      %v1847 = vld [vmem:[%s1153 + $0x60] sm:$0xf]
      %v1848 = vsel %vm1787, %v1691, %v1847
      %1849 = vst [vmem:[%s1153 + $0x60] sm:$0xf] %v1848
      %1850 = vst.msk [vmem:[%s1153 + $0x64] sm:$0xf] %vm1791, %v1693
      %v1851 = vld [vmem:[%s1153 + $0x68] sm:$0x1]
      %v1852 = vsel %vm1794, %v1695, %v1851
      %1853 = vst [vmem:[%s1153 + $0x68] sm:$0x1] %v1852
      %v1854 = vld [vmem:[%s1153 + $0x6c] sm:$0xf]
      %v1855 = vsel %vm1787, %v1697, %v1854
      %1856 = vst [vmem:[%s1153 + $0x6c] sm:$0xf] %v1855
      %1857 = vst.msk [vmem:[%s1153 + $0x70] sm:$0xf] %vm1791, %v1699
      %v1858 = vld [vmem:[%s1153 + $0x74] sm:$0x1]
      %v1859 = vsel %vm1794, %v1701, %v1858
      %1860 = vst [vmem:[%s1153 + $0x74] sm:$0x1] %v1859
      %v1861 = vld [vmem:[%s1153 + $0x78] sm:$0xf]
      %v1862 = vsel %vm1787, %v1703, %v1861
      %1863 = vst [vmem:[%s1153 + $0x78] sm:$0xf] %v1862
      %1864 = vst.msk [vmem:[%s1153 + $0x7c] sm:$0xf] %vm1791, %v1705
      %v1865 = vld [vmem:[%s1153 + $0x80] sm:$0x1]
      %v1866 = vsel %vm1794, %v1707, %v1865
      %1867 = vst [vmem:[%s1153 + $0x80] sm:$0x1] %v1866
      %v1868 = vld [vmem:[%s1153 + $0x84] sm:$0xf]
      %v1869 = vsel %vm1787, %v1709, %v1868
      %1870 = vst [vmem:[%s1153 + $0x84] sm:$0xf] %v1869
      %1871 = vst.msk [vmem:[%s1153 + $0x88] sm:$0xf] %vm1791, %v1711
      %v1872 = vld [vmem:[%s1153 + $0x8c] sm:$0x1]
      %v1873 = vsel %vm1794, %v1713, %v1872
      %1874 = vst [vmem:[%s1153 + $0x8c] sm:$0x1] %v1873
      %v1875 = vld [vmem:[%s1153 + $0x90] sm:$0xf]
      %v1876 = vsel %vm1787, %v1715, %v1875
      %1877 = vst [vmem:[%s1153 + $0x90] sm:$0xf] %v1876
      %1878 = vst.msk [vmem:[%s1153 + $0x94] sm:$0xf] %vm1791, %v1717
      %v1879 = vld [vmem:[%s1153 + $0x98] sm:$0x1]
      %v1880 = vsel %vm1794, %v1719, %v1879
      %1881 = vst [vmem:[%s1153 + $0x98] sm:$0x1] %v1880
      %v1882 = vld [vmem:[%s1153 + $0x9c] sm:$0xf]
      %v1883 = vsel %vm1787, %v1721, %v1882
      %1884 = vst [vmem:[%s1153 + $0x9c] sm:$0xf] %v1883
      %1885 = vst.msk [vmem:[%s1153 + $0xa0] sm:$0xf] %vm1791, %v1723
      %v1886 = vld [vmem:[%s1153 + $0xa4] sm:$0x1]
      %v1887 = vsel %vm1794, %v1725, %v1886
      %1888 = vst [vmem:[%s1153 + $0xa4] sm:$0x1] %v1887
      %v1889 = vld [vmem:[%s1153 + $0xa8] sm:$0xf]
      %v1890 = vsel %vm1787, %v1727, %v1889
      %1891 = vst [vmem:[%s1153 + $0xa8] sm:$0xf] %v1890
      %1892 = vst.msk [vmem:[%s1153 + $0xac] sm:$0xf] %vm1791, %v1729
      %v1893 = vld [vmem:[%s1153 + $0xb0] sm:$0x1]
      %v1894 = vsel %vm1794, %v1731, %v1893
      %1895 = vst [vmem:[%s1153 + $0xb0] sm:$0x1] %v1894
      %v1896 = vld [vmem:[%s1153 + $0xb4] sm:$0xf]
      %v1897 = vsel %vm1787, %v1733, %v1896
      %1898 = vst [vmem:[%s1153 + $0xb4] sm:$0xf] %v1897
      %1899 = vst.msk [vmem:[%s1153 + $0xb8] sm:$0xf] %vm1791, %v1735
      %v1900 = vld [vmem:[%s1153 + $0xbc] sm:$0x1]
      %v1901 = vsel %vm1794, %v1737, %v1900
      %1902 = vst [vmem:[%s1153 + $0xbc] sm:$0x1] %v1901
      // Predicated region
      $region69: #{decoder_block_forward.4} parent=55 // pred_check
        %p1903 = pneg %p1271
      $region70: #{decoder_block_forward.4} parent=55 // pred_check_branch
        %1905 = sbr.rel (%p1903) target = $region72
      $region71: #{decoder_block_forward.4} parent=55 // pred_region
        %v1906 = vld [vmem:[%s631] sm:$0xf]
        %v1907 = vld [vmem:[%s631 + $0x4] sm:$0xf]
        %v1909 = vshrl.u32 %v1906, 16
        %v1911 = vrot.slane %v1909, 7
        %v1912 = vshll.u32 %v1906, 16
        %v1914 = vor.u32 %v1911, %v1912
        %v1915 = vrot.slane %v1911, 4
        %v1917 = vshrl.u32 %v1907, 16
        %v1919 = vrot.slane %v1917, 7
        %v1920 = vshll.u32 %v1907, 16
        %v1922 = vor.u32 %v1919, %v1920
        %v1923 = vsel %vm832, %v1915, %v1922
        %v1924 = vrot.slane %v1919, 4
        %1925 = vrot.lane.b32.xlu0 %v1914, 4
        %v1926 = vpop.permute.xlu0 %1925
        %1927 = vrot.lane.b32.xlu0 %v1923, 4
        %v1928 = vpop.permute.xlu0 %1927
        %1929 = vrot.lane.b32.xlu0 %v1924, 4
        %v1930 = vpop.permute.xlu0 %1929
        %v1934 = vld [vmem:[#allocation2] sm:$0xf]
        %v1935 = vsel %vm1787, %v1926, %v1934
        %1936 = vst [vmem:[#allocation2] sm:$0xf] %v1935
        %1937 = vst.msk [vmem:[#allocation2 + $0x4] sm:$0xf] %vm1791, %v1928
        %v1938 = vld [vmem:[#allocation2 + $0x8] sm:$0x1]
        %v1939 = vsel %vm1794, %v1930, %v1938
        %1940 = vst [vmem:[#allocation2 + $0x8] sm:$0x1] %v1939
      $region72: #{decoder_block_forward.4} parent=55 // pred_fallthru
        _
      // Predicated region
      $region73: #{decoder_block_forward.4} parent=55 // pred_check
        %p1941 = pneg %p1304
      $region74: #{decoder_block_forward.4} parent=55 // pred_check_branch
        %1943 = sbr.rel (%p1941) target = $region76
      $region75: #{decoder_block_forward.4} parent=55 // pred_region
        %v1944 = vld [vmem:[%s648] sm:$0xf]
        %v1945 = vld [vmem:[%s648 + $0x4] sm:$0xf]
        %v1947 = vshrl.u32 %v1944, 16
        %v1949 = vrot.slane %v1947, 7
        %v1950 = vshll.u32 %v1944, 16
        %v1952 = vor.u32 %v1949, %v1950
        %v1953 = vrot.slane %v1949, 4
        %v1955 = vshrl.u32 %v1945, 16
        %v1957 = vrot.slane %v1955, 7
        %v1958 = vshll.u32 %v1945, 16
        %v1960 = vor.u32 %v1957, %v1958
        %v1961 = vsel %vm832, %v1953, %v1960
        %v1962 = vrot.slane %v1957, 4
        %1963 = vrot.lane.b32.xlu0 %v1952, 4
        %v1964 = vpop.permute.xlu0 %1963
        %1965 = vrot.lane.b32.xlu0 %v1961, 4
        %v1966 = vpop.permute.xlu0 %1965
        %1967 = vrot.lane.b32.xlu0 %v1962, 4
        %v1968 = vpop.permute.xlu0 %1967
        %s1972 = scalar_lea.vmem [#allocation2], 204
        %v1973 = vld [vmem:[%s1972] sm:$0xf]
        %v1974 = vsel %vm1787, %v1964, %v1973
        %1975 = vst [vmem:[%s1972] sm:$0xf] %v1974
        %1976 = vst.msk [vmem:[%s1972 + $0x4] sm:$0xf] %vm1791, %v1966
        %v1977 = vld [vmem:[%s1972 + $0x8] sm:$0x1]
        %v1978 = vsel %vm1794, %v1968, %v1977
        %1979 = vst [vmem:[%s1972 + $0x8] sm:$0x1] %v1978
      $region76: #{decoder_block_forward.4} parent=55 // pred_fallthru
        _
      %v1980 = vld [vmem:[#allocation2] sm:$0xf]
      %v1981 = vld [vmem:[#allocation2 + $0x4] sm:$0xf]
      %v1982 = vld [vmem:[#allocation2 + $0x8] sm:$0xf]
      %v1983 = vld [vmem:[#allocation2 + $0xc] sm:$0xf]
      %v1984 = vld [vmem:[#allocation2 + $0x10] sm:$0xf]
      %v1985 = vld [vmem:[#allocation2 + $0x14] sm:$0xf]
      %v1986 = vld [vmem:[#allocation2 + $0x18] sm:$0xf]
      %v1987 = vld [vmem:[#allocation2 + $0x1c] sm:$0xf]
      %v1988 = vld [vmem:[#allocation2 + $0x20] sm:$0xf]
      %v1989 = vld [vmem:[#allocation2 + $0x24] sm:$0xf]
      %v1990 = vld [vmem:[#allocation2 + $0x28] sm:$0xf]
      %v1991 = vld [vmem:[#allocation2 + $0x2c] sm:$0xf]
      %v1992 = vld [vmem:[#allocation2 + $0x30] sm:$0xf]
      %v1993 = vld [vmem:[#allocation2 + $0x34] sm:$0xf]
      %v1994 = vld [vmem:[#allocation2 + $0x38] sm:$0xf]
      %v1995 = vld [vmem:[#allocation2 + $0x3c] sm:$0xf]
      %v1996 = vld [vmem:[#allocation2 + $0x40] sm:$0xf]
      %v1997 = vld [vmem:[#allocation2 + $0x44] sm:$0xf]
      %v1998 = vld [vmem:[#allocation2 + $0x48] sm:$0xf]
      %v1999 = vld [vmem:[#allocation2 + $0x4c] sm:$0xf]
      %v2000 = vld [vmem:[#allocation2 + $0x50] sm:$0xf]
      %v2001 = vld [vmem:[#allocation2 + $0x54] sm:$0xf]
      %v2002 = vld [vmem:[#allocation2 + $0x58] sm:$0xf]
      %v2003 = vld [vmem:[#allocation2 + $0x5c] sm:$0xf]
      %v2004 = vld [vmem:[#allocation2 + $0x60] sm:$0xf]
      %v2005 = vld [vmem:[#allocation2 + $0x64] sm:$0xf]
      %v2006 = vld [vmem:[#allocation2 + $0x68] sm:$0xf]
      %v2007 = vld [vmem:[#allocation2 + $0x6c] sm:$0xf]
      %v2008 = vld [vmem:[#allocation2 + $0x70] sm:$0xf]
      %v2009 = vld [vmem:[#allocation2 + $0x74] sm:$0xf]
      %v2010 = vld [vmem:[#allocation2 + $0x78] sm:$0xf]
      %v2011 = vld [vmem:[#allocation2 + $0x7c] sm:$0xf]
      %v2012 = vld [vmem:[#allocation2 + $0x80] sm:$0xf]
      %v2013 = vld [vmem:[#allocation2 + $0x84] sm:$0xf]
      %v2014 = vld [vmem:[#allocation2 + $0x88] sm:$0xf]
      %v2015 = vld [vmem:[#allocation2 + $0x8c] sm:$0xf]
      %v2016 = vld [vmem:[#allocation2 + $0x90] sm:$0xf]
      %v2017 = vld [vmem:[#allocation2 + $0x94] sm:$0xf]
      %v2018 = vld [vmem:[#allocation2 + $0x98] sm:$0xf]
      %v2019 = vld [vmem:[#allocation2 + $0x9c] sm:$0xf]
      %v2020 = vld [vmem:[#allocation2 + $0xa0] sm:$0xf]
      %v2021 = vld [vmem:[#allocation2 + $0xa4] sm:$0xf]
      %v2022 = vld [vmem:[#allocation2 + $0xa8] sm:$0xf]
      %v2023 = vld [vmem:[#allocation2 + $0xac] sm:$0xf]
      %v2024 = vld [vmem:[#allocation2 + $0xb0] sm:$0xf]
      %v2025 = vld [vmem:[#allocation2 + $0xb4] sm:$0xf]
      %v2026 = vld [vmem:[#allocation2 + $0xb8] sm:$0xf]
      %v2027 = vld [vmem:[#allocation2 + $0xbc] sm:$0xf]
      %v2028 = vld [vmem:[%s6] sm:$0xf]
      %v2077 = vunpack.c.l.b16 %v1980
      %v2078 = vunpack.c.l.b16 %v1981
      %v2079 = vunpack.c.l.b16 %v1982
      %v2080 = vunpack.c.l.b16 %v1983
      %v2081 = vunpack.c.l.b16 %v1984
      %v2082 = vunpack.c.l.b16 %v1985
      %v2083 = vunpack.c.l.b16 %v1986
      %v2084 = vunpack.c.l.b16 %v1987
      %v2085 = vunpack.c.l.b16 %v1988
      %v2086 = vunpack.c.l.b16 %v1989
      %v2087 = vunpack.c.l.b16 %v1990
      %v2088 = vunpack.c.l.b16 %v1991
      %v2089 = vunpack.c.l.b16 %v1992
      %v2090 = vunpack.c.l.b16 %v1993
      %v2091 = vunpack.c.l.b16 %v1994
      %v2092 = vunpack.c.l.b16 %v1995
      %v2093 = vunpack.c.l.b16 %v1996
      %v2094 = vunpack.c.l.b16 %v1997
      %v2095 = vunpack.c.l.b16 %v1998
      %v2096 = vunpack.c.l.b16 %v1999
      %v2097 = vunpack.c.l.b16 %v2000
      %v2098 = vunpack.c.l.b16 %v2001
      %v2099 = vunpack.c.l.b16 %v2002
      %v2100 = vunpack.c.l.b16 %v2003
      %v2101 = vunpack.c.l.b16 %v2004
      %v2102 = vunpack.c.l.b16 %v2005
      %v2103 = vunpack.c.l.b16 %v2006
      %v2104 = vunpack.c.l.b16 %v2007
      %v2105 = vunpack.c.l.b16 %v2008
      %v2106 = vunpack.c.l.b16 %v2009
      %v2107 = vunpack.c.l.b16 %v2010
      %v2108 = vunpack.c.l.b16 %v2011
      %v2109 = vunpack.c.l.b16 %v2012
      %v2110 = vunpack.c.l.b16 %v2013
      %v2111 = vunpack.c.l.b16 %v2014
      %v2112 = vunpack.c.l.b16 %v2015
      %v2113 = vunpack.c.l.b16 %v2016
      %v2114 = vunpack.c.l.b16 %v2017
      %v2115 = vunpack.c.l.b16 %v2018
      %v2116 = vunpack.c.l.b16 %v2019
      %v2117 = vunpack.c.l.b16 %v2020
      %v2118 = vunpack.c.l.b16 %v2021
      %v2119 = vunpack.c.l.b16 %v2022
      %v2120 = vunpack.c.l.b16 %v2023
      %v2121 = vunpack.c.l.b16 %v2024
      %v2122 = vunpack.c.l.b16 %v2025
      %v2123 = vunpack.c.l.b16 %v2026
      %v2124 = vunpack.c.l.b16 %v2027
      %v2125 = vpack.c.b16 %v2078, %v2077
      %v2126 = vpack.c.b16 %v2080, %v2079
      %v2127 = vpack.c.b16 %v2082, %v2081
      %v2128 = vpack.c.b16 %v2084, %v2083
      %v2129 = vpack.c.b16 %v2086, %v2085
      %v2130 = vpack.c.b16 %v2088, %v2087
      %v2131 = vpack.c.b16 %v2090, %v2089
      %v2132 = vpack.c.b16 %v2092, %v2091
      %v2133 = vpack.c.b16 %v2094, %v2093
      %v2134 = vpack.c.b16 %v2096, %v2095
      %v2135 = vpack.c.b16 %v2098, %v2097
      %v2136 = vpack.c.b16 %v2100, %v2099
      %v2137 = vpack.c.b16 %v2102, %v2101
      %v2138 = vpack.c.b16 %v2104, %v2103
      %v2139 = vpack.c.b16 %v2106, %v2105
      %v2140 = vpack.c.b16 %v2108, %v2107
      %v2141 = vpack.c.b16 %v2110, %v2109
      %v2142 = vpack.c.b16 %v2112, %v2111
      %v2143 = vpack.c.b16 %v2114, %v2113
      %v2144 = vpack.c.b16 %v2116, %v2115
      %v2145 = vpack.c.b16 %v2118, %v2117
      %v2146 = vpack.c.b16 %v2120, %v2119
      %v2147 = vpack.c.b16 %v2122, %v2121
      %v2148 = vpack.c.b16 %v2124, %v2123
      %vm2149 = vcmask 64512
      %v2151 = vsel %vm2149, %v2125, 0
      %v2154 = vsel %vm2149, %v2126, 0
      %v2157 = vsel %vm2149, %v2127, 0
      %v2160 = vsel %vm2149, %v2128, 0
      %v2163 = vsel %vm2149, %v2129, 0
      %v2166 = vsel %vm2149, %v2130, 0
      %v2169 = vsel %vm2149, %v2131, 0
      %v2172 = vsel %vm2149, %v2132, 0
      %v2175 = vsel %vm2149, %v2133, 0
      %v2178 = vsel %vm2149, %v2134, 0
      %v2181 = vsel %vm2149, %v2135, 0
      %v2184 = vsel %vm2149, %v2136, 0
      %v2187 = vsel %vm2149, %v2137, 0
      %v2190 = vsel %vm2149, %v2138, 0
      %v2193 = vsel %vm2149, %v2139, 0
      %v2196 = vsel %vm2149, %v2140, 0
      %v2199 = vsel %vm2149, %v2141, 0
      %v2202 = vsel %vm2149, %v2142, 0
      %v2205 = vsel %vm2149, %v2143, 0
      %v2208 = vsel %vm2149, %v2144, 0
      %v2211 = vsel %vm2149, %v2145, 0
      %v2214 = vsel %vm2149, %v2146, 0
      %v2217 = vsel %vm2149, %v2147, 0
      %v2220 = vsel %vm2149, %v2148, 0
      %vm2222 = vcmask 1043456
      %v2224 = vsel %vm2222, %v2028, 0
      %2226 = vmatprep.subr.bf16.mxu0 0
      %2227 = vmatpush1.bf16.msra.mxu0 %v2224
      %2228 = vmatprep.subr.bf16.mxu0 0
      %2229 = vmatpush1.bf16.msra.mxu0 0
      %2230 = vmatprep.subr.bf16.mxu0 0
      %2231 = vmatpush1.bf16.msra.mxu0 0
      %2232 = vmatprep.subr.bf16.mxu0 0
      %2233 = vmatpush1.bf16.msra.mxu0 0
      %2234 = vmatprep.subr.bf16.mxu0 0
      %2235 = vmatpush1.bf16.msra.mxu0 0
      %2236 = vmatprep.subr.bf16.mxu0 0
      %2237 = vmatpush1.bf16.msra.mxu0 0
      %2238 = vmatprep.subr.bf16.mxu0 0
      %2239 = vmatpush1.bf16.msra.mxu0 0
      %2240 = vmatprep.subr.bf16.mxu0 0
      %2241 = vmatpush1.bf16.msra.mxu0 0
      %2242 = vmatprep.subr.bf16.mxu0 0
      %2243 = vmatpush1.bf16.msra.mxu0 0
      %2244 = vmatprep.subr.bf16.mxu0 0
      %2245 = vmatpush1.bf16.msra.mxu0 0
      %2246 = vmatprep.subr.bf16.mxu0 0
      %2247 = vmatpush1.bf16.msra.mxu0 0
      %2248 = vmatprep.subr.bf16.mxu0 0
      %2249 = vmatpush1.bf16.msra.mxu0 0
      %2250 = vmatprep.subr.bf16.mxu0 0
      %2251 = vmatpush1.bf16.msra.mxu0 0
      %2252 = vmatprep.subr.bf16.mxu0 0
      %2253 = vmatpush1.bf16.msra.mxu0 0
      %2254 = vmatprep.subr.bf16.mxu0 0
      %2255 = vmatpush1.bf16.msra.mxu0 0
      %2256 = vmatprep.subr.bf16.mxu0 0
      %2257 = vmatpush1.bf16.msra.mxu0 0
      %2258 = vmatprep.mubr.bf16.mxu0 0
      %2259 = vmatmul.mubr.bf16.gmra.mrb[0].mxu0 %v2151
      %v2260 = vpop.f32.mrb[0].mxu0
      %v2261 = vadd.f32 0.0, %v2260
      %v2262 = vpop.f32.mrb[0].mxu0
      %v2263 = vpop.f32.mrb[0].mxu0
      %v2264 = vadd.f32 0.0, %v2263
      %v2265 = vpop.f32.mrb[0].mxu0
      %2266 = vmatprep.mubr.bf16.mxu0 0
      %2267 = vmatmul.mubr.bf16.gmra.mrb[0].mxu0 %v2154
      %v2268 = vpop.f32.mrb[0].mxu0
      %v2269 = vadd.f32 0.0, %v2268
      %v2270 = vpop.f32.mrb[0].mxu0
      %v2271 = vpop.f32.mrb[0].mxu0
      %v2272 = vadd.f32 0.0, %v2271
      %v2273 = vpop.f32.mrb[0].mxu0
      %2274 = vmatprep.mubr.bf16.mxu0 0
      %2275 = vmatmul.mubr.bf16.gmra.mrb[0].mxu0 %v2157
      %v2276 = vpop.f32.mrb[0].mxu0
      %v2277 = vadd.f32 0.0, %v2276
      %v2278 = vpop.f32.mrb[0].mxu0
      %v2279 = vpop.f32.mrb[0].mxu0
      %v2280 = vadd.f32 0.0, %v2279
      %v2281 = vpop.f32.mrb[0].mxu0
      %2282 = vmatprep.mubr.bf16.mxu0 0
      %2283 = vmatmul.mubr.bf16.gmra.mrb[0].mxu0 %v2160
      %v2284 = vpop.f32.mrb[0].mxu0
      %v2285 = vadd.f32 0.0, %v2284
      %v2286 = vpop.f32.mrb[0].mxu0
      %v2287 = vpop.f32.mrb[0].mxu0
      %v2288 = vadd.f32 0.0, %v2287
      %v2289 = vpop.f32.mrb[0].mxu0
      %2290 = vmatprep.mubr.bf16.mxu0 0
      %2291 = vmatmul.mubr.bf16.gmra.mrb[0].mxu0 %v2163
      %v2292 = vpop.f32.mrb[0].mxu0
      %v2293 = vadd.f32 0.0, %v2292
      %v2294 = vpop.f32.mrb[0].mxu0
      %v2295 = vpop.f32.mrb[0].mxu0
      %v2296 = vadd.f32 0.0, %v2295
      %v2297 = vpop.f32.mrb[0].mxu0
      %2298 = vmatprep.mubr.bf16.mxu0 0
      %2299 = vmatmul.mubr.bf16.gmra.mrb[0].mxu0 %v2166
      %v2300 = vpop.f32.mrb[0].mxu0
      %v2301 = vadd.f32 0.0, %v2300
      %v2302 = vpop.f32.mrb[0].mxu0
      %v2303 = vpop.f32.mrb[0].mxu0
      %v2304 = vadd.f32 0.0, %v2303
      %v2305 = vpop.f32.mrb[0].mxu0
      %2306 = vmatprep.mubr.bf16.mxu0 0
      %2307 = vmatmul.mubr.bf16.gmra.mrb[0].mxu0 %v2169
      %v2308 = vpop.f32.mrb[0].mxu0
      %v2309 = vadd.f32 0.0, %v2308
      %v2310 = vpop.f32.mrb[0].mxu0
      %v2311 = vpop.f32.mrb[0].mxu0
      %v2312 = vadd.f32 0.0, %v2311
      %v2313 = vpop.f32.mrb[0].mxu0
      %2314 = vmatprep.mubr.bf16.mxu0 0
      %2315 = vmatmul.mubr.bf16.gmra.mrb[0].mxu0 %v2172
      %v2316 = vpop.f32.mrb[0].mxu0
      %v2317 = vadd.f32 0.0, %v2316
      %v2318 = vpop.f32.mrb[0].mxu0
      %v2319 = vpop.f32.mrb[0].mxu0
      %v2320 = vadd.f32 0.0, %v2319
      %v2321 = vpop.f32.mrb[0].mxu0
      %2322 = vmatprep.mubr.bf16.mxu0 0
      %2323 = vmatmul.mubr.bf16.gmra.mrb[0].mxu0 %v2175
      %v2324 = vpop.f32.mrb[0].mxu0
      %v2325 = vadd.f32 0.0, %v2324
      %v2326 = vpop.f32.mrb[0].mxu0
      %v2327 = vpop.f32.mrb[0].mxu0
      %v2328 = vadd.f32 0.0, %v2327
      %v2329 = vpop.f32.mrb[0].mxu0
      %2330 = vmatprep.mubr.bf16.mxu0 0
      %2331 = vmatmul.mubr.bf16.gmra.mrb[0].mxu0 %v2178
      %v2332 = vpop.f32.mrb[0].mxu0
      %v2333 = vadd.f32 0.0, %v2332
      %v2334 = vpop.f32.mrb[0].mxu0
      %v2335 = vpop.f32.mrb[0].mxu0
      %v2336 = vadd.f32 0.0, %v2335
      %v2337 = vpop.f32.mrb[0].mxu0
      %2338 = vmatprep.mubr.bf16.mxu0 0
      %2339 = vmatmul.mubr.bf16.gmra.mrb[0].mxu0 %v2181
      %v2340 = vpop.f32.mrb[0].mxu0
      %v2341 = vadd.f32 0.0, %v2340
      %v2342 = vpop.f32.mrb[0].mxu0
      %v2343 = vpop.f32.mrb[0].mxu0
      %v2344 = vadd.f32 0.0, %v2343
      %v2345 = vpop.f32.mrb[0].mxu0
      %2346 = vmatprep.mubr.bf16.mxu0 0
      %2347 = vmatmul.mubr.bf16.gmra.mrb[0].mxu0 %v2184
      %v2348 = vpop.f32.mrb[0].mxu0
      %v2349 = vadd.f32 0.0, %v2348
      %v2350 = vpop.f32.mrb[0].mxu0
      %v2351 = vpop.f32.mrb[0].mxu0
      %v2352 = vadd.f32 0.0, %v2351
      %v2353 = vpop.f32.mrb[0].mxu0
      %2354 = vmatprep.mubr.bf16.mxu0 0
      %2355 = vmatmul.mubr.bf16.gmra.mrb[0].mxu0 %v2187
      %v2356 = vpop.f32.mrb[0].mxu0
      %v2357 = vadd.f32 0.0, %v2356
      %v2358 = vpop.f32.mrb[0].mxu0
      %v2359 = vpop.f32.mrb[0].mxu0
      %v2360 = vadd.f32 0.0, %v2359
      %v2361 = vpop.f32.mrb[0].mxu0
      %2362 = vmatprep.mubr.bf16.mxu0 0
      %2363 = vmatmul.mubr.bf16.gmra.mrb[0].mxu0 %v2190
      %v2364 = vpop.f32.mrb[0].mxu0
      %v2365 = vadd.f32 0.0, %v2364
      %v2366 = vpop.f32.mrb[0].mxu0
      %v2367 = vpop.f32.mrb[0].mxu0
      %v2368 = vadd.f32 0.0, %v2367
      %v2369 = vpop.f32.mrb[0].mxu0
      %2370 = vmatprep.mubr.bf16.mxu0 0
      %2371 = vmatmul.mubr.bf16.gmra.mrb[0].mxu0 %v2193
      %v2372 = vpop.f32.mrb[0].mxu0
      %v2373 = vadd.f32 0.0, %v2372
      %v2374 = vpop.f32.mrb[0].mxu0
      %v2375 = vpop.f32.mrb[0].mxu0
      %v2376 = vadd.f32 0.0, %v2375
      %v2377 = vpop.f32.mrb[0].mxu0
      %2378 = vmatprep.mubr.bf16.mxu0 0
      %2379 = vmatmul.mubr.bf16.gmra.mrb[0].mxu0 %v2196
      %v2380 = vpop.f32.mrb[0].mxu0
      %v2381 = vadd.f32 0.0, %v2380
      %v2382 = vpop.f32.mrb[0].mxu0
      %v2383 = vpop.f32.mrb[0].mxu0
      %v2384 = vadd.f32 0.0, %v2383
      %v2385 = vpop.f32.mrb[0].mxu0
      %2386 = vmatprep.mubr.bf16.mxu0 0
      %2387 = vmatmul.mubr.bf16.gmra.mrb[0].mxu0 %v2199
      %v2388 = vpop.f32.mrb[0].mxu0
      %v2389 = vadd.f32 0.0, %v2388
      %v2390 = vpop.f32.mrb[0].mxu0
      %v2391 = vpop.f32.mrb[0].mxu0
      %v2392 = vadd.f32 0.0, %v2391
      %v2393 = vpop.f32.mrb[0].mxu0
      %2394 = vmatprep.mubr.bf16.mxu0 0
      %2395 = vmatmul.mubr.bf16.gmra.mrb[0].mxu0 %v2202
      %v2396 = vpop.f32.mrb[0].mxu0
      %v2397 = vadd.f32 0.0, %v2396
      %v2398 = vpop.f32.mrb[0].mxu0
      %v2399 = vpop.f32.mrb[0].mxu0
      %v2400 = vadd.f32 0.0, %v2399
      %v2401 = vpop.f32.mrb[0].mxu0
      %2402 = vmatprep.mubr.bf16.mxu0 0
      %2403 = vmatmul.mubr.bf16.gmra.mrb[0].mxu0 %v2205
      %v2404 = vpop.f32.mrb[0].mxu0
      %v2405 = vadd.f32 0.0, %v2404
      %v2406 = vpop.f32.mrb[0].mxu0
      %v2407 = vpop.f32.mrb[0].mxu0
      %v2408 = vadd.f32 0.0, %v2407
      %v2409 = vpop.f32.mrb[0].mxu0
      %2410 = vmatprep.mubr.bf16.mxu0 0
      %2411 = vmatmul.mubr.bf16.gmra.mrb[0].mxu0 %v2208
      %v2412 = vpop.f32.mrb[0].mxu0
      %v2413 = vadd.f32 0.0, %v2412
      %v2414 = vpop.f32.mrb[0].mxu0
      %v2415 = vpop.f32.mrb[0].mxu0
      %v2416 = vadd.f32 0.0, %v2415
      %v2417 = vpop.f32.mrb[0].mxu0
      %2418 = vmatprep.mubr.bf16.mxu0 0
      %2419 = vmatmul.mubr.bf16.gmra.mrb[0].mxu0 %v2211
      %v2420 = vpop.f32.mrb[0].mxu0
      %v2421 = vadd.f32 0.0, %v2420
      %v2422 = vpop.f32.mrb[0].mxu0
      %v2423 = vpop.f32.mrb[0].mxu0
      %v2424 = vadd.f32 0.0, %v2423
      %v2425 = vpop.f32.mrb[0].mxu0
      %2426 = vmatprep.mubr.bf16.mxu0 0
      %2427 = vmatmul.mubr.bf16.gmra.mrb[0].mxu0 %v2214
      %v2428 = vpop.f32.mrb[0].mxu0
      %v2429 = vadd.f32 0.0, %v2428
      %v2430 = vpop.f32.mrb[0].mxu0
      %v2431 = vpop.f32.mrb[0].mxu0
      %v2432 = vadd.f32 0.0, %v2431
      %v2433 = vpop.f32.mrb[0].mxu0
      %2434 = vmatprep.mubr.bf16.mxu0 0
      %2435 = vmatmul.mubr.bf16.gmra.mrb[0].mxu0 %v2217
      %v2436 = vpop.f32.mrb[0].mxu0
      %v2437 = vadd.f32 0.0, %v2436
      %v2438 = vpop.f32.mrb[0].mxu0
      %v2439 = vpop.f32.mrb[0].mxu0
      %v2440 = vadd.f32 0.0, %v2439
      %v2441 = vpop.f32.mrb[0].mxu0
      %2442 = vmatprep.mubr.bf16.mxu0 0
      %2443 = vmatmul.mubr.bf16.gmra.mrb[0].mxu0 %v2220
      %v2444 = vpop.f32.mrb[0].mxu0
      %v2445 = vadd.f32 0.0, %v2444
      %v2446 = vpop.f32.mrb[0].mxu0
      %v2447 = vpop.f32.mrb[0].mxu0
      %v2448 = vadd.f32 0.0, %v2447
      %v2449 = vpop.f32.mrb[0].mxu0
      %2450 = vdwg.mxu0
      %vm2499 = vcmask 1046528
      %v2500 = vrot.slane %v2261, 1
      %v2501 = vrot.slane %v2264, 1
      %v2502 = vsel %vm2499, %v2500, %v2501
      %v2503 = vrot.slane %v2269, 1
      %v2504 = vsel %vm2499, %v2501, %v2503
      %v2505 = vrot.slane %v2272, 1
      %v2506 = vrot.slane %v2277, 1
      %v2507 = vsel %vm2499, %v2505, %v2506
      %v2508 = vrot.slane %v2280, 1
      %v2509 = vsel %vm2499, %v2506, %v2508
      %v2510 = vrot.slane %v2285, 1
      %v2511 = vrot.slane %v2288, 1
      %v2512 = vsel %vm2499, %v2510, %v2511
      %v2513 = vrot.slane %v2293, 1
      %v2514 = vsel %vm2499, %v2511, %v2513
      %v2515 = vrot.slane %v2296, 1
      %v2516 = vrot.slane %v2301, 1
      %v2517 = vsel %vm2499, %v2515, %v2516
      %v2518 = vrot.slane %v2304, 1
      %v2519 = vsel %vm2499, %v2516, %v2518
      %v2520 = vrot.slane %v2309, 1
      %v2521 = vrot.slane %v2312, 1
      %v2522 = vsel %vm2499, %v2520, %v2521
      %v2523 = vrot.slane %v2317, 1
      %v2524 = vsel %vm2499, %v2521, %v2523
      %v2525 = vrot.slane %v2320, 1
      %v2526 = vrot.slane %v2325, 1
      %v2527 = vsel %vm2499, %v2525, %v2526
      %v2528 = vrot.slane %v2328, 1
      %v2529 = vsel %vm2499, %v2526, %v2528
      %v2530 = vrot.slane %v2333, 1
      %v2531 = vrot.slane %v2336, 1
      %v2532 = vsel %vm2499, %v2530, %v2531
      %v2533 = vrot.slane %v2341, 1
      %v2534 = vsel %vm2499, %v2531, %v2533
      %v2535 = vrot.slane %v2344, 1
      %v2536 = vrot.slane %v2349, 1
      %v2537 = vsel %vm2499, %v2535, %v2536
      %v2538 = vrot.slane %v2352, 1
      %v2539 = vsel %vm2499, %v2536, %v2538
      %v2540 = vrot.slane %v2357, 1
      %v2541 = vrot.slane %v2360, 1
      %v2542 = vsel %vm2499, %v2540, %v2541
      %v2543 = vrot.slane %v2365, 1
      %v2544 = vsel %vm2499, %v2541, %v2543
      %v2545 = vrot.slane %v2368, 1
      %v2546 = vrot.slane %v2373, 1
      %v2547 = vsel %vm2499, %v2545, %v2546
      %v2548 = vrot.slane %v2376, 1
      %v2549 = vsel %vm2499, %v2546, %v2548
      %v2550 = vrot.slane %v2381, 1
      %v2551 = vrot.slane %v2384, 1
      %v2552 = vsel %vm2499, %v2550, %v2551
      %v2553 = vrot.slane %v2389, 1
      %v2554 = vsel %vm2499, %v2551, %v2553
      %v2555 = vrot.slane %v2392, 1
      %v2556 = vrot.slane %v2397, 1
      %v2557 = vsel %vm2499, %v2555, %v2556
      %v2558 = vrot.slane %v2400, 1
      %v2559 = vsel %vm2499, %v2556, %v2558
      %v2560 = vrot.slane %v2405, 1
      %v2561 = vrot.slane %v2408, 1
      %v2562 = vsel %vm2499, %v2560, %v2561
      %v2563 = vrot.slane %v2413, 1
      %v2564 = vsel %vm2499, %v2561, %v2563
      %v2565 = vrot.slane %v2416, 1
      %v2566 = vrot.slane %v2421, 1
      %v2567 = vsel %vm2499, %v2565, %v2566
      %v2568 = vrot.slane %v2424, 1
      %v2569 = vsel %vm2499, %v2566, %v2568
      %v2570 = vrot.slane %v2429, 1
      %v2571 = vrot.slane %v2432, 1
      %v2572 = vsel %vm2499, %v2570, %v2571
      %v2573 = vrot.slane %v2437, 1
      %v2574 = vsel %vm2499, %v2571, %v2573
      %v2575 = vrot.slane %v2440, 1
      %v2576 = vrot.slane %v2445, 1
      %v2577 = vsel %vm2499, %v2575, %v2576
      %v2578 = vrot.slane %v2448, 1
      %v2579 = vsel %vm2499, %v2576, %v2578
      %2580 = vrot.lane.b32.xlu0 %v2502, 124
      %v2581 = vpop.permute.xlu0 %2580
      %2582 = vrot.lane.b32.xlu0 %v2504, 124
      %v2583 = vpop.permute.xlu0 %2582
      %2584 = vrot.lane.b32.xlu0 %v2507, 124
      %v2585 = vpop.permute.xlu0 %2584
      %2586 = vrot.lane.b32.xlu0 %v2509, 124
      %v2587 = vpop.permute.xlu0 %2586
      %2588 = vrot.lane.b32.xlu0 %v2512, 124
      %v2589 = vpop.permute.xlu0 %2588
      %2590 = vrot.lane.b32.xlu0 %v2514, 124
      %v2591 = vpop.permute.xlu0 %2590
      %2592 = vrot.lane.b32.xlu0 %v2517, 124
      %v2593 = vpop.permute.xlu0 %2592
      %2594 = vrot.lane.b32.xlu0 %v2519, 124
      %v2595 = vpop.permute.xlu0 %2594
      %2596 = vrot.lane.b32.xlu0 %v2522, 124
      %v2597 = vpop.permute.xlu0 %2596
      %2598 = vrot.lane.b32.xlu0 %v2524, 124
      %v2599 = vpop.permute.xlu0 %2598
      %2600 = vrot.lane.b32.xlu0 %v2527, 124
      %v2601 = vpop.permute.xlu0 %2600
      %2602 = vrot.lane.b32.xlu0 %v2529, 124
      %v2603 = vpop.permute.xlu0 %2602
      %2604 = vrot.lane.b32.xlu0 %v2532, 124
      %v2605 = vpop.permute.xlu0 %2604
      %2606 = vrot.lane.b32.xlu0 %v2534, 124
      %v2607 = vpop.permute.xlu0 %2606
      %2608 = vrot.lane.b32.xlu0 %v2537, 124
      %v2609 = vpop.permute.xlu0 %2608
      %2610 = vrot.lane.b32.xlu0 %v2539, 124
      %v2611 = vpop.permute.xlu0 %2610
      %2612 = vrot.lane.b32.xlu0 %v2542, 124
      %v2613 = vpop.permute.xlu0 %2612
      %2614 = vrot.lane.b32.xlu0 %v2544, 124
      %v2615 = vpop.permute.xlu0 %2614
      %2616 = vrot.lane.b32.xlu0 %v2547, 124
      %v2617 = vpop.permute.xlu0 %2616
      %2618 = vrot.lane.b32.xlu0 %v2549, 124
      %v2619 = vpop.permute.xlu0 %2618
      %2620 = vrot.lane.b32.xlu0 %v2552, 124
      %v2621 = vpop.permute.xlu0 %2620
      %2622 = vrot.lane.b32.xlu0 %v2554, 124
      %v2623 = vpop.permute.xlu0 %2622
      %2624 = vrot.lane.b32.xlu0 %v2557, 124
      %v2625 = vpop.permute.xlu0 %2624
      %2626 = vrot.lane.b32.xlu0 %v2559, 124
      %v2627 = vpop.permute.xlu0 %2626
      %2628 = vrot.lane.b32.xlu0 %v2562, 124
      %v2629 = vpop.permute.xlu0 %2628
      %2630 = vrot.lane.b32.xlu0 %v2564, 124
      %v2631 = vpop.permute.xlu0 %2630
      %2632 = vrot.lane.b32.xlu0 %v2567, 124
      %v2633 = vpop.permute.xlu0 %2632
      %2634 = vrot.lane.b32.xlu0 %v2569, 124
      %v2635 = vpop.permute.xlu0 %2634
      %2636 = vrot.lane.b32.xlu0 %v2572, 124
      %v2637 = vpop.permute.xlu0 %2636
      %2638 = vrot.lane.b32.xlu0 %v2574, 124
      %v2639 = vpop.permute.xlu0 %2638
      %2640 = vrot.lane.b32.xlu0 %v2577, 124
      %v2641 = vpop.permute.xlu0 %2640
      %2642 = vrot.lane.b32.xlu0 %v2579, 124
      %v2643 = vpop.permute.xlu0 %2642
      %v2676 = vadd.f32 %v2261, %v2581
      %v2677 = vadd.f32 %v2264, %v2583
      %v2678 = vadd.f32 %v2272, %v2585
      %v2679 = vadd.f32 %v2277, %v2587
      %v2680 = vadd.f32 %v2285, %v2589
      %v2681 = vadd.f32 %v2288, %v2591
      %v2682 = vadd.f32 %v2296, %v2593
      %v2683 = vadd.f32 %v2301, %v2595
      %v2684 = vadd.f32 %v2309, %v2597
      %v2685 = vadd.f32 %v2312, %v2599
      %v2686 = vadd.f32 %v2320, %v2601
      %v2687 = vadd.f32 %v2325, %v2603
      %v2688 = vadd.f32 %v2333, %v2605
      %v2689 = vadd.f32 %v2336, %v2607
      %v2690 = vadd.f32 %v2344, %v2609
      %v2691 = vadd.f32 %v2349, %v2611
      %v2692 = vadd.f32 %v2357, %v2613
      %v2693 = vadd.f32 %v2360, %v2615
      %v2694 = vadd.f32 %v2368, %v2617
      %v2695 = vadd.f32 %v2373, %v2619
      %v2696 = vadd.f32 %v2381, %v2621
      %v2697 = vadd.f32 %v2384, %v2623
      %v2698 = vadd.f32 %v2392, %v2625
      %v2699 = vadd.f32 %v2397, %v2627
      %v2700 = vadd.f32 %v2405, %v2629
      %v2701 = vadd.f32 %v2408, %v2631
      %v2702 = vadd.f32 %v2416, %v2633
      %v2703 = vadd.f32 %v2421, %v2635
      %v2704 = vadd.f32 %v2429, %v2637
      %v2705 = vadd.f32 %v2432, %v2639
      %v2706 = vadd.f32 %v2440, %v2641
      %v2707 = vadd.f32 %v2445, %v2643
      %vm2708 = vcmask 1045504
      %v2709 = vrot.slane %v2261, 2
      %v2710 = vrot.slane %v2264, 2
      %v2711 = vsel %vm2708, %v2709, %v2710
      %v2712 = vrot.slane %v2269, 2
      %v2713 = vsel %vm2708, %v2710, %v2712
      %v2714 = vrot.slane %v2272, 2
      %v2715 = vrot.slane %v2277, 2
      %v2716 = vsel %vm2708, %v2714, %v2715
      %v2717 = vrot.slane %v2280, 2
      %v2718 = vsel %vm2708, %v2715, %v2717
      %v2719 = vrot.slane %v2285, 2
      %v2720 = vrot.slane %v2288, 2
      %v2721 = vsel %vm2708, %v2719, %v2720
      %v2722 = vrot.slane %v2293, 2
      %v2723 = vsel %vm2708, %v2720, %v2722
      %v2724 = vrot.slane %v2296, 2
      %v2725 = vrot.slane %v2301, 2
      %v2726 = vsel %vm2708, %v2724, %v2725
      %v2727 = vrot.slane %v2304, 2
      %v2728 = vsel %vm2708, %v2725, %v2727
      %v2729 = vrot.slane %v2309, 2
      %v2730 = vrot.slane %v2312, 2
      %v2731 = vsel %vm2708, %v2729, %v2730
      %v2732 = vrot.slane %v2317, 2
      %v2733 = vsel %vm2708, %v2730, %v2732
      %v2734 = vrot.slane %v2320, 2
      %v2735 = vrot.slane %v2325, 2
      %v2736 = vsel %vm2708, %v2734, %v2735
      %v2737 = vrot.slane %v2328, 2
      %v2738 = vsel %vm2708, %v2735, %v2737
      %v2739 = vrot.slane %v2333, 2
      %v2740 = vrot.slane %v2336, 2
      %v2741 = vsel %vm2708, %v2739, %v2740
      %v2742 = vrot.slane %v2341, 2
      %v2743 = vsel %vm2708, %v2740, %v2742
      %v2744 = vrot.slane %v2344, 2
      %v2745 = vrot.slane %v2349, 2
      %v2746 = vsel %vm2708, %v2744, %v2745
      %v2747 = vrot.slane %v2352, 2
      %v2748 = vsel %vm2708, %v2745, %v2747
      %v2749 = vrot.slane %v2357, 2
      %v2750 = vrot.slane %v2360, 2
      %v2751 = vsel %vm2708, %v2749, %v2750
      %v2752 = vrot.slane %v2365, 2
      %v2753 = vsel %vm2708, %v2750, %v2752
      %v2754 = vrot.slane %v2368, 2
      %v2755 = vrot.slane %v2373, 2
      %v2756 = vsel %vm2708, %v2754, %v2755
      %v2757 = vrot.slane %v2376, 2
      %v2758 = vsel %vm2708, %v2755, %v2757
      %v2759 = vrot.slane %v2381, 2
      %v2760 = vrot.slane %v2384, 2
      %v2761 = vsel %vm2708, %v2759, %v2760
      %v2762 = vrot.slane %v2389, 2
      %v2763 = vsel %vm2708, %v2760, %v2762
      %v2764 = vrot.slane %v2392, 2
      %v2765 = vrot.slane %v2397, 2
      %v2766 = vsel %vm2708, %v2764, %v2765
      %v2767 = vrot.slane %v2400, 2
      %v2768 = vsel %vm2708, %v2765, %v2767
      %v2769 = vrot.slane %v2405, 2
      %v2770 = vrot.slane %v2408, 2
      %v2771 = vsel %vm2708, %v2769, %v2770
      %v2772 = vrot.slane %v2413, 2
      %v2773 = vsel %vm2708, %v2770, %v2772
      %v2774 = vrot.slane %v2416, 2
      %v2775 = vrot.slane %v2421, 2
      %v2776 = vsel %vm2708, %v2774, %v2775
      %v2777 = vrot.slane %v2424, 2
      %v2778 = vsel %vm2708, %v2775, %v2777
      %v2779 = vrot.slane %v2429, 2
      %v2780 = vrot.slane %v2432, 2
      %v2781 = vsel %vm2708, %v2779, %v2780
      %v2782 = vrot.slane %v2437, 2
      %v2783 = vsel %vm2708, %v2780, %v2782
      %v2784 = vrot.slane %v2440, 2
      %v2785 = vrot.slane %v2445, 2
      %v2786 = vsel %vm2708, %v2784, %v2785
      %v2787 = vrot.slane %v2448, 2
      %v2788 = vsel %vm2708, %v2785, %v2787
      %2789 = vrot.lane.b32.xlu0 %v2711, 120
      %v2790 = vpop.permute.xlu0 %2789
      %2791 = vrot.lane.b32.xlu0 %v2713, 120
      %v2792 = vpop.permute.xlu0 %2791
      %2793 = vrot.lane.b32.xlu0 %v2716, 120
      %v2794 = vpop.permute.xlu0 %2793
      %2795 = vrot.lane.b32.xlu0 %v2718, 120
      %v2796 = vpop.permute.xlu0 %2795
      %2797 = vrot.lane.b32.xlu0 %v2721, 120
      %v2798 = vpop.permute.xlu0 %2797
      %2799 = vrot.lane.b32.xlu0 %v2723, 120
      %v2800 = vpop.permute.xlu0 %2799
      %2801 = vrot.lane.b32.xlu0 %v2726, 120
      %v2802 = vpop.permute.xlu0 %2801
      %2803 = vrot.lane.b32.xlu0 %v2728, 120
      %v2804 = vpop.permute.xlu0 %2803
      %2805 = vrot.lane.b32.xlu0 %v2731, 120
      %v2806 = vpop.permute.xlu0 %2805
      %2807 = vrot.lane.b32.xlu0 %v2733, 120
      %v2808 = vpop.permute.xlu0 %2807
      %2809 = vrot.lane.b32.xlu0 %v2736, 120
      %v2810 = vpop.permute.xlu0 %2809
      %2811 = vrot.lane.b32.xlu0 %v2738, 120
      %v2812 = vpop.permute.xlu0 %2811
      %2813 = vrot.lane.b32.xlu0 %v2741, 120
      %v2814 = vpop.permute.xlu0 %2813
      %2815 = vrot.lane.b32.xlu0 %v2743, 120
      %v2816 = vpop.permute.xlu0 %2815
      %2817 = vrot.lane.b32.xlu0 %v2746, 120
      %v2818 = vpop.permute.xlu0 %2817
      %2819 = vrot.lane.b32.xlu0 %v2748, 120
      %v2820 = vpop.permute.xlu0 %2819
      %2821 = vrot.lane.b32.xlu0 %v2751, 120
      %v2822 = vpop.permute.xlu0 %2821
      %2823 = vrot.lane.b32.xlu0 %v2753, 120
      %v2824 = vpop.permute.xlu0 %2823
      %2825 = vrot.lane.b32.xlu0 %v2756, 120
      %v2826 = vpop.permute.xlu0 %2825
      %2827 = vrot.lane.b32.xlu0 %v2758, 120
      %v2828 = vpop.permute.xlu0 %2827
      %2829 = vrot.lane.b32.xlu0 %v2761, 120
      %v2830 = vpop.permute.xlu0 %2829
      %2831 = vrot.lane.b32.xlu0 %v2763, 120
      %v2832 = vpop.permute.xlu0 %2831
      %2833 = vrot.lane.b32.xlu0 %v2766, 120
      %v2834 = vpop.permute.xlu0 %2833
      %2835 = vrot.lane.b32.xlu0 %v2768, 120
      %v2836 = vpop.permute.xlu0 %2835
      %2837 = vrot.lane.b32.xlu0 %v2771, 120
      %v2838 = vpop.permute.xlu0 %2837
      %2839 = vrot.lane.b32.xlu0 %v2773, 120
      %v2840 = vpop.permute.xlu0 %2839
      %2841 = vrot.lane.b32.xlu0 %v2776, 120
      %v2842 = vpop.permute.xlu0 %2841
      %2843 = vrot.lane.b32.xlu0 %v2778, 120
      %v2844 = vpop.permute.xlu0 %2843
      %2845 = vrot.lane.b32.xlu0 %v2781, 120
      %v2846 = vpop.permute.xlu0 %2845
      %2847 = vrot.lane.b32.xlu0 %v2783, 120
      %v2848 = vpop.permute.xlu0 %2847
      %2849 = vrot.lane.b32.xlu0 %v2786, 120
      %v2850 = vpop.permute.xlu0 %2849
      %2851 = vrot.lane.b32.xlu0 %v2788, 120
      %v2852 = vpop.permute.xlu0 %2851
      %v2885 = vadd.f32 %v2676, %v2790
      %v2886 = vadd.f32 %v2677, %v2792
      %v2887 = vadd.f32 %v2678, %v2794
      %v2888 = vadd.f32 %v2679, %v2796
      %v2889 = vadd.f32 %v2680, %v2798
      %v2890 = vadd.f32 %v2681, %v2800
      %v2891 = vadd.f32 %v2682, %v2802
      %v2892 = vadd.f32 %v2683, %v2804
      %v2893 = vadd.f32 %v2684, %v2806
      %v2894 = vadd.f32 %v2685, %v2808
      %v2895 = vadd.f32 %v2686, %v2810
      %v2896 = vadd.f32 %v2687, %v2812
      %v2897 = vadd.f32 %v2688, %v2814
      %v2898 = vadd.f32 %v2689, %v2816
      %v2899 = vadd.f32 %v2690, %v2818
      %v2900 = vadd.f32 %v2691, %v2820
      %v2901 = vadd.f32 %v2692, %v2822
      %v2902 = vadd.f32 %v2693, %v2824
      %v2903 = vadd.f32 %v2694, %v2826
      %v2904 = vadd.f32 %v2695, %v2828
      %v2905 = vadd.f32 %v2696, %v2830
      %v2906 = vadd.f32 %v2697, %v2832
      %v2907 = vadd.f32 %v2698, %v2834
      %v2908 = vadd.f32 %v2699, %v2836
      %v2909 = vadd.f32 %v2700, %v2838
      %v2910 = vadd.f32 %v2701, %v2840
      %v2911 = vadd.f32 %v2702, %v2842
      %v2912 = vadd.f32 %v2703, %v2844
      %v2913 = vadd.f32 %v2704, %v2846
      %v2914 = vadd.f32 %v2705, %v2848
      %v2915 = vadd.f32 %v2706, %v2850
      %v2916 = vadd.f32 %v2707, %v2852
      %v2917 = vld [vmem:[%s1153] sm:$0xf]
      %v2918 = vld [vmem:[%s1153 + $0x4] sm:$0xf]
      %v2919 = vld [vmem:[%s1153 + $0x8] sm:$0xf]
      %v2920 = vld [vmem:[%s1153 + $0xc] sm:$0xf]
      %v2921 = vld [vmem:[%s1153 + $0x10] sm:$0xf]
      %v2922 = vld [vmem:[%s1153 + $0x14] sm:$0xf]
      %v2923 = vld [vmem:[%s1153 + $0x18] sm:$0xf]
      %v2924 = vld [vmem:[%s1153 + $0x1c] sm:$0xf]
      %v2925 = vld [vmem:[%s1153 + $0x20] sm:$0xf]
      %v2926 = vld [vmem:[%s1153 + $0x24] sm:$0xf]
      %v2927 = vld [vmem:[%s1153 + $0x28] sm:$0xf]
      %v2928 = vld [vmem:[%s1153 + $0x2c] sm:$0xf]
      %v2929 = vld [vmem:[%s1153 + $0x30] sm:$0xf]
      %v2930 = vld [vmem:[%s1153 + $0x34] sm:$0xf]
      %v2931 = vld [vmem:[%s1153 + $0x38] sm:$0xf]
      %v2932 = vld [vmem:[%s1153 + $0x3c] sm:$0xf]
      %v2933 = vld [vmem:[%s1153 + $0x40] sm:$0xf]
      %v2934 = vld [vmem:[%s1153 + $0x44] sm:$0xf]
      %v2935 = vld [vmem:[%s1153 + $0x48] sm:$0xf]
      %v2936 = vld [vmem:[%s1153 + $0x4c] sm:$0xf]
      %v2937 = vld [vmem:[%s1153 + $0x50] sm:$0xf]
      %v2938 = vld [vmem:[%s1153 + $0x54] sm:$0xf]
      %v2939 = vld [vmem:[%s1153 + $0x58] sm:$0xf]
      %v2940 = vld [vmem:[%s1153 + $0x5c] sm:$0xf]
      %v2941 = vld [vmem:[%s1153 + $0x60] sm:$0xf]
      %v2942 = vld [vmem:[%s1153 + $0x64] sm:$0xf]
      %v2943 = vld [vmem:[%s1153 + $0x68] sm:$0xf]
      %v2944 = vld [vmem:[%s1153 + $0x6c] sm:$0xf]
      %v2945 = vld [vmem:[%s1153 + $0x70] sm:$0xf]
      %v2946 = vld [vmem:[%s1153 + $0x74] sm:$0xf]
      %v2947 = vld [vmem:[%s1153 + $0x78] sm:$0xf]
      %v2948 = vld [vmem:[%s1153 + $0x7c] sm:$0xf]
      %v2949 = vld [vmem:[%s1153 + $0x80] sm:$0xf]
      %v2950 = vld [vmem:[%s1153 + $0x84] sm:$0xf]
      %v2951 = vld [vmem:[%s1153 + $0x88] sm:$0xf]
      %v2952 = vld [vmem:[%s1153 + $0x8c] sm:$0xf]
      %v2953 = vld [vmem:[%s1153 + $0x90] sm:$0xf]
      %v2954 = vld [vmem:[%s1153 + $0x94] sm:$0xf]
      %v2955 = vld [vmem:[%s1153 + $0x98] sm:$0xf]
      %v2956 = vld [vmem:[%s1153 + $0x9c] sm:$0xf]
      %v2957 = vld [vmem:[%s1153 + $0xa0] sm:$0xf]
      %v2958 = vld [vmem:[%s1153 + $0xa4] sm:$0xf]
      %v2959 = vld [vmem:[%s1153 + $0xa8] sm:$0xf]
      %v2960 = vld [vmem:[%s1153 + $0xac] sm:$0xf]
      %v2961 = vld [vmem:[%s1153 + $0xb0] sm:$0xf]
      %v2962 = vld [vmem:[%s1153 + $0xb4] sm:$0xf]
      %v2963 = vld [vmem:[%s1153 + $0xb8] sm:$0xf]
      %v2964 = vld [vmem:[%s1153 + $0xbc] sm:$0xf]
      %s2965 = scalar_lea.vmem %s6, 4
      %v2966 = vld [vmem:[%s2965] sm:$0xf]
      %v3015 = vunpack.c.l.b16 %v2917
      %v3016 = vunpack.c.l.b16 %v2918
      %v3017 = vunpack.c.l.b16 %v2919
      %v3018 = vunpack.c.l.b16 %v2920
      %v3019 = vunpack.c.l.b16 %v2921
      %v3020 = vunpack.c.l.b16 %v2922
      %v3021 = vunpack.c.l.b16 %v2923
      %v3022 = vunpack.c.l.b16 %v2924
      %v3023 = vunpack.c.l.b16 %v2925
      %v3024 = vunpack.c.l.b16 %v2926
      %v3025 = vunpack.c.l.b16 %v2927
      %v3026 = vunpack.c.l.b16 %v2928
      %v3027 = vunpack.c.l.b16 %v2929
      %v3028 = vunpack.c.l.b16 %v2930
      %v3029 = vunpack.c.l.b16 %v2931
      %v3030 = vunpack.c.l.b16 %v2932
      %v3031 = vunpack.c.l.b16 %v2933
      %v3032 = vunpack.c.l.b16 %v2934
      %v3033 = vunpack.c.l.b16 %v2935
      %v3034 = vunpack.c.l.b16 %v2936
      %v3035 = vunpack.c.l.b16 %v2937
      %v3036 = vunpack.c.l.b16 %v2938
      %v3037 = vunpack.c.l.b16 %v2939
      %v3038 = vunpack.c.l.b16 %v2940
      %v3039 = vunpack.c.l.b16 %v2941
      %v3040 = vunpack.c.l.b16 %v2942
      %v3041 = vunpack.c.l.b16 %v2943
      %v3042 = vunpack.c.l.b16 %v2944
      %v3043 = vunpack.c.l.b16 %v2945
      %v3044 = vunpack.c.l.b16 %v2946
      %v3045 = vunpack.c.l.b16 %v2947
      %v3046 = vunpack.c.l.b16 %v2948
      %v3047 = vunpack.c.l.b16 %v2949
      %v3048 = vunpack.c.l.b16 %v2950
      %v3049 = vunpack.c.l.b16 %v2951
      %v3050 = vunpack.c.l.b16 %v2952
      %v3051 = vunpack.c.l.b16 %v2953
      %v3052 = vunpack.c.l.b16 %v2954
      %v3053 = vunpack.c.l.b16 %v2955
      %v3054 = vunpack.c.l.b16 %v2956
      %v3055 = vunpack.c.l.b16 %v2957
      %v3056 = vunpack.c.l.b16 %v2958
      %v3057 = vunpack.c.l.b16 %v2959
      %v3058 = vunpack.c.l.b16 %v2960
      %v3059 = vunpack.c.l.b16 %v2961
      %v3060 = vunpack.c.l.b16 %v2962
      %v3061 = vunpack.c.l.b16 %v2963
      %v3062 = vunpack.c.l.b16 %v2964
      %v3063 = vpack.c.b16 %v3016, %v3015
      %v3064 = vpack.c.b16 %v3018, %v3017
      %v3065 = vpack.c.b16 %v3020, %v3019
      %v3066 = vpack.c.b16 %v3022, %v3021
      %v3067 = vpack.c.b16 %v3024, %v3023
      %v3068 = vpack.c.b16 %v3026, %v3025
      %v3069 = vpack.c.b16 %v3028, %v3027
      %v3070 = vpack.c.b16 %v3030, %v3029
      %v3071 = vpack.c.b16 %v3032, %v3031
      %v3072 = vpack.c.b16 %v3034, %v3033
      %v3073 = vpack.c.b16 %v3036, %v3035
      %v3074 = vpack.c.b16 %v3038, %v3037
      %v3075 = vpack.c.b16 %v3040, %v3039
      %v3076 = vpack.c.b16 %v3042, %v3041
      %v3077 = vpack.c.b16 %v3044, %v3043
      %v3078 = vpack.c.b16 %v3046, %v3045
      %v3079 = vpack.c.b16 %v3048, %v3047
      %v3080 = vpack.c.b16 %v3050, %v3049
      %v3081 = vpack.c.b16 %v3052, %v3051
      %v3082 = vpack.c.b16 %v3054, %v3053
      %v3083 = vpack.c.b16 %v3056, %v3055
      %v3084 = vpack.c.b16 %v3058, %v3057
      %v3085 = vpack.c.b16 %v3060, %v3059
      %v3086 = vpack.c.b16 %v3062, %v3061
      %v3088 = vsel %vm2149, %v3063, 0
      %v3091 = vsel %vm2149, %v3064, 0
      %v3094 = vsel %vm2149, %v3065, 0
      %v3097 = vsel %vm2149, %v3066, 0
      %v3100 = vsel %vm2149, %v3067, 0
      %v3103 = vsel %vm2149, %v3068, 0
      %v3106 = vsel %vm2149, %v3069, 0
      %v3109 = vsel %vm2149, %v3070, 0
      %v3112 = vsel %vm2149, %v3071, 0
      %v3115 = vsel %vm2149, %v3072, 0
      %v3118 = vsel %vm2149, %v3073, 0
      %v3121 = vsel %vm2149, %v3074, 0
      %v3124 = vsel %vm2149, %v3075, 0
      %v3127 = vsel %vm2149, %v3076, 0
      %v3130 = vsel %vm2149, %v3077, 0
      %v3133 = vsel %vm2149, %v3078, 0
      %v3136 = vsel %vm2149, %v3079, 0
      %v3139 = vsel %vm2149, %v3080, 0
      %v3142 = vsel %vm2149, %v3081, 0
      %v3145 = vsel %vm2149, %v3082, 0
      %v3148 = vsel %vm2149, %v3083, 0
      %v3151 = vsel %vm2149, %v3084, 0
      %v3154 = vsel %vm2149, %v3085, 0
      %v3157 = vsel %vm2149, %v3086, 0
      %v3160 = vsel %vm2222, %v2966, 0
      %3162 = vmatprep.subr.bf16.mxu0 0
      %3163 = vmatpush1.bf16.msra.mxu0 %v3160
      %3164 = vmatprep.subr.bf16.mxu0 0
      %3165 = vmatpush1.bf16.msra.mxu0 0
      %3166 = vmatprep.subr.bf16.mxu0 0
      %3167 = vmatpush1.bf16.msra.mxu0 0
      %3168 = vmatprep.subr.bf16.mxu0 0
      %3169 = vmatpush1.bf16.msra.mxu0 0
      %3170 = vmatprep.subr.bf16.mxu0 0
      %3171 = vmatpush1.bf16.msra.mxu0 0
      %3172 = vmatprep.subr.bf16.mxu0 0
      %3173 = vmatpush1.bf16.msra.mxu0 0
      %3174 = vmatprep.subr.bf16.mxu0 0
      %3175 = vmatpush1.bf16.msra.mxu0 0
      %3176 = vmatprep.subr.bf16.mxu0 0
      %3177 = vmatpush1.bf16.msra.mxu0 0
      %3178 = vmatprep.subr.bf16.mxu0 0
      %3179 = vmatpush1.bf16.msra.mxu0 0
      %3180 = vmatprep.subr.bf16.mxu0 0
      %3181 = vmatpush1.bf16.msra.mxu0 0
      %3182 = vmatprep.subr.bf16.mxu0 0
      %3183 = vmatpush1.bf16.msra.mxu0 0
      %3184 = vmatprep.subr.bf16.mxu0 0
      %3185 = vmatpush1.bf16.msra.mxu0 0
      %3186 = vmatprep.subr.bf16.mxu0 0
      %3187 = vmatpush1.bf16.msra.mxu0 0
      %3188 = vmatprep.subr.bf16.mxu0 0
      %3189 = vmatpush1.bf16.msra.mxu0 0
      %3190 = vmatprep.subr.bf16.mxu0 0
      %3191 = vmatpush1.bf16.msra.mxu0 0
      %3192 = vmatprep.subr.bf16.mxu0 0
      %3193 = vmatpush1.bf16.msra.mxu0 0
      %3194 = vmatprep.mubr.bf16.mxu0 0
      %3195 = vmatmul.mubr.bf16.gmra.mrb[0].mxu0 %v3088
      %v3196 = vpop.f32.mrb[0].mxu0
      %v3197 = vadd.f32 0.0, %v3196
      %v3198 = vpop.f32.mrb[0].mxu0
      %v3199 = vpop.f32.mrb[0].mxu0
      %v3200 = vadd.f32 0.0, %v3199
      %v3201 = vpop.f32.mrb[0].mxu0
      %3202 = vmatprep.mubr.bf16.mxu0 0
      %3203 = vmatmul.mubr.bf16.gmra.mrb[0].mxu0 %v3091
      %v3204 = vpop.f32.mrb[0].mxu0
      %v3205 = vadd.f32 0.0, %v3204
      %v3206 = vpop.f32.mrb[0].mxu0
      %v3207 = vpop.f32.mrb[0].mxu0
      %v3208 = vadd.f32 0.0, %v3207
      %v3209 = vpop.f32.mrb[0].mxu0
      %3210 = vmatprep.mubr.bf16.mxu0 0
      %3211 = vmatmul.mubr.bf16.gmra.mrb[0].mxu0 %v3094
      %v3212 = vpop.f32.mrb[0].mxu0
      %v3213 = vadd.f32 0.0, %v3212
      %v3214 = vpop.f32.mrb[0].mxu0
      %v3215 = vpop.f32.mrb[0].mxu0
      %v3216 = vadd.f32 0.0, %v3215
      %v3217 = vpop.f32.mrb[0].mxu0
      %3218 = vmatprep.mubr.bf16.mxu0 0
      %3219 = vmatmul.mubr.bf16.gmra.mrb[0].mxu0 %v3097
      %v3220 = vpop.f32.mrb[0].mxu0
      %v3221 = vadd.f32 0.0, %v3220
      %v3222 = vpop.f32.mrb[0].mxu0
      %v3223 = vpop.f32.mrb[0].mxu0
      %v3224 = vadd.f32 0.0, %v3223
      %v3225 = vpop.f32.mrb[0].mxu0
      %3226 = vmatprep.mubr.bf16.mxu0 0
      %3227 = vmatmul.mubr.bf16.gmra.mrb[0].mxu0 %v3100
      %v3228 = vpop.f32.mrb[0].mxu0
      %v3229 = vadd.f32 0.0, %v3228
      %v3230 = vpop.f32.mrb[0].mxu0
      %v3231 = vpop.f32.mrb[0].mxu0
      %v3232 = vadd.f32 0.0, %v3231
      %v3233 = vpop.f32.mrb[0].mxu0
      %3234 = vmatprep.mubr.bf16.mxu0 0
      %3235 = vmatmul.mubr.bf16.gmra.mrb[0].mxu0 %v3103
      %v3236 = vpop.f32.mrb[0].mxu0
      %v3237 = vadd.f32 0.0, %v3236
      %v3238 = vpop.f32.mrb[0].mxu0
      %v3239 = vpop.f32.mrb[0].mxu0
      %v3240 = vadd.f32 0.0, %v3239
      %v3241 = vpop.f32.mrb[0].mxu0
      %3242 = vmatprep.mubr.bf16.mxu0 0
      %3243 = vmatmul.mubr.bf16.gmra.mrb[0].mxu0 %v3106
      %v3244 = vpop.f32.mrb[0].mxu0
      %v3245 = vadd.f32 0.0, %v3244
      %v3246 = vpop.f32.mrb[0].mxu0
      %v3247 = vpop.f32.mrb[0].mxu0
      %v3248 = vadd.f32 0.0, %v3247
      %v3249 = vpop.f32.mrb[0].mxu0
      %3250 = vmatprep.mubr.bf16.mxu0 0
      %3251 = vmatmul.mubr.bf16.gmra.mrb[0].mxu0 %v3109
      %v3252 = vpop.f32.mrb[0].mxu0
      %v3253 = vadd.f32 0.0, %v3252
      %v3254 = vpop.f32.mrb[0].mxu0
      %v3255 = vpop.f32.mrb[0].mxu0
      %v3256 = vadd.f32 0.0, %v3255
      %v3257 = vpop.f32.mrb[0].mxu0
      %3258 = vmatprep.mubr.bf16.mxu0 0
      %3259 = vmatmul.mubr.bf16.gmra.mrb[0].mxu0 %v3112
      %v3260 = vpop.f32.mrb[0].mxu0
      %v3261 = vadd.f32 0.0, %v3260
      %v3262 = vpop.f32.mrb[0].mxu0
      %v3263 = vpop.f32.mrb[0].mxu0
      %v3264 = vadd.f32 0.0, %v3263
      %v3265 = vpop.f32.mrb[0].mxu0
      %3266 = vmatprep.mubr.bf16.mxu0 0
      %3267 = vmatmul.mubr.bf16.gmra.mrb[0].mxu0 %v3115
      %v3268 = vpop.f32.mrb[0].mxu0
      %v3269 = vadd.f32 0.0, %v3268
      %v3270 = vpop.f32.mrb[0].mxu0
      %v3271 = vpop.f32.mrb[0].mxu0
      %v3272 = vadd.f32 0.0, %v3271
      %v3273 = vpop.f32.mrb[0].mxu0
      %3274 = vmatprep.mubr.bf16.mxu0 0
      %3275 = vmatmul.mubr.bf16.gmra.mrb[0].mxu0 %v3118
      %v3276 = vpop.f32.mrb[0].mxu0
      %v3277 = vadd.f32 0.0, %v3276
      %v3278 = vpop.f32.mrb[0].mxu0
      %v3279 = vpop.f32.mrb[0].mxu0
      %v3280 = vadd.f32 0.0, %v3279
      %v3281 = vpop.f32.mrb[0].mxu0
      %3282 = vmatprep.mubr.bf16.mxu0 0
      %3283 = vmatmul.mubr.bf16.gmra.mrb[0].mxu0 %v3121
      %v3284 = vpop.f32.mrb[0].mxu0
      %v3285 = vadd.f32 0.0, %v3284
      %v3286 = vpop.f32.mrb[0].mxu0
      %v3287 = vpop.f32.mrb[0].mxu0
      %v3288 = vadd.f32 0.0, %v3287
      %v3289 = vpop.f32.mrb[0].mxu0
      %3290 = vmatprep.mubr.bf16.mxu0 0
      %3291 = vmatmul.mubr.bf16.gmra.mrb[0].mxu0 %v3124
      %v3292 = vpop.f32.mrb[0].mxu0
      %v3293 = vadd.f32 0.0, %v3292
      %v3294 = vpop.f32.mrb[0].mxu0
      %v3295 = vpop.f32.mrb[0].mxu0
      %v3296 = vadd.f32 0.0, %v3295
      %v3297 = vpop.f32.mrb[0].mxu0
      %3298 = vmatprep.mubr.bf16.mxu0 0
      %3299 = vmatmul.mubr.bf16.gmra.mrb[0].mxu0 %v3127
      %v3300 = vpop.f32.mrb[0].mxu0
      %v3301 = vadd.f32 0.0, %v3300
      %v3302 = vpop.f32.mrb[0].mxu0
      %v3303 = vpop.f32.mrb[0].mxu0
      %v3304 = vadd.f32 0.0, %v3303
      %v3305 = vpop.f32.mrb[0].mxu0
      %3306 = vmatprep.mubr.bf16.mxu0 0
      %3307 = vmatmul.mubr.bf16.gmra.mrb[0].mxu0 %v3130
      %v3308 = vpop.f32.mrb[0].mxu0
      %v3309 = vadd.f32 0.0, %v3308
      %v3310 = vpop.f32.mrb[0].mxu0
      %v3311 = vpop.f32.mrb[0].mxu0
      %v3312 = vadd.f32 0.0, %v3311
      %v3313 = vpop.f32.mrb[0].mxu0
      %3314 = vmatprep.mubr.bf16.mxu0 0
      %3315 = vmatmul.mubr.bf16.gmra.mrb[0].mxu0 %v3133
      %v3316 = vpop.f32.mrb[0].mxu0
      %v3317 = vadd.f32 0.0, %v3316
      %v3318 = vpop.f32.mrb[0].mxu0
      %v3319 = vpop.f32.mrb[0].mxu0
      %v3320 = vadd.f32 0.0, %v3319
      %v3321 = vpop.f32.mrb[0].mxu0
      %3322 = vmatprep.mubr.bf16.mxu0 0
      %3323 = vmatmul.mubr.bf16.gmra.mrb[0].mxu0 %v3136
      %v3324 = vpop.f32.mrb[0].mxu0
      %v3325 = vadd.f32 0.0, %v3324
      %v3326 = vpop.f32.mrb[0].mxu0
      %v3327 = vpop.f32.mrb[0].mxu0
      %v3328 = vadd.f32 0.0, %v3327
      %v3329 = vpop.f32.mrb[0].mxu0
      %3330 = vmatprep.mubr.bf16.mxu0 0
      %3331 = vmatmul.mubr.bf16.gmra.mrb[0].mxu0 %v3139
      %v3332 = vpop.f32.mrb[0].mxu0
      %v3333 = vadd.f32 0.0, %v3332
      %v3334 = vpop.f32.mrb[0].mxu0
      %v3335 = vpop.f32.mrb[0].mxu0
      %v3336 = vadd.f32 0.0, %v3335
      %v3337 = vpop.f32.mrb[0].mxu0
      %3338 = vmatprep.mubr.bf16.mxu0 0
      %3339 = vmatmul.mubr.bf16.gmra.mrb[0].mxu0 %v3142
      %v3340 = vpop.f32.mrb[0].mxu0
      %v3341 = vadd.f32 0.0, %v3340
      %v3342 = vpop.f32.mrb[0].mxu0
      %v3343 = vpop.f32.mrb[0].mxu0
      %v3344 = vadd.f32 0.0, %v3343
      %v3345 = vpop.f32.mrb[0].mxu0
      %3346 = vmatprep.mubr.bf16.mxu0 0
      %3347 = vmatmul.mubr.bf16.gmra.mrb[0].mxu0 %v3145
      %v3348 = vpop.f32.mrb[0].mxu0
      %v3349 = vadd.f32 0.0, %v3348
      %v3350 = vpop.f32.mrb[0].mxu0
      %v3351 = vpop.f32.mrb[0].mxu0
      %v3352 = vadd.f32 0.0, %v3351
      %v3353 = vpop.f32.mrb[0].mxu0
      %3354 = vmatprep.mubr.bf16.mxu0 0
      %3355 = vmatmul.mubr.bf16.gmra.mrb[0].mxu0 %v3148
      %v3356 = vpop.f32.mrb[0].mxu0
      %v3357 = vadd.f32 0.0, %v3356
      %v3358 = vpop.f32.mrb[0].mxu0
      %v3359 = vpop.f32.mrb[0].mxu0
      %v3360 = vadd.f32 0.0, %v3359
      %v3361 = vpop.f32.mrb[0].mxu0
      %3362 = vmatprep.mubr.bf16.mxu0 0
      %3363 = vmatmul.mubr.bf16.gmra.mrb[0].mxu0 %v3151
      %v3364 = vpop.f32.mrb[0].mxu0
      %v3365 = vadd.f32 0.0, %v3364
      %v3366 = vpop.f32.mrb[0].mxu0
      %v3367 = vpop.f32.mrb[0].mxu0
      %v3368 = vadd.f32 0.0, %v3367
      %v3369 = vpop.f32.mrb[0].mxu0
      %3370 = vmatprep.mubr.bf16.mxu0 0
      %3371 = vmatmul.mubr.bf16.gmra.mrb[0].mxu0 %v3154
      %v3372 = vpop.f32.mrb[0].mxu0
      %v3373 = vadd.f32 0.0, %v3372
      %v3374 = vpop.f32.mrb[0].mxu0
      %v3375 = vpop.f32.mrb[0].mxu0
      %v3376 = vadd.f32 0.0, %v3375
      %v3377 = vpop.f32.mrb[0].mxu0
      %3378 = vmatprep.mubr.bf16.mxu0 0
      %3379 = vmatmul.mubr.bf16.gmra.mrb[0].mxu0 %v3157
      %v3380 = vpop.f32.mrb[0].mxu0
      %v3381 = vadd.f32 0.0, %v3380
      %v3382 = vpop.f32.mrb[0].mxu0
      %v3383 = vpop.f32.mrb[0].mxu0
      %v3384 = vadd.f32 0.0, %v3383
      %v3385 = vpop.f32.mrb[0].mxu0
      %3386 = vdwg.mxu0
      %v3435 = vrot.slane %v3197, 1
      %v3436 = vrot.slane %v3200, 1
      %v3437 = vsel %vm2499, %v3435, %v3436
      %v3438 = vrot.slane %v3205, 1
      %v3439 = vsel %vm2499, %v3436, %v3438
      %v3440 = vrot.slane %v3208, 1
      %v3441 = vrot.slane %v3213, 1
      %v3442 = vsel %vm2499, %v3440, %v3441
      %v3443 = vrot.slane %v3216, 1
      %v3444 = vsel %vm2499, %v3441, %v3443
      %v3445 = vrot.slane %v3221, 1
      %v3446 = vrot.slane %v3224, 1
      %v3447 = vsel %vm2499, %v3445, %v3446
      %v3448 = vrot.slane %v3229, 1
      %v3449 = vsel %vm2499, %v3446, %v3448
      %v3450 = vrot.slane %v3232, 1
      %v3451 = vrot.slane %v3237, 1
      %v3452 = vsel %vm2499, %v3450, %v3451
      %v3453 = vrot.slane %v3240, 1
      %v3454 = vsel %vm2499, %v3451, %v3453
      %v3455 = vrot.slane %v3245, 1
      %v3456 = vrot.slane %v3248, 1
      %v3457 = vsel %vm2499, %v3455, %v3456
      %v3458 = vrot.slane %v3253, 1
      %v3459 = vsel %vm2499, %v3456, %v3458
      %v3460 = vrot.slane %v3256, 1
      %v3461 = vrot.slane %v3261, 1
      %v3462 = vsel %vm2499, %v3460, %v3461
      %v3463 = vrot.slane %v3264, 1
      %v3464 = vsel %vm2499, %v3461, %v3463
      %v3465 = vrot.slane %v3269, 1
      %v3466 = vrot.slane %v3272, 1
      %v3467 = vsel %vm2499, %v3465, %v3466
      %v3468 = vrot.slane %v3277, 1
      %v3469 = vsel %vm2499, %v3466, %v3468
      %v3470 = vrot.slane %v3280, 1
      %v3471 = vrot.slane %v3285, 1
      %v3472 = vsel %vm2499, %v3470, %v3471
      %v3473 = vrot.slane %v3288, 1
      %v3474 = vsel %vm2499, %v3471, %v3473
      %v3475 = vrot.slane %v3293, 1
      %v3476 = vrot.slane %v3296, 1
      %v3477 = vsel %vm2499, %v3475, %v3476
      %v3478 = vrot.slane %v3301, 1
      %v3479 = vsel %vm2499, %v3476, %v3478
      %v3480 = vrot.slane %v3304, 1
      %v3481 = vrot.slane %v3309, 1
      %v3482 = vsel %vm2499, %v3480, %v3481
      %v3483 = vrot.slane %v3312, 1
      %v3484 = vsel %vm2499, %v3481, %v3483
      %v3485 = vrot.slane %v3317, 1
      %v3486 = vrot.slane %v3320, 1
      %v3487 = vsel %vm2499, %v3485, %v3486
      %v3488 = vrot.slane %v3325, 1
      %v3489 = vsel %vm2499, %v3486, %v3488
      %v3490 = vrot.slane %v3328, 1
      %v3491 = vrot.slane %v3333, 1
      %v3492 = vsel %vm2499, %v3490, %v3491
      %v3493 = vrot.slane %v3336, 1
      %v3494 = vsel %vm2499, %v3491, %v3493
      %v3495 = vrot.slane %v3341, 1
      %v3496 = vrot.slane %v3344, 1
      %v3497 = vsel %vm2499, %v3495, %v3496
      %v3498 = vrot.slane %v3349, 1
      %v3499 = vsel %vm2499, %v3496, %v3498
      %v3500 = vrot.slane %v3352, 1
      %v3501 = vrot.slane %v3357, 1
      %v3502 = vsel %vm2499, %v3500, %v3501
      %v3503 = vrot.slane %v3360, 1
      %v3504 = vsel %vm2499, %v3501, %v3503
      %v3505 = vrot.slane %v3365, 1
      %v3506 = vrot.slane %v3368, 1
      %v3507 = vsel %vm2499, %v3505, %v3506
      %v3508 = vrot.slane %v3373, 1
      %v3509 = vsel %vm2499, %v3506, %v3508
      %v3510 = vrot.slane %v3376, 1
      %v3511 = vrot.slane %v3381, 1
      %v3512 = vsel %vm2499, %v3510, %v3511
      %v3513 = vrot.slane %v3384, 1
      %v3514 = vsel %vm2499, %v3511, %v3513
      %3515 = vrot.lane.b32.xlu0 %v3437, 124
      %v3516 = vpop.permute.xlu0 %3515
      %3517 = vrot.lane.b32.xlu0 %v3439, 124
      %v3518 = vpop.permute.xlu0 %3517
      %3519 = vrot.lane.b32.xlu0 %v3442, 124
      %v3520 = vpop.permute.xlu0 %3519
      %3521 = vrot.lane.b32.xlu0 %v3444, 124
      %v3522 = vpop.permute.xlu0 %3521
      %3523 = vrot.lane.b32.xlu0 %v3447, 124
      %v3524 = vpop.permute.xlu0 %3523
      %3525 = vrot.lane.b32.xlu0 %v3449, 124
      %v3526 = vpop.permute.xlu0 %3525
      %3527 = vrot.lane.b32.xlu0 %v3452, 124
      %v3528 = vpop.permute.xlu0 %3527
      %3529 = vrot.lane.b32.xlu0 %v3454, 124
      %v3530 = vpop.permute.xlu0 %3529
      %3531 = vrot.lane.b32.xlu0 %v3457, 124
      %v3532 = vpop.permute.xlu0 %3531
      %3533 = vrot.lane.b32.xlu0 %v3459, 124
      %v3534 = vpop.permute.xlu0 %3533
      %3535 = vrot.lane.b32.xlu0 %v3462, 124
      %v3536 = vpop.permute.xlu0 %3535
      %3537 = vrot.lane.b32.xlu0 %v3464, 124
      %v3538 = vpop.permute.xlu0 %3537
      %3539 = vrot.lane.b32.xlu0 %v3467, 124
      %v3540 = vpop.permute.xlu0 %3539
      %3541 = vrot.lane.b32.xlu0 %v3469, 124
      %v3542 = vpop.permute.xlu0 %3541
      %3543 = vrot.lane.b32.xlu0 %v3472, 124
      %v3544 = vpop.permute.xlu0 %3543
      %3545 = vrot.lane.b32.xlu0 %v3474, 124
      %v3546 = vpop.permute.xlu0 %3545
      %3547 = vrot.lane.b32.xlu0 %v3477, 124
      %v3548 = vpop.permute.xlu0 %3547
      %3549 = vrot.lane.b32.xlu0 %v3479, 124
      %v3550 = vpop.permute.xlu0 %3549
      %3551 = vrot.lane.b32.xlu0 %v3482, 124
      %v3552 = vpop.permute.xlu0 %3551
      %3553 = vrot.lane.b32.xlu0 %v3484, 124
      %v3554 = vpop.permute.xlu0 %3553
      %3555 = vrot.lane.b32.xlu0 %v3487, 124
      %v3556 = vpop.permute.xlu0 %3555
      %3557 = vrot.lane.b32.xlu0 %v3489, 124
      %v3558 = vpop.permute.xlu0 %3557
      %3559 = vrot.lane.b32.xlu0 %v3492, 124
      %v3560 = vpop.permute.xlu0 %3559
      %3561 = vrot.lane.b32.xlu0 %v3494, 124
      %v3562 = vpop.permute.xlu0 %3561
      %3563 = vrot.lane.b32.xlu0 %v3497, 124
      %v3564 = vpop.permute.xlu0 %3563
      %3565 = vrot.lane.b32.xlu0 %v3499, 124
      %v3566 = vpop.permute.xlu0 %3565
      %3567 = vrot.lane.b32.xlu0 %v3502, 124
      %v3568 = vpop.permute.xlu0 %3567
      %3569 = vrot.lane.b32.xlu0 %v3504, 124
      %v3570 = vpop.permute.xlu0 %3569
      %3571 = vrot.lane.b32.xlu0 %v3507, 124
      %v3572 = vpop.permute.xlu0 %3571
      %3573 = vrot.lane.b32.xlu0 %v3509, 124
      %v3574 = vpop.permute.xlu0 %3573
      %3575 = vrot.lane.b32.xlu0 %v3512, 124
      %v3576 = vpop.permute.xlu0 %3575
      %3577 = vrot.lane.b32.xlu0 %v3514, 124
      %v3578 = vpop.permute.xlu0 %3577
      %v3611 = vadd.f32 %v3197, %v3516
      %v3612 = vadd.f32 %v3200, %v3518
      %v3613 = vadd.f32 %v3208, %v3520
      %v3614 = vadd.f32 %v3213, %v3522
      %v3615 = vadd.f32 %v3221, %v3524
      %v3616 = vadd.f32 %v3224, %v3526
      %v3617 = vadd.f32 %v3232, %v3528
      %v3618 = vadd.f32 %v3237, %v3530
      %v3619 = vadd.f32 %v3245, %v3532
      %v3620 = vadd.f32 %v3248, %v3534
      %v3621 = vadd.f32 %v3256, %v3536
      %v3622 = vadd.f32 %v3261, %v3538
      %v3623 = vadd.f32 %v3269, %v3540
      %v3624 = vadd.f32 %v3272, %v3542
      %v3625 = vadd.f32 %v3280, %v3544
      %v3626 = vadd.f32 %v3285, %v3546
      %v3627 = vadd.f32 %v3293, %v3548
      %v3628 = vadd.f32 %v3296, %v3550
      %v3629 = vadd.f32 %v3304, %v3552
      %v3630 = vadd.f32 %v3309, %v3554
      %v3631 = vadd.f32 %v3317, %v3556
      %v3632 = vadd.f32 %v3320, %v3558
      %v3633 = vadd.f32 %v3328, %v3560
      %v3634 = vadd.f32 %v3333, %v3562
      %v3635 = vadd.f32 %v3341, %v3564
      %v3636 = vadd.f32 %v3344, %v3566
      %v3637 = vadd.f32 %v3352, %v3568
      %v3638 = vadd.f32 %v3357, %v3570
      %v3639 = vadd.f32 %v3365, %v3572
      %v3640 = vadd.f32 %v3368, %v3574
      %v3641 = vadd.f32 %v3376, %v3576
      %v3642 = vadd.f32 %v3381, %v3578
      %v3643 = vrot.slane %v3197, 2
      %v3644 = vrot.slane %v3200, 2
      %v3645 = vsel %vm2708, %v3643, %v3644
      %v3646 = vrot.slane %v3205, 2
      %v3647 = vsel %vm2708, %v3644, %v3646
      %v3648 = vrot.slane %v3208, 2
      %v3649 = vrot.slane %v3213, 2
      %v3650 = vsel %vm2708, %v3648, %v3649
      %v3651 = vrot.slane %v3216, 2
      %v3652 = vsel %vm2708, %v3649, %v3651
      %v3653 = vrot.slane %v3221, 2
      %v3654 = vrot.slane %v3224, 2
      %v3655 = vsel %vm2708, %v3653, %v3654
      %v3656 = vrot.slane %v3229, 2
      %v3657 = vsel %vm2708, %v3654, %v3656
      %v3658 = vrot.slane %v3232, 2
      %v3659 = vrot.slane %v3237, 2
      %v3660 = vsel %vm2708, %v3658, %v3659
      %v3661 = vrot.slane %v3240, 2
      %v3662 = vsel %vm2708, %v3659, %v3661
      %v3663 = vrot.slane %v3245, 2
      %v3664 = vrot.slane %v3248, 2
      %v3665 = vsel %vm2708, %v3663, %v3664
      %v3666 = vrot.slane %v3253, 2
      %v3667 = vsel %vm2708, %v3664, %v3666
      %v3668 = vrot.slane %v3256, 2
      %v3669 = vrot.slane %v3261, 2
      %v3670 = vsel %vm2708, %v3668, %v3669
      %v3671 = vrot.slane %v3264, 2
      %v3672 = vsel %vm2708, %v3669, %v3671
      %v3673 = vrot.slane %v3269, 2
      %v3674 = vrot.slane %v3272, 2
      %v3675 = vsel %vm2708, %v3673, %v3674
      %v3676 = vrot.slane %v3277, 2
      %v3677 = vsel %vm2708, %v3674, %v3676
      %v3678 = vrot.slane %v3280, 2
      %v3679 = vrot.slane %v3285, 2
      %v3680 = vsel %vm2708, %v3678, %v3679
      %v3681 = vrot.slane %v3288, 2
      %v3682 = vsel %vm2708, %v3679, %v3681
      %v3683 = vrot.slane %v3293, 2
      %v3684 = vrot.slane %v3296, 2
      %v3685 = vsel %vm2708, %v3683, %v3684
      %v3686 = vrot.slane %v3301, 2
      %v3687 = vsel %vm2708, %v3684, %v3686
      %v3688 = vrot.slane %v3304, 2
      %v3689 = vrot.slane %v3309, 2
      %v3690 = vsel %vm2708, %v3688, %v3689
      %v3691 = vrot.slane %v3312, 2
      %v3692 = vsel %vm2708, %v3689, %v3691
      %v3693 = vrot.slane %v3317, 2
      %v3694 = vrot.slane %v3320, 2
      %v3695 = vsel %vm2708, %v3693, %v3694
      %v3696 = vrot.slane %v3325, 2
      %v3697 = vsel %vm2708, %v3694, %v3696
      %v3698 = vrot.slane %v3328, 2
      %v3699 = vrot.slane %v3333, 2
      %v3700 = vsel %vm2708, %v3698, %v3699
      %v3701 = vrot.slane %v3336, 2
      %v3702 = vsel %vm2708, %v3699, %v3701
      %v3703 = vrot.slane %v3341, 2
      %v3704 = vrot.slane %v3344, 2
      %v3705 = vsel %vm2708, %v3703, %v3704
      %v3706 = vrot.slane %v3349, 2
      %v3707 = vsel %vm2708, %v3704, %v3706
      %v3708 = vrot.slane %v3352, 2
      %v3709 = vrot.slane %v3357, 2
      %v3710 = vsel %vm2708, %v3708, %v3709
      %v3711 = vrot.slane %v3360, 2
      %v3712 = vsel %vm2708, %v3709, %v3711
      %v3713 = vrot.slane %v3365, 2
      %v3714 = vrot.slane %v3368, 2
      %v3715 = vsel %vm2708, %v3713, %v3714
      %v3716 = vrot.slane %v3373, 2
      %v3717 = vsel %vm2708, %v3714, %v3716
      %v3718 = vrot.slane %v3376, 2
      %v3719 = vrot.slane %v3381, 2
      %v3720 = vsel %vm2708, %v3718, %v3719
      %v3721 = vrot.slane %v3384, 2
      %v3722 = vsel %vm2708, %v3719, %v3721
      %3723 = vrot.lane.b32.xlu0 %v3645, 120
      %v3724 = vpop.permute.xlu0 %3723
      %3725 = vrot.lane.b32.xlu0 %v3647, 120
      %v3726 = vpop.permute.xlu0 %3725
      %3727 = vrot.lane.b32.xlu0 %v3650, 120
      %v3728 = vpop.permute.xlu0 %3727
      %3729 = vrot.lane.b32.xlu0 %v3652, 120
      %v3730 = vpop.permute.xlu0 %3729
      %3731 = vrot.lane.b32.xlu0 %v3655, 120
      %v3732 = vpop.permute.xlu0 %3731
      %3733 = vrot.lane.b32.xlu0 %v3657, 120
      %v3734 = vpop.permute.xlu0 %3733
      %3735 = vrot.lane.b32.xlu0 %v3660, 120
      %v3736 = vpop.permute.xlu0 %3735
      %3737 = vrot.lane.b32.xlu0 %v3662, 120
      %v3738 = vpop.permute.xlu0 %3737
      %3739 = vrot.lane.b32.xlu0 %v3665, 120
      %v3740 = vpop.permute.xlu0 %3739
      %3741 = vrot.lane.b32.xlu0 %v3667, 120
      %v3742 = vpop.permute.xlu0 %3741
      %3743 = vrot.lane.b32.xlu0 %v3670, 120
      %v3744 = vpop.permute.xlu0 %3743
      %3745 = vrot.lane.b32.xlu0 %v3672, 120
      %v3746 = vpop.permute.xlu0 %3745
      %3747 = vrot.lane.b32.xlu0 %v3675, 120
      %v3748 = vpop.permute.xlu0 %3747
      %3749 = vrot.lane.b32.xlu0 %v3677, 120
      %v3750 = vpop.permute.xlu0 %3749
      %3751 = vrot.lane.b32.xlu0 %v3680, 120
      %v3752 = vpop.permute.xlu0 %3751
      %3753 = vrot.lane.b32.xlu0 %v3682, 120
      %v3754 = vpop.permute.xlu0 %3753
      %3755 = vrot.lane.b32.xlu0 %v3685, 120
      %v3756 = vpop.permute.xlu0 %3755
      %3757 = vrot.lane.b32.xlu0 %v3687, 120
      %v3758 = vpop.permute.xlu0 %3757
      %3759 = vrot.lane.b32.xlu0 %v3690, 120
      %v3760 = vpop.permute.xlu0 %3759
      %3761 = vrot.lane.b32.xlu0 %v3692, 120
      %v3762 = vpop.permute.xlu0 %3761
      %3763 = vrot.lane.b32.xlu0 %v3695, 120
      %v3764 = vpop.permute.xlu0 %3763
      %3765 = vrot.lane.b32.xlu0 %v3697, 120
      %v3766 = vpop.permute.xlu0 %3765
      %3767 = vrot.lane.b32.xlu0 %v3700, 120
      %v3768 = vpop.permute.xlu0 %3767
      %3769 = vrot.lane.b32.xlu0 %v3702, 120
      %v3770 = vpop.permute.xlu0 %3769
      %3771 = vrot.lane.b32.xlu0 %v3705, 120
      %v3772 = vpop.permute.xlu0 %3771
      %3773 = vrot.lane.b32.xlu0 %v3707, 120
      %v3774 = vpop.permute.xlu0 %3773
      %3775 = vrot.lane.b32.xlu0 %v3710, 120
      %v3776 = vpop.permute.xlu0 %3775
      %3777 = vrot.lane.b32.xlu0 %v3712, 120
      %v3778 = vpop.permute.xlu0 %3777
      %3779 = vrot.lane.b32.xlu0 %v3715, 120
      %v3780 = vpop.permute.xlu0 %3779
      %3781 = vrot.lane.b32.xlu0 %v3717, 120
      %v3782 = vpop.permute.xlu0 %3781
      %3783 = vrot.lane.b32.xlu0 %v3720, 120
      %v3784 = vpop.permute.xlu0 %3783
      %3785 = vrot.lane.b32.xlu0 %v3722, 120
      %v3786 = vpop.permute.xlu0 %3785
      %v3819 = vadd.f32 %v3611, %v3724
      %v3820 = vadd.f32 %v3612, %v3726
      %v3821 = vadd.f32 %v3613, %v3728
      %v3822 = vadd.f32 %v3614, %v3730
      %v3823 = vadd.f32 %v3615, %v3732
      %v3824 = vadd.f32 %v3616, %v3734
      %v3825 = vadd.f32 %v3617, %v3736
      %v3826 = vadd.f32 %v3618, %v3738
      %v3827 = vadd.f32 %v3619, %v3740
      %v3828 = vadd.f32 %v3620, %v3742
      %v3829 = vadd.f32 %v3621, %v3744
      %v3830 = vadd.f32 %v3622, %v3746
      %v3831 = vadd.f32 %v3623, %v3748
      %v3832 = vadd.f32 %v3624, %v3750
      %v3833 = vadd.f32 %v3625, %v3752
      %v3834 = vadd.f32 %v3626, %v3754
      %v3835 = vadd.f32 %v3627, %v3756
      %v3836 = vadd.f32 %v3628, %v3758
      %v3837 = vadd.f32 %v3629, %v3760
      %v3838 = vadd.f32 %v3630, %v3762
      %v3839 = vadd.f32 %v3631, %v3764
      %v3840 = vadd.f32 %v3632, %v3766
      %v3841 = vadd.f32 %v3633, %v3768
      %v3842 = vadd.f32 %v3634, %v3770
      %v3843 = vadd.f32 %v3635, %v3772
      %v3844 = vadd.f32 %v3636, %v3774
      %v3845 = vadd.f32 %v3637, %v3776
      %v3846 = vadd.f32 %v3638, %v3778
      %v3847 = vadd.f32 %v3639, %v3780
      %v3848 = vadd.f32 %v3640, %v3782
      %v3849 = vadd.f32 %v3641, %v3784
      %v3850 = vadd.f32 %v3642, %v3786
      %v3851 = vadd.f32 %v2885, %v3819
      %v3852 = vadd.f32 %v2886, %v3820
      %v3853 = vadd.f32 %v2887, %v3821
      %v3854 = vadd.f32 %v2888, %v3822
      %v3855 = vadd.f32 %v2889, %v3823
      %v3856 = vadd.f32 %v2890, %v3824
      %v3857 = vadd.f32 %v2891, %v3825
      %v3858 = vadd.f32 %v2892, %v3826
      %v3859 = vadd.f32 %v2893, %v3827
      %v3860 = vadd.f32 %v2894, %v3828
      %v3861 = vadd.f32 %v2895, %v3829
      %v3862 = vadd.f32 %v2896, %v3830
      %v3863 = vadd.f32 %v2897, %v3831
      %v3864 = vadd.f32 %v2898, %v3832
      %v3865 = vadd.f32 %v2899, %v3833
      %v3866 = vadd.f32 %v2900, %v3834
      %v3867 = vadd.f32 %v2901, %v3835
      %v3868 = vadd.f32 %v2902, %v3836
      %v3869 = vadd.f32 %v2903, %v3837
      %v3870 = vadd.f32 %v2904, %v3838
      %v3871 = vadd.f32 %v2905, %v3839
      %v3872 = vadd.f32 %v2906, %v3840
      %v3873 = vadd.f32 %v2907, %v3841
      %v3874 = vadd.f32 %v2908, %v3842
      %v3875 = vadd.f32 %v2909, %v3843
      %v3876 = vadd.f32 %v2910, %v3844
      %v3877 = vadd.f32 %v2911, %v3845
      %v3878 = vadd.f32 %v2912, %v3846
      %v3879 = vadd.f32 %v2913, %v3847
      %v3880 = vadd.f32 %v2914, %v3848
      %v3881 = vadd.f32 %v2915, %v3849
      %v3882 = vadd.f32 %v2916, %v3850
      %s3883 = scalar_lea.vmem [#allocation2], 24
      %v3884 = vld [vmem:[%s3883] sm:$0xf]
      %v3885 = vld [vmem:[%s3883 + $0x4] sm:$0xf]
      %v3886 = vld [vmem:[%s3883 + $0x8] sm:$0xf]
      %v3887 = vld [vmem:[%s3883 + $0xc] sm:$0xf]
      %v3888 = vld [vmem:[%s3883 + $0x10] sm:$0xf]
      %v3889 = vld [vmem:[%s3883 + $0x14] sm:$0xf]
      %v3890 = vld [vmem:[%s3883 + $0x18] sm:$0xf]
      %v3891 = vld [vmem:[%s3883 + $0x1c] sm:$0xf]
      %v3892 = vld [vmem:[%s3883 + $0x20] sm:$0xf]
      %v3893 = vld [vmem:[%s3883 + $0x24] sm:$0xf]
      %v3894 = vld [vmem:[%s3883 + $0x28] sm:$0xf]
      %v3895 = vld [vmem:[%s3883 + $0x2c] sm:$0xf]
      %v3896 = vld [vmem:[%s3883 + $0x30] sm:$0xf]
      %v3897 = vld [vmem:[%s3883 + $0x34] sm:$0xf]
      %v3898 = vld [vmem:[%s3883 + $0x38] sm:$0xf]
      %v3899 = vld [vmem:[%s3883 + $0x3c] sm:$0xf]
      %v3900 = vld [vmem:[%s3883 + $0x40] sm:$0xf]
      %v3901 = vld [vmem:[%s3883 + $0x44] sm:$0xf]
      %v3902 = vld [vmem:[%s3883 + $0x48] sm:$0xf]
      %v3903 = vld [vmem:[%s3883 + $0x4c] sm:$0xf]
      %v3904 = vld [vmem:[%s3883 + $0x50] sm:$0xf]
      %v3905 = vld [vmem:[%s3883 + $0x54] sm:$0xf]
      %v3906 = vld [vmem:[%s3883 + $0x58] sm:$0xf]
      %v3907 = vld [vmem:[%s3883 + $0x5c] sm:$0xf]
      %v3908 = vld [vmem:[%s3883 + $0x60] sm:$0xf]
      %v3909 = vld [vmem:[%s3883 + $0x64] sm:$0xf]
      %v3910 = vld [vmem:[%s3883 + $0x68] sm:$0xf]
      %v3911 = vld [vmem:[%s3883 + $0x6c] sm:$0xf]
      %v3912 = vld [vmem:[%s3883 + $0x70] sm:$0xf]
      %v3913 = vld [vmem:[%s3883 + $0x74] sm:$0xf]
      %v3914 = vld [vmem:[%s3883 + $0x78] sm:$0xf]
      %v3915 = vld [vmem:[%s3883 + $0x7c] sm:$0xf]
      %v3916 = vld [vmem:[%s3883 + $0x80] sm:$0xf]
      %v3917 = vld [vmem:[%s3883 + $0x84] sm:$0xf]
      %v3918 = vld [vmem:[%s3883 + $0x88] sm:$0xf]
      %v3919 = vld [vmem:[%s3883 + $0x8c] sm:$0xf]
      %v3920 = vld [vmem:[%s3883 + $0x90] sm:$0xf]
      %v3921 = vld [vmem:[%s3883 + $0x94] sm:$0xf]
      %v3922 = vld [vmem:[%s3883 + $0x98] sm:$0xf]
      %v3923 = vld [vmem:[%s3883 + $0x9c] sm:$0xf]
      %v3924 = vld [vmem:[%s3883 + $0xa0] sm:$0xf]
      %v3925 = vld [vmem:[%s3883 + $0xa4] sm:$0xf]
      %v3926 = vld [vmem:[%s3883 + $0xa8] sm:$0xf]
      %v3927 = vld [vmem:[%s3883 + $0xac] sm:$0xf]
      %v3928 = vld [vmem:[%s3883 + $0xb0] sm:$0xf]
      %v3929 = vld [vmem:[%s3883 + $0xb4] sm:$0xf]
      %v3930 = vld [vmem:[%s3883 + $0xb8] sm:$0xf]
      %v3931 = vld [vmem:[%s3883 + $0xbc] sm:$0xf]
      %s3932 = scalar_lea.vmem %s6, 8
      %v3933 = vld [vmem:[%s3932] sm:$0xf]
      %v3982 = vunpack.c.l.b16 %v3884
      %v3983 = vunpack.c.l.b16 %v3885
      %v3984 = vunpack.c.l.b16 %v3886
      %v3985 = vunpack.c.l.b16 %v3887
      %v3986 = vunpack.c.l.b16 %v3888
      %v3987 = vunpack.c.l.b16 %v3889
      %v3988 = vunpack.c.l.b16 %v3890
      %v3989 = vunpack.c.l.b16 %v3891
      %v3990 = vunpack.c.l.b16 %v3892
      %v3991 = vunpack.c.l.b16 %v3893
      %v3992 = vunpack.c.l.b16 %v3894
      %v3993 = vunpack.c.l.b16 %v3895
      %v3994 = vunpack.c.l.b16 %v3896
      %v3995 = vunpack.c.l.b16 %v3897
      %v3996 = vunpack.c.l.b16 %v3898
      %v3997 = vunpack.c.l.b16 %v3899
      %v3998 = vunpack.c.l.b16 %v3900
      %v3999 = vunpack.c.l.b16 %v3901
      %v4000 = vunpack.c.l.b16 %v3902
      %v4001 = vunpack.c.l.b16 %v3903
      %v4002 = vunpack.c.l.b16 %v3904
      %v4003 = vunpack.c.l.b16 %v3905
      %v4004 = vunpack.c.l.b16 %v3906
      %v4005 = vunpack.c.l.b16 %v3907
      %v4006 = vunpack.c.l.b16 %v3908
      %v4007 = vunpack.c.l.b16 %v3909
      %v4008 = vunpack.c.l.b16 %v3910
      %v4009 = vunpack.c.l.b16 %v3911
      %v4010 = vunpack.c.l.b16 %v3912
      %v4011 = vunpack.c.l.b16 %v3913
      %v4012 = vunpack.c.l.b16 %v3914
      %v4013 = vunpack.c.l.b16 %v3915
      %v4014 = vunpack.c.l.b16 %v3916
      %v4015 = vunpack.c.l.b16 %v3917
      %v4016 = vunpack.c.l.b16 %v3918
      %v4017 = vunpack.c.l.b16 %v3919
      %v4018 = vunpack.c.l.b16 %v3920
      %v4019 = vunpack.c.l.b16 %v3921
      %v4020 = vunpack.c.l.b16 %v3922
      %v4021 = vunpack.c.l.b16 %v3923
      %v4022 = vunpack.c.l.b16 %v3924
      %v4023 = vunpack.c.l.b16 %v3925
      %v4024 = vunpack.c.l.b16 %v3926
      %v4025 = vunpack.c.l.b16 %v3927
      %v4026 = vunpack.c.l.b16 %v3928
      %v4027 = vunpack.c.l.b16 %v3929
      %v4028 = vunpack.c.l.b16 %v3930
      %v4029 = vunpack.c.l.b16 %v3931
      %v4030 = vpack.c.b16 %v3983, %v3982
      %v4031 = vpack.c.b16 %v3985, %v3984
      %v4032 = vpack.c.b16 %v3987, %v3986
      %v4033 = vpack.c.b16 %v3989, %v3988
      %v4034 = vpack.c.b16 %v3991, %v3990
      %v4035 = vpack.c.b16 %v3993, %v3992
      %v4036 = vpack.c.b16 %v3995, %v3994
      %v4037 = vpack.c.b16 %v3997, %v3996
      %v4038 = vpack.c.b16 %v3999, %v3998
      %v4039 = vpack.c.b16 %v4001, %v4000
      %v4040 = vpack.c.b16 %v4003, %v4002
      %v4041 = vpack.c.b16 %v4005, %v4004
      %v4042 = vpack.c.b16 %v4007, %v4006
      %v4043 = vpack.c.b16 %v4009, %v4008
      %v4044 = vpack.c.b16 %v4011, %v4010
      %v4045 = vpack.c.b16 %v4013, %v4012
      %v4046 = vpack.c.b16 %v4015, %v4014
      %v4047 = vpack.c.b16 %v4017, %v4016
      %v4048 = vpack.c.b16 %v4019, %v4018
      %v4049 = vpack.c.b16 %v4021, %v4020
      %v4050 = vpack.c.b16 %v4023, %v4022
      %v4051 = vpack.c.b16 %v4025, %v4024
      %v4052 = vpack.c.b16 %v4027, %v4026
      %v4053 = vpack.c.b16 %v4029, %v4028
      %v4055 = vsel %vm2149, %v4030, 0
      %v4058 = vsel %vm2149, %v4031, 0
      %v4061 = vsel %vm2149, %v4032, 0
      %v4064 = vsel %vm2149, %v4033, 0
      %v4067 = vsel %vm2149, %v4034, 0
      %v4070 = vsel %vm2149, %v4035, 0
      %v4073 = vsel %vm2149, %v4036, 0
      %v4076 = vsel %vm2149, %v4037, 0
      %v4079 = vsel %vm2149, %v4038, 0
      %v4082 = vsel %vm2149, %v4039, 0
      %v4085 = vsel %vm2149, %v4040, 0
      %v4088 = vsel %vm2149, %v4041, 0
      %v4091 = vsel %vm2149, %v4042, 0
      %v4094 = vsel %vm2149, %v4043, 0
      %v4097 = vsel %vm2149, %v4044, 0
      %v4100 = vsel %vm2149, %v4045, 0
      %v4103 = vsel %vm2149, %v4046, 0
      %v4106 = vsel %vm2149, %v4047, 0
      %v4109 = vsel %vm2149, %v4048, 0
      %v4112 = vsel %vm2149, %v4049, 0
      %v4115 = vsel %vm2149, %v4050, 0
      %v4118 = vsel %vm2149, %v4051, 0
      %v4121 = vsel %vm2149, %v4052, 0
      %v4124 = vsel %vm2149, %v4053, 0
      %v4127 = vsel %vm2222, %v3933, 0
      %4129 = vmatprep.subr.bf16.mxu0 0
      %4130 = vmatpush1.bf16.msra.mxu0 %v4127
      %4131 = vmatprep.subr.bf16.mxu0 0
      %4132 = vmatpush1.bf16.msra.mxu0 0
      %4133 = vmatprep.subr.bf16.mxu0 0
      %4134 = vmatpush1.bf16.msra.mxu0 0
      %4135 = vmatprep.subr.bf16.mxu0 0
      %4136 = vmatpush1.bf16.msra.mxu0 0
      %4137 = vmatprep.subr.bf16.mxu0 0
      %4138 = vmatpush1.bf16.msra.mxu0 0
      %4139 = vmatprep.subr.bf16.mxu0 0
      %4140 = vmatpush1.bf16.msra.mxu0 0
      %4141 = vmatprep.subr.bf16.mxu0 0
      %4142 = vmatpush1.bf16.msra.mxu0 0
      %4143 = vmatprep.subr.bf16.mxu0 0
      %4144 = vmatpush1.bf16.msra.mxu0 0
      %4145 = vmatprep.subr.bf16.mxu0 0
      %4146 = vmatpush1.bf16.msra.mxu0 0
      %4147 = vmatprep.subr.bf16.mxu0 0
      %4148 = vmatpush1.bf16.msra.mxu0 0
      %4149 = vmatprep.subr.bf16.mxu0 0
      %4150 = vmatpush1.bf16.msra.mxu0 0
      %4151 = vmatprep.subr.bf16.mxu0 0
      %4152 = vmatpush1.bf16.msra.mxu0 0
      %4153 = vmatprep.subr.bf16.mxu0 0
      %4154 = vmatpush1.bf16.msra.mxu0 0
      %4155 = vmatprep.subr.bf16.mxu0 0
      %4156 = vmatpush1.bf16.msra.mxu0 0
      %4157 = vmatprep.subr.bf16.mxu0 0
      %4158 = vmatpush1.bf16.msra.mxu0 0
      %4159 = vmatprep.subr.bf16.mxu0 0
      %4160 = vmatpush1.bf16.msra.mxu0 0
      %4161 = vmatprep.mubr.bf16.mxu0 0
      %4162 = vmatmul.mubr.bf16.gmra.mrb[0].mxu0 %v4055
      %v4163 = vpop.f32.mrb[0].mxu0
      %v4164 = vadd.f32 0.0, %v4163
      %v4165 = vpop.f32.mrb[0].mxu0
      %v4166 = vpop.f32.mrb[0].mxu0
      %v4167 = vadd.f32 0.0, %v4166
      %v4168 = vpop.f32.mrb[0].mxu0
      %4169 = vmatprep.mubr.bf16.mxu0 0
      %4170 = vmatmul.mubr.bf16.gmra.mrb[0].mxu0 %v4058
      %v4171 = vpop.f32.mrb[0].mxu0
      %v4172 = vadd.f32 0.0, %v4171
      %v4173 = vpop.f32.mrb[0].mxu0
      %v4174 = vpop.f32.mrb[0].mxu0
      %v4175 = vadd.f32 0.0, %v4174
      %v4176 = vpop.f32.mrb[0].mxu0
      %4177 = vmatprep.mubr.bf16.mxu0 0
      %4178 = vmatmul.mubr.bf16.gmra.mrb[0].mxu0 %v4061
      %v4179 = vpop.f32.mrb[0].mxu0
      %v4180 = vadd.f32 0.0, %v4179
      %v4181 = vpop.f32.mrb[0].mxu0
      %v4182 = vpop.f32.mrb[0].mxu0
      %v4183 = vadd.f32 0.0, %v4182
      %v4184 = vpop.f32.mrb[0].mxu0
      %4185 = vmatprep.mubr.bf16.mxu0 0
      %4186 = vmatmul.mubr.bf16.gmra.mrb[0].mxu0 %v4064
      %v4187 = vpop.f32.mrb[0].mxu0
      %v4188 = vadd.f32 0.0, %v4187
      %v4189 = vpop.f32.mrb[0].mxu0
      %v4190 = vpop.f32.mrb[0].mxu0
      %v4191 = vadd.f32 0.0, %v4190
      %v4192 = vpop.f32.mrb[0].mxu0
      %4193 = vmatprep.mubr.bf16.mxu0 0
      %4194 = vmatmul.mubr.bf16.gmra.mrb[0].mxu0 %v4067
      %v4195 = vpop.f32.mrb[0].mxu0
      %v4196 = vadd.f32 0.0, %v4195
      %v4197 = vpop.f32.mrb[0].mxu0
      %v4198 = vpop.f32.mrb[0].mxu0
      %v4199 = vadd.f32 0.0, %v4198
      %v4200 = vpop.f32.mrb[0].mxu0
      %4201 = vmatprep.mubr.bf16.mxu0 0
      %4202 = vmatmul.mubr.bf16.gmra.mrb[0].mxu0 %v4070
      %v4203 = vpop.f32.mrb[0].mxu0
      %v4204 = vadd.f32 0.0, %v4203
      %v4205 = vpop.f32.mrb[0].mxu0
      %v4206 = vpop.f32.mrb[0].mxu0
      %v4207 = vadd.f32 0.0, %v4206
      %v4208 = vpop.f32.mrb[0].mxu0
      %4209 = vmatprep.mubr.bf16.mxu0 0
      %4210 = vmatmul.mubr.bf16.gmra.mrb[0].mxu0 %v4073
      %v4211 = vpop.f32.mrb[0].mxu0
      %v4212 = vadd.f32 0.0, %v4211
      %v4213 = vpop.f32.mrb[0].mxu0
      %v4214 = vpop.f32.mrb[0].mxu0
      %v4215 = vadd.f32 0.0, %v4214
      %v4216 = vpop.f32.mrb[0].mxu0
      %4217 = vmatprep.mubr.bf16.mxu0 0
      %4218 = vmatmul.mubr.bf16.gmra.mrb[0].mxu0 %v4076
      %v4219 = vpop.f32.mrb[0].mxu0
      %v4220 = vadd.f32 0.0, %v4219
      %v4221 = vpop.f32.mrb[0].mxu0
      %v4222 = vpop.f32.mrb[0].mxu0
      %v4223 = vadd.f32 0.0, %v4222
      %v4224 = vpop.f32.mrb[0].mxu0
      %4225 = vmatprep.mubr.bf16.mxu0 0
      %4226 = vmatmul.mubr.bf16.gmra.mrb[0].mxu0 %v4079
      %v4227 = vpop.f32.mrb[0].mxu0
      %v4228 = vadd.f32 0.0, %v4227
      %v4229 = vpop.f32.mrb[0].mxu0
      %v4230 = vpop.f32.mrb[0].mxu0
      %v4231 = vadd.f32 0.0, %v4230
      %v4232 = vpop.f32.mrb[0].mxu0
      %4233 = vmatprep.mubr.bf16.mxu0 0
      %4234 = vmatmul.mubr.bf16.gmra.mrb[0].mxu0 %v4082
      %v4235 = vpop.f32.mrb[0].mxu0
      %v4236 = vadd.f32 0.0, %v4235
      %v4237 = vpop.f32.mrb[0].mxu0
      %v4238 = vpop.f32.mrb[0].mxu0
      %v4239 = vadd.f32 0.0, %v4238
      %v4240 = vpop.f32.mrb[0].mxu0
      %4241 = vmatprep.mubr.bf16.mxu0 0
      %4242 = vmatmul.mubr.bf16.gmra.mrb[0].mxu0 %v4085
      %v4243 = vpop.f32.mrb[0].mxu0
      %v4244 = vadd.f32 0.0, %v4243
      %v4245 = vpop.f32.mrb[0].mxu0
      %v4246 = vpop.f32.mrb[0].mxu0
      %v4247 = vadd.f32 0.0, %v4246
      %v4248 = vpop.f32.mrb[0].mxu0
      %4249 = vmatprep.mubr.bf16.mxu0 0
      %4250 = vmatmul.mubr.bf16.gmra.mrb[0].mxu0 %v4088
      %v4251 = vpop.f32.mrb[0].mxu0
      %v4252 = vadd.f32 0.0, %v4251
      %v4253 = vpop.f32.mrb[0].mxu0
      %v4254 = vpop.f32.mrb[0].mxu0
      %v4255 = vadd.f32 0.0, %v4254
      %v4256 = vpop.f32.mrb[0].mxu0
      %4257 = vmatprep.mubr.bf16.mxu0 0
      %4258 = vmatmul.mubr.bf16.gmra.mrb[0].mxu0 %v4091
      %v4259 = vpop.f32.mrb[0].mxu0
      %v4260 = vadd.f32 0.0, %v4259
      %v4261 = vpop.f32.mrb[0].mxu0
      %v4262 = vpop.f32.mrb[0].mxu0
      %v4263 = vadd.f32 0.0, %v4262
      %v4264 = vpop.f32.mrb[0].mxu0
      %4265 = vmatprep.mubr.bf16.mxu0 0
      %4266 = vmatmul.mubr.bf16.gmra.mrb[0].mxu0 %v4094
      %v4267 = vpop.f32.mrb[0].mxu0
      %v4268 = vadd.f32 0.0, %v4267
      %v4269 = vpop.f32.mrb[0].mxu0
      %v4270 = vpop.f32.mrb[0].mxu0
      %v4271 = vadd.f32 0.0, %v4270
      %v4272 = vpop.f32.mrb[0].mxu0
      %4273 = vmatprep.mubr.bf16.mxu0 0
      %4274 = vmatmul.mubr.bf16.gmra.mrb[0].mxu0 %v4097
      %v4275 = vpop.f32.mrb[0].mxu0
      %v4276 = vadd.f32 0.0, %v4275
      %v4277 = vpop.f32.mrb[0].mxu0
      %v4278 = vpop.f32.mrb[0].mxu0
      %v4279 = vadd.f32 0.0, %v4278
      %v4280 = vpop.f32.mrb[0].mxu0
      %4281 = vmatprep.mubr.bf16.mxu0 0
      %4282 = vmatmul.mubr.bf16.gmra.mrb[0].mxu0 %v4100
      %v4283 = vpop.f32.mrb[0].mxu0
      %v4284 = vadd.f32 0.0, %v4283
      %v4285 = vpop.f32.mrb[0].mxu0
      %v4286 = vpop.f32.mrb[0].mxu0
      %v4287 = vadd.f32 0.0, %v4286
      %v4288 = vpop.f32.mrb[0].mxu0
      %4289 = vmatprep.mubr.bf16.mxu0 0
      %4290 = vmatmul.mubr.bf16.gmra.mrb[0].mxu0 %v4103
      %v4291 = vpop.f32.mrb[0].mxu0
      %v4292 = vadd.f32 0.0, %v4291
      %v4293 = vpop.f32.mrb[0].mxu0
      %v4294 = vpop.f32.mrb[0].mxu0
      %v4295 = vadd.f32 0.0, %v4294
      %v4296 = vpop.f32.mrb[0].mxu0
      %4297 = vmatprep.mubr.bf16.mxu0 0
      %4298 = vmatmul.mubr.bf16.gmra.mrb[0].mxu0 %v4106
      %v4299 = vpop.f32.mrb[0].mxu0
      %v4300 = vadd.f32 0.0, %v4299
      %v4301 = vpop.f32.mrb[0].mxu0
      %v4302 = vpop.f32.mrb[0].mxu0
      %v4303 = vadd.f32 0.0, %v4302
      %v4304 = vpop.f32.mrb[0].mxu0
      %4305 = vmatprep.mubr.bf16.mxu0 0
      %4306 = vmatmul.mubr.bf16.gmra.mrb[0].mxu0 %v4109
      %v4307 = vpop.f32.mrb[0].mxu0
      %v4308 = vadd.f32 0.0, %v4307
      %v4309 = vpop.f32.mrb[0].mxu0
      %v4310 = vpop.f32.mrb[0].mxu0
      %v4311 = vadd.f32 0.0, %v4310
      %v4312 = vpop.f32.mrb[0].mxu0
      %4313 = vmatprep.mubr.bf16.mxu0 0
      %4314 = vmatmul.mubr.bf16.gmra.mrb[0].mxu0 %v4112
      %v4315 = vpop.f32.mrb[0].mxu0
      %v4316 = vadd.f32 0.0, %v4315
      %v4317 = vpop.f32.mrb[0].mxu0
      %v4318 = vpop.f32.mrb[0].mxu0
      %v4319 = vadd.f32 0.0, %v4318
      %v4320 = vpop.f32.mrb[0].mxu0
      %4321 = vmatprep.mubr.bf16.mxu0 0
      %4322 = vmatmul.mubr.bf16.gmra.mrb[0].mxu0 %v4115
      %v4323 = vpop.f32.mrb[0].mxu0
      %v4324 = vadd.f32 0.0, %v4323
      %v4325 = vpop.f32.mrb[0].mxu0
      %v4326 = vpop.f32.mrb[0].mxu0
      %v4327 = vadd.f32 0.0, %v4326
      %v4328 = vpop.f32.mrb[0].mxu0
      %4329 = vmatprep.mubr.bf16.mxu0 0
      %4330 = vmatmul.mubr.bf16.gmra.mrb[0].mxu0 %v4118
      %v4331 = vpop.f32.mrb[0].mxu0
      %v4332 = vadd.f32 0.0, %v4331
      %v4333 = vpop.f32.mrb[0].mxu0
      %v4334 = vpop.f32.mrb[0].mxu0
      %v4335 = vadd.f32 0.0, %v4334
      %v4336 = vpop.f32.mrb[0].mxu0
      %4337 = vmatprep.mubr.bf16.mxu0 0
      %4338 = vmatmul.mubr.bf16.gmra.mrb[0].mxu0 %v4121
      %v4339 = vpop.f32.mrb[0].mxu0
      %v4340 = vadd.f32 0.0, %v4339
      %v4341 = vpop.f32.mrb[0].mxu0
      %v4342 = vpop.f32.mrb[0].mxu0
      %v4343 = vadd.f32 0.0, %v4342
      %v4344 = vpop.f32.mrb[0].mxu0
      %4345 = vmatprep.mubr.bf16.mxu0 0
      %4346 = vmatmul.mubr.bf16.gmra.mrb[0].mxu0 %v4124
      %v4347 = vpop.f32.mrb[0].mxu0
      %v4348 = vadd.f32 0.0, %v4347
      %v4349 = vpop.f32.mrb[0].mxu0
      %v4350 = vpop.f32.mrb[0].mxu0
      %v4351 = vadd.f32 0.0, %v4350
      %v4352 = vpop.f32.mrb[0].mxu0
      %4353 = vdwg.mxu0
      %v4402 = vrot.slane %v4164, 1
      %v4403 = vrot.slane %v4167, 1
      %v4404 = vsel %vm2499, %v4402, %v4403
      %v4405 = vrot.slane %v4172, 1
      %v4406 = vsel %vm2499, %v4403, %v4405
      %v4407 = vrot.slane %v4175, 1
      %v4408 = vrot.slane %v4180, 1
      %v4409 = vsel %vm2499, %v4407, %v4408
      %v4410 = vrot.slane %v4183, 1
      %v4411 = vsel %vm2499, %v4408, %v4410
      %v4412 = vrot.slane %v4188, 1
      %v4413 = vrot.slane %v4191, 1
      %v4414 = vsel %vm2499, %v4412, %v4413
      %v4415 = vrot.slane %v4196, 1
      %v4416 = vsel %vm2499, %v4413, %v4415
      %v4417 = vrot.slane %v4199, 1
      %v4418 = vrot.slane %v4204, 1
      %v4419 = vsel %vm2499, %v4417, %v4418
      %v4420 = vrot.slane %v4207, 1
      %v4421 = vsel %vm2499, %v4418, %v4420
      %v4422 = vrot.slane %v4212, 1
      %v4423 = vrot.slane %v4215, 1
      %v4424 = vsel %vm2499, %v4422, %v4423
      %v4425 = vrot.slane %v4220, 1
      %v4426 = vsel %vm2499, %v4423, %v4425
      %v4427 = vrot.slane %v4223, 1
      %v4428 = vrot.slane %v4228, 1
      %v4429 = vsel %vm2499, %v4427, %v4428
      %v4430 = vrot.slane %v4231, 1
      %v4431 = vsel %vm2499, %v4428, %v4430
      %v4432 = vrot.slane %v4236, 1
      %v4433 = vrot.slane %v4239, 1
      %v4434 = vsel %vm2499, %v4432, %v4433
      %v4435 = vrot.slane %v4244, 1
      %v4436 = vsel %vm2499, %v4433, %v4435
      %v4437 = vrot.slane %v4247, 1
      %v4438 = vrot.slane %v4252, 1
      %v4439 = vsel %vm2499, %v4437, %v4438
      %v4440 = vrot.slane %v4255, 1
      %v4441 = vsel %vm2499, %v4438, %v4440
      %v4442 = vrot.slane %v4260, 1
      %v4443 = vrot.slane %v4263, 1
      %v4444 = vsel %vm2499, %v4442, %v4443
      %v4445 = vrot.slane %v4268, 1
      %v4446 = vsel %vm2499, %v4443, %v4445
      %v4447 = vrot.slane %v4271, 1
      %v4448 = vrot.slane %v4276, 1
      %v4449 = vsel %vm2499, %v4447, %v4448
      %v4450 = vrot.slane %v4279, 1
      %v4451 = vsel %vm2499, %v4448, %v4450
      %v4452 = vrot.slane %v4284, 1
      %v4453 = vrot.slane %v4287, 1
      %v4454 = vsel %vm2499, %v4452, %v4453
      %v4455 = vrot.slane %v4292, 1
      %v4456 = vsel %vm2499, %v4453, %v4455
      %v4457 = vrot.slane %v4295, 1
      %v4458 = vrot.slane %v4300, 1
      %v4459 = vsel %vm2499, %v4457, %v4458
      %v4460 = vrot.slane %v4303, 1
      %v4461 = vsel %vm2499, %v4458, %v4460
      %v4462 = vrot.slane %v4308, 1
      %v4463 = vrot.slane %v4311, 1
      %v4464 = vsel %vm2499, %v4462, %v4463
      %v4465 = vrot.slane %v4316, 1
      %v4466 = vsel %vm2499, %v4463, %v4465
      %v4467 = vrot.slane %v4319, 1
      %v4468 = vrot.slane %v4324, 1
      %v4469 = vsel %vm2499, %v4467, %v4468
      %v4470 = vrot.slane %v4327, 1
      %v4471 = vsel %vm2499, %v4468, %v4470
      %v4472 = vrot.slane %v4332, 1
      %v4473 = vrot.slane %v4335, 1
      %v4474 = vsel %vm2499, %v4472, %v4473
      %v4475 = vrot.slane %v4340, 1
      %v4476 = vsel %vm2499, %v4473, %v4475
      %v4477 = vrot.slane %v4343, 1
      %v4478 = vrot.slane %v4348, 1
      %v4479 = vsel %vm2499, %v4477, %v4478
      %v4480 = vrot.slane %v4351, 1
      %v4481 = vsel %vm2499, %v4478, %v4480
      %4482 = vrot.lane.b32.xlu0 %v4404, 124
      %v4483 = vpop.permute.xlu0 %4482
      %4484 = vrot.lane.b32.xlu0 %v4406, 124
      %v4485 = vpop.permute.xlu0 %4484
      %4486 = vrot.lane.b32.xlu0 %v4409, 124
      %v4487 = vpop.permute.xlu0 %4486
      %4488 = vrot.lane.b32.xlu0 %v4411, 124
      %v4489 = vpop.permute.xlu0 %4488
      %4490 = vrot.lane.b32.xlu0 %v4414, 124
      %v4491 = vpop.permute.xlu0 %4490
      %4492 = vrot.lane.b32.xlu0 %v4416, 124
      %v4493 = vpop.permute.xlu0 %4492
      %4494 = vrot.lane.b32.xlu0 %v4419, 124
      %v4495 = vpop.permute.xlu0 %4494
      %4496 = vrot.lane.b32.xlu0 %v4421, 124
      %v4497 = vpop.permute.xlu0 %4496
      %4498 = vrot.lane.b32.xlu0 %v4424, 124
      %v4499 = vpop.permute.xlu0 %4498
      %4500 = vrot.lane.b32.xlu0 %v4426, 124
      %v4501 = vpop.permute.xlu0 %4500
      %4502 = vrot.lane.b32.xlu0 %v4429, 124
      %v4503 = vpop.permute.xlu0 %4502
      %4504 = vrot.lane.b32.xlu0 %v4431, 124
      %v4505 = vpop.permute.xlu0 %4504
      %4506 = vrot.lane.b32.xlu0 %v4434, 124
      %v4507 = vpop.permute.xlu0 %4506
      %4508 = vrot.lane.b32.xlu0 %v4436, 124
      %v4509 = vpop.permute.xlu0 %4508
      %4510 = vrot.lane.b32.xlu0 %v4439, 124
      %v4511 = vpop.permute.xlu0 %4510
      %4512 = vrot.lane.b32.xlu0 %v4441, 124
      %v4513 = vpop.permute.xlu0 %4512
      %4514 = vrot.lane.b32.xlu0 %v4444, 124
      %v4515 = vpop.permute.xlu0 %4514
      %4516 = vrot.lane.b32.xlu0 %v4446, 124
      %v4517 = vpop.permute.xlu0 %4516
      %4518 = vrot.lane.b32.xlu0 %v4449, 124
      %v4519 = vpop.permute.xlu0 %4518
      %4520 = vrot.lane.b32.xlu0 %v4451, 124
      %v4521 = vpop.permute.xlu0 %4520
      %4522 = vrot.lane.b32.xlu0 %v4454, 124
      %v4523 = vpop.permute.xlu0 %4522
      %4524 = vrot.lane.b32.xlu0 %v4456, 124
      %v4525 = vpop.permute.xlu0 %4524
      %4526 = vrot.lane.b32.xlu0 %v4459, 124
      %v4527 = vpop.permute.xlu0 %4526
      %4528 = vrot.lane.b32.xlu0 %v4461, 124
      %v4529 = vpop.permute.xlu0 %4528
      %4530 = vrot.lane.b32.xlu0 %v4464, 124
      %v4531 = vpop.permute.xlu0 %4530
      %4532 = vrot.lane.b32.xlu0 %v4466, 124
      %v4533 = vpop.permute.xlu0 %4532
      %4534 = vrot.lane.b32.xlu0 %v4469, 124
      %v4535 = vpop.permute.xlu0 %4534
      %4536 = vrot.lane.b32.xlu0 %v4471, 124
      %v4537 = vpop.permute.xlu0 %4536
      %4538 = vrot.lane.b32.xlu0 %v4474, 124
      %v4539 = vpop.permute.xlu0 %4538
      %4540 = vrot.lane.b32.xlu0 %v4476, 124
      %v4541 = vpop.permute.xlu0 %4540
      %4542 = vrot.lane.b32.xlu0 %v4479, 124
      %v4543 = vpop.permute.xlu0 %4542
      %4544 = vrot.lane.b32.xlu0 %v4481, 124
      %v4545 = vpop.permute.xlu0 %4544
      %v4578 = vadd.f32 %v4164, %v4483
      %v4579 = vadd.f32 %v4167, %v4485
      %v4580 = vadd.f32 %v4175, %v4487
      %v4581 = vadd.f32 %v4180, %v4489
      %v4582 = vadd.f32 %v4188, %v4491
      %v4583 = vadd.f32 %v4191, %v4493
      %v4584 = vadd.f32 %v4199, %v4495
      %v4585 = vadd.f32 %v4204, %v4497
      %v4586 = vadd.f32 %v4212, %v4499
      %v4587 = vadd.f32 %v4215, %v4501
      %v4588 = vadd.f32 %v4223, %v4503
      %v4589 = vadd.f32 %v4228, %v4505
      %v4590 = vadd.f32 %v4236, %v4507
      %v4591 = vadd.f32 %v4239, %v4509
      %v4592 = vadd.f32 %v4247, %v4511
      %v4593 = vadd.f32 %v4252, %v4513
      %v4594 = vadd.f32 %v4260, %v4515
      %v4595 = vadd.f32 %v4263, %v4517
      %v4596 = vadd.f32 %v4271, %v4519
      %v4597 = vadd.f32 %v4276, %v4521
      %v4598 = vadd.f32 %v4284, %v4523
      %v4599 = vadd.f32 %v4287, %v4525
      %v4600 = vadd.f32 %v4295, %v4527
      %v4601 = vadd.f32 %v4300, %v4529
      %v4602 = vadd.f32 %v4308, %v4531
      %v4603 = vadd.f32 %v4311, %v4533
      %v4604 = vadd.f32 %v4319, %v4535
      %v4605 = vadd.f32 %v4324, %v4537
      %v4606 = vadd.f32 %v4332, %v4539
      %v4607 = vadd.f32 %v4335, %v4541
      %v4608 = vadd.f32 %v4343, %v4543
      %v4609 = vadd.f32 %v4348, %v4545
      %v4610 = vrot.slane %v4164, 2
      %v4611 = vrot.slane %v4167, 2
      %v4612 = vsel %vm2708, %v4610, %v4611
      %v4613 = vrot.slane %v4172, 2
      %v4614 = vsel %vm2708, %v4611, %v4613
      %v4615 = vrot.slane %v4175, 2
      %v4616 = vrot.slane %v4180, 2
      %v4617 = vsel %vm2708, %v4615, %v4616
      %v4618 = vrot.slane %v4183, 2
      %v4619 = vsel %vm2708, %v4616, %v4618
      %v4620 = vrot.slane %v4188, 2
      %v4621 = vrot.slane %v4191, 2
      %v4622 = vsel %vm2708, %v4620, %v4621
      %v4623 = vrot.slane %v4196, 2
      %v4624 = vsel %vm2708, %v4621, %v4623
      %v4625 = vrot.slane %v4199, 2
      %v4626 = vrot.slane %v4204, 2
      %v4627 = vsel %vm2708, %v4625, %v4626
      %v4628 = vrot.slane %v4207, 2
      %v4629 = vsel %vm2708, %v4626, %v4628
      %v4630 = vrot.slane %v4212, 2
      %v4631 = vrot.slane %v4215, 2
      %v4632 = vsel %vm2708, %v4630, %v4631
      %v4633 = vrot.slane %v4220, 2
      %v4634 = vsel %vm2708, %v4631, %v4633
      %v4635 = vrot.slane %v4223, 2
      %v4636 = vrot.slane %v4228, 2
      %v4637 = vsel %vm2708, %v4635, %v4636
      %v4638 = vrot.slane %v4231, 2
      %v4639 = vsel %vm2708, %v4636, %v4638
      %v4640 = vrot.slane %v4236, 2
      %v4641 = vrot.slane %v4239, 2
      %v4642 = vsel %vm2708, %v4640, %v4641
      %v4643 = vrot.slane %v4244, 2
      %v4644 = vsel %vm2708, %v4641, %v4643
      %v4645 = vrot.slane %v4247, 2
      %v4646 = vrot.slane %v4252, 2
      %v4647 = vsel %vm2708, %v4645, %v4646
      %v4648 = vrot.slane %v4255, 2
      %v4649 = vsel %vm2708, %v4646, %v4648
      %v4650 = vrot.slane %v4260, 2
      %v4651 = vrot.slane %v4263, 2
      %v4652 = vsel %vm2708, %v4650, %v4651
      %v4653 = vrot.slane %v4268, 2
      %v4654 = vsel %vm2708, %v4651, %v4653
      %v4655 = vrot.slane %v4271, 2
      %v4656 = vrot.slane %v4276, 2
      %v4657 = vsel %vm2708, %v4655, %v4656
      %v4658 = vrot.slane %v4279, 2
      %v4659 = vsel %vm2708, %v4656, %v4658
      %v4660 = vrot.slane %v4284, 2
      %v4661 = vrot.slane %v4287, 2
      %v4662 = vsel %vm2708, %v4660, %v4661
      %v4663 = vrot.slane %v4292, 2
      %v4664 = vsel %vm2708, %v4661, %v4663
      %v4665 = vrot.slane %v4295, 2
      %v4666 = vrot.slane %v4300, 2
      %v4667 = vsel %vm2708, %v4665, %v4666
      %v4668 = vrot.slane %v4303, 2
      %v4669 = vsel %vm2708, %v4666, %v4668
      %v4670 = vrot.slane %v4308, 2
      %v4671 = vrot.slane %v4311, 2
      %v4672 = vsel %vm2708, %v4670, %v4671
      %v4673 = vrot.slane %v4316, 2
      %v4674 = vsel %vm2708, %v4671, %v4673
      %v4675 = vrot.slane %v4319, 2
      %v4676 = vrot.slane %v4324, 2
      %v4677 = vsel %vm2708, %v4675, %v4676
      %v4678 = vrot.slane %v4327, 2
      %v4679 = vsel %vm2708, %v4676, %v4678
      %v4680 = vrot.slane %v4332, 2
      %v4681 = vrot.slane %v4335, 2
      %v4682 = vsel %vm2708, %v4680, %v4681
      %v4683 = vrot.slane %v4340, 2
      %v4684 = vsel %vm2708, %v4681, %v4683
      %v4685 = vrot.slane %v4343, 2
      %v4686 = vrot.slane %v4348, 2
      %v4687 = vsel %vm2708, %v4685, %v4686
      %v4688 = vrot.slane %v4351, 2
      %v4689 = vsel %vm2708, %v4686, %v4688
      %4690 = vrot.lane.b32.xlu0 %v4612, 120
      %v4691 = vpop.permute.xlu0 %4690
      %4692 = vrot.lane.b32.xlu0 %v4614, 120
      %v4693 = vpop.permute.xlu0 %4692
      %4694 = vrot.lane.b32.xlu0 %v4617, 120
      %v4695 = vpop.permute.xlu0 %4694
      %4696 = vrot.lane.b32.xlu0 %v4619, 120
      %v4697 = vpop.permute.xlu0 %4696
      %4698 = vrot.lane.b32.xlu0 %v4622, 120
      %v4699 = vpop.permute.xlu0 %4698
      %4700 = vrot.lane.b32.xlu0 %v4624, 120
      %v4701 = vpop.permute.xlu0 %4700
      %4702 = vrot.lane.b32.xlu0 %v4627, 120
      %v4703 = vpop.permute.xlu0 %4702
      %4704 = vrot.lane.b32.xlu0 %v4629, 120
      %v4705 = vpop.permute.xlu0 %4704
      %4706 = vrot.lane.b32.xlu0 %v4632, 120
      %v4707 = vpop.permute.xlu0 %4706
      %4708 = vrot.lane.b32.xlu0 %v4634, 120
      %v4709 = vpop.permute.xlu0 %4708
      %4710 = vrot.lane.b32.xlu0 %v4637, 120
      %v4711 = vpop.permute.xlu0 %4710
      %4712 = vrot.lane.b32.xlu0 %v4639, 120
      %v4713 = vpop.permute.xlu0 %4712
      %4714 = vrot.lane.b32.xlu0 %v4642, 120
      %v4715 = vpop.permute.xlu0 %4714
      %4716 = vrot.lane.b32.xlu0 %v4644, 120
      %v4717 = vpop.permute.xlu0 %4716
      %4718 = vrot.lane.b32.xlu0 %v4647, 120
      %v4719 = vpop.permute.xlu0 %4718
      %4720 = vrot.lane.b32.xlu0 %v4649, 120
      %v4721 = vpop.permute.xlu0 %4720
      %4722 = vrot.lane.b32.xlu0 %v4652, 120
      %v4723 = vpop.permute.xlu0 %4722
      %4724 = vrot.lane.b32.xlu0 %v4654, 120
      %v4725 = vpop.permute.xlu0 %4724
      %4726 = vrot.lane.b32.xlu0 %v4657, 120
      %v4727 = vpop.permute.xlu0 %4726
      %4728 = vrot.lane.b32.xlu0 %v4659, 120
      %v4729 = vpop.permute.xlu0 %4728
      %4730 = vrot.lane.b32.xlu0 %v4662, 120
      %v4731 = vpop.permute.xlu0 %4730
      %4732 = vrot.lane.b32.xlu0 %v4664, 120
      %v4733 = vpop.permute.xlu0 %4732
      %4734 = vrot.lane.b32.xlu0 %v4667, 120
      %v4735 = vpop.permute.xlu0 %4734
      %4736 = vrot.lane.b32.xlu0 %v4669, 120
      %v4737 = vpop.permute.xlu0 %4736
      %4738 = vrot.lane.b32.xlu0 %v4672, 120
      %v4739 = vpop.permute.xlu0 %4738
      %4740 = vrot.lane.b32.xlu0 %v4674, 120
      %v4741 = vpop.permute.xlu0 %4740
      %4742 = vrot.lane.b32.xlu0 %v4677, 120
      %v4743 = vpop.permute.xlu0 %4742
      %4744 = vrot.lane.b32.xlu0 %v4679, 120
      %v4745 = vpop.permute.xlu0 %4744
      %4746 = vrot.lane.b32.xlu0 %v4682, 120
      %v4747 = vpop.permute.xlu0 %4746
      %4748 = vrot.lane.b32.xlu0 %v4684, 120
      %v4749 = vpop.permute.xlu0 %4748
      %4750 = vrot.lane.b32.xlu0 %v4687, 120
      %v4751 = vpop.permute.xlu0 %4750
      %4752 = vrot.lane.b32.xlu0 %v4689, 120
      %v4753 = vpop.permute.xlu0 %4752
      %v4786 = vadd.f32 %v4578, %v4691
      %v4787 = vadd.f32 %v4579, %v4693
      %v4788 = vadd.f32 %v4580, %v4695
      %v4789 = vadd.f32 %v4581, %v4697
      %v4790 = vadd.f32 %v4582, %v4699
      %v4791 = vadd.f32 %v4583, %v4701
      %v4792 = vadd.f32 %v4584, %v4703
      %v4793 = vadd.f32 %v4585, %v4705
      %v4794 = vadd.f32 %v4586, %v4707
      %v4795 = vadd.f32 %v4587, %v4709
      %v4796 = vadd.f32 %v4588, %v4711
      %v4797 = vadd.f32 %v4589, %v4713
      %v4798 = vadd.f32 %v4590, %v4715
      %v4799 = vadd.f32 %v4591, %v4717
      %v4800 = vadd.f32 %v4592, %v4719
      %v4801 = vadd.f32 %v4593, %v4721
      %v4802 = vadd.f32 %v4594, %v4723
      %v4803 = vadd.f32 %v4595, %v4725
      %v4804 = vadd.f32 %v4596, %v4727
      %v4805 = vadd.f32 %v4597, %v4729
      %v4806 = vadd.f32 %v4598, %v4731
      %v4807 = vadd.f32 %v4599, %v4733
      %v4808 = vadd.f32 %v4600, %v4735
      %v4809 = vadd.f32 %v4601, %v4737
      %v4810 = vadd.f32 %v4602, %v4739
      %v4811 = vadd.f32 %v4603, %v4741
      %v4812 = vadd.f32 %v4604, %v4743
      %v4813 = vadd.f32 %v4605, %v4745
      %v4814 = vadd.f32 %v4606, %v4747
      %v4815 = vadd.f32 %v4607, %v4749
      %v4816 = vadd.f32 %v4608, %v4751
      %v4817 = vadd.f32 %v4609, %v4753
      %v4818 = vadd.f32 %v3851, %v4786
      %v4819 = vadd.f32 %v3852, %v4787
      %v4820 = vadd.f32 %v3853, %v4788
      %v4821 = vadd.f32 %v3854, %v4789
      %v4822 = vadd.f32 %v3855, %v4790
      %v4823 = vadd.f32 %v3856, %v4791
      %v4824 = vadd.f32 %v3857, %v4792
      %v4825 = vadd.f32 %v3858, %v4793
      %v4826 = vadd.f32 %v3859, %v4794
      %v4827 = vadd.f32 %v3860, %v4795
      %v4828 = vadd.f32 %v3861, %v4796
      %v4829 = vadd.f32 %v3862, %v4797
      %v4830 = vadd.f32 %v3863, %v4798
      %v4831 = vadd.f32 %v3864, %v4799
      %v4832 = vadd.f32 %v3865, %v4800
      %v4833 = vadd.f32 %v3866, %v4801
      %v4834 = vadd.f32 %v3867, %v4802
      %v4835 = vadd.f32 %v3868, %v4803
      %v4836 = vadd.f32 %v3869, %v4804
      %v4837 = vadd.f32 %v3870, %v4805
      %v4838 = vadd.f32 %v3871, %v4806
      %v4839 = vadd.f32 %v3872, %v4807
      %v4840 = vadd.f32 %v3873, %v4808
      %v4841 = vadd.f32 %v3874, %v4809
      %v4842 = vadd.f32 %v3875, %v4810
      %v4843 = vadd.f32 %v3876, %v4811
      %v4844 = vadd.f32 %v3877, %v4812
      %v4845 = vadd.f32 %v3878, %v4813
      %v4846 = vadd.f32 %v3879, %v4814
      %v4847 = vadd.f32 %v3880, %v4815
      %v4848 = vadd.f32 %v3881, %v4816
      %v4849 = vadd.f32 %v3882, %v4817
      %v4850 = vld [vmem:[%s7] sm:$0x1]
      %v4852 = vlaneseq
      %v4853 = vshrl.u32 %v4852, 7
      %v4854 = vsub.s32 0, %v4853
      %v4855 = vrot.slane %v4850, %v4854
      %v4857 = vmul.f32 %v4818, %v4855
      %v4858 = vmul.f32 %v4819, %v4855
      %v4859 = vmul.f32 %v4820, %v4855
      %v4860 = vmul.f32 %v4821, %v4855
      %v4861 = vmul.f32 %v4822, %v4855
      %v4862 = vmul.f32 %v4823, %v4855
      %v4863 = vmul.f32 %v4824, %v4855
      %v4864 = vmul.f32 %v4825, %v4855
      %v4865 = vmul.f32 %v4826, %v4855
      %v4866 = vmul.f32 %v4827, %v4855
      %v4867 = vmul.f32 %v4828, %v4855
      %v4868 = vmul.f32 %v4829, %v4855
      %v4869 = vmul.f32 %v4830, %v4855
      %v4870 = vmul.f32 %v4831, %v4855
      %v4871 = vmul.f32 %v4832, %v4855
      %v4872 = vmul.f32 %v4833, %v4855
      %v4873 = vmul.f32 %v4834, %v4855
      %v4874 = vmul.f32 %v4835, %v4855
      %v4875 = vmul.f32 %v4836, %v4855
      %v4876 = vmul.f32 %v4837, %v4855
      %v4877 = vmul.f32 %v4838, %v4855
      %v4878 = vmul.f32 %v4839, %v4855
      %v4879 = vmul.f32 %v4840, %v4855
      %v4880 = vmul.f32 %v4841, %v4855
      %v4881 = vmul.f32 %v4842, %v4855
      %v4882 = vmul.f32 %v4843, %v4855
      %v4883 = vmul.f32 %v4844, %v4855
      %v4884 = vmul.f32 %v4845, %v4855
      %v4885 = vmul.f32 %v4846, %v4855
      %v4886 = vmul.f32 %v4847, %v4855
      %v4887 = vmul.f32 %v4848, %v4855
      %v4888 = vmul.f32 %v4849, %v4855
      %v4889 = vld [vmem:[%s8] sm:$0x1]
      %v4891 = vlaneseq
      %v4892 = vshrl.u32 %v4891, 7
      %v4893 = vsub.s32 0, %v4892
      %v4894 = vrot.slane %v4889, %v4893
      %v4896 = vadd.f32 %v4857, %v4894
      %v4897 = vadd.f32 %v4858, %v4894
      %v4898 = vadd.f32 %v4859, %v4894
      %v4899 = vadd.f32 %v4860, %v4894
      %v4900 = vadd.f32 %v4861, %v4894
      %v4901 = vadd.f32 %v4862, %v4894
      %v4902 = vadd.f32 %v4863, %v4894
      %v4903 = vadd.f32 %v4864, %v4894
      %v4904 = vadd.f32 %v4865, %v4894
      %v4905 = vadd.f32 %v4866, %v4894
      %v4906 = vadd.f32 %v4867, %v4894
      %v4907 = vadd.f32 %v4868, %v4894
      %v4908 = vadd.f32 %v4869, %v4894
      %v4909 = vadd.f32 %v4870, %v4894
      %v4910 = vadd.f32 %v4871, %v4894
      %v4911 = vadd.f32 %v4872, %v4894
      %v4912 = vadd.f32 %v4873, %v4894
      %v4913 = vadd.f32 %v4874, %v4894
      %v4914 = vadd.f32 %v4875, %v4894
      %v4915 = vadd.f32 %v4876, %v4894
      %v4916 = vadd.f32 %v4877, %v4894
      %v4917 = vadd.f32 %v4878, %v4894
      %v4918 = vadd.f32 %v4879, %v4894
      %v4919 = vadd.f32 %v4880, %v4894
      %v4920 = vadd.f32 %v4881, %v4894
      %v4921 = vadd.f32 %v4882, %v4894
      %v4922 = vadd.f32 %v4883, %v4894
      %v4923 = vadd.f32 %v4884, %v4894
      %v4924 = vadd.f32 %v4885, %v4894
      %v4925 = vadd.f32 %v4886, %v4894
      %v4926 = vadd.f32 %v4887, %v4894
      %v4927 = vadd.f32 %v4888, %v4894
      %v4928 = vmax.f32 %v4896, 0.0
      %v4929 = vmax.f32 %v4897, 0.0
      %v4930 = vmax.f32 %v4898, 0.0
      %v4931 = vmax.f32 %v4899, 0.0
      %v4932 = vmax.f32 %v4900, 0.0
      %v4933 = vmax.f32 %v4901, 0.0
      %v4934 = vmax.f32 %v4902, 0.0
      %v4935 = vmax.f32 %v4903, 0.0
      %v4936 = vmax.f32 %v4904, 0.0
      %v4937 = vmax.f32 %v4905, 0.0
      %v4938 = vmax.f32 %v4906, 0.0
      %v4939 = vmax.f32 %v4907, 0.0
      %v4940 = vmax.f32 %v4908, 0.0
      %v4941 = vmax.f32 %v4909, 0.0
      %v4942 = vmax.f32 %v4910, 0.0
      %v4943 = vmax.f32 %v4911, 0.0
      %v4944 = vmax.f32 %v4912, 0.0
      %v4945 = vmax.f32 %v4913, 0.0
      %v4946 = vmax.f32 %v4914, 0.0
      %v4947 = vmax.f32 %v4915, 0.0
      %v4948 = vmax.f32 %v4916, 0.0
      %v4949 = vmax.f32 %v4917, 0.0
      %v4950 = vmax.f32 %v4918, 0.0
      %v4951 = vmax.f32 %v4919, 0.0
      %v4952 = vmax.f32 %v4920, 0.0
      %v4953 = vmax.f32 %v4921, 0.0
      %v4954 = vmax.f32 %v4922, 0.0
      %v4955 = vmax.f32 %v4923, 0.0
      %v4956 = vmax.f32 %v4924, 0.0
      %v4957 = vmax.f32 %v4925, 0.0
      %v4958 = vmax.f32 %v4926, 0.0
      %v4959 = vmax.f32 %v4927, 0.0
      %v4960 = vpack.c.bf16 %v4929, %v4928
      %v4961 = vpack.c.bf16 %v4931, %v4930
      %v4962 = vpack.c.bf16 %v4933, %v4932
      %v4963 = vpack.c.bf16 %v4935, %v4934
      %v4964 = vpack.c.bf16 %v4937, %v4936
      %v4965 = vpack.c.bf16 %v4939, %v4938
      %v4966 = vpack.c.bf16 %v4941, %v4940
      %v4967 = vpack.c.bf16 %v4943, %v4942
      %v4968 = vpack.c.bf16 %v4945, %v4944
      %v4969 = vpack.c.bf16 %v4947, %v4946
      %v4970 = vpack.c.bf16 %v4949, %v4948
      %v4971 = vpack.c.bf16 %v4951, %v4950
      %v4972 = vpack.c.bf16 %v4953, %v4952
      %v4973 = vpack.c.bf16 %v4955, %v4954
      %v4974 = vpack.c.bf16 %v4957, %v4956
      %v4975 = vpack.c.bf16 %v4959, %v4958
      %v4992 = vunpack.c.l.b16 %v4960
      %v4993 = vunpack.c.h.b16 %v4960
      %v4994 = vunpack.c.l.b16 %v4961
      %v4995 = vunpack.c.h.b16 %v4961
      %v4996 = vunpack.c.l.b16 %v4962
      %v4997 = vunpack.c.h.b16 %v4962
      %v4998 = vunpack.c.l.b16 %v4963
      %v4999 = vunpack.c.h.b16 %v4963
      %v5000 = vunpack.c.l.b16 %v4964
      %v5001 = vunpack.c.h.b16 %v4964
      %v5002 = vunpack.c.l.b16 %v4965
      %v5003 = vunpack.c.h.b16 %v4965
      %v5004 = vunpack.c.l.b16 %v4966
      %v5005 = vunpack.c.h.b16 %v4966
      %v5006 = vunpack.c.l.b16 %v4967
      %v5007 = vunpack.c.h.b16 %v4967
      %v5008 = vunpack.c.l.b16 %v4968
      %v5009 = vunpack.c.h.b16 %v4968
      %v5010 = vunpack.c.l.b16 %v4969
      %v5011 = vunpack.c.h.b16 %v4969
      %v5012 = vunpack.c.l.b16 %v4970
      %v5013 = vunpack.c.h.b16 %v4970
      %v5014 = vunpack.c.l.b16 %v4971
      %v5015 = vunpack.c.h.b16 %v4971
      %v5016 = vunpack.c.l.b16 %v4972
      %v5017 = vunpack.c.h.b16 %v4972
      %v5018 = vunpack.c.l.b16 %v4973
      %v5019 = vunpack.c.h.b16 %v4973
      %v5020 = vunpack.c.l.b16 %v4974
      %v5021 = vunpack.c.h.b16 %v4974
      %v5022 = vunpack.c.l.b16 %v4975
      %v5023 = vunpack.c.h.b16 %v4975
      %v5024 = vpack.c.b16 %v4992, %v4992
      %v5025 = vpack.c.b16 %v4993, %v4993
      %v5026 = vpack.c.b16 %v4994, %v4994
      %v5027 = vpack.c.b16 %v4995, %v4995
      %v5028 = vpack.c.b16 %v4996, %v4996
      %v5029 = vpack.c.b16 %v4997, %v4997
      %v5030 = vpack.c.b16 %v4998, %v4998
      %v5031 = vpack.c.b16 %v4999, %v4999
      %v5032 = vpack.c.b16 %v5000, %v5000
      %v5033 = vpack.c.b16 %v5001, %v5001
      %v5034 = vpack.c.b16 %v5002, %v5002
      %v5035 = vpack.c.b16 %v5003, %v5003
      %v5036 = vpack.c.b16 %v5004, %v5004
      %v5037 = vpack.c.b16 %v5005, %v5005
      %v5038 = vpack.c.b16 %v5006, %v5006
      %v5039 = vpack.c.b16 %v5007, %v5007
      %v5040 = vpack.c.b16 %v5008, %v5008
      %v5041 = vpack.c.b16 %v5009, %v5009
      %v5042 = vpack.c.b16 %v5010, %v5010
      %v5043 = vpack.c.b16 %v5011, %v5011
      %v5044 = vpack.c.b16 %v5012, %v5012
      %v5045 = vpack.c.b16 %v5013, %v5013
      %v5046 = vpack.c.b16 %v5014, %v5014
      %v5047 = vpack.c.b16 %v5015, %v5015
      %v5048 = vpack.c.b16 %v5016, %v5016
      %v5049 = vpack.c.b16 %v5017, %v5017
      %v5050 = vpack.c.b16 %v5018, %v5018
      %v5051 = vpack.c.b16 %v5019, %v5019
      %v5052 = vpack.c.b16 %v5020, %v5020
      %v5053 = vpack.c.b16 %v5021, %v5021
      %v5054 = vpack.c.b16 %v5022, %v5022
      %v5055 = vpack.c.b16 %v5023, %v5023
      %5088 = vst.msk [vmem:[%s662] sm:$0xf] %vm1159, %v5024
      %5089 = vst.msk [vmem:[%s662 + $0x4] sm:$0xf] %vm1159, %v5025
      %5090 = vst.msk [vmem:[%s662 + $0x8] sm:$0xf] %vm1159, %v5026
      %5091 = vst.msk [vmem:[%s662 + $0xc] sm:$0xf] %vm1159, %v5027
      %5092 = vst.msk [vmem:[%s662 + $0x10] sm:$0xf] %vm1159, %v5028
      %5093 = vst.msk [vmem:[%s662 + $0x14] sm:$0xf] %vm1159, %v5029
      %5094 = vst.msk [vmem:[%s662 + $0x18] sm:$0xf] %vm1159, %v5030
      %5095 = vst.msk [vmem:[%s662 + $0x1c] sm:$0xf] %vm1159, %v5031
      %5096 = vst.msk [vmem:[%s662 + $0x20] sm:$0xf] %vm1159, %v5032
      %5097 = vst.msk [vmem:[%s662 + $0x24] sm:$0xf] %vm1159, %v5033
      %5098 = vst.msk [vmem:[%s662 + $0x28] sm:$0xf] %vm1159, %v5034
      %5099 = vst.msk [vmem:[%s662 + $0x2c] sm:$0xf] %vm1159, %v5035
      %5100 = vst.msk [vmem:[%s662 + $0x30] sm:$0xf] %vm1159, %v5036
      %5101 = vst.msk [vmem:[%s662 + $0x34] sm:$0xf] %vm1159, %v5037
      %5102 = vst.msk [vmem:[%s662 + $0x38] sm:$0xf] %vm1159, %v5038
      %5103 = vst.msk [vmem:[%s662 + $0x3c] sm:$0xf] %vm1159, %v5039
      %5104 = vst.msk [vmem:[%s662 + $0x40] sm:$0xf] %vm1159, %v5040
      %5105 = vst.msk [vmem:[%s662 + $0x44] sm:$0xf] %vm1159, %v5041
      %5106 = vst.msk [vmem:[%s662 + $0x48] sm:$0xf] %vm1159, %v5042
      %5107 = vst.msk [vmem:[%s662 + $0x4c] sm:$0xf] %vm1159, %v5043
      %5108 = vst.msk [vmem:[%s662 + $0x50] sm:$0xf] %vm1159, %v5044
      %5109 = vst.msk [vmem:[%s662 + $0x54] sm:$0xf] %vm1159, %v5045
      %5110 = vst.msk [vmem:[%s662 + $0x58] sm:$0xf] %vm1159, %v5046
      %5111 = vst.msk [vmem:[%s662 + $0x5c] sm:$0xf] %vm1159, %v5047
      %5112 = vst.msk [vmem:[%s662 + $0x60] sm:$0xf] %vm1159, %v5048
      %5113 = vst.msk [vmem:[%s662 + $0x64] sm:$0xf] %vm1159, %v5049
      %5114 = vst.msk [vmem:[%s662 + $0x68] sm:$0xf] %vm1159, %v5050
      %5115 = vst.msk [vmem:[%s662 + $0x6c] sm:$0xf] %vm1159, %v5051
      %5116 = vst.msk [vmem:[%s662 + $0x70] sm:$0xf] %vm1159, %v5052
      %5117 = vst.msk [vmem:[%s662 + $0x74] sm:$0xf] %vm1159, %v5053
      %5118 = vst.msk [vmem:[%s662 + $0x78] sm:$0xf] %vm1159, %v5054
      %5119 = vst.msk [vmem:[%s662 + $0x7c] sm:$0xf] %vm1159, %v5055
      %s5120 = smul.u32 16, %s25
      %p5121 = scmp.lt.s32.totalorder %s24, 1
      %s5122 = scalar_select %p5121, %s24, 1
      %p5123 = scmp.lt.s32.totalorder %s5120, 15
      %s5124 = scalar_select %p5123, %s5120, 15
      %s5125 = smul.addr %s5124, 2
      %s5126 = smul.addr %s5122, 32
      %s5127 = sadd.s32 %s5125, %s5126
      %s5128 = smul.addr %s5127, 4
      %s5129 = scalar_lea.vmem %s9, %s5128
      // Predicated region
      $region77: #{decoder_block_forward.4} parent=55 // pred_check
        %p5130 = pneg %p315
      $region78: #{decoder_block_forward.4} parent=55 // pred_check_branch
        %5132 = sbr.rel (%p5130) target = $region80
      $region79: #{decoder_block_forward.4} parent=55 // pred_region
        %s5133 = smul.u32 16, %s25
      $region80: #{decoder_block_forward.4} parent=55 // pred_fallthru
        _
    $region56: #{decoder_block_forward.4} parent=5 // pred_fallthru
      _
    %p5134 = scmp.le.s32.totalorder 2, %s15
    // Predicated region
    $region81: #{decoder_block_forward.4} parent=5 // pred_check
      %p5135 = pneg %p5134
    $region82: #{decoder_block_forward.4} parent=5 // pred_check_branch
      %5137 = sbr.rel (%p5135) target = $region84
    $region83: #{decoder_block_forward.4} parent=5 // pred_region
      %s5138 = ssub.s32 %s15, 2
      // Predicated region
      $region85: #{decoder_block_forward.4} parent=83 // pred_check
        %p5139 = pneg %p321
      $region86: #{decoder_block_forward.4} parent=83 // pred_check_branch
        %5141 = sbr.rel (%p5139) target = $region88
      $region87: #{decoder_block_forward.4} parent=83 // pred_region
        %s5142 = smul.u32 16, %s27
        %p5143 = scmp.lt.s32.totalorder %s26, 1
        %s5144 = scalar_select %p5143, %s26, 1
        %p5145 = scmp.lt.s32.totalorder %s5142, 15
        %s5146 = scalar_select %p5145, %s5142, 15
        %s5147 = smul.addr %s5146, 2
        %s5148 = smul.addr %s5144, 32
        %s5149 = sadd.s32 %s5147, %s5148
        %s5150 = smul.addr %s5149, 4
        %s5151 = scalar_lea.vmem %s9, %s5150
      $region88: #{decoder_block_forward.4} parent=83 // pred_fallthru
        _
    $region84: #{decoder_block_forward.4} parent=5 // pred_fallthru
      _
  $region6: #{decoder_block_forward.4} parent=0 // loop_footer
    %s19 = sadd.s32 1, %s15
  $region7: #{decoder_block_forward.4} parent=0 // loop_footer_branch
    %14 = sbr.rel target = $region3
  $region8: #{decoder_block_forward.4} parent=0 // loop_exit
    _

</llo_original>
